<compile_context>
chip_gen: v7x
topology: tpu7x:2x2x1
jax: 0.10.0
libtpu: 0.0.40
codegen_flags: <defaults>
</compile_context>

<pallas_src>
import functools
import math

import jax
import jax.numpy as jnp
from jax import lax
from jax.experimental import pallas as pl
from jax.experimental.pallas import tpu as pltpu

NUM_LAYERS = 2  # matches the module default


def _round_up(n, m):
    return ((n + m - 1) // m) * m


def lstm_unit_kernel(x_ref, h0_ref, c0_ref,
                     we_ref, be_ref,
                     wih0_ref, whh0_ref, b0_ref,
                     wih1_ref, whh1_ref, b1_ref,
                     wd_ref, bd_ref,
                     y_ref, hout_ref, cout_ref,
                     xpart_buf, seq_buf,
                     *, L, Bb, Hp):
    """Forward pass for one batch block: encoder matmul, 2-layer LSTM, decoder matmul."""
    Fp = x_ref.shape[-1]
    H4 = 4 * Hp

    # ---- Encoder + layer-0 input projection, hoisted out of the recurrence ----
    # enc:    (L*Bb, Fp) @ (Fp, Ip) + b_enc
    # xpart0: enc @ W_ih0 + b0   -> (L, Bb, 4Hp)  (one MXU-efficient matmul)
    x2d = x_ref[...].reshape(L * Bb, Fp)
    enc = jnp.dot(x2d, we_ref[...], preferred_element_type=jnp.float32) + be_ref[...]
    xpart_buf[...] = (jnp.dot(enc, wih0_ref[...], preferred_element_type=jnp.float32)
                      + b0_ref[...]).reshape(L, Bb, H4)

    def make_step(whh_ref):
        def step(t, carry):
            h_prev, c_prev = carry
            # Only the recurrent matmul stays on the serial critical path.
            gates = xpart_buf[t] + jnp.dot(h_prev, whh_ref[...],
                                           preferred_element_type=jnp.float32)
            i_g = jax.nn.sigmoid(gates[:, 0 * Hp:1 * Hp])
            f_g = jax.nn.sigmoid(gates[:, 1 * Hp:2 * Hp])
            g_g = jnp.tanh(gates[:, 2 * Hp:3 * Hp])
            o_g = jax.nn.sigmoid(gates[:, 3 * Hp:4 * Hp])
            c_new = f_g * c_prev + i_g * g_g
            h_new = o_g * jnp.tanh(c_new)
            seq_buf[t] = h_new
            return (h_new, c_new)
        return step

    # ---- Layer 0 recurrence (fully unrolled; L is static) ----
    h_fin, c_fin = lax.fori_loop(0, L, make_step(whh0_ref),
                                 (h0_ref[0], c0_ref[0]), unroll=True)
    hout_ref[0] = h_fin
    cout_ref[0] = c_fin

    # ---- Layer 1 input projection (reuses xpart_buf; layer-0 output fully written) ----
    seq2d = seq_buf[...].reshape(L * Bb, Hp)
    xpart_buf[...] = (jnp.dot(seq2d, wih1_ref[...], preferred_element_type=jnp.float32)
                      + b1_ref[...]).reshape(L, Bb, H4)

    # ---- Layer 1 recurrence (overwrites seq_buf in place; step only reads xpart_buf) ----
    h_fin, c_fin = lax.fori_loop(0, L, make_step(whh1_ref),
                                 (h0_ref[1], c0_ref[1]), unroll=True)
    hout_ref[1] = h_fin
    cout_ref[1] = c_fin

    # ---- Decoder: (L*Bb, Hp) @ (Hp, Fp) + b -> lane-dense (Fp = multiple of 128) ----
    y = jnp.dot(seq_buf[...].reshape(L * Bb, Hp), wd_ref[...],
                preferred_element_type=jnp.float32) + bd_ref[...]
    y_ref[...] = y.reshape(L, Bb, Fp)


def _pad_to(a, shape):
    pads = [(0, s - d) for d, s in zip(a.shape, shape)]
    return jnp.pad(a.astype(jnp.float32), pads)


def _pad_gates(w, H, Hp):
    """Pad a (..., 4H) LSTM weight/bias to (..., 4Hp), per gate, preserving [i,f,g,o]."""
    parts = [w[..., k * H:(k + 1) * H] for k in range(4)]
    parts = [jnp.pad(p.astype(jnp.float32),
                     [(0, 0)] * (w.ndim - 1) + [(0, Hp - H)]) for p in parts]
    return jnp.concatenate(parts, axis=-1)


def lstm_unit_forward(x, h0, c0, params, *, batch_block=8):
    L, B, F = x.shape
    NL, _, H = h0.shape
    assert NL == NUM_LAYERS
    I = params["W_enc"].shape[1]

    # ---- Padded dims: sublane multiple for batch, 128 lanes for feature dims ----
    Fp = _round_up(F, 128)
    Ip = _round_up(I, 128)
    Hp = _round_up(H, 128)
    Bb = _round_up(min(batch_block, _round_up(B, 8)), 8)
    Bp = _round_up(_round_up(B, 8), Bb)
    nb = Bp // Bb          # grid over batch blocks (parallel; megacore on v7x)

    # ---- Pad inputs / weights in the wrapper (padded rows/cols are exact zeros) ----
    xp = _pad_to(x, (L, Bp, Fp))
    h0p = _pad_to(h0, (NL, Bp, Hp))
    c0p = _pad_to(c0, (NL, Bp, Hp))

    We = _pad_to(params["W_enc"], (Fp, Ip))
    be = _pad_to(params["b_enc"], (1, Ip))
    Wd = _pad_to(params["W_dec"], (Hp, Fp))
    bd = _pad_to(params["b_dec"], (1, Fp))

    Wih0 = _pad_to(_pad_gates(params["W_ih0"], H, Hp), (Ip, 4 * Hp))
    Whh0 = _pad_to(_pad_gates(params["W_hh0"], H, Hp), (Hp, 4 * Hp))
    b0 = _pad_gates(params["b_l0"], H, Hp)
    Wih1 = _pad_to(_pad_gates(params["W_ih1"], H, Hp), (Hp, 4 * Hp))
    Whh1 = _pad_to(_pad_gates(params["W_hh1"], H, Hp), (Hp, 4 * Hp))
    b1 = _pad_gates(params["b_l1"], H, Hp)

    kernel = functools.partial(lstm_unit_kernel, L=L, Bb=Bb, Hp=Hp)

    inputs = (xp, h0p, c0p, We, be, Wih0, Whh0, b0, Wih1, Whh1, b1, Wd, bd)

    def resident(shape):
        n = len(shape)
        return pl.BlockSpec(shape, lambda i, _n=n: (0,) * _n)

    in_specs = [
        pl.BlockSpec((L, Bb, Fp), lambda i: (0, i, 0)),    # x (batch-blocked)
        pl.BlockSpec((NL, Bb, Hp), lambda i: (0, i, 0)),   # h0
        pl.BlockSpec((NL, Bb, Hp), lambda i: (0, i, 0)),   # c0
        resident((Fp, Ip)), resident((1, Ip)),             # encoder
        resident((Ip, 4 * Hp)), resident((Hp, 4 * Hp)), resident((1, 4 * Hp)),  # layer 0
        resident((Hp, 4 * Hp)), resident((Hp, 4 * Hp)), resident((1, 4 * Hp)),  # layer 1
        resident((Hp, Fp)), resident((1, Fp)),             # decoder
    ]

    out_shape = (
        jax.ShapeDtypeStruct((L, Bp, Fp), jnp.float32),    # output sequence (lane-dense)
        jax.ShapeDtypeStruct((NL, Bp, Hp), jnp.float32),   # cur_hidden
        jax.ShapeDtypeStruct((NL, Bp, Hp), jnp.float32),   # cur_cell
    )
    out_specs = (
        pl.BlockSpec((L, Bb, Fp), lambda i: (0, i, 0)),
        pl.BlockSpec((NL, Bb, Hp), lambda i: (0, i, 0)),
        pl.BlockSpec((NL, Bb, Hp), lambda i: (0, i, 0)),
    )

    scratch_shapes = [
        pltpu.VMEM((L, Bb, 4 * Hp), jnp.float32),   # hoisted x-projection (reused per layer)
        pltpu.VMEM((L, Bb, Hp), jnp.float32),       # per-layer output buffer (reused)
    ]

    # ---- Explicit VMEM budget (double-buffered tensors + scratch, 1.5x headroom) ----
    f32 = 4
    nbytes = lambda s: int(math.prod(s)) * f32
    tensor_bytes = (
        nbytes((L, Bb, Fp)) + 2 * nbytes((NL, Bb, Hp)) +                 # x, h0, c0
        nbytes((Fp, Ip)) + nbytes((1, Ip)) +                             # encoder
        2 * (nbytes((Ip, 4 * Hp)) + nbytes((Hp, 4 * Hp)) + nbytes((1, 4 * Hp))) +  # 2 layers
        nbytes((Hp, Fp)) + nbytes((1, Fp)) +                             # decoder
        nbytes((L, Bb, Fp)) + 2 * nbytes((NL, Bb, Hp))                   # outputs
    )
    scratch_bytes = nbytes((L, Bb, 4 * Hp)) + nbytes((L, Bb, Hp))
    vmem_limit = min(int(1.5 * (2 * tensor_bytes + scratch_bytes)) + (16 << 20), 120 << 20)

    # ---- Advisory cost estimate for the XLA scheduler ----
    flops = 2 * L * B * (F * I                       # encoder
                         + (I + H) * 4 * H           # layer 0
                         + (H + H) * 4 * H           # layer 1
                         + H * F)                    # decoder
    transcendentals = 5 * L * B * H * NUM_LAYERS     # 3 sigmoid + 2 tanh per cell
    bytes_accessed = sum(int(a.size) * f32 for a in inputs) + sum(
        int(math.prod(s.shape)) * f32 for s in out_shape)

    y_p, h_p, c_p = pl.pallas_call(
        kernel,
        out_shape=out_shape,
        grid=(nb,),
        in_specs=in_specs,
        out_specs=out_specs,
        scratch_shapes=scratch_shapes,
        compiler_params=pltpu.CompilerParams(
            dimension_semantics=("parallel",),
            vmem_limit_bytes=vmem_limit,
        ),
        cost_estimate=pl.CostEstimate(
            flops=flops,
            transcendentals=transcendentals,
            bytes_accessed=bytes_accessed,
        ),
    )(*inputs)

    # Strip padding.
    return y_p[:, :B, :F], h_p[:, :B, :H], c_p[:, :B, :H]


def lstm_unit_reference(x, h0, c0, p):
    """Pure-JAX reference replicating PyTorch semantics."""
    L, B, F = x.shape
    H = h0.shape[-1]
    out = x @ p["W_enc"] + p["b_enc"]
    hs, cs = [], []
    for l in range(NUM_LAYERS):
        wih, whh, b = p[f"W_ih{l}"], p[f"W_hh{l}"], p[f"b_l{l}"]
        h, c = h0[l], c0[l]
        ys = []
        for t in range(L):
            gates = out[t] @ wih + h @ whh + b
            i = jax.nn.sigmoid(gates[:, :H])
            f = jax.nn.sigmoid(gates[:, H:2 * H])
            g = jnp.tanh(gates[:, 2 * H:3 * H])
            o = jax.nn.sigmoid(gates[:, 3 * H:4 * H])
            c = f * c + i * g
            h = o * jnp.tanh(c)
            ys.append(h)
        out = jnp.stack(ys)
        hs.append(h)
        cs.append(c)
    y = out @ p["W_dec"] + p["b_dec"]
    return y, jnp.stack(hs), jnp.stack(cs)


def init_params(key, F, I, H):
    """Deterministic synthetic parameters with PyTorch-style uniform bounds."""
    ks = jax.random.split(key, 16)
    u = lambda k, shape, bound: jax.random.uniform(k, shape, jnp.float32, -bound, bound)
    be = 1.0 / jnp.sqrt(F)   # encoder Linear fan_in = F
    bl = 1.0 / jnp.sqrt(H)   # LSTM bound = 1/sqrt(hidden_size)
    bd = 1.0 / jnp.sqrt(H)   # decoder Linear fan_in = H
    p = {
        "W_enc": u(ks[0], (F, I), be),
        "b_enc": u(ks[1], (1, I), be),
        "W_dec": u(ks[2], (H, F), bd),
        "b_dec": u(ks[3], (1, F), bd),
    }
    in_sizes = [I, H]
    for l in range(NUM_LAYERS):
        base = 4 + 4 * l
        p[f"W_ih{l}"] = u(ks[base + 0], (in_sizes[l], 4 * H), bl)
        p[f"W_hh{l}"] = u(ks[base + 1], (H, 4 * H), bl)
        b_ih = u(ks[base + 2], (1, 4 * H), bl)
        b_hh = u(ks[base + 3], (1, 4 * H), bl)
        p[f"b_l{l}"] = b_ih + b_hh
    return p


if __name__ == "__main__":
    L, B, F = 8, 4, 16        # seq len, batch, features
    I, H = 32, 32             # input_size, hidden_size

    key = jax.random.PRNGKey(0)
    kx, kh, kc, kp = jax.random.split(key, 4)
    x = jax.random.normal(kx, (L, B, F), jnp.float32)
    h0 = jax.random.normal(kh, (NUM_LAYERS, B, H), jnp.float32)
    c0 = jax.random.normal(kc, (NUM_LAYERS, B, H), jnp.float32)
    params = init_params(kp, F, I, H)

    y, h_out, c_out = jax.block_until_ready(lstm_unit_forward(x, h0, c0, params))

    y_ref, h_ref, c_ref = lstm_unit_reference(x, h0, c0, params)
    assert bool(jnp.allclose(y, y_ref, atol=1e-4, rtol=1e-4))
    assert bool(jnp.allclose(h_out, h_ref, atol=1e-4, rtol=1e-4))
    assert bool(jnp.allclose(c_out, c_ref, atol=1e-4, rtol=1e-4))

    print("KERNEL_OK")
</pallas_src>

<mosaic_0001>
module attributes {stable_mosaic.version = 11 : i64} {
  func.func @lstm_unit_kernel(%arg0: i32, %arg1: memref<8x8x128xf32, #tpu.memory_space<vmem>>, %arg2: memref<2x8x128xf32, #tpu.memory_space<vmem>>, %arg3: memref<2x8x128xf32, #tpu.memory_space<vmem>>, %arg4: memref<128x128xf32, #tpu.memory_space<vmem>>, %arg5: memref<1x128xf32, #tpu.memory_space<vmem>>, %arg6: memref<128x512xf32, #tpu.memory_space<vmem>>, %arg7: memref<128x512xf32, #tpu.memory_space<vmem>>, %arg8: memref<1x512xf32, #tpu.memory_space<vmem>>, %arg9: memref<128x512xf32, #tpu.memory_space<vmem>>, %arg10: memref<128x512xf32, #tpu.memory_space<vmem>>, %arg11: memref<1x512xf32, #tpu.memory_space<vmem>>, %arg12: memref<128x128xf32, #tpu.memory_space<vmem>>, %arg13: memref<1x128xf32, #tpu.memory_space<vmem>>, %arg14: memref<8x8x128xf32, #tpu.memory_space<vmem>>, %arg15: memref<2x8x128xf32, #tpu.memory_space<vmem>>, %arg16: memref<2x8x128xf32, #tpu.memory_space<vmem>>, %arg17: memref<8x8x512xf32, #tpu.memory_space<vmem>>, %arg18: memref<8x8x128xf32, #tpu.memory_space<vmem>>) attributes {dimension_semantics = [#tpu.dimension_semantics<parallel>], iteration_bounds = array<i64: 1>, scalar_prefetch = 0 : i64, scratch_operands = 2 : i64, tpu.core_type = #tpu.core_type<tc>, window_params = [{transform_indices = @transform_0, window_bounds = array<i64: 8, 8, 128>}, {transform_indices = @transform_1, window_bounds = array<i64: 2, 8, 128>}, {transform_indices = @transform_2, window_bounds = array<i64: 2, 8, 128>}, {pipeline_mode = #tpu.pipeline_mode<synchronous>, transform_indices = @transform_3, window_bounds = array<i64: 128, 128>}, {pipeline_mode = #tpu.pipeline_mode<synchronous>, transform_indices = @transform_4, window_bounds = array<i64: 1, 128>}, {pipeline_mode = #tpu.pipeline_mode<synchronous>, transform_indices = @transform_5, window_bounds = array<i64: 128, 512>}, {pipeline_mode = #tpu.pipeline_mode<synchronous>, transform_indices = @transform_6, window_bounds = array<i64: 128, 512>}, {pipeline_mode = #tpu.pipeline_mode<synchronous>, transform_indices = @transform_7, window_bounds = array<i64: 1, 512>}, {pipeline_mode = #tpu.pipeline_mode<synchronous>, transform_indices = @transform_8, window_bounds = array<i64: 128, 512>}, {pipeline_mode = #tpu.pipeline_mode<synchronous>, transform_indices = @transform_9, window_bounds = array<i64: 128, 512>}, {pipeline_mode = #tpu.pipeline_mode<synchronous>, transform_indices = @transform_10, window_bounds = array<i64: 1, 512>}, {pipeline_mode = #tpu.pipeline_mode<synchronous>, transform_indices = @transform_11, window_bounds = array<i64: 128, 128>}, {pipeline_mode = #tpu.pipeline_mode<synchronous>, transform_indices = @transform_12, window_bounds = array<i64: 1, 128>}, {transform_indices = @transform_13, window_bounds = array<i64: 8, 8, 128>}, {transform_indices = @transform_14, window_bounds = array<i64: 2, 8, 128>}, {transform_indices = @transform_15, window_bounds = array<i64: 2, 8, 128>}]} {
    %c0 = arith.constant 0 : index
    %c0_0 = arith.constant 0 : index
    %c0_1 = arith.constant 0 : index
    %0 = vector.load %arg1[%c0, %c0_0, %c0_1] : memref<8x8x128xf32, #tpu.memory_space<vmem>>, vector<8x8x128xf32>
    %1 = vector.shape_cast %0 : vector<8x8x128xf32> to vector<64x128xf32>
    %c0_2 = arith.constant 0 : index
    %c0_3 = arith.constant 0 : index
    %2 = vector.load %arg4[%c0_2, %c0_3] : memref<128x128xf32, #tpu.memory_space<vmem>>, vector<128x128xf32>
    %cst = arith.constant dense<0.000000e+00> : vector<64x128xf32>
    %3 = tpu.matmul %1, %2, %cst {dimension_numbers = #tpu.dot_dimension_numbers<[1], [0], [0], [1], [0, 0, 1, 1], [], []>} : vector<64x128xf32>, vector<128x128xf32>, vector<64x128xf32> -> vector<64x128xf32>
    %c0_4 = arith.constant 0 : index
    %c0_5 = arith.constant 0 : index
    %4 = vector.load %arg5[%c0_4, %c0_5] : memref<1x128xf32, #tpu.memory_space<vmem>>, vector<1x128xf32>
    %5 = vector.broadcast %4 : vector<1x128xf32> to vector<64x128xf32>
    %6 = arith.addf %3, %5 : vector<64x128xf32>
    %c0_6 = arith.constant 0 : index
    %c0_7 = arith.constant 0 : index
    %7 = vector.load %arg6[%c0_6, %c0_7] : memref<128x512xf32, #tpu.memory_space<vmem>>, vector<128x512xf32>
    %cst_8 = arith.constant dense<0.000000e+00> : vector<64x512xf32>
    %8 = tpu.matmul %6, %7, %cst_8 {dimension_numbers = #tpu.dot_dimension_numbers<[1], [0], [0], [1], [0, 0, 1, 1], [], []>} : vector<64x128xf32>, vector<128x512xf32>, vector<64x512xf32> -> vector<64x512xf32>
    %c0_9 = arith.constant 0 : index
    %c0_10 = arith.constant 0 : index
    %9 = vector.load %arg8[%c0_9, %c0_10] : memref<1x512xf32, #tpu.memory_space<vmem>>, vector<1x512xf32>
    %10 = vector.broadcast %9 : vector<1x512xf32> to vector<64x512xf32>
    %11 = arith.addf %8, %10 : vector<64x512xf32>
    %12 = vector.shape_cast %11 : vector<64x512xf32> to vector<8x8x512xf32>
    %c0_11 = arith.constant 0 : index
    %c0_12 = arith.constant 0 : index
    %c0_13 = arith.constant 0 : index
    %13 = vector.load %arg17[%c0_11, %c0_12, %c0_13] : memref<8x8x512xf32, #tpu.memory_space<vmem>>, vector<8x8x512xf32>
    tpu.vector_store %arg17[%c0_11, %c0_12, %c0_13], %12 {strides = array<i32>} : memref<8x8x512xf32, #tpu.memory_space<vmem>>, vector<8x8x512xf32>,
    %c0_14 = arith.constant 0 : index
    %c0_15 = arith.constant 0 : index
    %c0_16 = arith.constant 0 : index
    %14 = vector.load %arg2[%c0_14, %c0_15, %c0_16] : memref<2x8x128xf32, #tpu.memory_space<vmem>>, vector<1x8x128xf32>
    %15 = vector.shape_cast %14 : vector<1x8x128xf32> to vector<8x128xf32>
    %c0_17 = arith.constant 0 : index
    %c0_18 = arith.constant 0 : index
    %c0_19 = arith.constant 0 : index
    %16 = vector.load %arg3[%c0_17, %c0_18, %c0_19] : memref<2x8x128xf32, #tpu.memory_space<vmem>>, vector<1x8x128xf32>
    %17 = vector.shape_cast %16 : vector<1x8x128xf32> to vector<8x128xf32>
    %c0_i32 = arith.constant 0 : i32
    %18 = arith.index_cast %c0_i32 : i32 to index
    %c0_20 = arith.constant 0 : index
    %c0_21 = arith.constant 0 : index
    %19 = vector.load %arg17[%18, %c0_20, %c0_21] : memref<8x8x512xf32, #tpu.memory_space<vmem>>, vector<1x8x512xf32>
    %20 = vector.shape_cast %19 : vector<1x8x512xf32> to vector<8x512xf32>
    %c0_22 = arith.constant 0 : index
    %c0_23 = arith.constant 0 : index
    %21 = vector.load %arg7[%c0_22, %c0_23] : memref<128x512xf32, #tpu.memory_space<vmem>>, vector<128x512xf32>
    %cst_24 = arith.constant dense<0.000000e+00> : vector<8x512xf32>
    %22 = tpu.matmul %15, %21, %cst_24 {dimension_numbers = #tpu.dot_dimension_numbers<[1], [0], [0], [1], [0, 0, 1, 1], [], []>} : vector<8x128xf32>, vector<128x512xf32>, vector<8x512xf32> -> vector<8x512xf32>
    %23 = arith.addf %20, %22 : vector<8x512xf32>
    %24 = vector.extract_strided_slice %23 {offsets = [0, 0], sizes = [8, 128], strides = [1, 1]} : vector<8x512xf32> to vector<8x128xf32>
    %25 = arith.negf %24 : vector<8x128xf32>
    %26 = math.exp %25 : vector<8x128xf32>
    %cst_25 = arith.constant 1.000000e+00 : f32
    %27 = vector.broadcast %cst_25 : f32 to vector<8x128xf32>
    %28 = arith.addf %27, %26 : vector<8x128xf32>
    %29 = arith.divf %27, %28 : vector<8x128xf32>
    %30 = vector.extract_strided_slice %23 {offsets = [0, 128], sizes = [8, 128], strides = [1, 1]} : vector<8x512xf32> to vector<8x128xf32>
    %31 = arith.negf %30 : vector<8x128xf32>
    %32 = math.exp %31 : vector<8x128xf32>
    %cst_26 = arith.constant 1.000000e+00 : f32
    %33 = vector.broadcast %cst_26 : f32 to vector<8x128xf32>
    %34 = arith.addf %33, %32 : vector<8x128xf32>
    %35 = arith.divf %33, %34 : vector<8x128xf32>
    %36 = vector.extract_strided_slice %23 {offsets = [0, 256], sizes = [8, 128], strides = [1, 1]} : vector<8x512xf32> to vector<8x128xf32>
    %37 = math.tanh %36 : vector<8x128xf32>
    %38 = vector.extract_strided_slice %23 {offsets = [0, 384], sizes = [8, 128], strides = [1, 1]} : vector<8x512xf32> to vector<8x128xf32>
    %39 = arith.negf %38 : vector<8x128xf32>
    %40 = math.exp %39 : vector<8x128xf32>
    %cst_27 = arith.constant 1.000000e+00 : f32
    %41 = vector.broadcast %cst_27 : f32 to vector<8x128xf32>
    %42 = arith.addf %41, %40 : vector<8x128xf32>
    %43 = arith.divf %41, %42 : vector<8x128xf32>
    %44 = arith.mulf %35, %17 : vector<8x128xf32>
    %45 = arith.mulf %29, %37 : vector<8x128xf32>
    %46 = arith.addf %44, %45 : vector<8x128xf32>
    %47 = math.tanh %46 : vector<8x128xf32>
    %48 = arith.mulf %43, %47 : vector<8x128xf32>
    %49 = arith.index_cast %c0_i32 : i32 to index
    %c0_28 = arith.constant 0 : index
    %c0_29 = arith.constant 0 : index
    %50 = vector.load %arg18[%49, %c0_28, %c0_29] : memref<8x8x128xf32, #tpu.memory_space<vmem>>, vector<1x8x128xf32>
    %51 = vector.shape_cast %50 : vector<1x8x128xf32> to vector<8x128xf32>
    %52 = vector.shape_cast %48 : vector<8x128xf32> to vector<1x8x128xf32>
    tpu.vector_store %arg18[%49, %c0_28, %c0_29], %52 {strides = array<i32>} : memref<8x8x128xf32, #tpu.memory_space<vmem>>, vector<1x8x128xf32>,
    %c1_i32 = arith.constant 1 : i32
    %53 = arith.index_cast %c1_i32 : i32 to index
    %c0_30 = arith.constant 0 : index
    %c0_31 = arith.constant 0 : index
    %54 = vector.load %arg17[%53, %c0_30, %c0_31] : memref<8x8x512xf32, #tpu.memory_space<vmem>>, vector<1x8x512xf32>
    %55 = vector.shape_cast %54 : vector<1x8x512xf32> to vector<8x512xf32>
    %c0_32 = arith.constant 0 : index
    %c0_33 = arith.constant 0 : index
    %56 = vector.load %arg7[%c0_32, %c0_33] : memref<128x512xf32, #tpu.memory_space<vmem>>, vector<128x512xf32>
    %cst_34 = arith.constant dense<0.000000e+00> : vector<8x512xf32>
    %57 = tpu.matmul %48, %56, %cst_34 {dimension_numbers = #tpu.dot_dimension_numbers<[1], [0], [0], [1], [0, 0, 1, 1], [], []>} : vector<8x128xf32>, vector<128x512xf32>, vector<8x512xf32> -> vector<8x512xf32>
    %58 = arith.addf %55, %57 : vector<8x512xf32>
    %59 = vector.extract_strided_slice %58 {offsets = [0, 0], sizes = [8, 128], strides = [1, 1]} : vector<8x512xf32> to vector<8x128xf32>
    %60 = arith.negf %59 : vector<8x128xf32>
    %61 = math.exp %60 : vector<8x128xf32>
    %cst_35 = arith.constant 1.000000e+00 : f32
    %62 = vector.broadcast %cst_35 : f32 to vector<8x128xf32>
    %63 = arith.addf %62, %61 : vector<8x128xf32>
    %64 = arith.divf %62, %63 : vector<8x128xf32>
    %65 = vector.extract_strided_slice %58 {offsets = [0, 128], sizes = [8, 128], strides = [1, 1]} : vector<8x512xf32> to vector<8x128xf32>
    %66 = arith.negf %65 : vector<8x128xf32>
    %67 = math.exp %66 : vector<8x128xf32>
    %cst_36 = arith.constant 1.000000e+00 : f32
    %68 = vector.broadcast %cst_36 : f32 to vector<8x128xf32>
    %69 = arith.addf %68, %67 : vector<8x128xf32>
    %70 = arith.divf %68, %69 : vector<8x128xf32>
    %71 = vector.extract_strided_slice %58 {offsets = [0, 256], sizes = [8, 128], strides = [1, 1]} : vector<8x512xf32> to vector<8x128xf32>
    %72 = math.tanh %71 : vector<8x128xf32>
    %73 = vector.extract_strided_slice %58 {offsets = [0, 384], sizes = [8, 128], strides = [1, 1]} : vector<8x512xf32> to vector<8x128xf32>
    %74 = arith.negf %73 : vector<8x128xf32>
    %75 = math.exp %74 : vector<8x128xf32>
    %cst_37 = arith.constant 1.000000e+00 : f32
    %76 = vector.broadcast %cst_37 : f32 to vector<8x128xf32>
    %77 = arith.addf %76, %75 : vector<8x128xf32>
    %78 = arith.divf %76, %77 : vector<8x128xf32>
    %79 = arith.mulf %70, %46 : vector<8x128xf32>
    %80 = arith.mulf %64, %72 : vector<8x128xf32>
    %81 = arith.addf %79, %80 : vector<8x128xf32>
    %82 = math.tanh %81 : vector<8x128xf32>
    %83 = arith.mulf %78, %82 : vector<8x128xf32>
    %84 = arith.index_cast %c1_i32 : i32 to index
    %c0_38 = arith.constant 0 : index
    %c0_39 = arith.constant 0 : index
    %85 = vector.load %arg18[%84, %c0_38, %c0_39] : memref<8x8x128xf32, #tpu.memory_space<vmem>>, vector<1x8x128xf32>
    %86 = vector.shape_cast %85 : vector<1x8x128xf32> to vector<8x128xf32>
    %87 = vector.shape_cast %83 : vector<8x128xf32> to vector<1x8x128xf32>
    tpu.vector_store %arg18[%84, %c0_38, %c0_39], %87 {strides = array<i32>} : memref<8x8x128xf32, #tpu.memory_space<vmem>>, vector<1x8x128xf32>,
    %c2_i32 = arith.constant 2 : i32
    %88 = arith.index_cast %c2_i32 : i32 to index
    %c0_40 = arith.constant 0 : index
    %c0_41 = arith.constant 0 : index
    %89 = vector.load %arg17[%88, %c0_40, %c0_41] : memref<8x8x512xf32, #tpu.memory_space<vmem>>, vector<1x8x512xf32>
    %90 = vector.shape_cast %89 : vector<1x8x512xf32> to vector<8x512xf32>
    %c0_42 = arith.constant 0 : index
    %c0_43 = arith.constant 0 : index
    %91 = vector.load %arg7[%c0_42, %c0_43] : memref<128x512xf32, #tpu.memory_space<vmem>>, vector<128x512xf32>
    %cst_44 = arith.constant dense<0.000000e+00> : vector<8x512xf32>
    %92 = tpu.matmul %83, %91, %cst_44 {dimension_numbers = #tpu.dot_dimension_numbers<[1], [0], [0], [1], [0, 0, 1, 1], [], []>} : vector<8x128xf32>, vector<128x512xf32>, vector<8x512xf32> -> vector<8x512xf32>
    %93 = arith.addf %90, %92 : vector<8x512xf32>
    %94 = vector.extract_strided_slice %93 {offsets = [0, 0], sizes = [8, 128], strides = [1, 1]} : vector<8x512xf32> to vector<8x128xf32>
    %95 = arith.negf %94 : vector<8x128xf32>
    %96 = math.exp %95 : vector<8x128xf32>
    %cst_45 = arith.constant 1.000000e+00 : f32
    %97 = vector.broadcast %cst_45 : f32 to vector<8x128xf32>
    %98 = arith.addf %97, %96 : vector<8x128xf32>
    %99 = arith.divf %97, %98 : vector<8x128xf32>
    %100 = vector.extract_strided_slice %93 {offsets = [0, 128], sizes = [8, 128], strides = [1, 1]} : vector<8x512xf32> to vector<8x128xf32>
    %101 = arith.negf %100 : vector<8x128xf32>
    %102 = math.exp %101 : vector<8x128xf32>
    %cst_46 = arith.constant 1.000000e+00 : f32
    %103 = vector.broadcast %cst_46 : f32 to vector<8x128xf32>
    %104 = arith.addf %103, %102 : vector<8x128xf32>
    %105 = arith.divf %103, %104 : vector<8x128xf32>
    %106 = vector.extract_strided_slice %93 {offsets = [0, 256], sizes = [8, 128], strides = [1, 1]} : vector<8x512xf32> to vector<8x128xf32>
    %107 = math.tanh %106 : vector<8x128xf32>
    %108 = vector.extract_strided_slice %93 {offsets = [0, 384], sizes = [8, 128], strides = [1, 1]} : vector<8x512xf32> to vector<8x128xf32>
    %109 = arith.negf %108 : vector<8x128xf32>
    %110 = math.exp %109 : vector<8x128xf32>
    %cst_47 = arith.constant 1.000000e+00 : f32
    %111 = vector.broadcast %cst_47 : f32 to vector<8x128xf32>
    %112 = arith.addf %111, %110 : vector<8x128xf32>
    %113 = arith.divf %111, %112 : vector<8x128xf32>
    %114 = arith.mulf %105, %81 : vector<8x128xf32>
    %115 = arith.mulf %99, %107 : vector<8x128xf32>
    %116 = arith.addf %114, %115 : vector<8x128xf32>
    %117 = math.tanh %116 : vector<8x128xf32>
    %118 = arith.mulf %113, %117 : vector<8x128xf32>
    %119 = arith.index_cast %c2_i32 : i32 to index
    %c0_48 = arith.constant 0 : index
    %c0_49 = arith.constant 0 : index
    %120 = vector.load %arg18[%119, %c0_48, %c0_49] : memref<8x8x128xf32, #tpu.memory_space<vmem>>, vector<1x8x128xf32>
    %121 = vector.shape_cast %120 : vector<1x8x128xf32> to vector<8x128xf32>
    %122 = vector.shape_cast %118 : vector<8x128xf32> to vector<1x8x128xf32>
    tpu.vector_store %arg18[%119, %c0_48, %c0_49], %122 {strides = array<i32>} : memref<8x8x128xf32, #tpu.memory_space<vmem>>, vector<1x8x128xf32>,
    %c3_i32 = arith.constant 3 : i32
    %123 = arith.index_cast %c3_i32 : i32 to index
    %c0_50 = arith.constant 0 : index
    %c0_51 = arith.constant 0 : index
    %124 = vector.load %arg17[%123, %c0_50, %c0_51] : memref<8x8x512xf32, #tpu.memory_space<vmem>>, vector<1x8x512xf32>
    %125 = vector.shape_cast %124 : vector<1x8x512xf32> to vector<8x512xf32>
    %c0_52 = arith.constant 0 : index
    %c0_53 = arith.constant 0 : index
    %126 = vector.load %arg7[%c0_52, %c0_53] : memref<128x512xf32, #tpu.memory_space<vmem>>, vector<128x512xf32>
    %cst_54 = arith.constant dense<0.000000e+00> : vector<8x512xf32>
    %127 = tpu.matmul %118, %126, %cst_54 {dimension_numbers = #tpu.dot_dimension_numbers<[1], [0], [0], [1], [0, 0, 1, 1], [], []>} : vector<8x128xf32>, vector<128x512xf32>, vector<8x512xf32> -> vector<8x512xf32>
    %128 = arith.addf %125, %127 : vector<8x512xf32>
    %129 = vector.extract_strided_slice %128 {offsets = [0, 0], sizes = [8, 128], strides = [1, 1]} : vector<8x512xf32> to vector<8x128xf32>
    %130 = arith.negf %129 : vector<8x128xf32>
    %131 = math.exp %130 : vector<8x128xf32>
    %cst_55 = arith.constant 1.000000e+00 : f32
    %132 = vector.broadcast %cst_55 : f32 to vector<8x128xf32>
    %133 = arith.addf %132, %131 : vector<8x128xf32>
    %134 = arith.divf %132, %133 : vector<8x128xf32>
    %135 = vector.extract_strided_slice %128 {offsets = [0, 128], sizes = [8, 128], strides = [1, 1]} : vector<8x512xf32> to vector<8x128xf32>
    %136 = arith.negf %135 : vector<8x128xf32>
    %137 = math.exp %136 : vector<8x128xf32>
    %cst_56 = arith.constant 1.000000e+00 : f32
    %138 = vector.broadcast %cst_56 : f32 to vector<8x128xf32>
    %139 = arith.addf %138, %137 : vector<8x128xf32>
    %140 = arith.divf %138, %139 : vector<8x128xf32>
    %141 = vector.extract_strided_slice %128 {offsets = [0, 256], sizes = [8, 128], strides = [1, 1]} : vector<8x512xf32> to vector<8x128xf32>
    %142 = math.tanh %141 : vector<8x128xf32>
    %143 = vector.extract_strided_slice %128 {offsets = [0, 384], sizes = [8, 128], strides = [1, 1]} : vector<8x512xf32> to vector<8x128xf32>
    %144 = arith.negf %143 : vector<8x128xf32>
    %145 = math.exp %144 : vector<8x128xf32>
    %cst_57 = arith.constant 1.000000e+00 : f32
    %146 = vector.broadcast %cst_57 : f32 to vector<8x128xf32>
    %147 = arith.addf %146, %145 : vector<8x128xf32>
    %148 = arith.divf %146, %147 : vector<8x128xf32>
    %149 = arith.mulf %140, %116 : vector<8x128xf32>
    %150 = arith.mulf %134, %142 : vector<8x128xf32>
    %151 = arith.addf %149, %150 : vector<8x128xf32>
    %152 = math.tanh %151 : vector<8x128xf32>
    %153 = arith.mulf %148, %152 : vector<8x128xf32>
    %154 = arith.index_cast %c3_i32 : i32 to index
    %c0_58 = arith.constant 0 : index
    %c0_59 = arith.constant 0 : index
    %155 = vector.load %arg18[%154, %c0_58, %c0_59] : memref<8x8x128xf32, #tpu.memory_space<vmem>>, vector<1x8x128xf32>
    %156 = vector.shape_cast %155 : vector<1x8x128xf32> to vector<8x128xf32>
    %157 = vector.shape_cast %153 : vector<8x128xf32> to vector<1x8x128xf32>
    tpu.vector_store %arg18[%154, %c0_58, %c0_59], %157 {strides = array<i32>} : memref<8x8x128xf32, #tpu.memory_space<vmem>>, vector<1x8x128xf32>,
    %c4_i32 = arith.constant 4 : i32
    %158 = arith.index_cast %c4_i32 : i32 to index
    %c0_60 = arith.constant 0 : index
    %c0_61 = arith.constant 0 : index
    %159 = vector.load %arg17[%158, %c0_60, %c0_61] : memref<8x8x512xf32, #tpu.memory_space<vmem>>, vector<1x8x512xf32>
    %160 = vector.shape_cast %159 : vector<1x8x512xf32> to vector<8x512xf32>
    %c0_62 = arith.constant 0 : index
    %c0_63 = arith.constant 0 : index
    %161 = vector.load %arg7[%c0_62, %c0_63] : memref<128x512xf32, #tpu.memory_space<vmem>>, vector<128x512xf32>
    %cst_64 = arith.constant dense<0.000000e+00> : vector<8x512xf32>
    %162 = tpu.matmul %153, %161, %cst_64 {dimension_numbers = #tpu.dot_dimension_numbers<[1], [0], [0], [1], [0, 0, 1, 1], [], []>} : vector<8x128xf32>, vector<128x512xf32>, vector<8x512xf32> -> vector<8x512xf32>
    %163 = arith.addf %160, %162 : vector<8x512xf32>
    %164 = vector.extract_strided_slice %163 {offsets = [0, 0], sizes = [8, 128], strides = [1, 1]} : vector<8x512xf32> to vector<8x128xf32>
    %165 = arith.negf %164 : vector<8x128xf32>
    %166 = math.exp %165 : vector<8x128xf32>
    %cst_65 = arith.constant 1.000000e+00 : f32
    %167 = vector.broadcast %cst_65 : f32 to vector<8x128xf32>
    %168 = arith.addf %167, %166 : vector<8x128xf32>
    %169 = arith.divf %167, %168 : vector<8x128xf32>
    %170 = vector.extract_strided_slice %163 {offsets = [0, 128], sizes = [8, 128], strides = [1, 1]} : vector<8x512xf32> to vector<8x128xf32>
    %171 = arith.negf %170 : vector<8x128xf32>
    %172 = math.exp %171 : vector<8x128xf32>
    %cst_66 = arith.constant 1.000000e+00 : f32
    %173 = vector.broadcast %cst_66 : f32 to vector<8x128xf32>
    %174 = arith.addf %173, %172 : vector<8x128xf32>
    %175 = arith.divf %173, %174 : vector<8x128xf32>
    %176 = vector.extract_strided_slice %163 {offsets = [0, 256], sizes = [8, 128], strides = [1, 1]} : vector<8x512xf32> to vector<8x128xf32>
    %177 = math.tanh %176 : vector<8x128xf32>
    %178 = vector.extract_strided_slice %163 {offsets = [0, 384], sizes = [8, 128], strides = [1, 1]} : vector<8x512xf32> to vector<8x128xf32>
    %179 = arith.negf %178 : vector<8x128xf32>
    %180 = math.exp %179 : vector<8x128xf32>
    %cst_67 = arith.constant 1.000000e+00 : f32
    %181 = vector.broadcast %cst_67 : f32 to vector<8x128xf32>
    %182 = arith.addf %181, %180 : vector<8x128xf32>
    %183 = arith.divf %181, %182 : vector<8x128xf32>
    %184 = arith.mulf %175, %151 : vector<8x128xf32>
    %185 = arith.mulf %169, %177 : vector<8x128xf32>
    %186 = arith.addf %184, %185 : vector<8x128xf32>
    %187 = math.tanh %186 : vector<8x128xf32>
    %188 = arith.mulf %183, %187 : vector<8x128xf32>
    %189 = arith.index_cast %c4_i32 : i32 to index
    %c0_68 = arith.constant 0 : index
    %c0_69 = arith.constant 0 : index
    %190 = vector.load %arg18[%189, %c0_68, %c0_69] : memref<8x8x128xf32, #tpu.memory_space<vmem>>, vector<1x8x128xf32>
    %191 = vector.shape_cast %190 : vector<1x8x128xf32> to vector<8x128xf32>
    %192 = vector.shape_cast %188 : vector<8x128xf32> to vector<1x8x128xf32>
    tpu.vector_store %arg18[%189, %c0_68, %c0_69], %192 {strides = array<i32>} : memref<8x8x128xf32, #tpu.memory_space<vmem>>, vector<1x8x128xf32>,
    %c5_i32 = arith.constant 5 : i32
    %193 = arith.index_cast %c5_i32 : i32 to index
    %c0_70 = arith.constant 0 : index
    %c0_71 = arith.constant 0 : index
    %194 = vector.load %arg17[%193, %c0_70, %c0_71] : memref<8x8x512xf32, #tpu.memory_space<vmem>>, vector<1x8x512xf32>
    %195 = vector.shape_cast %194 : vector<1x8x512xf32> to vector<8x512xf32>
    %c0_72 = arith.constant 0 : index
    %c0_73 = arith.constant 0 : index
    %196 = vector.load %arg7[%c0_72, %c0_73] : memref<128x512xf32, #tpu.memory_space<vmem>>, vector<128x512xf32>
    %cst_74 = arith.constant dense<0.000000e+00> : vector<8x512xf32>
    %197 = tpu.matmul %188, %196, %cst_74 {dimension_numbers = #tpu.dot_dimension_numbers<[1], [0], [0], [1], [0, 0, 1, 1], [], []>} : vector<8x128xf32>, vector<128x512xf32>, vector<8x512xf32> -> vector<8x512xf32>
    %198 = arith.addf %195, %197 : vector<8x512xf32>
    %199 = vector.extract_strided_slice %198 {offsets = [0, 0], sizes = [8, 128], strides = [1, 1]} : vector<8x512xf32> to vector<8x128xf32>
    %200 = arith.negf %199 : vector<8x128xf32>
    %201 = math.exp %200 : vector<8x128xf32>
    %cst_75 = arith.constant 1.000000e+00 : f32
    %202 = vector.broadcast %cst_75 : f32 to vector<8x128xf32>
    %203 = arith.addf %202, %201 : vector<8x128xf32>
    %204 = arith.divf %202, %203 : vector<8x128xf32>
    %205 = vector.extract_strided_slice %198 {offsets = [0, 128], sizes = [8, 128], strides = [1, 1]} : vector<8x512xf32> to vector<8x128xf32>
    %206 = arith.negf %205 : vector<8x128xf32>
    %207 = math.exp %206 : vector<8x128xf32>
    %cst_76 = arith.constant 1.000000e+00 : f32
    %208 = vector.broadcast %cst_76 : f32 to vector<8x128xf32>
    %209 = arith.addf %208, %207 : vector<8x128xf32>
    %210 = arith.divf %208, %209 : vector<8x128xf32>
    %211 = vector.extract_strided_slice %198 {offsets = [0, 256], sizes = [8, 128], strides = [1, 1]} : vector<8x512xf32> to vector<8x128xf32>
    %212 = math.tanh %211 : vector<8x128xf32>
    %213 = vector.extract_strided_slice %198 {offsets = [0, 384], sizes = [8, 128], strides = [1, 1]} : vector<8x512xf32> to vector<8x128xf32>
    %214 = arith.negf %213 : vector<8x128xf32>
    %215 = math.exp %214 : vector<8x128xf32>
    %cst_77 = arith.constant 1.000000e+00 : f32
    %216 = vector.broadcast %cst_77 : f32 to vector<8x128xf32>
    %217 = arith.addf %216, %215 : vector<8x128xf32>
    %218 = arith.divf %216, %217 : vector<8x128xf32>
    %219 = arith.mulf %210, %186 : vector<8x128xf32>
    %220 = arith.mulf %204, %212 : vector<8x128xf32>
    %221 = arith.addf %219, %220 : vector<8x128xf32>
    %222 = math.tanh %221 : vector<8x128xf32>
    %223 = arith.mulf %218, %222 : vector<8x128xf32>
    %224 = arith.index_cast %c5_i32 : i32 to index
    %c0_78 = arith.constant 0 : index
    %c0_79 = arith.constant 0 : index
    %225 = vector.load %arg18[%224, %c0_78, %c0_79] : memref<8x8x128xf32, #tpu.memory_space<vmem>>, vector<1x8x128xf32>
    %226 = vector.shape_cast %225 : vector<1x8x128xf32> to vector<8x128xf32>
    %227 = vector.shape_cast %223 : vector<8x128xf32> to vector<1x8x128xf32>
    tpu.vector_store %arg18[%224, %c0_78, %c0_79], %227 {strides = array<i32>} : memref<8x8x128xf32, #tpu.memory_space<vmem>>, vector<1x8x128xf32>,
    %c6_i32 = arith.constant 6 : i32
    %228 = arith.index_cast %c6_i32 : i32 to index
    %c0_80 = arith.constant 0 : index
    %c0_81 = arith.constant 0 : index
    %229 = vector.load %arg17[%228, %c0_80, %c0_81] : memref<8x8x512xf32, #tpu.memory_space<vmem>>, vector<1x8x512xf32>
    %230 = vector.shape_cast %229 : vector<1x8x512xf32> to vector<8x512xf32>
    %c0_82 = arith.constant 0 : index
    %c0_83 = arith.constant 0 : index
    %231 = vector.load %arg7[%c0_82, %c0_83] : memref<128x512xf32, #tpu.memory_space<vmem>>, vector<128x512xf32>
    %cst_84 = arith.constant dense<0.000000e+00> : vector<8x512xf32>
    %232 = tpu.matmul %223, %231, %cst_84 {dimension_numbers = #tpu.dot_dimension_numbers<[1], [0], [0], [1], [0, 0, 1, 1], [], []>} : vector<8x128xf32>, vector<128x512xf32>, vector<8x512xf32> -> vector<8x512xf32>
    %233 = arith.addf %230, %232 : vector<8x512xf32>
    %234 = vector.extract_strided_slice %233 {offsets = [0, 0], sizes = [8, 128], strides = [1, 1]} : vector<8x512xf32> to vector<8x128xf32>
    %235 = arith.negf %234 : vector<8x128xf32>
    %236 = math.exp %235 : vector<8x128xf32>
    %cst_85 = arith.constant 1.000000e+00 : f32
    %237 = vector.broadcast %cst_85 : f32 to vector<8x128xf32>
    %238 = arith.addf %237, %236 : vector<8x128xf32>
    %239 = arith.divf %237, %238 : vector<8x128xf32>
    %240 = vector.extract_strided_slice %233 {offsets = [0, 128], sizes = [8, 128], strides = [1, 1]} : vector<8x512xf32> to vector<8x128xf32>
    %241 = arith.negf %240 : vector<8x128xf32>
    %242 = math.exp %241 : vector<8x128xf32>
    %cst_86 = arith.constant 1.000000e+00 : f32
    %243 = vector.broadcast %cst_86 : f32 to vector<8x128xf32>
    %244 = arith.addf %243, %242 : vector<8x128xf32>
    %245 = arith.divf %243, %244 : vector<8x128xf32>
    %246 = vector.extract_strided_slice %233 {offsets = [0, 256], sizes = [8, 128], strides = [1, 1]} : vector<8x512xf32> to vector<8x128xf32>
    %247 = math.tanh %246 : vector<8x128xf32>
    %248 = vector.extract_strided_slice %233 {offsets = [0, 384], sizes = [8, 128], strides = [1, 1]} : vector<8x512xf32> to vector<8x128xf32>
    %249 = arith.negf %248 : vector<8x128xf32>
    %250 = math.exp %249 : vector<8x128xf32>
    %cst_87 = arith.constant 1.000000e+00 : f32
    %251 = vector.broadcast %cst_87 : f32 to vector<8x128xf32>
    %252 = arith.addf %251, %250 : vector<8x128xf32>
    %253 = arith.divf %251, %252 : vector<8x128xf32>
    %254 = arith.mulf %245, %221 : vector<8x128xf32>
    %255 = arith.mulf %239, %247 : vector<8x128xf32>
    %256 = arith.addf %254, %255 : vector<8x128xf32>
    %257 = math.tanh %256 : vector<8x128xf32>
    %258 = arith.mulf %253, %257 : vector<8x128xf32>
    %259 = arith.index_cast %c6_i32 : i32 to index
    %c0_88 = arith.constant 0 : index
    %c0_89 = arith.constant 0 : index
    %260 = vector.load %arg18[%259, %c0_88, %c0_89] : memref<8x8x128xf32, #tpu.memory_space<vmem>>, vector<1x8x128xf32>
    %261 = vector.shape_cast %260 : vector<1x8x128xf32> to vector<8x128xf32>
    %262 = vector.shape_cast %258 : vector<8x128xf32> to vector<1x8x128xf32>
    tpu.vector_store %arg18[%259, %c0_88, %c0_89], %262 {strides = array<i32>} : memref<8x8x128xf32, #tpu.memory_space<vmem>>, vector<1x8x128xf32>,
    %c7_i32 = arith.constant 7 : i32
    %263 = arith.index_cast %c7_i32 : i32 to index
    %c0_90 = arith.constant 0 : index
    %c0_91 = arith.constant 0 : index
    %264 = vector.load %arg17[%263, %c0_90, %c0_91] : memref<8x8x512xf32, #tpu.memory_space<vmem>>, vector<1x8x512xf32>
    %265 = vector.shape_cast %264 : vector<1x8x512xf32> to vector<8x512xf32>
    %c0_92 = arith.constant 0 : index
    %c0_93 = arith.constant 0 : index
    %266 = vector.load %arg7[%c0_92, %c0_93] : memref<128x512xf32, #tpu.memory_space<vmem>>, vector<128x512xf32>
    %cst_94 = arith.constant dense<0.000000e+00> : vector<8x512xf32>
    %267 = tpu.matmul %258, %266, %cst_94 {dimension_numbers = #tpu.dot_dimension_numbers<[1], [0], [0], [1], [0, 0, 1, 1], [], []>} : vector<8x128xf32>, vector<128x512xf32>, vector<8x512xf32> -> vector<8x512xf32>
    %268 = arith.addf %265, %267 : vector<8x512xf32>
    %269 = vector.extract_strided_slice %268 {offsets = [0, 0], sizes = [8, 128], strides = [1, 1]} : vector<8x512xf32> to vector<8x128xf32>
    %270 = arith.negf %269 : vector<8x128xf32>
    %271 = math.exp %270 : vector<8x128xf32>
    %cst_95 = arith.constant 1.000000e+00 : f32
    %272 = vector.broadcast %cst_95 : f32 to vector<8x128xf32>
    %273 = arith.addf %272, %271 : vector<8x128xf32>
    %274 = arith.divf %272, %273 : vector<8x128xf32>
    %275 = vector.extract_strided_slice %268 {offsets = [0, 128], sizes = [8, 128], strides = [1, 1]} : vector<8x512xf32> to vector<8x128xf32>
    %276 = arith.negf %275 : vector<8x128xf32>
    %277 = math.exp %276 : vector<8x128xf32>
    %cst_96 = arith.constant 1.000000e+00 : f32
    %278 = vector.broadcast %cst_96 : f32 to vector<8x128xf32>
    %279 = arith.addf %278, %277 : vector<8x128xf32>
    %280 = arith.divf %278, %279 : vector<8x128xf32>
    %281 = vector.extract_strided_slice %268 {offsets = [0, 256], sizes = [8, 128], strides = [1, 1]} : vector<8x512xf32> to vector<8x128xf32>
    %282 = math.tanh %281 : vector<8x128xf32>
    %283 = vector.extract_strided_slice %268 {offsets = [0, 384], sizes = [8, 128], strides = [1, 1]} : vector<8x512xf32> to vector<8x128xf32>
    %284 = arith.negf %283 : vector<8x128xf32>
    %285 = math.exp %284 : vector<8x128xf32>
    %cst_97 = arith.constant 1.000000e+00 : f32
    %286 = vector.broadcast %cst_97 : f32 to vector<8x128xf32>
    %287 = arith.addf %286, %285 : vector<8x128xf32>
    %288 = arith.divf %286, %287 : vector<8x128xf32>
    %289 = arith.mulf %280, %256 : vector<8x128xf32>
    %290 = arith.mulf %274, %282 : vector<8x128xf32>
    %291 = arith.addf %289, %290 : vector<8x128xf32>
    %292 = math.tanh %291 : vector<8x128xf32>
    %293 = arith.mulf %288, %292 : vector<8x128xf32>
    %294 = arith.index_cast %c7_i32 : i32 to index
    %c0_98 = arith.constant 0 : index
    %c0_99 = arith.constant 0 : index
    %295 = vector.load %arg18[%294, %c0_98, %c0_99] : memref<8x8x128xf32, #tpu.memory_space<vmem>>, vector<1x8x128xf32>
    %296 = vector.shape_cast %295 : vector<1x8x128xf32> to vector<8x128xf32>
    %297 = vector.shape_cast %293 : vector<8x128xf32> to vector<1x8x128xf32>
    tpu.vector_store %arg18[%294, %c0_98, %c0_99], %297 {strides = array<i32>} : memref<8x8x128xf32, #tpu.memory_space<vmem>>, vector<1x8x128xf32>,
    %c8_i32 = arith.constant 8 : i32
    %c0_100 = arith.constant 0 : index
    %c0_101 = arith.constant 0 : index
    %c0_102 = arith.constant 0 : index
    %298 = vector.load %arg15[%c0_100, %c0_101, %c0_102] : memref<2x8x128xf32, #tpu.memory_space<vmem>>, vector<1x8x128xf32>
    %299 = vector.shape_cast %298 : vector<1x8x128xf32> to vector<8x128xf32>
    %300 = vector.shape_cast %293 : vector<8x128xf32> to vector<1x8x128xf32>
    tpu.vector_store %arg15[%c0_100, %c0_101, %c0_102], %300 {strides = array<i32>} : memref<2x8x128xf32, #tpu.memory_space<vmem>>, vector<1x8x128xf32>,
    %c0_103 = arith.constant 0 : index
    %c0_104 = arith.constant 0 : index
    %c0_105 = arith.constant 0 : index
    %301 = vector.load %arg16[%c0_103, %c0_104, %c0_105] : memref<2x8x128xf32, #tpu.memory_space<vmem>>, vector<1x8x128xf32>
    %302 = vector.shape_cast %301 : vector<1x8x128xf32> to vector<8x128xf32>
    %303 = vector.shape_cast %291 : vector<8x128xf32> to vector<1x8x128xf32>
    tpu.vector_store %arg16[%c0_103, %c0_104, %c0_105], %303 {strides = array<i32>} : memref<2x8x128xf32, #tpu.memory_space<vmem>>, vector<1x8x128xf32>,
    %c0_106 = arith.constant 0 : index
    %c0_107 = arith.constant 0 : index
    %c0_108 = arith.constant 0 : index
    %304 = vector.load %arg18[%c0_106, %c0_107, %c0_108] : memref<8x8x128xf32, #tpu.memory_space<vmem>>, vector<8x8x128xf32>
    %305 = vector.shape_cast %304 : vector<8x8x128xf32> to vector<64x128xf32>
    %c0_109 = arith.constant 0 : index
    %c0_110 = arith.constant 0 : index
    %306 = vector.load %arg9[%c0_109, %c0_110] : memref<128x512xf32, #tpu.memory_space<vmem>>, vector<128x512xf32>
    %cst_111 = arith.constant dense<0.000000e+00> : vector<64x512xf32>
    %307 = tpu.matmul %305, %306, %cst_111 {dimension_numbers = #tpu.dot_dimension_numbers<[1], [0], [0], [1], [0, 0, 1, 1], [], []>} : vector<64x128xf32>, vector<128x512xf32>, vector<64x512xf32> -> vector<64x512xf32>
    %c0_112 = arith.constant 0 : index
    %c0_113 = arith.constant 0 : index
    %308 = vector.load %arg11[%c0_112, %c0_113] : memref<1x512xf32, #tpu.memory_space<vmem>>, vector<1x512xf32>
    %309 = vector.broadcast %308 : vector<1x512xf32> to vector<64x512xf32>
    %310 = arith.addf %307, %309 : vector<64x512xf32>
    %311 = vector.shape_cast %310 : vector<64x512xf32> to vector<8x8x512xf32>
    %c0_114 = arith.constant 0 : index
    %c0_115 = arith.constant 0 : index
    %c0_116 = arith.constant 0 : index
    %312 = vector.load %arg17[%c0_114, %c0_115, %c0_116] : memref<8x8x512xf32, #tpu.memory_space<vmem>>, vector<8x8x512xf32>
    tpu.vector_store %arg17[%c0_114, %c0_115, %c0_116], %311 {strides = array<i32>} : memref<8x8x512xf32, #tpu.memory_space<vmem>>, vector<8x8x512xf32>,
    %c1 = arith.constant 1 : index
    %c0_117 = arith.constant 0 : index
    %c0_118 = arith.constant 0 : index
    %313 = vector.load %arg2[%c1, %c0_117, %c0_118] : memref<2x8x128xf32, #tpu.memory_space<vmem>>, vector<1x8x128xf32>
    %314 = vector.shape_cast %313 : vector<1x8x128xf32> to vector<8x128xf32>
    %c1_119 = arith.constant 1 : index
    %c0_120 = arith.constant 0 : index
    %c0_121 = arith.constant 0 : index
    %315 = vector.load %arg3[%c1_119, %c0_120, %c0_121] : memref<2x8x128xf32, #tpu.memory_space<vmem>>, vector<1x8x128xf32>
    %316 = vector.shape_cast %315 : vector<1x8x128xf32> to vector<8x128xf32>
    %c0_i32_122 = arith.constant 0 : i32
    %317 = arith.index_cast %c0_i32_122 : i32 to index
    %c0_123 = arith.constant 0 : index
    %c0_124 = arith.constant 0 : index
    %318 = vector.load %arg17[%317, %c0_123, %c0_124] : memref<8x8x512xf32, #tpu.memory_space<vmem>>, vector<1x8x512xf32>
    %319 = vector.shape_cast %318 : vector<1x8x512xf32> to vector<8x512xf32>
    %c0_125 = arith.constant 0 : index
    %c0_126 = arith.constant 0 : index
    %320 = vector.load %arg10[%c0_125, %c0_126] : memref<128x512xf32, #tpu.memory_space<vmem>>, vector<128x512xf32>
    %cst_127 = arith.constant dense<0.000000e+00> : vector<8x512xf32>
    %321 = tpu.matmul %314, %320, %cst_127 {dimension_numbers = #tpu.dot_dimension_numbers<[1], [0], [0], [1], [0, 0, 1, 1], [], []>} : vector<8x128xf32>, vector<128x512xf32>, vector<8x512xf32> -> vector<8x512xf32>
    %322 = arith.addf %319, %321 : vector<8x512xf32>
    %323 = vector.extract_strided_slice %322 {offsets = [0, 0], sizes = [8, 128], strides = [1, 1]} : vector<8x512xf32> to vector<8x128xf32>
    %324 = arith.negf %323 : vector<8x128xf32>
    %325 = math.exp %324 : vector<8x128xf32>
    %cst_128 = arith.constant 1.000000e+00 : f32
    %326 = vector.broadcast %cst_128 : f32 to vector<8x128xf32>
    %327 = arith.addf %326, %325 : vector<8x128xf32>
    %328 = arith.divf %326, %327 : vector<8x128xf32>
    %329 = vector.extract_strided_slice %322 {offsets = [0, 128], sizes = [8, 128], strides = [1, 1]} : vector<8x512xf32> to vector<8x128xf32>
    %330 = arith.negf %329 : vector<8x128xf32>
    %331 = math.exp %330 : vector<8x128xf32>
    %cst_129 = arith.constant 1.000000e+00 : f32
    %332 = vector.broadcast %cst_129 : f32 to vector<8x128xf32>
    %333 = arith.addf %332, %331 : vector<8x128xf32>
    %334 = arith.divf %332, %333 : vector<8x128xf32>
    %335 = vector.extract_strided_slice %322 {offsets = [0, 256], sizes = [8, 128], strides = [1, 1]} : vector<8x512xf32> to vector<8x128xf32>
    %336 = math.tanh %335 : vector<8x128xf32>
    %337 = vector.extract_strided_slice %322 {offsets = [0, 384], sizes = [8, 128], strides = [1, 1]} : vector<8x512xf32> to vector<8x128xf32>
    %338 = arith.negf %337 : vector<8x128xf32>
    %339 = math.exp %338 : vector<8x128xf32>
    %cst_130 = arith.constant 1.000000e+00 : f32
    %340 = vector.broadcast %cst_130 : f32 to vector<8x128xf32>
    %341 = arith.addf %340, %339 : vector<8x128xf32>
    %342 = arith.divf %340, %341 : vector<8x128xf32>
    %343 = arith.mulf %334, %316 : vector<8x128xf32>
    %344 = arith.mulf %328, %336 : vector<8x128xf32>
    %345 = arith.addf %343, %344 : vector<8x128xf32>
    %346 = math.tanh %345 : vector<8x128xf32>
    %347 = arith.mulf %342, %346 : vector<8x128xf32>
    %348 = arith.index_cast %c0_i32_122 : i32 to index
    %c0_131 = arith.constant 0 : index
    %c0_132 = arith.constant 0 : index
    %349 = vector.load %arg18[%348, %c0_131, %c0_132] : memref<8x8x128xf32, #tpu.memory_space<vmem>>, vector<1x8x128xf32>
    %350 = vector.shape_cast %349 : vector<1x8x128xf32> to vector<8x128xf32>
    %351 = vector.shape_cast %347 : vector<8x128xf32> to vector<1x8x128xf32>
    tpu.vector_store %arg18[%348, %c0_131, %c0_132], %351 {strides = array<i32>} : memref<8x8x128xf32, #tpu.memory_space<vmem>>, vector<1x8x128xf32>,
    %c1_i32_133 = arith.constant 1 : i32
    %352 = arith.index_cast %c1_i32_133 : i32 to index
    %c0_134 = arith.constant 0 : index
    %c0_135 = arith.constant 0 : index
    %353 = vector.load %arg17[%352, %c0_134, %c0_135] : memref<8x8x512xf32, #tpu.memory_space<vmem>>, vector<1x8x512xf32>
    %354 = vector.shape_cast %353 : vector<1x8x512xf32> to vector<8x512xf32>
    %c0_136 = arith.constant 0 : index
    %c0_137 = arith.constant 0 : index
    %355 = vector.load %arg10[%c0_136, %c0_137] : memref<128x512xf32, #tpu.memory_space<vmem>>, vector<128x512xf32>
    %cst_138 = arith.constant dense<0.000000e+00> : vector<8x512xf32>
    %356 = tpu.matmul %347, %355, %cst_138 {dimension_numbers = #tpu.dot_dimension_numbers<[1], [0], [0], [1], [0, 0, 1, 1], [], []>} : vector<8x128xf32>, vector<128x512xf32>, vector<8x512xf32> -> vector<8x512xf32>
    %357 = arith.addf %354, %356 : vector<8x512xf32>
    %358 = vector.extract_strided_slice %357 {offsets = [0, 0], sizes = [8, 128], strides = [1, 1]} : vector<8x512xf32> to vector<8x128xf32>
    %359 = arith.negf %358 : vector<8x128xf32>
    %360 = math.exp %359 : vector<8x128xf32>
    %cst_139 = arith.constant 1.000000e+00 : f32
    %361 = vector.broadcast %cst_139 : f32 to vector<8x128xf32>
    %362 = arith.addf %361, %360 : vector<8x128xf32>
    %363 = arith.divf %361, %362 : vector<8x128xf32>
    %364 = vector.extract_strided_slice %357 {offsets = [0, 128], sizes = [8, 128], strides = [1, 1]} : vector<8x512xf32> to vector<8x128xf32>
    %365 = arith.negf %364 : vector<8x128xf32>
    %366 = math.exp %365 : vector<8x128xf32>
    %cst_140 = arith.constant 1.000000e+00 : f32
    %367 = vector.broadcast %cst_140 : f32 to vector<8x128xf32>
    %368 = arith.addf %367, %366 : vector<8x128xf32>
    %369 = arith.divf %367, %368 : vector<8x128xf32>
    %370 = vector.extract_strided_slice %357 {offsets = [0, 256], sizes = [8, 128], strides = [1, 1]} : vector<8x512xf32> to vector<8x128xf32>
    %371 = math.tanh %370 : vector<8x128xf32>
    %372 = vector.extract_strided_slice %357 {offsets = [0, 384], sizes = [8, 128], strides = [1, 1]} : vector<8x512xf32> to vector<8x128xf32>
    %373 = arith.negf %372 : vector<8x128xf32>
    %374 = math.exp %373 : vector<8x128xf32>
    %cst_141 = arith.constant 1.000000e+00 : f32
    %375 = vector.broadcast %cst_141 : f32 to vector<8x128xf32>
    %376 = arith.addf %375, %374 : vector<8x128xf32>
    %377 = arith.divf %375, %376 : vector<8x128xf32>
    %378 = arith.mulf %369, %345 : vector<8x128xf32>
    %379 = arith.mulf %363, %371 : vector<8x128xf32>
    %380 = arith.addf %378, %379 : vector<8x128xf32>
    %381 = math.tanh %380 : vector<8x128xf32>
    %382 = arith.mulf %377, %381 : vector<8x128xf32>
    %383 = arith.index_cast %c1_i32_133 : i32 to index
    %c0_142 = arith.constant 0 : index
    %c0_143 = arith.constant 0 : index
    %384 = vector.load %arg18[%383, %c0_142, %c0_143] : memref<8x8x128xf32, #tpu.memory_space<vmem>>, vector<1x8x128xf32>
    %385 = vector.shape_cast %384 : vector<1x8x128xf32> to vector<8x128xf32>
    %386 = vector.shape_cast %382 : vector<8x128xf32> to vector<1x8x128xf32>
    tpu.vector_store %arg18[%383, %c0_142, %c0_143], %386 {strides = array<i32>} : memref<8x8x128xf32, #tpu.memory_space<vmem>>, vector<1x8x128xf32>,
    %c2_i32_144 = arith.constant 2 : i32
    %387 = arith.index_cast %c2_i32_144 : i32 to index
    %c0_145 = arith.constant 0 : index
    %c0_146 = arith.constant 0 : index
    %388 = vector.load %arg17[%387, %c0_145, %c0_146] : memref<8x8x512xf32, #tpu.memory_space<vmem>>, vector<1x8x512xf32>
    %389 = vector.shape_cast %388 : vector<1x8x512xf32> to vector<8x512xf32>
    %c0_147 = arith.constant 0 : index
    %c0_148 = arith.constant 0 : index
    %390 = vector.load %arg10[%c0_147, %c0_148] : memref<128x512xf32, #tpu.memory_space<vmem>>, vector<128x512xf32>
    %cst_149 = arith.constant dense<0.000000e+00> : vector<8x512xf32>
    %391 = tpu.matmul %382, %390, %cst_149 {dimension_numbers = #tpu.dot_dimension_numbers<[1], [0], [0], [1], [0, 0, 1, 1], [], []>} : vector<8x128xf32>, vector<128x512xf32>, vector<8x512xf32> -> vector<8x512xf32>
    %392 = arith.addf %389, %391 : vector<8x512xf32>
    %393 = vector.extract_strided_slice %392 {offsets = [0, 0], sizes = [8, 128], strides = [1, 1]} : vector<8x512xf32> to vector<8x128xf32>
    %394 = arith.negf %393 : vector<8x128xf32>
    %395 = math.exp %394 : vector<8x128xf32>
    %cst_150 = arith.constant 1.000000e+00 : f32
    %396 = vector.broadcast %cst_150 : f32 to vector<8x128xf32>
    %397 = arith.addf %396, %395 : vector<8x128xf32>
    %398 = arith.divf %396, %397 : vector<8x128xf32>
    %399 = vector.extract_strided_slice %392 {offsets = [0, 128], sizes = [8, 128], strides = [1, 1]} : vector<8x512xf32> to vector<8x128xf32>
    %400 = arith.negf %399 : vector<8x128xf32>
    %401 = math.exp %400 : vector<8x128xf32>
    %cst_151 = arith.constant 1.000000e+00 : f32
    %402 = vector.broadcast %cst_151 : f32 to vector<8x128xf32>
    %403 = arith.addf %402, %401 : vector<8x128xf32>
    %404 = arith.divf %402, %403 : vector<8x128xf32>
    %405 = vector.extract_strided_slice %392 {offsets = [0, 256], sizes = [8, 128], strides = [1, 1]} : vector<8x512xf32> to vector<8x128xf32>
    %406 = math.tanh %405 : vector<8x128xf32>
    %407 = vector.extract_strided_slice %392 {offsets = [0, 384], sizes = [8, 128], strides = [1, 1]} : vector<8x512xf32> to vector<8x128xf32>
    %408 = arith.negf %407 : vector<8x128xf32>
    %409 = math.exp %408 : vector<8x128xf32>
    %cst_152 = arith.constant 1.000000e+00 : f32
    %410 = vector.broadcast %cst_152 : f32 to vector<8x128xf32>
    %411 = arith.addf %410, %409 : vector<8x128xf32>
    %412 = arith.divf %410, %411 : vector<8x128xf32>
    %413 = arith.mulf %404, %380 : vector<8x128xf32>
    %414 = arith.mulf %398, %406 : vector<8x128xf32>
    %415 = arith.addf %413, %414 : vector<8x128xf32>
    %416 = math.tanh %415 : vector<8x128xf32>
    %417 = arith.mulf %412, %416 : vector<8x128xf32>
    %418 = arith.index_cast %c2_i32_144 : i32 to index
    %c0_153 = arith.constant 0 : index
    %c0_154 = arith.constant 0 : index
    %419 = vector.load %arg18[%418, %c0_153, %c0_154] : memref<8x8x128xf32, #tpu.memory_space<vmem>>, vector<1x8x128xf32>
    %420 = vector.shape_cast %419 : vector<1x8x128xf32> to vector<8x128xf32>
    %421 = vector.shape_cast %417 : vector<8x128xf32> to vector<1x8x128xf32>
    tpu.vector_store %arg18[%418, %c0_153, %c0_154], %421 {strides = array<i32>} : memref<8x8x128xf32, #tpu.memory_space<vmem>>, vector<1x8x128xf32>,
    %c3_i32_155 = arith.constant 3 : i32
    %422 = arith.index_cast %c3_i32_155 : i32 to index
    %c0_156 = arith.constant 0 : index
    %c0_157 = arith.constant 0 : index
    %423 = vector.load %arg17[%422, %c0_156, %c0_157] : memref<8x8x512xf32, #tpu.memory_space<vmem>>, vector<1x8x512xf32>
    %424 = vector.shape_cast %423 : vector<1x8x512xf32> to vector<8x512xf32>
    %c0_158 = arith.constant 0 : index
    %c0_159 = arith.constant 0 : index
    %425 = vector.load %arg10[%c0_158, %c0_159] : memref<128x512xf32, #tpu.memory_space<vmem>>, vector<128x512xf32>
    %cst_160 = arith.constant dense<0.000000e+00> : vector<8x512xf32>
    %426 = tpu.matmul %417, %425, %cst_160 {dimension_numbers = #tpu.dot_dimension_numbers<[1], [0], [0], [1], [0, 0, 1, 1], [], []>} : vector<8x128xf32>, vector<128x512xf32>, vector<8x512xf32> -> vector<8x512xf32>
    %427 = arith.addf %424, %426 : vector<8x512xf32>
    %428 = vector.extract_strided_slice %427 {offsets = [0, 0], sizes = [8, 128], strides = [1, 1]} : vector<8x512xf32> to vector<8x128xf32>
    %429 = arith.negf %428 : vector<8x128xf32>
    %430 = math.exp %429 : vector<8x128xf32>
    %cst_161 = arith.constant 1.000000e+00 : f32
    %431 = vector.broadcast %cst_161 : f32 to vector<8x128xf32>
    %432 = arith.addf %431, %430 : vector<8x128xf32>
    %433 = arith.divf %431, %432 : vector<8x128xf32>
    %434 = vector.extract_strided_slice %427 {offsets = [0, 128], sizes = [8, 128], strides = [1, 1]} : vector<8x512xf32> to vector<8x128xf32>
    %435 = arith.negf %434 : vector<8x128xf32>
    %436 = math.exp %435 : vector<8x128xf32>
    %cst_162 = arith.constant 1.000000e+00 : f32
    %437 = vector.broadcast %cst_162 : f32 to vector<8x128xf32>
    %438 = arith.addf %437, %436 : vector<8x128xf32>
    %439 = arith.divf %437, %438 : vector<8x128xf32>
    %440 = vector.extract_strided_slice %427 {offsets = [0, 256], sizes = [8, 128], strides = [1, 1]} : vector<8x512xf32> to vector<8x128xf32>
    %441 = math.tanh %440 : vector<8x128xf32>
    %442 = vector.extract_strided_slice %427 {offsets = [0, 384], sizes = [8, 128], strides = [1, 1]} : vector<8x512xf32> to vector<8x128xf32>
    %443 = arith.negf %442 : vector<8x128xf32>
    %444 = math.exp %443 : vector<8x128xf32>
    %cst_163 = arith.constant 1.000000e+00 : f32
    %445 = vector.broadcast %cst_163 : f32 to vector<8x128xf32>
    %446 = arith.addf %445, %444 : vector<8x128xf32>
    %447 = arith.divf %445, %446 : vector<8x128xf32>
    %448 = arith.mulf %439, %415 : vector<8x128xf32>
    %449 = arith.mulf %433, %441 : vector<8x128xf32>
    %450 = arith.addf %448, %449 : vector<8x128xf32>
    %451 = math.tanh %450 : vector<8x128xf32>
    %452 = arith.mulf %447, %451 : vector<8x128xf32>
    %453 = arith.index_cast %c3_i32_155 : i32 to index
    %c0_164 = arith.constant 0 : index
    %c0_165 = arith.constant 0 : index
    %454 = vector.load %arg18[%453, %c0_164, %c0_165] : memref<8x8x128xf32, #tpu.memory_space<vmem>>, vector<1x8x128xf32>
    %455 = vector.shape_cast %454 : vector<1x8x128xf32> to vector<8x128xf32>
    %456 = vector.shape_cast %452 : vector<8x128xf32> to vector<1x8x128xf32>
    tpu.vector_store %arg18[%453, %c0_164, %c0_165], %456 {strides = array<i32>} : memref<8x8x128xf32, #tpu.memory_space<vmem>>, vector<1x8x128xf32>,
    %c4_i32_166 = arith.constant 4 : i32
    %457 = arith.index_cast %c4_i32_166 : i32 to index
    %c0_167 = arith.constant 0 : index
    %c0_168 = arith.constant 0 : index
    %458 = vector.load %arg17[%457, %c0_167, %c0_168] : memref<8x8x512xf32, #tpu.memory_space<vmem>>, vector<1x8x512xf32>
    %459 = vector.shape_cast %458 : vector<1x8x512xf32> to vector<8x512xf32>
    %c0_169 = arith.constant 0 : index
    %c0_170 = arith.constant 0 : index
    %460 = vector.load %arg10[%c0_169, %c0_170] : memref<128x512xf32, #tpu.memory_space<vmem>>, vector<128x512xf32>
    %cst_171 = arith.constant dense<0.000000e+00> : vector<8x512xf32>
    %461 = tpu.matmul %452, %460, %cst_171 {dimension_numbers = #tpu.dot_dimension_numbers<[1], [0], [0], [1], [0, 0, 1, 1], [], []>} : vector<8x128xf32>, vector<128x512xf32>, vector<8x512xf32> -> vector<8x512xf32>
    %462 = arith.addf %459, %461 : vector<8x512xf32>
    %463 = vector.extract_strided_slice %462 {offsets = [0, 0], sizes = [8, 128], strides = [1, 1]} : vector<8x512xf32> to vector<8x128xf32>
    %464 = arith.negf %463 : vector<8x128xf32>
    %465 = math.exp %464 : vector<8x128xf32>
    %cst_172 = arith.constant 1.000000e+00 : f32
    %466 = vector.broadcast %cst_172 : f32 to vector<8x128xf32>
    %467 = arith.addf %466, %465 : vector<8x128xf32>
    %468 = arith.divf %466, %467 : vector<8x128xf32>
    %469 = vector.extract_strided_slice %462 {offsets = [0, 128], sizes = [8, 128], strides = [1, 1]} : vector<8x512xf32> to vector<8x128xf32>
    %470 = arith.negf %469 : vector<8x128xf32>
    %471 = math.exp %470 : vector<8x128xf32>
    %cst_173 = arith.constant 1.000000e+00 : f32
    %472 = vector.broadcast %cst_173 : f32 to vector<8x128xf32>
    %473 = arith.addf %472, %471 : vector<8x128xf32>
    %474 = arith.divf %472, %473 : vector<8x128xf32>
    %475 = vector.extract_strided_slice %462 {offsets = [0, 256], sizes = [8, 128], strides = [1, 1]} : vector<8x512xf32> to vector<8x128xf32>
    %476 = math.tanh %475 : vector<8x128xf32>
    %477 = vector.extract_strided_slice %462 {offsets = [0, 384], sizes = [8, 128], strides = [1, 1]} : vector<8x512xf32> to vector<8x128xf32>
    %478 = arith.negf %477 : vector<8x128xf32>
    %479 = math.exp %478 : vector<8x128xf32>
    %cst_174 = arith.constant 1.000000e+00 : f32
    %480 = vector.broadcast %cst_174 : f32 to vector<8x128xf32>
    %481 = arith.addf %480, %479 : vector<8x128xf32>
    %482 = arith.divf %480, %481 : vector<8x128xf32>
    %483 = arith.mulf %474, %450 : vector<8x128xf32>
    %484 = arith.mulf %468, %476 : vector<8x128xf32>
    %485 = arith.addf %483, %484 : vector<8x128xf32>
    %486 = math.tanh %485 : vector<8x128xf32>
    %487 = arith.mulf %482, %486 : vector<8x128xf32>
    %488 = arith.index_cast %c4_i32_166 : i32 to index
    %c0_175 = arith.constant 0 : index
    %c0_176 = arith.constant 0 : index
    %489 = vector.load %arg18[%488, %c0_175, %c0_176] : memref<8x8x128xf32, #tpu.memory_space<vmem>>, vector<1x8x128xf32>
    %490 = vector.shape_cast %489 : vector<1x8x128xf32> to vector<8x128xf32>
    %491 = vector.shape_cast %487 : vector<8x128xf32> to vector<1x8x128xf32>
    tpu.vector_store %arg18[%488, %c0_175, %c0_176], %491 {strides = array<i32>} : memref<8x8x128xf32, #tpu.memory_space<vmem>>, vector<1x8x128xf32>,
    %c5_i32_177 = arith.constant 5 : i32
    %492 = arith.index_cast %c5_i32_177 : i32 to index
    %c0_178 = arith.constant 0 : index
    %c0_179 = arith.constant 0 : index
    %493 = vector.load %arg17[%492, %c0_178, %c0_179] : memref<8x8x512xf32, #tpu.memory_space<vmem>>, vector<1x8x512xf32>
    %494 = vector.shape_cast %493 : vector<1x8x512xf32> to vector<8x512xf32>
    %c0_180 = arith.constant 0 : index
    %c0_181 = arith.constant 0 : index
    %495 = vector.load %arg10[%c0_180, %c0_181] : memref<128x512xf32, #tpu.memory_space<vmem>>, vector<128x512xf32>
    %cst_182 = arith.constant dense<0.000000e+00> : vector<8x512xf32>
    %496 = tpu.matmul %487, %495, %cst_182 {dimension_numbers = #tpu.dot_dimension_numbers<[1], [0], [0], [1], [0, 0, 1, 1], [], []>} : vector<8x128xf32>, vector<128x512xf32>, vector<8x512xf32> -> vector<8x512xf32>
    %497 = arith.addf %494, %496 : vector<8x512xf32>
    %498 = vector.extract_strided_slice %497 {offsets = [0, 0], sizes = [8, 128], strides = [1, 1]} : vector<8x512xf32> to vector<8x128xf32>
    %499 = arith.negf %498 : vector<8x128xf32>
    %500 = math.exp %499 : vector<8x128xf32>
    %cst_183 = arith.constant 1.000000e+00 : f32
    %501 = vector.broadcast %cst_183 : f32 to vector<8x128xf32>
    %502 = arith.addf %501, %500 : vector<8x128xf32>
    %503 = arith.divf %501, %502 : vector<8x128xf32>
    %504 = vector.extract_strided_slice %497 {offsets = [0, 128], sizes = [8, 128], strides = [1, 1]} : vector<8x512xf32> to vector<8x128xf32>
    %505 = arith.negf %504 : vector<8x128xf32>
    %506 = math.exp %505 : vector<8x128xf32>
    %cst_184 = arith.constant 1.000000e+00 : f32
    %507 = vector.broadcast %cst_184 : f32 to vector<8x128xf32>
    %508 = arith.addf %507, %506 : vector<8x128xf32>
    %509 = arith.divf %507, %508 : vector<8x128xf32>
    %510 = vector.extract_strided_slice %497 {offsets = [0, 256], sizes = [8, 128], strides = [1, 1]} : vector<8x512xf32> to vector<8x128xf32>
    %511 = math.tanh %510 : vector<8x128xf32>
    %512 = vector.extract_strided_slice %497 {offsets = [0, 384], sizes = [8, 128], strides = [1, 1]} : vector<8x512xf32> to vector<8x128xf32>
    %513 = arith.negf %512 : vector<8x128xf32>
    %514 = math.exp %513 : vector<8x128xf32>
    %cst_185 = arith.constant 1.000000e+00 : f32
    %515 = vector.broadcast %cst_185 : f32 to vector<8x128xf32>
    %516 = arith.addf %515, %514 : vector<8x128xf32>
    %517 = arith.divf %515, %516 : vector<8x128xf32>
    %518 = arith.mulf %509, %485 : vector<8x128xf32>
    %519 = arith.mulf %503, %511 : vector<8x128xf32>
    %520 = arith.addf %518, %519 : vector<8x128xf32>
    %521 = math.tanh %520 : vector<8x128xf32>
    %522 = arith.mulf %517, %521 : vector<8x128xf32>
    %523 = arith.index_cast %c5_i32_177 : i32 to index
    %c0_186 = arith.constant 0 : index
    %c0_187 = arith.constant 0 : index
    %524 = vector.load %arg18[%523, %c0_186, %c0_187] : memref<8x8x128xf32, #tpu.memory_space<vmem>>, vector<1x8x128xf32>
    %525 = vector.shape_cast %524 : vector<1x8x128xf32> to vector<8x128xf32>
    %526 = vector.shape_cast %522 : vector<8x128xf32> to vector<1x8x128xf32>
    tpu.vector_store %arg18[%523, %c0_186, %c0_187], %526 {strides = array<i32>} : memref<8x8x128xf32, #tpu.memory_space<vmem>>, vector<1x8x128xf32>,
    %c6_i32_188 = arith.constant 6 : i32
    %527 = arith.index_cast %c6_i32_188 : i32 to index
    %c0_189 = arith.constant 0 : index
    %c0_190 = arith.constant 0 : index
    %528 = vector.load %arg17[%527, %c0_189, %c0_190] : memref<8x8x512xf32, #tpu.memory_space<vmem>>, vector<1x8x512xf32>
    %529 = vector.shape_cast %528 : vector<1x8x512xf32> to vector<8x512xf32>
    %c0_191 = arith.constant 0 : index
    %c0_192 = arith.constant 0 : index
    %530 = vector.load %arg10[%c0_191, %c0_192] : memref<128x512xf32, #tpu.memory_space<vmem>>, vector<128x512xf32>
    %cst_193 = arith.constant dense<0.000000e+00> : vector<8x512xf32>
    %531 = tpu.matmul %522, %530, %cst_193 {dimension_numbers = #tpu.dot_dimension_numbers<[1], [0], [0], [1], [0, 0, 1, 1], [], []>} : vector<8x128xf32>, vector<128x512xf32>, vector<8x512xf32> -> vector<8x512xf32>
    %532 = arith.addf %529, %531 : vector<8x512xf32>
    %533 = vector.extract_strided_slice %532 {offsets = [0, 0], sizes = [8, 128], strides = [1, 1]} : vector<8x512xf32> to vector<8x128xf32>
    %534 = arith.negf %533 : vector<8x128xf32>
    %535 = math.exp %534 : vector<8x128xf32>
    %cst_194 = arith.constant 1.000000e+00 : f32
    %536 = vector.broadcast %cst_194 : f32 to vector<8x128xf32>
    %537 = arith.addf %536, %535 : vector<8x128xf32>
    %538 = arith.divf %536, %537 : vector<8x128xf32>
    %539 = vector.extract_strided_slice %532 {offsets = [0, 128], sizes = [8, 128], strides = [1, 1]} : vector<8x512xf32> to vector<8x128xf32>
    %540 = arith.negf %539 : vector<8x128xf32>
    %541 = math.exp %540 : vector<8x128xf32>
    %cst_195 = arith.constant 1.000000e+00 : f32
    %542 = vector.broadcast %cst_195 : f32 to vector<8x128xf32>
    %543 = arith.addf %542, %541 : vector<8x128xf32>
    %544 = arith.divf %542, %543 : vector<8x128xf32>
    %545 = vector.extract_strided_slice %532 {offsets = [0, 256], sizes = [8, 128], strides = [1, 1]} : vector<8x512xf32> to vector<8x128xf32>
    %546 = math.tanh %545 : vector<8x128xf32>
    %547 = vector.extract_strided_slice %532 {offsets = [0, 384], sizes = [8, 128], strides = [1, 1]} : vector<8x512xf32> to vector<8x128xf32>
    %548 = arith.negf %547 : vector<8x128xf32>
    %549 = math.exp %548 : vector<8x128xf32>
    %cst_196 = arith.constant 1.000000e+00 : f32
    %550 = vector.broadcast %cst_196 : f32 to vector<8x128xf32>
    %551 = arith.addf %550, %549 : vector<8x128xf32>
    %552 = arith.divf %550, %551 : vector<8x128xf32>
    %553 = arith.mulf %544, %520 : vector<8x128xf32>
    %554 = arith.mulf %538, %546 : vector<8x128xf32>
    %555 = arith.addf %553, %554 : vector<8x128xf32>
    %556 = math.tanh %555 : vector<8x128xf32>
    %557 = arith.mulf %552, %556 : vector<8x128xf32>
    %558 = arith.index_cast %c6_i32_188 : i32 to index
    %c0_197 = arith.constant 0 : index
    %c0_198 = arith.constant 0 : index
    %559 = vector.load %arg18[%558, %c0_197, %c0_198] : memref<8x8x128xf32, #tpu.memory_space<vmem>>, vector<1x8x128xf32>
    %560 = vector.shape_cast %559 : vector<1x8x128xf32> to vector<8x128xf32>
    %561 = vector.shape_cast %557 : vector<8x128xf32> to vector<1x8x128xf32>
    tpu.vector_store %arg18[%558, %c0_197, %c0_198], %561 {strides = array<i32>} : memref<8x8x128xf32, #tpu.memory_space<vmem>>, vector<1x8x128xf32>,
    %c7_i32_199 = arith.constant 7 : i32
    %562 = arith.index_cast %c7_i32_199 : i32 to index
    %c0_200 = arith.constant 0 : index
    %c0_201 = arith.constant 0 : index
    %563 = vector.load %arg17[%562, %c0_200, %c0_201] : memref<8x8x512xf32, #tpu.memory_space<vmem>>, vector<1x8x512xf32>
    %564 = vector.shape_cast %563 : vector<1x8x512xf32> to vector<8x512xf32>
    %c0_202 = arith.constant 0 : index
    %c0_203 = arith.constant 0 : index
    %565 = vector.load %arg10[%c0_202, %c0_203] : memref<128x512xf32, #tpu.memory_space<vmem>>, vector<128x512xf32>
    %cst_204 = arith.constant dense<0.000000e+00> : vector<8x512xf32>
    %566 = tpu.matmul %557, %565, %cst_204 {dimension_numbers = #tpu.dot_dimension_numbers<[1], [0], [0], [1], [0, 0, 1, 1], [], []>} : vector<8x128xf32>, vector<128x512xf32>, vector<8x512xf32> -> vector<8x512xf32>
    %567 = arith.addf %564, %566 : vector<8x512xf32>
    %568 = vector.extract_strided_slice %567 {offsets = [0, 0], sizes = [8, 128], strides = [1, 1]} : vector<8x512xf32> to vector<8x128xf32>
    %569 = arith.negf %568 : vector<8x128xf32>
    %570 = math.exp %569 : vector<8x128xf32>
    %cst_205 = arith.constant 1.000000e+00 : f32
    %571 = vector.broadcast %cst_205 : f32 to vector<8x128xf32>
    %572 = arith.addf %571, %570 : vector<8x128xf32>
    %573 = arith.divf %571, %572 : vector<8x128xf32>
    %574 = vector.extract_strided_slice %567 {offsets = [0, 128], sizes = [8, 128], strides = [1, 1]} : vector<8x512xf32> to vector<8x128xf32>
    %575 = arith.negf %574 : vector<8x128xf32>
    %576 = math.exp %575 : vector<8x128xf32>
    %cst_206 = arith.constant 1.000000e+00 : f32
    %577 = vector.broadcast %cst_206 : f32 to vector<8x128xf32>
    %578 = arith.addf %577, %576 : vector<8x128xf32>
    %579 = arith.divf %577, %578 : vector<8x128xf32>
    %580 = vector.extract_strided_slice %567 {offsets = [0, 256], sizes = [8, 128], strides = [1, 1]} : vector<8x512xf32> to vector<8x128xf32>
    %581 = math.tanh %580 : vector<8x128xf32>
    %582 = vector.extract_strided_slice %567 {offsets = [0, 384], sizes = [8, 128], strides = [1, 1]} : vector<8x512xf32> to vector<8x128xf32>
    %583 = arith.negf %582 : vector<8x128xf32>
    %584 = math.exp %583 : vector<8x128xf32>
    %cst_207 = arith.constant 1.000000e+00 : f32
    %585 = vector.broadcast %cst_207 : f32 to vector<8x128xf32>
    %586 = arith.addf %585, %584 : vector<8x128xf32>
    %587 = arith.divf %585, %586 : vector<8x128xf32>
    %588 = arith.mulf %579, %555 : vector<8x128xf32>
    %589 = arith.mulf %573, %581 : vector<8x128xf32>
    %590 = arith.addf %588, %589 : vector<8x128xf32>
    %591 = math.tanh %590 : vector<8x128xf32>
    %592 = arith.mulf %587, %591 : vector<8x128xf32>
    %593 = arith.index_cast %c7_i32_199 : i32 to index
    %c0_208 = arith.constant 0 : index
    %c0_209 = arith.constant 0 : index
    %594 = vector.load %arg18[%593, %c0_208, %c0_209] : memref<8x8x128xf32, #tpu.memory_space<vmem>>, vector<1x8x128xf32>
    %595 = vector.shape_cast %594 : vector<1x8x128xf32> to vector<8x128xf32>
    %596 = vector.shape_cast %592 : vector<8x128xf32> to vector<1x8x128xf32>
    tpu.vector_store %arg18[%593, %c0_208, %c0_209], %596 {strides = array<i32>} : memref<8x8x128xf32, #tpu.memory_space<vmem>>, vector<1x8x128xf32>,
    %c8_i32_210 = arith.constant 8 : i32
    %c1_211 = arith.constant 1 : index
    %c0_212 = arith.constant 0 : index
    %c0_213 = arith.constant 0 : index
    %597 = vector.load %arg15[%c1_211, %c0_212, %c0_213] : memref<2x8x128xf32, #tpu.memory_space<vmem>>, vector<1x8x128xf32>
    %598 = vector.shape_cast %597 : vector<1x8x128xf32> to vector<8x128xf32>
    %599 = vector.shape_cast %592 : vector<8x128xf32> to vector<1x8x128xf32>
    tpu.vector_store %arg15[%c1_211, %c0_212, %c0_213], %599 {strides = array<i32>} : memref<2x8x128xf32, #tpu.memory_space<vmem>>, vector<1x8x128xf32>,
    %c1_214 = arith.constant 1 : index
    %c0_215 = arith.constant 0 : index
    %c0_216 = arith.constant 0 : index
    %600 = vector.load %arg16[%c1_214, %c0_215, %c0_216] : memref<2x8x128xf32, #tpu.memory_space<vmem>>, vector<1x8x128xf32>
    %601 = vector.shape_cast %600 : vector<1x8x128xf32> to vector<8x128xf32>
    %602 = vector.shape_cast %590 : vector<8x128xf32> to vector<1x8x128xf32>
    tpu.vector_store %arg16[%c1_214, %c0_215, %c0_216], %602 {strides = array<i32>} : memref<2x8x128xf32, #tpu.memory_space<vmem>>, vector<1x8x128xf32>,
    %c0_217 = arith.constant 0 : index
    %c0_218 = arith.constant 0 : index
    %c0_219 = arith.constant 0 : index
    %603 = vector.load %arg18[%c0_217, %c0_218, %c0_219] : memref<8x8x128xf32, #tpu.memory_space<vmem>>, vector<8x8x128xf32>
    %604 = vector.shape_cast %603 : vector<8x8x128xf32> to vector<64x128xf32>
    %c0_220 = arith.constant 0 : index
    %c0_221 = arith.constant 0 : index
    %605 = vector.load %arg12[%c0_220, %c0_221] : memref<128x128xf32, #tpu.memory_space<vmem>>, vector<128x128xf32>
    %cst_222 = arith.constant dense<0.000000e+00> : vector<64x128xf32>
    %606 = tpu.matmul %604, %605, %cst_222 {dimension_numbers = #tpu.dot_dimension_numbers<[1], [0], [0], [1], [0, 0, 1, 1], [], []>} : vector<64x128xf32>, vector<128x128xf32>, vector<64x128xf32> -> vector<64x128xf32>
    %c0_223 = arith.constant 0 : index
    %c0_224 = arith.constant 0 : index
    %607 = vector.load %arg13[%c0_223, %c0_224] : memref<1x128xf32, #tpu.memory_space<vmem>>, vector<1x128xf32>
    %608 = vector.broadcast %607 : vector<1x128xf32> to vector<64x128xf32>
    %609 = arith.addf %606, %608 : vector<64x128xf32>
    %610 = vector.shape_cast %609 : vector<64x128xf32> to vector<8x8x128xf32>
    %c0_225 = arith.constant 0 : index
    %c0_226 = arith.constant 0 : index
    %c0_227 = arith.constant 0 : index
    %611 = vector.load %arg14[%c0_225, %c0_226, %c0_227] : memref<8x8x128xf32, #tpu.memory_space<vmem>>, vector<8x8x128xf32>
    tpu.vector_store %arg14[%c0_225, %c0_226, %c0_227], %610 {strides = array<i32>} : memref<8x8x128xf32, #tpu.memory_space<vmem>>, vector<8x8x128xf32>,
    return
  }
  func.func @transform_0(%arg0: i32) -> (i32, i32, i32) {
    %c0_i32 = arith.constant 0 : i32
    %c0_i32_0 = arith.constant 0 : i32
    %c0_i32_1 = arith.constant 0 : i32
    return %c0_i32, %arg0, %c0_i32_0 : i32, i32, i32
  }
  func.func @transform_1(%arg0: i32) -> (i32, i32, i32) {
    %c0_i32 = arith.constant 0 : i32
    %c0_i32_0 = arith.constant 0 : i32
    %c0_i32_1 = arith.constant 0 : i32
    return %c0_i32, %arg0, %c0_i32_0 : i32, i32, i32
  }
  func.func @transform_2(%arg0: i32) -> (i32, i32, i32) {
    %c0_i32 = arith.constant 0 : i32
    %c0_i32_0 = arith.constant 0 : i32
    %c0_i32_1 = arith.constant 0 : i32
    return %c0_i32, %arg0, %c0_i32_0 : i32, i32, i32
  }
  func.func @transform_3(%arg0: i32) -> (i32, i32) {
    %c0_i32 = arith.constant 0 : i32
    %c0_i32_0 = arith.constant 0 : i32
    %c0_i32_1 = arith.constant 0 : i32
    return %c0_i32, %c0_i32_0 : i32, i32
  }
  func.func @transform_4(%arg0: i32) -> (i32, i32) {
    %c0_i32 = arith.constant 0 : i32
    %c0_i32_0 = arith.constant 0 : i32
    %c0_i32_1 = arith.constant 0 : i32
    return %c0_i32, %c0_i32_0 : i32, i32
  }
  func.func @transform_5(%arg0: i32) -> (i32, i32) {
    %c0_i32 = arith.constant 0 : i32
    %c0_i32_0 = arith.constant 0 : i32
    %c0_i32_1 = arith.constant 0 : i32
    return %c0_i32, %c0_i32_0 : i32, i32
  }
  func.func @transform_6(%arg0: i32) -> (i32, i32) {
    %c0_i32 = arith.constant 0 : i32
    %c0_i32_0 = arith.constant 0 : i32
    %c0_i32_1 = arith.constant 0 : i32
    return %c0_i32, %c0_i32_0 : i32, i32
  }
  func.func @transform_7(%arg0: i32) -> (i32, i32) {
    %c0_i32 = arith.constant 0 : i32
    %c0_i32_0 = arith.constant 0 : i32
    %c0_i32_1 = arith.constant 0 : i32
    return %c0_i32, %c0_i32_0 : i32, i32
  }
  func.func @transform_8(%arg0: i32) -> (i32, i32) {
    %c0_i32 = arith.constant 0 : i32
    %c0_i32_0 = arith.constant 0 : i32
    %c0_i32_1 = arith.constant 0 : i32
    return %c0_i32, %c0_i32_0 : i32, i32
  }
  func.func @transform_9(%arg0: i32) -> (i32, i32) {
    %c0_i32 = arith.constant 0 : i32
    %c0_i32_0 = arith.constant 0 : i32
    %c0_i32_1 = arith.constant 0 : i32
    return %c0_i32, %c0_i32_0 : i32, i32
  }
  func.func @transform_10(%arg0: i32) -> (i32, i32) {
    %c0_i32 = arith.constant 0 : i32
    %c0_i32_0 = arith.constant 0 : i32
    %c0_i32_1 = arith.constant 0 : i32
    return %c0_i32, %c0_i32_0 : i32, i32
  }
  func.func @transform_11(%arg0: i32) -> (i32, i32) {
    %c0_i32 = arith.constant 0 : i32
    %c0_i32_0 = arith.constant 0 : i32
    %c0_i32_1 = arith.constant 0 : i32
    return %c0_i32, %c0_i32_0 : i32, i32
  }
  func.func @transform_12(%arg0: i32) -> (i32, i32) {
    %c0_i32 = arith.constant 0 : i32
    %c0_i32_0 = arith.constant 0 : i32
    %c0_i32_1 = arith.constant 0 : i32
    return %c0_i32, %c0_i32_0 : i32, i32
  }
  func.func @transform_13(%arg0: i32) -> (i32, i32, i32) {
    %c0_i32 = arith.constant 0 : i32
    %c0_i32_0 = arith.constant 0 : i32
    %c0_i32_1 = arith.constant 0 : i32
    return %c0_i32, %arg0, %c0_i32_0 : i32, i32, i32
  }
  func.func @transform_14(%arg0: i32) -> (i32, i32, i32) {
    %c0_i32 = arith.constant 0 : i32
    %c0_i32_0 = arith.constant 0 : i32
    %c0_i32_1 = arith.constant 0 : i32
    return %c0_i32, %arg0, %c0_i32_0 : i32, i32, i32
  }
  func.func @transform_15(%arg0: i32) -> (i32, i32, i32) {
    %c0_i32 = arith.constant 0 : i32
    %c0_i32_0 = arith.constant 0 : i32
    %c0_i32_1 = arith.constant 0 : i32
    return %c0_i32, %arg0, %c0_i32_0 : i32, i32, i32
  }
}

</mosaic_0001>

<llo_original>
// kernel: tpu_custom_call.1
$region0: #{tpu_custom_call.1}
  #allocation0 [shape = 'u32[]', space=smem, size = 0x4, offset = 0x4, fixed_abs, tag = 'smem constant byte address 0x4 - core index']
  #allocation1 [shape = 'u32[144,128]{1,0:T(1,128)}', space=vmem, size = 0x12000, scoped, tag = 'internal scratch']
  #allocation2 [shape = 'f32[8,8,512]{2,1,0:T(8,128)}', space=vmem, size = 0x20000, scoped, tag = 'scratch operand']
  #allocation3 [shape = 'f32[8,8,128]{2,1,0:T(8,128)}', space=vmem, size = 0x8000, scoped, tag = 'scratch operand']
  %s0 = inlined_call_operand.hbm [shape: f32[8,8,128], index: 0, kind: input, shape index: {}]
  %s1 = inlined_call_operand.hbm [shape: f32[2,8,128], index: 1, kind: input, shape index: {}]
  %s2 = inlined_call_operand.hbm [shape: f32[2,8,128], index: 2, kind: input, shape index: {}]
  %s3 = inlined_call_operand.hbm [shape: f32[128,128], index: 3, kind: input, shape index: {}]
  %s4 = inlined_call_operand.vmem [shape: f32[1,128], index: 4, kind: input, shape index: {}]
  %s5 = inlined_call_operand.hbm [shape: f32[128,512], index: 5, kind: input, shape index: {}]
  %s6 = inlined_call_operand.hbm [shape: f32[128,512], index: 6, kind: input, shape index: {}]
  %s7 = inlined_call_operand.vmem [shape: f32[1,512], index: 7, kind: input, shape index: {}]
  %s8 = inlined_call_operand.hbm [shape: f32[128,512], index: 8, kind: input, shape index: {}]
  %s9 = inlined_call_operand.hbm [shape: f32[128,512], index: 9, kind: input, shape index: {}]
  %s10 = inlined_call_operand.vmem [shape: f32[1,512], index: 10, kind: input, shape index: {}]
  %s11 = inlined_call_operand.hbm [shape: f32[128,128], index: 11, kind: input, shape index: {}]
  %s12 = inlined_call_operand.vmem [shape: f32[1,128], index: 12, kind: input, shape index: {}]
  %s13 = inlined_call_operand.hbm [shape: f32[8,8,128], index: 13, kind: output, shape index: {0}]
  %s14 = inlined_call_operand.hbm [shape: f32[2,8,128], index: 14, kind: output, shape index: {1}]
  %s15 = inlined_call_operand.hbm [shape: f32[2,8,128], index: 15, kind: output, shape index: {2}]
  %16 = xla_tuple %s13, %s14, %s15
  %s17 = sld [smem:[#allocation0]]
  $region114: #{tpu_custom_call.1} parent=0
    _
  %s19 = ssub.s32 1, %s17
  %s20 = scalar_select 0, %s19, %s17
  $region1: #{tpu_custom_call.1} parent=0
    #allocation4 [shape = 'u8[32768]{0}', space=vmem, size = 0x8000, scoped, tag = 'input window, operand 0, single buffered']
    #allocation5 [shape = 's32[1]{0}', space=sflag, size = 0x4, scoped, tag = 'scoped memory for tpu_custom_call.1']
    #allocation6 [shape = 's32[1]{0}', space=sflag, size = 0x4, scoped, tag = 'scoped memory for tpu_custom_call.1']
    #allocation7 [shape = 'u8[8192]{0}', space=vmem, size = 0x2000, scoped, tag = 'input window, operand 1, single buffered']
    #allocation8 [shape = 's32[1]{0}', space=sflag, size = 0x4, scoped, tag = 'scoped memory for tpu_custom_call.1']
    #allocation9 [shape = 'u8[8192]{0}', space=vmem, size = 0x2000, scoped, tag = 'input window, operand 2, single buffered']
    #allocation10 [shape = 'u8[65536]{0}', space=vmem, size = 0x10000, scoped, tag = 'input window, operand 3, single buffered']
    #allocation11 [shape = 's32[1]{0}', space=sflag, size = 0x4, scoped, tag = 'scoped memory for tpu_custom_call.1']
    #allocation12 [shape = 'u8[262144]{0}', space=vmem, size = 0x40000, scoped, tag = 'input window, operand 5, single buffered']
    #allocation13 [shape = 'u8[262144]{0}', space=vmem, size = 0x40000, scoped, tag = 'input window, operand 6, single buffered']
    #allocation14 [shape = 's32[1]{0}', space=sflag, size = 0x4, scoped, tag = 'scoped memory for tpu_custom_call.1']
    #allocation15 [shape = 'u8[262144]{0}', space=vmem, size = 0x40000, scoped, tag = 'input window, operand 8, single buffered']
    #allocation16 [shape = 'u8[262144]{0}', space=vmem, size = 0x40000, scoped, tag = 'input window, operand 9, single buffered']
    #allocation17 [shape = 's32[1]{0}', space=sflag, size = 0x4, scoped, tag = 'scoped memory for tpu_custom_call.1']
    #allocation18 [shape = 'u8[65536]{0}', space=vmem, size = 0x10000, scoped, tag = 'input window, operand 11, single buffered']
    #allocation19 [shape = 'u8[32768]{0}', space=vmem, size = 0x8000, scoped, tag = 'output window, operand 0, single buffered']
    #allocation20 [shape = 'u8[8192]{0}', space=vmem, size = 0x2000, scoped, tag = 'output window, operand 1, single buffered']
    #allocation21 [shape = 's32[1]{0}', space=sflag, size = 0x4, scoped, tag = 'scoped memory for tpu_custom_call.1']
    #allocation22 [shape = 'u8[8192]{0}', space=vmem, size = 0x2000, scoped, tag = 'output window, operand 2, single buffered']
    %21 = vsyncpa [#allocation5], 0
    %22 = vsyncpa [#allocation8], 0
    %23 = vsyncpa [#allocation11], 0
    %24 = vsyncpa [#allocation14], 0
    %25 = vsyncpa [#allocation17], 0
    %26 = vsyncpa [#allocation6], 0
    %27 = vsyncpa [#allocation21], 0
    // Predicated region
    $region2: #{tpu_custom_call.1} parent=1 // pred_check
      _
    $region3: #{tpu_custom_call.1} parent=1 // pred_check_branch
      %29 = sbr.rel (0) target = $region5
    $region4: #{tpu_custom_call.1} parent=1 // pred_region
      %s31 = ssub.s32 1024, 1024
      %32 = vsyncadd [#allocation5], %s31
      %s33 = sshll.u32 [#allocation4], 4
      %s34 = int_to_ptr.vmem [resolvable:$true] %s33
      %39 = dma.hbm_to_vmem [thread:$0]  %s0, 1024, %s34, [#allocation5], 128, 128, 8
    $region5: #{tpu_custom_call.1} parent=1 // pred_fallthru
      _
    // Predicated region
    $region6: #{tpu_custom_call.1} parent=1 // pred_check
      _
    $region7: #{tpu_custom_call.1} parent=1 // pred_check_branch
      %41 = sbr.rel (0) target = $region9
    $region8: #{tpu_custom_call.1} parent=1 // pred_region
      %s43 = ssub.s32 256, 256
      %44 = vsyncadd [#allocation8], %s43
      %s45 = sshll.u32 [#allocation7], 4
      %s46 = int_to_ptr.vmem [resolvable:$true] %s45
      %51 = dma.hbm_to_vmem [thread:$0]  %s1, 256, %s46, [#allocation8], 128, 128, 8
    $region9: #{tpu_custom_call.1} parent=1 // pred_fallthru
      _
    // Predicated region
    $region10: #{tpu_custom_call.1} parent=1 // pred_check
      _
    $region11: #{tpu_custom_call.1} parent=1 // pred_check_branch
      %53 = sbr.rel (0) target = $region13
    $region12: #{tpu_custom_call.1} parent=1 // pred_region
      %s55 = ssub.s32 256, 256
      %56 = vsyncadd [#allocation8], %s55
      %s57 = sshll.u32 [#allocation9], 4
      %s58 = int_to_ptr.vmem [resolvable:$true] %s57
      %63 = dma.hbm_to_vmem [thread:$0]  %s2, 256, %s58, [#allocation8], 128, 128, 8
    $region13: #{tpu_custom_call.1} parent=1 // pred_fallthru
      _
    // Predicated region
    $region14: #{tpu_custom_call.1} parent=1 // pred_check
      _
    $region15: #{tpu_custom_call.1} parent=1 // pred_check_branch
      %65 = sbr.rel (0) target = $region17
    $region16: #{tpu_custom_call.1} parent=1 // pred_region
      %s67 = ssub.s32 2048, 2048
      %68 = vsyncadd [#allocation11], %s67
      %s69 = sshll.u32 [#allocation10], 4
      %s70 = int_to_ptr.vmem [resolvable:$true] %s69
      %75 = dma.hbm_to_vmem [thread:$0]  %s3, 2048, %s70, [#allocation11], 128, 128, 8
    $region17: #{tpu_custom_call.1} parent=1 // pred_fallthru
      _
    // Predicated region
    $region18: #{tpu_custom_call.1} parent=1 // pred_check
      _
    $region19: #{tpu_custom_call.1} parent=1 // pred_check_branch
      %77 = sbr.rel (0) target = $region21
    $region20: #{tpu_custom_call.1} parent=1 // pred_region
      _
    $region21: #{tpu_custom_call.1} parent=1 // pred_fallthru
      _
    // Predicated region
    $region22: #{tpu_custom_call.1} parent=1 // pred_check
      _
    $region23: #{tpu_custom_call.1} parent=1 // pred_check_branch
      %79 = sbr.rel (0) target = $region25
    $region24: #{tpu_custom_call.1} parent=1 // pred_region
      %s81 = ssub.s32 8192, 8192
      %82 = vsyncadd [#allocation11], %s81
      %s83 = sshll.u32 [#allocation12], 4
      %s84 = int_to_ptr.vmem [resolvable:$true] %s83
      %89 = dma.hbm_to_vmem [thread:$0]  %s5, 8192, %s84, [#allocation11], 512, 512, 32
    $region25: #{tpu_custom_call.1} parent=1 // pred_fallthru
      _
    // Predicated region
    $region26: #{tpu_custom_call.1} parent=1 // pred_check
      _
    $region27: #{tpu_custom_call.1} parent=1 // pred_check_branch
      %91 = sbr.rel (0) target = $region29
    $region28: #{tpu_custom_call.1} parent=1 // pred_region
      %s93 = ssub.s32 8192, 8192
      %94 = vsyncadd [#allocation14], %s93
      %s95 = sshll.u32 [#allocation13], 4
      %s96 = int_to_ptr.vmem [resolvable:$true] %s95
      %101 = dma.hbm_to_vmem [thread:$0]  %s6, 8192, %s96, [#allocation14], 512, 512, 32
    $region29: #{tpu_custom_call.1} parent=1 // pred_fallthru
      _
    // Predicated region
    $region30: #{tpu_custom_call.1} parent=1 // pred_check
      _
    $region31: #{tpu_custom_call.1} parent=1 // pred_check_branch
      %103 = sbr.rel (0) target = $region33
    $region32: #{tpu_custom_call.1} parent=1 // pred_region
      _
    $region33: #{tpu_custom_call.1} parent=1 // pred_fallthru
      _
    // Predicated region
    $region34: #{tpu_custom_call.1} parent=1 // pred_check
      _
    $region35: #{tpu_custom_call.1} parent=1 // pred_check_branch
      %105 = sbr.rel (0) target = $region37
    $region36: #{tpu_custom_call.1} parent=1 // pred_region
      %s107 = ssub.s32 8192, 8192
      %108 = vsyncadd [#allocation14], %s107
      %s109 = sshll.u32 [#allocation15], 4
      %s110 = int_to_ptr.vmem [resolvable:$true] %s109
      %115 = dma.hbm_to_vmem [thread:$0]  %s8, 8192, %s110, [#allocation14], 512, 512, 32
    $region37: #{tpu_custom_call.1} parent=1 // pred_fallthru
      _
    // Predicated region
    $region38: #{tpu_custom_call.1} parent=1 // pred_check
      _
    $region39: #{tpu_custom_call.1} parent=1 // pred_check_branch
      %117 = sbr.rel (0) target = $region41
    $region40: #{tpu_custom_call.1} parent=1 // pred_region
      %s119 = ssub.s32 8192, 8192
      %120 = vsyncadd [#allocation17], %s119
      %s121 = sshll.u32 [#allocation16], 4
      %s122 = int_to_ptr.vmem [resolvable:$true] %s121
      %127 = dma.hbm_to_vmem [thread:$0]  %s9, 8192, %s122, [#allocation17], 512, 512, 32
    $region41: #{tpu_custom_call.1} parent=1 // pred_fallthru
      _
    // Predicated region
    $region42: #{tpu_custom_call.1} parent=1 // pred_check
      _
    $region43: #{tpu_custom_call.1} parent=1 // pred_check_branch
      %129 = sbr.rel (0) target = $region45
    $region44: #{tpu_custom_call.1} parent=1 // pred_region
      _
    $region45: #{tpu_custom_call.1} parent=1 // pred_fallthru
      _
    // Predicated region
    $region46: #{tpu_custom_call.1} parent=1 // pred_check
      _
    $region47: #{tpu_custom_call.1} parent=1 // pred_check_branch
      %131 = sbr.rel (0) target = $region49
    $region48: #{tpu_custom_call.1} parent=1 // pred_region
      %s133 = ssub.s32 2048, 2048
      %134 = vsyncadd [#allocation17], %s133
      %s135 = sshll.u32 [#allocation18], 4
      %s136 = int_to_ptr.vmem [resolvable:$true] %s135
      %141 = dma.hbm_to_vmem [thread:$0]  %s11, 2048, %s136, [#allocation17], 128, 128, 8
    $region49: #{tpu_custom_call.1} parent=1 // pred_fallthru
      _
    // Predicated region
    $region50: #{tpu_custom_call.1} parent=1 // pred_check
      _
    $region51: #{tpu_custom_call.1} parent=1 // pred_check_branch
      %143 = sbr.rel (0) target = $region53
    $region52: #{tpu_custom_call.1} parent=1 // pred_region
      _
    $region53: #{tpu_custom_call.1} parent=1 // pred_fallthru
      _
    // Predicated region
    $region54: #{tpu_custom_call.1} parent=1 // pred_check
      _
    $region55: #{tpu_custom_call.1} parent=1 // pred_check_branch
      %145 = sbr.rel (0) target = $region57
    $region56: #{tpu_custom_call.1} parent=1 // pred_region
      %146 = dma.done [#allocation5], 1024
    $region57: #{tpu_custom_call.1} parent=1 // pred_fallthru
      _
    // Predicated region
    $region58: #{tpu_custom_call.1} parent=1 // pred_check
      _
    $region59: #{tpu_custom_call.1} parent=1 // pred_check_branch
      %148 = sbr.rel (0) target = $region61
    $region60: #{tpu_custom_call.1} parent=1 // pred_region
      %149 = dma.done [#allocation8], 256
    $region61: #{tpu_custom_call.1} parent=1 // pred_fallthru
      _
    // Predicated region
    $region62: #{tpu_custom_call.1} parent=1 // pred_check
      _
    $region63: #{tpu_custom_call.1} parent=1 // pred_check_branch
      %151 = sbr.rel (0) target = $region65
    $region64: #{tpu_custom_call.1} parent=1 // pred_region
      %152 = dma.done [#allocation8], 256
    $region65: #{tpu_custom_call.1} parent=1 // pred_fallthru
      _
    // Predicated region
    $region66: #{tpu_custom_call.1} parent=1 // pred_check
      _
    $region67: #{tpu_custom_call.1} parent=1 // pred_check_branch
      %154 = sbr.rel (0) target = $region69
    $region68: #{tpu_custom_call.1} parent=1 // pred_region
      %155 = dma.done [#allocation11], 2048
    $region69: #{tpu_custom_call.1} parent=1 // pred_fallthru
      _
    // Predicated region
    $region70: #{tpu_custom_call.1} parent=1 // pred_check
      _
    $region71: #{tpu_custom_call.1} parent=1 // pred_check_branch
      %157 = sbr.rel (0) target = $region73
    $region72: #{tpu_custom_call.1} parent=1 // pred_region
      %158 = dma.done [#allocation11], 8192
    $region73: #{tpu_custom_call.1} parent=1 // pred_fallthru
      _
    // Predicated region
    $region74: #{tpu_custom_call.1} parent=1 // pred_check
      _
    $region75: #{tpu_custom_call.1} parent=1 // pred_check_branch
      %160 = sbr.rel (0) target = $region77
    $region76: #{tpu_custom_call.1} parent=1 // pred_region
      %161 = dma.done [#allocation14], 8192
    $region77: #{tpu_custom_call.1} parent=1 // pred_fallthru
      _
    // Predicated region
    $region78: #{tpu_custom_call.1} parent=1 // pred_check
      _
    $region79: #{tpu_custom_call.1} parent=1 // pred_check_branch
      %163 = sbr.rel (0) target = $region81
    $region80: #{tpu_custom_call.1} parent=1 // pred_region
      %164 = dma.done [#allocation14], 8192
    $region81: #{tpu_custom_call.1} parent=1 // pred_fallthru
      _
    // Predicated region
    $region82: #{tpu_custom_call.1} parent=1 // pred_check
      _
    $region83: #{tpu_custom_call.1} parent=1 // pred_check_branch
      %166 = sbr.rel (0) target = $region85
    $region84: #{tpu_custom_call.1} parent=1 // pred_region
      %167 = dma.done [#allocation17], 8192
    $region85: #{tpu_custom_call.1} parent=1 // pred_fallthru
      _
    // Predicated region
    $region86: #{tpu_custom_call.1} parent=1 // pred_check
      _
    $region87: #{tpu_custom_call.1} parent=1 // pred_check_branch
      %169 = sbr.rel (0) target = $region89
    $region88: #{tpu_custom_call.1} parent=1 // pred_region
      %170 = dma.done [#allocation17], 2048
    $region89: #{tpu_custom_call.1} parent=1 // pred_fallthru
      _
    %v171 = vld [vmem:[#allocation4] sm:$0xff]
    %v172 = vld [vmem:[#allocation4 + $0x8] sm:$0xff]
    %v173 = vld [vmem:[#allocation4 + $0x10] sm:$0xff]
    %v174 = vld [vmem:[#allocation4 + $0x18] sm:$0xff]
    %v175 = vld [vmem:[#allocation4 + $0x20] sm:$0xff]
    %v176 = vld [vmem:[#allocation4 + $0x28] sm:$0xff]
    %v177 = vld [vmem:[#allocation4 + $0x30] sm:$0xff]
    %v178 = vld [vmem:[#allocation4 + $0x38] sm:$0xff]
    %v179 = vld [vmem:[#allocation10] sm:$0xff]
    %v180 = vld [vmem:[#allocation10 + $0x8] sm:$0xff]
    %v181 = vld [vmem:[#allocation10 + $0x10] sm:$0xff]
    %v182 = vld [vmem:[#allocation10 + $0x18] sm:$0xff]
    %v183 = vld [vmem:[#allocation10 + $0x20] sm:$0xff]
    %v184 = vld [vmem:[#allocation10 + $0x28] sm:$0xff]
    %v185 = vld [vmem:[#allocation10 + $0x30] sm:$0xff]
    %v186 = vld [vmem:[#allocation10 + $0x38] sm:$0xff]
    %v187 = vld [vmem:[#allocation10 + $0x40] sm:$0xff]
    %v188 = vld [vmem:[#allocation10 + $0x48] sm:$0xff]
    %v189 = vld [vmem:[#allocation10 + $0x50] sm:$0xff]
    %v190 = vld [vmem:[#allocation10 + $0x58] sm:$0xff]
    %v191 = vld [vmem:[#allocation10 + $0x60] sm:$0xff]
    %v192 = vld [vmem:[#allocation10 + $0x68] sm:$0xff]
    %v193 = vld [vmem:[#allocation10 + $0x70] sm:$0xff]
    %v194 = vld [vmem:[#allocation10 + $0x78] sm:$0xff]
    %v195 = vld [vmem:[%s4] sm:$0x1]
    %v197 = vlaneseq
    %v198 = vshrl.u32 %v197, 7
    %v199 = vsub.s32 0, %v198
    %v200 = vrot.slane %v195, %v199
    %202 = vmatprep.subr.mxu0 0.0
    %203 = vmatpush1.msra.mxu0 %v179
    %204 = vmatprep.subr.mxu0 0.0
    %205 = vmatpush1.msra.mxu0 %v180
    %206 = vmatprep.subr.mxu0 0.0
    %207 = vmatpush1.msra.mxu0 %v181
    %208 = vmatprep.subr.mxu0 0.0
    %209 = vmatpush1.msra.mxu0 %v182
    %210 = vmatprep.subr.mxu0 0.0
    %211 = vmatpush1.msra.mxu0 %v183
    %212 = vmatprep.subr.mxu0 0.0
    %213 = vmatpush1.msra.mxu0 %v184
    %214 = vmatprep.subr.mxu0 0.0
    %215 = vmatpush1.msra.mxu0 %v185
    %216 = vmatprep.subr.mxu0 0.0
    %217 = vmatpush1.msra.mxu0 %v186
    %218 = vmatprep.subr.mxu0 0.0
    %219 = vmatpush1.msra.mxu0 %v187
    %220 = vmatprep.subr.mxu0 0.0
    %221 = vmatpush1.msra.mxu0 %v188
    %222 = vmatprep.subr.mxu0 0.0
    %223 = vmatpush1.msra.mxu0 %v189
    %224 = vmatprep.subr.mxu0 0.0
    %225 = vmatpush1.msra.mxu0 %v190
    %226 = vmatprep.subr.mxu0 0.0
    %227 = vmatpush1.msra.mxu0 %v191
    %228 = vmatprep.subr.mxu0 0.0
    %229 = vmatpush1.msra.mxu0 %v192
    %230 = vmatprep.subr.mxu0 0.0
    %231 = vmatpush1.msra.mxu0 %v193
    %232 = vmatprep.subr.mxu0 0.0
    %233 = vmatpush1.msra.mxu0 %v194
    %234 = vmatprep.subr.mxu0 0.0
    %235 = vmatpush1.msra.mxu0 0.0
    %236 = vmatprep.subr.mxu0 0.0
    %237 = vmatpush1.msra.mxu0 0.0
    %238 = vmatprep.subr.mxu0 0.0
    %239 = vmatpush1.msra.mxu0 0.0
    %240 = vmatprep.subr.mxu0 0.0
    %241 = vmatpush1.msra.mxu0 0.0
    %242 = vmatprep.subr.mxu0 0.0
    %243 = vmatpush1.msra.mxu0 0.0
    %244 = vmatprep.subr.mxu0 0.0
    %245 = vmatpush1.msra.mxu0 0.0
    %246 = vmatprep.subr.mxu0 0.0
    %247 = vmatpush1.msra.mxu0 0.0
    %248 = vmatprep.subr.mxu0 0.0
    %249 = vmatpush1.msra.mxu0 0.0
    %250 = vmatprep.subr.mxu0 0.0
    %251 = vmatpush1.msra.mxu0 0.0
    %252 = vmatprep.subr.mxu0 0.0
    %253 = vmatpush1.msra.mxu0 0.0
    %254 = vmatprep.subr.mxu0 0.0
    %255 = vmatpush1.msra.mxu0 0.0
    %256 = vmatprep.subr.mxu0 0.0
    %257 = vmatpush1.msra.mxu0 0.0
    %258 = vmatprep.subr.mxu0 0.0
    %259 = vmatpush1.msra.mxu0 0.0
    %260 = vmatprep.subr.mxu0 0.0
    %261 = vmatpush1.msra.mxu0 0.0
    %262 = vmatprep.subr.mxu0 0.0
    %263 = vmatpush1.msra.mxu0 0.0
    %264 = vmatprep.subr.mxu0 0.0
    %265 = vmatpush1.msra.mxu0 0.0
    %266 = vmatprep.mubr.f32.mxu0 0.0
    %267 = vmatmul.mubr.f32.gmra.mrb[0].mxu0 %v171
    %v268 = vpop.f32.mrb[0].mxu0
    %v269 = vadd.f32 %v200, %v268
    %v270 = vpop.f32.mrb[0].mxu0
    %271 = vmatprep.mubr.f32.mxu0 0.0
    %272 = vmatmul.mubr.f32.gmra.mrb[0].mxu0 %v172
    %v273 = vpop.f32.mrb[0].mxu0
    %v274 = vadd.f32 %v200, %v273
    %v275 = vpop.f32.mrb[0].mxu0
    %276 = vmatprep.mubr.f32.mxu0 0.0
    %277 = vmatmul.mubr.f32.gmra.mrb[0].mxu0 %v173
    %v278 = vpop.f32.mrb[0].mxu0
    %v279 = vadd.f32 %v200, %v278
    %v280 = vpop.f32.mrb[0].mxu0
    %281 = vmatprep.mubr.f32.mxu0 0.0
    %282 = vmatmul.mubr.f32.gmra.mrb[0].mxu0 %v174
    %v283 = vpop.f32.mrb[0].mxu0
    %v284 = vadd.f32 %v200, %v283
    %v285 = vpop.f32.mrb[0].mxu0
    %286 = vmatprep.mubr.f32.mxu0 0.0
    %287 = vmatmul.mubr.f32.gmra.mrb[0].mxu0 %v175
    %v288 = vpop.f32.mrb[0].mxu0
    %v289 = vadd.f32 %v200, %v288
    %v290 = vpop.f32.mrb[0].mxu0
    %291 = vmatprep.mubr.f32.mxu0 0.0
    %292 = vmatmul.mubr.f32.gmra.mrb[0].mxu0 %v176
    %v293 = vpop.f32.mrb[0].mxu0
    %v294 = vadd.f32 %v200, %v293
    %v295 = vpop.f32.mrb[0].mxu0
    %296 = vmatprep.mubr.f32.mxu0 0.0
    %297 = vmatmul.mubr.f32.gmra.mrb[0].mxu0 %v177
    %v298 = vpop.f32.mrb[0].mxu0
    %v299 = vadd.f32 %v200, %v298
    %v300 = vpop.f32.mrb[0].mxu0
    %301 = vmatprep.mubr.f32.mxu0 0.0
    %302 = vmatmul.mubr.f32.gmra.mrb[0].mxu0 %v178
    %v303 = vpop.f32.mrb[0].mxu0
    %v304 = vadd.f32 %v200, %v303
    %v305 = vpop.f32.mrb[0].mxu0
    %306 = vdwg.mxu0
    %v307 = vld [vmem:[#allocation12] sm:$0xff]
    %v308 = vld [vmem:[#allocation12 + $0x8] sm:$0xff]
    %v309 = vld [vmem:[#allocation12 + $0x10] sm:$0xff]
    %v310 = vld [vmem:[#allocation12 + $0x18] sm:$0xff]
    %v311 = vld [vmem:[#allocation12 + $0x20] sm:$0xff]
    %v312 = vld [vmem:[#allocation12 + $0x28] sm:$0xff]
    %v313 = vld [vmem:[#allocation12 + $0x30] sm:$0xff]
    %v314 = vld [vmem:[#allocation12 + $0x38] sm:$0xff]
    %v315 = vld [vmem:[#allocation12 + $0x40] sm:$0xff]
    %v316 = vld [vmem:[#allocation12 + $0x48] sm:$0xff]
    %v317 = vld [vmem:[#allocation12 + $0x50] sm:$0xff]
    %v318 = vld [vmem:[#allocation12 + $0x58] sm:$0xff]
    %v319 = vld [vmem:[#allocation12 + $0x60] sm:$0xff]
    %v320 = vld [vmem:[#allocation12 + $0x68] sm:$0xff]
    %v321 = vld [vmem:[#allocation12 + $0x70] sm:$0xff]
    %v322 = vld [vmem:[#allocation12 + $0x78] sm:$0xff]
    %v323 = vld [vmem:[#allocation12 + $0x80] sm:$0xff]
    %v324 = vld [vmem:[#allocation12 + $0x88] sm:$0xff]
    %v325 = vld [vmem:[#allocation12 + $0x90] sm:$0xff]
    %v326 = vld [vmem:[#allocation12 + $0x98] sm:$0xff]
    %v327 = vld [vmem:[#allocation12 + $0xa0] sm:$0xff]
    %v328 = vld [vmem:[#allocation12 + $0xa8] sm:$0xff]
    %v329 = vld [vmem:[#allocation12 + $0xb0] sm:$0xff]
    %v330 = vld [vmem:[#allocation12 + $0xb8] sm:$0xff]
    %v331 = vld [vmem:[#allocation12 + $0xc0] sm:$0xff]
    %v332 = vld [vmem:[#allocation12 + $0xc8] sm:$0xff]
    %v333 = vld [vmem:[#allocation12 + $0xd0] sm:$0xff]
    %v334 = vld [vmem:[#allocation12 + $0xd8] sm:$0xff]
    %v335 = vld [vmem:[#allocation12 + $0xe0] sm:$0xff]
    %v336 = vld [vmem:[#allocation12 + $0xe8] sm:$0xff]
    %v337 = vld [vmem:[#allocation12 + $0xf0] sm:$0xff]
    %v338 = vld [vmem:[#allocation12 + $0xf8] sm:$0xff]
    %v339 = vld [vmem:[#allocation12 + $0x100] sm:$0xff]
    %v340 = vld [vmem:[#allocation12 + $0x108] sm:$0xff]
    %v341 = vld [vmem:[#allocation12 + $0x110] sm:$0xff]
    %v342 = vld [vmem:[#allocation12 + $0x118] sm:$0xff]
    %v343 = vld [vmem:[#allocation12 + $0x120] sm:$0xff]
    %v344 = vld [vmem:[#allocation12 + $0x128] sm:$0xff]
    %v345 = vld [vmem:[#allocation12 + $0x130] sm:$0xff]
    %v346 = vld [vmem:[#allocation12 + $0x138] sm:$0xff]
    %v347 = vld [vmem:[#allocation12 + $0x140] sm:$0xff]
    %v348 = vld [vmem:[#allocation12 + $0x148] sm:$0xff]
    %v349 = vld [vmem:[#allocation12 + $0x150] sm:$0xff]
    %v350 = vld [vmem:[#allocation12 + $0x158] sm:$0xff]
    %v351 = vld [vmem:[#allocation12 + $0x160] sm:$0xff]
    %v352 = vld [vmem:[#allocation12 + $0x168] sm:$0xff]
    %v353 = vld [vmem:[#allocation12 + $0x170] sm:$0xff]
    %v354 = vld [vmem:[#allocation12 + $0x178] sm:$0xff]
    %v355 = vld [vmem:[#allocation12 + $0x180] sm:$0xff]
    %v356 = vld [vmem:[#allocation12 + $0x188] sm:$0xff]
    %v357 = vld [vmem:[#allocation12 + $0x190] sm:$0xff]
    %v358 = vld [vmem:[#allocation12 + $0x198] sm:$0xff]
    %v359 = vld [vmem:[#allocation12 + $0x1a0] sm:$0xff]
    %v360 = vld [vmem:[#allocation12 + $0x1a8] sm:$0xff]
    %v361 = vld [vmem:[#allocation12 + $0x1b0] sm:$0xff]
    %v362 = vld [vmem:[#allocation12 + $0x1b8] sm:$0xff]
    %v363 = vld [vmem:[#allocation12 + $0x1c0] sm:$0xff]
    %v364 = vld [vmem:[#allocation12 + $0x1c8] sm:$0xff]
    %v365 = vld [vmem:[#allocation12 + $0x1d0] sm:$0xff]
    %v366 = vld [vmem:[#allocation12 + $0x1d8] sm:$0xff]
    %v367 = vld [vmem:[#allocation12 + $0x1e0] sm:$0xff]
    %v368 = vld [vmem:[#allocation12 + $0x1e8] sm:$0xff]
    %v369 = vld [vmem:[#allocation12 + $0x1f0] sm:$0xff]
    %v370 = vld [vmem:[#allocation12 + $0x1f8] sm:$0xff]
    %v371 = vld [vmem:[%s7] sm:$0xf]
    %v373 = vlaneseq
    %v374 = vshrl.u32 %v373, 7
    %v375 = vsub.s32 0, %v374
    %v376 = vrot.slane %v371, %v375
    %v377 = vlaneseq
    %v378 = vshrl.u32 %v377, 7
    %v379 = vsub.s32 1, %v378
    %v380 = vrot.slane %v371, %v379
    %v381 = vlaneseq
    %v382 = vshrl.u32 %v381, 7
    %v383 = vsub.s32 2, %v382
    %v384 = vrot.slane %v371, %v383
    %v385 = vlaneseq
    %v386 = vshrl.u32 %v385, 7
    %v387 = vsub.s32 3, %v386
    %v388 = vrot.slane %v371, %v387
    %393 = vmatprep.subr.mxu0 %v308
    %394 = vmatpush1.msra.mxu0 %v307
    %395 = vmatprep.subr.mxu0 %v312
    %396 = vmatpush1.msra.mxu0 %v311
    %397 = vmatprep.subr.mxu0 %v316
    %398 = vmatpush1.msra.mxu0 %v315
    %399 = vmatprep.subr.mxu0 %v320
    %400 = vmatpush1.msra.mxu0 %v319
    %401 = vmatprep.subr.mxu0 %v324
    %402 = vmatpush1.msra.mxu0 %v323
    %403 = vmatprep.subr.mxu0 %v328
    %404 = vmatpush1.msra.mxu0 %v327
    %405 = vmatprep.subr.mxu0 %v332
    %406 = vmatpush1.msra.mxu0 %v331
    %407 = vmatprep.subr.mxu0 %v336
    %408 = vmatpush1.msra.mxu0 %v335
    %409 = vmatprep.subr.mxu0 %v340
    %410 = vmatpush1.msra.mxu0 %v339
    %411 = vmatprep.subr.mxu0 %v344
    %412 = vmatpush1.msra.mxu0 %v343
    %413 = vmatprep.subr.mxu0 %v348
    %414 = vmatpush1.msra.mxu0 %v347
    %415 = vmatprep.subr.mxu0 %v352
    %416 = vmatpush1.msra.mxu0 %v351
    %417 = vmatprep.subr.mxu0 %v356
    %418 = vmatpush1.msra.mxu0 %v355
    %419 = vmatprep.subr.mxu0 %v360
    %420 = vmatpush1.msra.mxu0 %v359
    %421 = vmatprep.subr.mxu0 %v364
    %422 = vmatpush1.msra.mxu0 %v363
    %423 = vmatprep.subr.mxu0 %v368
    %424 = vmatpush1.msra.mxu0 %v367
    %425 = vmatprep.subr.mxu0 0.0
    %426 = vmatpush1.msra.mxu0 0.0
    %427 = vmatprep.subr.mxu0 0.0
    %428 = vmatpush1.msra.mxu0 0.0
    %429 = vmatprep.subr.mxu0 0.0
    %430 = vmatpush1.msra.mxu0 0.0
    %431 = vmatprep.subr.mxu0 0.0
    %432 = vmatpush1.msra.mxu0 0.0
    %433 = vmatprep.subr.mxu0 0.0
    %434 = vmatpush1.msra.mxu0 0.0
    %435 = vmatprep.subr.mxu0 0.0
    %436 = vmatpush1.msra.mxu0 0.0
    %437 = vmatprep.subr.mxu0 0.0
    %438 = vmatpush1.msra.mxu0 0.0
    %439 = vmatprep.subr.mxu0 0.0
    %440 = vmatpush1.msra.mxu0 0.0
    %441 = vmatprep.subr.mxu0 0.0
    %442 = vmatpush1.msra.mxu0 0.0
    %443 = vmatprep.subr.mxu0 0.0
    %444 = vmatpush1.msra.mxu0 0.0
    %445 = vmatprep.subr.mxu0 0.0
    %446 = vmatpush1.msra.mxu0 0.0
    %447 = vmatprep.subr.mxu0 0.0
    %448 = vmatpush1.msra.mxu0 0.0
    %449 = vmatprep.subr.mxu0 0.0
    %450 = vmatpush1.msra.mxu0 0.0
    %451 = vmatprep.subr.mxu0 0.0
    %452 = vmatpush1.msra.mxu0 0.0
    %453 = vmatprep.subr.mxu0 0.0
    %454 = vmatpush1.msra.mxu0 0.0
    %455 = vmatprep.subr.mxu0 0.0
    %456 = vmatpush1.msra.mxu0 0.0
    %457 = vmatprep.mubr.f32.mxu0 0.0
    %458 = vmatmul.mubr.f32.gmra.mrb[0].mxu0 %v269
    %v459 = vpop.f32.mrb[0].mxu0
    %v460 = vadd.f32 %v376, %v459
    %v461 = vpop.f32.mrb[0].mxu0
    %v462 = vadd.f32 %v380, %v461
    %463 = vmatprep.mubr.f32.mxu0 0.0
    %464 = vmatmul.mubr.f32.gmra.mrb[0].mxu0 %v274
    %v465 = vpop.f32.mrb[0].mxu0
    %v466 = vadd.f32 %v376, %v465
    %v467 = vpop.f32.mrb[0].mxu0
    %v468 = vadd.f32 %v380, %v467
    %469 = vmatprep.mubr.f32.mxu0 0.0
    %470 = vmatmul.mubr.f32.gmra.mrb[0].mxu0 %v279
    %v471 = vpop.f32.mrb[0].mxu0
    %v472 = vadd.f32 %v376, %v471
    %v473 = vpop.f32.mrb[0].mxu0
    %v474 = vadd.f32 %v380, %v473
    %475 = vmatprep.mubr.f32.mxu0 0.0
    %476 = vmatmul.mubr.f32.gmra.mrb[0].mxu0 %v284
    %v477 = vpop.f32.mrb[0].mxu0
    %v478 = vadd.f32 %v376, %v477
    %v479 = vpop.f32.mrb[0].mxu0
    %v480 = vadd.f32 %v380, %v479
    %481 = vmatprep.mubr.f32.mxu0 0.0
    %482 = vmatmul.mubr.f32.gmra.mrb[0].mxu0 %v289
    %v483 = vpop.f32.mrb[0].mxu0
    %v484 = vadd.f32 %v376, %v483
    %v485 = vpop.f32.mrb[0].mxu0
    %v486 = vadd.f32 %v380, %v485
    %487 = vmatprep.mubr.f32.mxu0 0.0
    %488 = vmatmul.mubr.f32.gmra.mrb[0].mxu0 %v294
    %v489 = vpop.f32.mrb[0].mxu0
    %v490 = vadd.f32 %v376, %v489
    %v491 = vpop.f32.mrb[0].mxu0
    %v492 = vadd.f32 %v380, %v491
    %493 = vmatprep.mubr.f32.mxu0 0.0
    %494 = vmatmul.mubr.f32.gmra.mrb[0].mxu0 %v299
    %v495 = vpop.f32.mrb[0].mxu0
    %v496 = vadd.f32 %v376, %v495
    %v497 = vpop.f32.mrb[0].mxu0
    %v498 = vadd.f32 %v380, %v497
    %499 = vmatprep.mubr.f32.mxu0 0.0
    %500 = vmatmul.mubr.f32.gmra.mrb[0].mxu0 %v304
    %v501 = vpop.f32.mrb[0].mxu0
    %v502 = vadd.f32 %v376, %v501
    %v503 = vpop.f32.mrb[0].mxu0
    %v504 = vadd.f32 %v380, %v503
    %505 = vdwg.mxu0
    %506 = vmatprep.subr.mxu0 %v310
    %507 = vmatpush1.msra.mxu0 %v309
    %508 = vmatprep.subr.mxu0 %v314
    %509 = vmatpush1.msra.mxu0 %v313
    %510 = vmatprep.subr.mxu0 %v318
    %511 = vmatpush1.msra.mxu0 %v317
    %512 = vmatprep.subr.mxu0 %v322
    %513 = vmatpush1.msra.mxu0 %v321
    %514 = vmatprep.subr.mxu0 %v326
    %515 = vmatpush1.msra.mxu0 %v325
    %516 = vmatprep.subr.mxu0 %v330
    %517 = vmatpush1.msra.mxu0 %v329
    %518 = vmatprep.subr.mxu0 %v334
    %519 = vmatpush1.msra.mxu0 %v333
    %520 = vmatprep.subr.mxu0 %v338
    %521 = vmatpush1.msra.mxu0 %v337
    %522 = vmatprep.subr.mxu0 %v342
    %523 = vmatpush1.msra.mxu0 %v341
    %524 = vmatprep.subr.mxu0 %v346
    %525 = vmatpush1.msra.mxu0 %v345
    %526 = vmatprep.subr.mxu0 %v350
    %527 = vmatpush1.msra.mxu0 %v349
    %528 = vmatprep.subr.mxu0 %v354
    %529 = vmatpush1.msra.mxu0 %v353
    %530 = vmatprep.subr.mxu0 %v358
    %531 = vmatpush1.msra.mxu0 %v357
    %532 = vmatprep.subr.mxu0 %v362
    %533 = vmatpush1.msra.mxu0 %v361
    %534 = vmatprep.subr.mxu0 %v366
    %535 = vmatpush1.msra.mxu0 %v365
    %536 = vmatprep.subr.mxu0 %v370
    %537 = vmatpush1.msra.mxu0 %v369
    %538 = vmatprep.subr.mxu0 0.0
    %539 = vmatpush1.msra.mxu0 0.0
    %540 = vmatprep.subr.mxu0 0.0
    %541 = vmatpush1.msra.mxu0 0.0
    %542 = vmatprep.subr.mxu0 0.0
    %543 = vmatpush1.msra.mxu0 0.0
    %544 = vmatprep.subr.mxu0 0.0
    %545 = vmatpush1.msra.mxu0 0.0
    %546 = vmatprep.subr.mxu0 0.0
    %547 = vmatpush1.msra.mxu0 0.0
    %548 = vmatprep.subr.mxu0 0.0
    %549 = vmatpush1.msra.mxu0 0.0
    %550 = vmatprep.subr.mxu0 0.0
    %551 = vmatpush1.msra.mxu0 0.0
    %552 = vmatprep.subr.mxu0 0.0
    %553 = vmatpush1.msra.mxu0 0.0
    %554 = vmatprep.subr.mxu0 0.0
    %555 = vmatpush1.msra.mxu0 0.0
    %556 = vmatprep.subr.mxu0 0.0
    %557 = vmatpush1.msra.mxu0 0.0
    %558 = vmatprep.subr.mxu0 0.0
    %559 = vmatpush1.msra.mxu0 0.0
    %560 = vmatprep.subr.mxu0 0.0
    %561 = vmatpush1.msra.mxu0 0.0
    %562 = vmatprep.subr.mxu0 0.0
    %563 = vmatpush1.msra.mxu0 0.0
    %564 = vmatprep.subr.mxu0 0.0
    %565 = vmatpush1.msra.mxu0 0.0
    %566 = vmatprep.subr.mxu0 0.0
    %567 = vmatpush1.msra.mxu0 0.0
    %568 = vmatprep.subr.mxu0 0.0
    %569 = vmatpush1.msra.mxu0 0.0
    %570 = vmatprep.mubr.f32.mxu0 0.0
    %571 = vmatmul.mubr.f32.gmra.mrb[0].mxu0 %v269
    %v572 = vpop.f32.mrb[0].mxu0
    %v573 = vadd.f32 %v384, %v572
    %v574 = vpop.f32.mrb[0].mxu0
    %v575 = vadd.f32 %v388, %v574
    %576 = vmatprep.mubr.f32.mxu0 0.0
    %577 = vmatmul.mubr.f32.gmra.mrb[0].mxu0 %v274
    %v578 = vpop.f32.mrb[0].mxu0
    %v579 = vadd.f32 %v384, %v578
    %v580 = vpop.f32.mrb[0].mxu0
    %v581 = vadd.f32 %v388, %v580
    %582 = vmatprep.mubr.f32.mxu0 0.0
    %583 = vmatmul.mubr.f32.gmra.mrb[0].mxu0 %v279
    %v584 = vpop.f32.mrb[0].mxu0
    %v585 = vadd.f32 %v384, %v584
    %v586 = vpop.f32.mrb[0].mxu0
    %v587 = vadd.f32 %v388, %v586
    %588 = vmatprep.mubr.f32.mxu0 0.0
    %589 = vmatmul.mubr.f32.gmra.mrb[0].mxu0 %v284
    %v590 = vpop.f32.mrb[0].mxu0
    %v591 = vadd.f32 %v384, %v590
    %v592 = vpop.f32.mrb[0].mxu0
    %v593 = vadd.f32 %v388, %v592
    %594 = vmatprep.mubr.f32.mxu0 0.0
    %595 = vmatmul.mubr.f32.gmra.mrb[0].mxu0 %v289
    %v596 = vpop.f32.mrb[0].mxu0
    %v597 = vadd.f32 %v384, %v596
    %v598 = vpop.f32.mrb[0].mxu0
    %v599 = vadd.f32 %v388, %v598
    %600 = vmatprep.mubr.f32.mxu0 0.0
    %601 = vmatmul.mubr.f32.gmra.mrb[0].mxu0 %v294
    %v602 = vpop.f32.mrb[0].mxu0
    %v603 = vadd.f32 %v384, %v602
    %v604 = vpop.f32.mrb[0].mxu0
    %v605 = vadd.f32 %v388, %v604
    %606 = vmatprep.mubr.f32.mxu0 0.0
    %607 = vmatmul.mubr.f32.gmra.mrb[0].mxu0 %v299
    %v608 = vpop.f32.mrb[0].mxu0
    %v609 = vadd.f32 %v384, %v608
    %v610 = vpop.f32.mrb[0].mxu0
    %v611 = vadd.f32 %v388, %v610
    %612 = vmatprep.mubr.f32.mxu0 0.0
    %613 = vmatmul.mubr.f32.gmra.mrb[0].mxu0 %v304
    %v614 = vpop.f32.mrb[0].mxu0
    %v615 = vadd.f32 %v384, %v614
    %v616 = vpop.f32.mrb[0].mxu0
    %v617 = vadd.f32 %v388, %v616
    %618 = vdwg.mxu0
    %619 = vst [vmem:[#allocation2] sm:$0xff] %v460
    %620 = vst [vmem:[#allocation2 + $0x8] sm:$0xff] %v462
    %621 = vst [vmem:[#allocation2 + $0x10] sm:$0xff] %v573
    %622 = vst [vmem:[#allocation2 + $0x18] sm:$0xff] %v575
    %623 = vst [vmem:[#allocation2 + $0x20] sm:$0xff] %v466
    %624 = vst [vmem:[#allocation2 + $0x28] sm:$0xff] %v468
    %625 = vst [vmem:[#allocation2 + $0x30] sm:$0xff] %v579
    %626 = vst [vmem:[#allocation2 + $0x38] sm:$0xff] %v581
    %627 = vst [vmem:[#allocation2 + $0x40] sm:$0xff] %v472
    %628 = vst [vmem:[#allocation2 + $0x48] sm:$0xff] %v474
    %629 = vst [vmem:[#allocation2 + $0x50] sm:$0xff] %v585
    %630 = vst [vmem:[#allocation2 + $0x58] sm:$0xff] %v587
    %631 = vst [vmem:[#allocation2 + $0x60] sm:$0xff] %v478
    %632 = vst [vmem:[#allocation2 + $0x68] sm:$0xff] %v480
    %633 = vst [vmem:[#allocation2 + $0x70] sm:$0xff] %v591
    %634 = vst [vmem:[#allocation2 + $0x78] sm:$0xff] %v593
    %635 = vst [vmem:[#allocation2 + $0x80] sm:$0xff] %v484
    %636 = vst [vmem:[#allocation2 + $0x88] sm:$0xff] %v486
    %637 = vst [vmem:[#allocation2 + $0x90] sm:$0xff] %v597
    %638 = vst [vmem:[#allocation2 + $0x98] sm:$0xff] %v599
    %639 = vst [vmem:[#allocation2 + $0xa0] sm:$0xff] %v490
    %640 = vst [vmem:[#allocation2 + $0xa8] sm:$0xff] %v492
    %641 = vst [vmem:[#allocation2 + $0xb0] sm:$0xff] %v603
    %642 = vst [vmem:[#allocation2 + $0xb8] sm:$0xff] %v605
    %643 = vst [vmem:[#allocation2 + $0xc0] sm:$0xff] %v496
    %644 = vst [vmem:[#allocation2 + $0xc8] sm:$0xff] %v498
    %645 = vst [vmem:[#allocation2 + $0xd0] sm:$0xff] %v609
    %646 = vst [vmem:[#allocation2 + $0xd8] sm:$0xff] %v611
    %647 = vst [vmem:[#allocation2 + $0xe0] sm:$0xff] %v502
    %648 = vst [vmem:[#allocation2 + $0xe8] sm:$0xff] %v504
    %649 = vst [vmem:[#allocation2 + $0xf0] sm:$0xff] %v615
    %650 = vst [vmem:[#allocation2 + $0xf8] sm:$0xff] %v617
    %v651 = vld [vmem:[#allocation7] sm:$0xff]
    %v652 = vld [vmem:[#allocation9] sm:$0xff]
    %v653 = vld [vmem:[#allocation2] sm:$0xff]
    %v654 = vld [vmem:[#allocation2 + $0x8] sm:$0xff]
    %v655 = vld [vmem:[#allocation2 + $0x10] sm:$0xff]
    %v656 = vld [vmem:[#allocation2 + $0x18] sm:$0xff]
    %v657 = vld [vmem:[#allocation13] sm:$0xff]
    %v658 = vld [vmem:[#allocation13 + $0x8] sm:$0xff]
    %v659 = vld [vmem:[#allocation13 + $0x10] sm:$0xff]
    %v660 = vld [vmem:[#allocation13 + $0x18] sm:$0xff]
    %v661 = vld [vmem:[#allocation13 + $0x20] sm:$0xff]
    %v662 = vld [vmem:[#allocation13 + $0x28] sm:$0xff]
    %v663 = vld [vmem:[#allocation13 + $0x30] sm:$0xff]
    %v664 = vld [vmem:[#allocation13 + $0x38] sm:$0xff]
    %v665 = vld [vmem:[#allocation13 + $0x40] sm:$0xff]
    %v666 = vld [vmem:[#allocation13 + $0x48] sm:$0xff]
    %v667 = vld [vmem:[#allocation13 + $0x50] sm:$0xff]
    %v668 = vld [vmem:[#allocation13 + $0x58] sm:$0xff]
    %v669 = vld [vmem:[#allocation13 + $0x60] sm:$0xff]
    %v670 = vld [vmem:[#allocation13 + $0x68] sm:$0xff]
    %v671 = vld [vmem:[#allocation13 + $0x70] sm:$0xff]
    %v672 = vld [vmem:[#allocation13 + $0x78] sm:$0xff]
    %v673 = vld [vmem:[#allocation13 + $0x80] sm:$0xff]
    %v674 = vld [vmem:[#allocation13 + $0x88] sm:$0xff]
    %v675 = vld [vmem:[#allocation13 + $0x90] sm:$0xff]
    %v676 = vld [vmem:[#allocation13 + $0x98] sm:$0xff]
    %v677 = vld [vmem:[#allocation13 + $0xa0] sm:$0xff]
    %v678 = vld [vmem:[#allocation13 + $0xa8] sm:$0xff]
    %v679 = vld [vmem:[#allocation13 + $0xb0] sm:$0xff]
    %v680 = vld [vmem:[#allocation13 + $0xb8] sm:$0xff]
    %v681 = vld [vmem:[#allocation13 + $0xc0] sm:$0xff]
    %v682 = vld [vmem:[#allocation13 + $0xc8] sm:$0xff]
    %v683 = vld [vmem:[#allocation13 + $0xd0] sm:$0xff]
    %v684 = vld [vmem:[#allocation13 + $0xd8] sm:$0xff]
    %v685 = vld [vmem:[#allocation13 + $0xe0] sm:$0xff]
    %v686 = vld [vmem:[#allocation13 + $0xe8] sm:$0xff]
    %v687 = vld [vmem:[#allocation13 + $0xf0] sm:$0xff]
    %v688 = vld [vmem:[#allocation13 + $0xf8] sm:$0xff]
    %v689 = vld [vmem:[#allocation13 + $0x100] sm:$0xff]
    %v690 = vld [vmem:[#allocation13 + $0x108] sm:$0xff]
    %v691 = vld [vmem:[#allocation13 + $0x110] sm:$0xff]
    %v692 = vld [vmem:[#allocation13 + $0x118] sm:$0xff]
    %v693 = vld [vmem:[#allocation13 + $0x120] sm:$0xff]
    %v694 = vld [vmem:[#allocation13 + $0x128] sm:$0xff]
    %v695 = vld [vmem:[#allocation13 + $0x130] sm:$0xff]
    %v696 = vld [vmem:[#allocation13 + $0x138] sm:$0xff]
    %v697 = vld [vmem:[#allocation13 + $0x140] sm:$0xff]
    %v698 = vld [vmem:[#allocation13 + $0x148] sm:$0xff]
    %v699 = vld [vmem:[#allocation13 + $0x150] sm:$0xff]
    %v700 = vld [vmem:[#allocation13 + $0x158] sm:$0xff]
    %v701 = vld [vmem:[#allocation13 + $0x160] sm:$0xff]
    %v702 = vld [vmem:[#allocation13 + $0x168] sm:$0xff]
    %v703 = vld [vmem:[#allocation13 + $0x170] sm:$0xff]
    %v704 = vld [vmem:[#allocation13 + $0x178] sm:$0xff]
    %v705 = vld [vmem:[#allocation13 + $0x180] sm:$0xff]
    %v706 = vld [vmem:[#allocation13 + $0x188] sm:$0xff]
    %v707 = vld [vmem:[#allocation13 + $0x190] sm:$0xff]
    %v708 = vld [vmem:[#allocation13 + $0x198] sm:$0xff]
    %v709 = vld [vmem:[#allocation13 + $0x1a0] sm:$0xff]
    %v710 = vld [vmem:[#allocation13 + $0x1a8] sm:$0xff]
    %v711 = vld [vmem:[#allocation13 + $0x1b0] sm:$0xff]
    %v712 = vld [vmem:[#allocation13 + $0x1b8] sm:$0xff]
    %v713 = vld [vmem:[#allocation13 + $0x1c0] sm:$0xff]
    %v714 = vld [vmem:[#allocation13 + $0x1c8] sm:$0xff]
    %v715 = vld [vmem:[#allocation13 + $0x1d0] sm:$0xff]
    %v716 = vld [vmem:[#allocation13 + $0x1d8] sm:$0xff]
    %v717 = vld [vmem:[#allocation13 + $0x1e0] sm:$0xff]
    %v718 = vld [vmem:[#allocation13 + $0x1e8] sm:$0xff]
    %v719 = vld [vmem:[#allocation13 + $0x1f0] sm:$0xff]
    %v720 = vld [vmem:[#allocation13 + $0x1f8] sm:$0xff]
    %721 = vmatprep.subr.mxu0 %v658
    %722 = vmatpush1.msra.mxu0 %v657
    %723 = vmatprep.subr.mxu0 %v662
    %724 = vmatpush1.msra.mxu0 %v661
    %725 = vmatprep.subr.mxu0 %v666
    %726 = vmatpush1.msra.mxu0 %v665
    %727 = vmatprep.subr.mxu0 %v670
    %728 = vmatpush1.msra.mxu0 %v669
    %729 = vmatprep.subr.mxu0 %v674
    %730 = vmatpush1.msra.mxu0 %v673
    %731 = vmatprep.subr.mxu0 %v678
    %732 = vmatpush1.msra.mxu0 %v677
    %733 = vmatprep.subr.mxu0 %v682
    %734 = vmatpush1.msra.mxu0 %v681
    %735 = vmatprep.subr.mxu0 %v686
    %736 = vmatpush1.msra.mxu0 %v685
    %737 = vmatprep.subr.mxu0 %v690
    %738 = vmatpush1.msra.mxu0 %v689
    %739 = vmatprep.subr.mxu0 %v694
    %740 = vmatpush1.msra.mxu0 %v693
    %741 = vmatprep.subr.mxu0 %v698
    %742 = vmatpush1.msra.mxu0 %v697
    %743 = vmatprep.subr.mxu0 %v702
    %744 = vmatpush1.msra.mxu0 %v701
    %745 = vmatprep.subr.mxu0 %v706
    %746 = vmatpush1.msra.mxu0 %v705
    %747 = vmatprep.subr.mxu0 %v710
    %748 = vmatpush1.msra.mxu0 %v709
    %749 = vmatprep.subr.mxu0 %v714
    %750 = vmatpush1.msra.mxu0 %v713
    %751 = vmatprep.subr.mxu0 %v718
    %752 = vmatpush1.msra.mxu0 %v717
    %753 = vmatprep.subr.mxu0 0.0
    %754 = vmatpush1.msra.mxu0 0.0
    %755 = vmatprep.subr.mxu0 0.0
    %756 = vmatpush1.msra.mxu0 0.0
    %757 = vmatprep.subr.mxu0 0.0
    %758 = vmatpush1.msra.mxu0 0.0
    %759 = vmatprep.subr.mxu0 0.0
    %760 = vmatpush1.msra.mxu0 0.0
    %761 = vmatprep.subr.mxu0 0.0
    %762 = vmatpush1.msra.mxu0 0.0
    %763 = vmatprep.subr.mxu0 0.0
    %764 = vmatpush1.msra.mxu0 0.0
    %765 = vmatprep.subr.mxu0 0.0
    %766 = vmatpush1.msra.mxu0 0.0
    %767 = vmatprep.subr.mxu0 0.0
    %768 = vmatpush1.msra.mxu0 0.0
    %769 = vmatprep.subr.mxu0 0.0
    %770 = vmatpush1.msra.mxu0 0.0
    %771 = vmatprep.subr.mxu0 0.0
    %772 = vmatpush1.msra.mxu0 0.0
    %773 = vmatprep.subr.mxu0 0.0
    %774 = vmatpush1.msra.mxu0 0.0
    %775 = vmatprep.subr.mxu0 0.0
    %776 = vmatpush1.msra.mxu0 0.0
    %777 = vmatprep.subr.mxu0 0.0
    %778 = vmatpush1.msra.mxu0 0.0
    %779 = vmatprep.subr.mxu0 0.0
    %780 = vmatpush1.msra.mxu0 0.0
    %781 = vmatprep.subr.mxu0 0.0
    %782 = vmatpush1.msra.mxu0 0.0
    %783 = vmatprep.subr.mxu0 0.0
    %784 = vmatpush1.msra.mxu0 0.0
    %785 = vmatprep.mubr.f32.mxu0 0.0
    %786 = vmatmul.mubr.f32.gmra.mrb[0].mxu0 %v651
    %v787 = vpop.f32.mrb[0].mxu0
    %v788 = vadd.f32 0.0, %v787
    %v789 = vpop.f32.mrb[0].mxu0
    %v790 = vadd.f32 0.0, %v789
    %791 = vdwg.mxu0
    %792 = vmatprep.subr.mxu0 %v660
    %793 = vmatpush1.msra.mxu0 %v659
    %794 = vmatprep.subr.mxu0 %v664
    %795 = vmatpush1.msra.mxu0 %v663
    %796 = vmatprep.subr.mxu0 %v668
    %797 = vmatpush1.msra.mxu0 %v667
    %798 = vmatprep.subr.mxu0 %v672
    %799 = vmatpush1.msra.mxu0 %v671
    %800 = vmatprep.subr.mxu0 %v676
    %801 = vmatpush1.msra.mxu0 %v675
    %802 = vmatprep.subr.mxu0 %v680
    %803 = vmatpush1.msra.mxu0 %v679
    %804 = vmatprep.subr.mxu0 %v684
    %805 = vmatpush1.msra.mxu0 %v683
    %806 = vmatprep.subr.mxu0 %v688
    %807 = vmatpush1.msra.mxu0 %v687
    %808 = vmatprep.subr.mxu0 %v692
    %809 = vmatpush1.msra.mxu0 %v691
    %810 = vmatprep.subr.mxu0 %v696
    %811 = vmatpush1.msra.mxu0 %v695
    %812 = vmatprep.subr.mxu0 %v700
    %813 = vmatpush1.msra.mxu0 %v699
    %814 = vmatprep.subr.mxu0 %v704
    %815 = vmatpush1.msra.mxu0 %v703
    %816 = vmatprep.subr.mxu0 %v708
    %817 = vmatpush1.msra.mxu0 %v707
    %818 = vmatprep.subr.mxu0 %v712
    %819 = vmatpush1.msra.mxu0 %v711
    %820 = vmatprep.subr.mxu0 %v716
    %821 = vmatpush1.msra.mxu0 %v715
    %822 = vmatprep.subr.mxu0 %v720
    %823 = vmatpush1.msra.mxu0 %v719
    %824 = vmatprep.subr.mxu0 0.0
    %825 = vmatpush1.msra.mxu0 0.0
    %826 = vmatprep.subr.mxu0 0.0
    %827 = vmatpush1.msra.mxu0 0.0
    %828 = vmatprep.subr.mxu0 0.0
    %829 = vmatpush1.msra.mxu0 0.0
    %830 = vmatprep.subr.mxu0 0.0
    %831 = vmatpush1.msra.mxu0 0.0
    %832 = vmatprep.subr.mxu0 0.0
    %833 = vmatpush1.msra.mxu0 0.0
    %834 = vmatprep.subr.mxu0 0.0
    %835 = vmatpush1.msra.mxu0 0.0
    %836 = vmatprep.subr.mxu0 0.0
    %837 = vmatpush1.msra.mxu0 0.0
    %838 = vmatprep.subr.mxu0 0.0
    %839 = vmatpush1.msra.mxu0 0.0
    %840 = vmatprep.subr.mxu0 0.0
    %841 = vmatpush1.msra.mxu0 0.0
    %842 = vmatprep.subr.mxu0 0.0
    %843 = vmatpush1.msra.mxu0 0.0
    %844 = vmatprep.subr.mxu0 0.0
    %845 = vmatpush1.msra.mxu0 0.0
    %846 = vmatprep.subr.mxu0 0.0
    %847 = vmatpush1.msra.mxu0 0.0
    %848 = vmatprep.subr.mxu0 0.0
    %849 = vmatpush1.msra.mxu0 0.0
    %850 = vmatprep.subr.mxu0 0.0
    %851 = vmatpush1.msra.mxu0 0.0
    %852 = vmatprep.subr.mxu0 0.0
    %853 = vmatpush1.msra.mxu0 0.0
    %854 = vmatprep.subr.mxu0 0.0
    %855 = vmatpush1.msra.mxu0 0.0
    %856 = vmatprep.mubr.f32.mxu0 0.0
    %857 = vmatmul.mubr.f32.gmra.mrb[0].mxu0 %v651
    %v858 = vpop.f32.mrb[0].mxu0
    %v859 = vadd.f32 0.0, %v858
    %v860 = vpop.f32.mrb[0].mxu0
    %v861 = vadd.f32 0.0, %v860
    %862 = vdwg.mxu0
    %v863 = vadd.f32 %v653, %v788
    %v864 = vadd.f32 %v654, %v790
    %v865 = vadd.f32 %v655, %v859
    %v866 = vadd.f32 %v656, %v861
    %v867 = vxor.u32 %v863, 2147483648
    %v868 = vmul.f32 %v867, 1.442695
    %v869 = vpow.pop %v868
    %v870 = vadd.f32 %v869, 1.0
    %v871 = vrcp.pop %v870
    %v872 = vmul.f32 1.0, %v871
    %v873 = vxor.u32 %v864, 2147483648
    %v874 = vmul.f32 %v873, 1.442695
    %v875 = vpow.pop %v874
    %v876 = vadd.f32 %v875, 1.0
    %v877 = vrcp.pop %v876
    %v878 = vmul.f32 1.0, %v877
    %v879 = vtanh.pop %v865
    %v880 = vxor.u32 %v866, 2147483648
    %v881 = vmul.f32 %v880, 1.442695
    %v882 = vpow.pop %v881
    %v883 = vadd.f32 %v882, 1.0
    %v884 = vrcp.pop %v883
    %v885 = vmul.f32 1.0, %v884
    %v886 = vmul.f32 %v878, %v652
    %v887 = vmul.f32 %v872, %v879
    %v888 = vadd.f32 %v886, %v887
    %v889 = vtanh.pop %v888
    %v890 = vmul.f32 %v885, %v889
    %891 = vst [vmem:[#allocation3] sm:$0xff] %v890
    %s892 = scalar_lea.vmem [#allocation2], 32
    %v893 = vld [vmem:[%s892] sm:$0xff]
    %v894 = vld [vmem:[%s892 + $0x8] sm:$0xff]
    %v895 = vld [vmem:[%s892 + $0x10] sm:$0xff]
    %v896 = vld [vmem:[%s892 + $0x18] sm:$0xff]
    %v897 = vld [vmem:[#allocation13] sm:$0xff]
    %v898 = vld [vmem:[#allocation13 + $0x8] sm:$0xff]
    %v899 = vld [vmem:[#allocation13 + $0x10] sm:$0xff]
    %v900 = vld [vmem:[#allocation13 + $0x18] sm:$0xff]
    %v901 = vld [vmem:[#allocation13 + $0x20] sm:$0xff]
    %v902 = vld [vmem:[#allocation13 + $0x28] sm:$0xff]
    %v903 = vld [vmem:[#allocation13 + $0x30] sm:$0xff]
    %v904 = vld [vmem:[#allocation13 + $0x38] sm:$0xff]
    %v905 = vld [vmem:[#allocation13 + $0x40] sm:$0xff]
    %v906 = vld [vmem:[#allocation13 + $0x48] sm:$0xff]
    %v907 = vld [vmem:[#allocation13 + $0x50] sm:$0xff]
    %v908 = vld [vmem:[#allocation13 + $0x58] sm:$0xff]
    %v909 = vld [vmem:[#allocation13 + $0x60] sm:$0xff]
    %v910 = vld [vmem:[#allocation13 + $0x68] sm:$0xff]
    %v911 = vld [vmem:[#allocation13 + $0x70] sm:$0xff]
    %v912 = vld [vmem:[#allocation13 + $0x78] sm:$0xff]
    %v913 = vld [vmem:[#allocation13 + $0x80] sm:$0xff]
    %v914 = vld [vmem:[#allocation13 + $0x88] sm:$0xff]
    %v915 = vld [vmem:[#allocation13 + $0x90] sm:$0xff]
    %v916 = vld [vmem:[#allocation13 + $0x98] sm:$0xff]
    %v917 = vld [vmem:[#allocation13 + $0xa0] sm:$0xff]
    %v918 = vld [vmem:[#allocation13 + $0xa8] sm:$0xff]
    %v919 = vld [vmem:[#allocation13 + $0xb0] sm:$0xff]
    %v920 = vld [vmem:[#allocation13 + $0xb8] sm:$0xff]
    %v921 = vld [vmem:[#allocation13 + $0xc0] sm:$0xff]
    %v922 = vld [vmem:[#allocation13 + $0xc8] sm:$0xff]
    %v923 = vld [vmem:[#allocation13 + $0xd0] sm:$0xff]
    %v924 = vld [vmem:[#allocation13 + $0xd8] sm:$0xff]
    %v925 = vld [vmem:[#allocation13 + $0xe0] sm:$0xff]
    %v926 = vld [vmem:[#allocation13 + $0xe8] sm:$0xff]
    %v927 = vld [vmem:[#allocation13 + $0xf0] sm:$0xff]
    %v928 = vld [vmem:[#allocation13 + $0xf8] sm:$0xff]
    %v929 = vld [vmem:[#allocation13 + $0x100] sm:$0xff]
    %v930 = vld [vmem:[#allocation13 + $0x108] sm:$0xff]
    %v931 = vld [vmem:[#allocation13 + $0x110] sm:$0xff]
    %v932 = vld [vmem:[#allocation13 + $0x118] sm:$0xff]
    %v933 = vld [vmem:[#allocation13 + $0x120] sm:$0xff]
    %v934 = vld [vmem:[#allocation13 + $0x128] sm:$0xff]
    %v935 = vld [vmem:[#allocation13 + $0x130] sm:$0xff]
    %v936 = vld [vmem:[#allocation13 + $0x138] sm:$0xff]
    %v937 = vld [vmem:[#allocation13 + $0x140] sm:$0xff]
    %v938 = vld [vmem:[#allocation13 + $0x148] sm:$0xff]
    %v939 = vld [vmem:[#allocation13 + $0x150] sm:$0xff]
    %v940 = vld [vmem:[#allocation13 + $0x158] sm:$0xff]
    %v941 = vld [vmem:[#allocation13 + $0x160] sm:$0xff]
    %v942 = vld [vmem:[#allocation13 + $0x168] sm:$0xff]
    %v943 = vld [vmem:[#allocation13 + $0x170] sm:$0xff]
    %v944 = vld [vmem:[#allocation13 + $0x178] sm:$0xff]
    %v945 = vld [vmem:[#allocation13 + $0x180] sm:$0xff]
    %v946 = vld [vmem:[#allocation13 + $0x188] sm:$0xff]
    %v947 = vld [vmem:[#allocation13 + $0x190] sm:$0xff]
    %v948 = vld [vmem:[#allocation13 + $0x198] sm:$0xff]
    %v949 = vld [vmem:[#allocation13 + $0x1a0] sm:$0xff]
    %v950 = vld [vmem:[#allocation13 + $0x1a8] sm:$0xff]
    %v951 = vld [vmem:[#allocation13 + $0x1b0] sm:$0xff]
    %v952 = vld [vmem:[#allocation13 + $0x1b8] sm:$0xff]
    %v953 = vld [vmem:[#allocation13 + $0x1c0] sm:$0xff]
    %v954 = vld [vmem:[#allocation13 + $0x1c8] sm:$0xff]
    %v955 = vld [vmem:[#allocation13 + $0x1d0] sm:$0xff]
    %v956 = vld [vmem:[#allocation13 + $0x1d8] sm:$0xff]
    %v957 = vld [vmem:[#allocation13 + $0x1e0] sm:$0xff]
    %v958 = vld [vmem:[#allocation13 + $0x1e8] sm:$0xff]
    %v959 = vld [vmem:[#allocation13 + $0x1f0] sm:$0xff]
    %v960 = vld [vmem:[#allocation13 + $0x1f8] sm:$0xff]
    %961 = vmatprep.subr.mxu0 %v898
    %962 = vmatpush1.msra.mxu0 %v897
    %963 = vmatprep.subr.mxu0 %v902
    %964 = vmatpush1.msra.mxu0 %v901
    %965 = vmatprep.subr.mxu0 %v906
    %966 = vmatpush1.msra.mxu0 %v905
    %967 = vmatprep.subr.mxu0 %v910
    %968 = vmatpush1.msra.mxu0 %v909
    %969 = vmatprep.subr.mxu0 %v914
    %970 = vmatpush1.msra.mxu0 %v913
    %971 = vmatprep.subr.mxu0 %v918
    %972 = vmatpush1.msra.mxu0 %v917
    %973 = vmatprep.subr.mxu0 %v922
    %974 = vmatpush1.msra.mxu0 %v921
    %975 = vmatprep.subr.mxu0 %v926
    %976 = vmatpush1.msra.mxu0 %v925
    %977 = vmatprep.subr.mxu0 %v930
    %978 = vmatpush1.msra.mxu0 %v929
    %979 = vmatprep.subr.mxu0 %v934
    %980 = vmatpush1.msra.mxu0 %v933
    %981 = vmatprep.subr.mxu0 %v938
    %982 = vmatpush1.msra.mxu0 %v937
    %983 = vmatprep.subr.mxu0 %v942
    %984 = vmatpush1.msra.mxu0 %v941
    %985 = vmatprep.subr.mxu0 %v946
    %986 = vmatpush1.msra.mxu0 %v945
    %987 = vmatprep.subr.mxu0 %v950
    %988 = vmatpush1.msra.mxu0 %v949
    %989 = vmatprep.subr.mxu0 %v954
    %990 = vmatpush1.msra.mxu0 %v953
    %991 = vmatprep.subr.mxu0 %v958
    %992 = vmatpush1.msra.mxu0 %v957
    %993 = vmatprep.subr.mxu0 0.0
    %994 = vmatpush1.msra.mxu0 0.0
    %995 = vmatprep.subr.mxu0 0.0
    %996 = vmatpush1.msra.mxu0 0.0
    %997 = vmatprep.subr.mxu0 0.0
    %998 = vmatpush1.msra.mxu0 0.0
    %999 = vmatprep.subr.mxu0 0.0
    %1000 = vmatpush1.msra.mxu0 0.0
    %1001 = vmatprep.subr.mxu0 0.0
    %1002 = vmatpush1.msra.mxu0 0.0
    %1003 = vmatprep.subr.mxu0 0.0
    %1004 = vmatpush1.msra.mxu0 0.0
    %1005 = vmatprep.subr.mxu0 0.0
    %1006 = vmatpush1.msra.mxu0 0.0
    %1007 = vmatprep.subr.mxu0 0.0
    %1008 = vmatpush1.msra.mxu0 0.0
    %1009 = vmatprep.subr.mxu0 0.0
    %1010 = vmatpush1.msra.mxu0 0.0
    %1011 = vmatprep.subr.mxu0 0.0
    %1012 = vmatpush1.msra.mxu0 0.0
    %1013 = vmatprep.subr.mxu0 0.0
    %1014 = vmatpush1.msra.mxu0 0.0
    %1015 = vmatprep.subr.mxu0 0.0
    %1016 = vmatpush1.msra.mxu0 0.0
    %1017 = vmatprep.subr.mxu0 0.0
    %1018 = vmatpush1.msra.mxu0 0.0
    %1019 = vmatprep.subr.mxu0 0.0
    %1020 = vmatpush1.msra.mxu0 0.0
    %1021 = vmatprep.subr.mxu0 0.0
    %1022 = vmatpush1.msra.mxu0 0.0
    %1023 = vmatprep.subr.mxu0 0.0
    %1024 = vmatpush1.msra.mxu0 0.0
    %1025 = vmatprep.mubr.f32.mxu0 0.0
    %1026 = vmatmul.mubr.f32.gmra.mrb[0].mxu0 %v890
    %v1027 = vpop.f32.mrb[0].mxu0
    %v1028 = vadd.f32 0.0, %v1027
    %v1029 = vpop.f32.mrb[0].mxu0
    %v1030 = vadd.f32 0.0, %v1029
    %1031 = vdwg.mxu0
    %1032 = vmatprep.subr.mxu0 %v900
    %1033 = vmatpush1.msra.mxu0 %v899
    %1034 = vmatprep.subr.mxu0 %v904
    %1035 = vmatpush1.msra.mxu0 %v903
    %1036 = vmatprep.subr.mxu0 %v908
    %1037 = vmatpush1.msra.mxu0 %v907
    %1038 = vmatprep.subr.mxu0 %v912
    %1039 = vmatpush1.msra.mxu0 %v911
    %1040 = vmatprep.subr.mxu0 %v916
    %1041 = vmatpush1.msra.mxu0 %v915
    %1042 = vmatprep.subr.mxu0 %v920
    %1043 = vmatpush1.msra.mxu0 %v919
    %1044 = vmatprep.subr.mxu0 %v924
    %1045 = vmatpush1.msra.mxu0 %v923
    %1046 = vmatprep.subr.mxu0 %v928
    %1047 = vmatpush1.msra.mxu0 %v927
    %1048 = vmatprep.subr.mxu0 %v932
    %1049 = vmatpush1.msra.mxu0 %v931
    %1050 = vmatprep.subr.mxu0 %v936
    %1051 = vmatpush1.msra.mxu0 %v935
    %1052 = vmatprep.subr.mxu0 %v940
    %1053 = vmatpush1.msra.mxu0 %v939
    %1054 = vmatprep.subr.mxu0 %v944
    %1055 = vmatpush1.msra.mxu0 %v943
    %1056 = vmatprep.subr.mxu0 %v948
    %1057 = vmatpush1.msra.mxu0 %v947
    %1058 = vmatprep.subr.mxu0 %v952
    %1059 = vmatpush1.msra.mxu0 %v951
    %1060 = vmatprep.subr.mxu0 %v956
    %1061 = vmatpush1.msra.mxu0 %v955
    %1062 = vmatprep.subr.mxu0 %v960
    %1063 = vmatpush1.msra.mxu0 %v959
    %1064 = vmatprep.subr.mxu0 0.0
    %1065 = vmatpush1.msra.mxu0 0.0
    %1066 = vmatprep.subr.mxu0 0.0
    %1067 = vmatpush1.msra.mxu0 0.0
    %1068 = vmatprep.subr.mxu0 0.0
    %1069 = vmatpush1.msra.mxu0 0.0
    %1070 = vmatprep.subr.mxu0 0.0
    %1071 = vmatpush1.msra.mxu0 0.0
    %1072 = vmatprep.subr.mxu0 0.0
    %1073 = vmatpush1.msra.mxu0 0.0
    %1074 = vmatprep.subr.mxu0 0.0
    %1075 = vmatpush1.msra.mxu0 0.0
    %1076 = vmatprep.subr.mxu0 0.0
    %1077 = vmatpush1.msra.mxu0 0.0
    %1078 = vmatprep.subr.mxu0 0.0
    %1079 = vmatpush1.msra.mxu0 0.0
    %1080 = vmatprep.subr.mxu0 0.0
    %1081 = vmatpush1.msra.mxu0 0.0
    %1082 = vmatprep.subr.mxu0 0.0
    %1083 = vmatpush1.msra.mxu0 0.0
    %1084 = vmatprep.subr.mxu0 0.0
    %1085 = vmatpush1.msra.mxu0 0.0
    %1086 = vmatprep.subr.mxu0 0.0
    %1087 = vmatpush1.msra.mxu0 0.0
    %1088 = vmatprep.subr.mxu0 0.0
    %1089 = vmatpush1.msra.mxu0 0.0
    %1090 = vmatprep.subr.mxu0 0.0
    %1091 = vmatpush1.msra.mxu0 0.0
    %1092 = vmatprep.subr.mxu0 0.0
    %1093 = vmatpush1.msra.mxu0 0.0
    %1094 = vmatprep.subr.mxu0 0.0
    %1095 = vmatpush1.msra.mxu0 0.0
    %1096 = vmatprep.mubr.f32.mxu0 0.0
    %1097 = vmatmul.mubr.f32.gmra.mrb[0].mxu0 %v890
    %v1098 = vpop.f32.mrb[0].mxu0
    %v1099 = vadd.f32 0.0, %v1098
    %v1100 = vpop.f32.mrb[0].mxu0
    %v1101 = vadd.f32 0.0, %v1100
    %1102 = vdwg.mxu0
    %v1103 = vadd.f32 %v893, %v1028
    %v1104 = vadd.f32 %v894, %v1030
    %v1105 = vadd.f32 %v895, %v1099
    %v1106 = vadd.f32 %v896, %v1101
    %v1107 = vxor.u32 %v1103, 2147483648
    %v1108 = vmul.f32 %v1107, 1.442695
    %v1109 = vpow.pop %v1108
    %v1110 = vadd.f32 %v1109, 1.0
    %v1111 = vrcp.pop %v1110
    %v1112 = vmul.f32 1.0, %v1111
    %v1113 = vxor.u32 %v1104, 2147483648
    %v1114 = vmul.f32 %v1113, 1.442695
    %v1115 = vpow.pop %v1114
    %v1116 = vadd.f32 %v1115, 1.0
    %v1117 = vrcp.pop %v1116
    %v1118 = vmul.f32 1.0, %v1117
    %v1119 = vtanh.pop %v1105
    %v1120 = vxor.u32 %v1106, 2147483648
    %v1121 = vmul.f32 %v1120, 1.442695
    %v1122 = vpow.pop %v1121
    %v1123 = vadd.f32 %v1122, 1.0
    %v1124 = vrcp.pop %v1123
    %v1125 = vmul.f32 1.0, %v1124
    %v1126 = vmul.f32 %v1118, %v888
    %v1127 = vmul.f32 %v1112, %v1119
    %v1128 = vadd.f32 %v1126, %v1127
    %v1129 = vtanh.pop %v1128
    %v1130 = vmul.f32 %v1125, %v1129
    %s1131 = scalar_lea.vmem [#allocation3], 8
    %1132 = vst [vmem:[%s1131] sm:$0xff] %v1130
    %s1133 = scalar_lea.vmem [#allocation2], 64
    %v1134 = vld [vmem:[%s1133] sm:$0xff]
    %v1135 = vld [vmem:[%s1133 + $0x8] sm:$0xff]
    %v1136 = vld [vmem:[%s1133 + $0x10] sm:$0xff]
    %v1137 = vld [vmem:[%s1133 + $0x18] sm:$0xff]
    %v1138 = vld [vmem:[#allocation13] sm:$0xff]
    %v1139 = vld [vmem:[#allocation13 + $0x8] sm:$0xff]
    %v1140 = vld [vmem:[#allocation13 + $0x10] sm:$0xff]
    %v1141 = vld [vmem:[#allocation13 + $0x18] sm:$0xff]
    %v1142 = vld [vmem:[#allocation13 + $0x20] sm:$0xff]
    %v1143 = vld [vmem:[#allocation13 + $0x28] sm:$0xff]
    %v1144 = vld [vmem:[#allocation13 + $0x30] sm:$0xff]
    %v1145 = vld [vmem:[#allocation13 + $0x38] sm:$0xff]
    %v1146 = vld [vmem:[#allocation13 + $0x40] sm:$0xff]
    %v1147 = vld [vmem:[#allocation13 + $0x48] sm:$0xff]
    %v1148 = vld [vmem:[#allocation13 + $0x50] sm:$0xff]
    %v1149 = vld [vmem:[#allocation13 + $0x58] sm:$0xff]
    %v1150 = vld [vmem:[#allocation13 + $0x60] sm:$0xff]
    %v1151 = vld [vmem:[#allocation13 + $0x68] sm:$0xff]
    %v1152 = vld [vmem:[#allocation13 + $0x70] sm:$0xff]
    %v1153 = vld [vmem:[#allocation13 + $0x78] sm:$0xff]
    %v1154 = vld [vmem:[#allocation13 + $0x80] sm:$0xff]
    %v1155 = vld [vmem:[#allocation13 + $0x88] sm:$0xff]
    %v1156 = vld [vmem:[#allocation13 + $0x90] sm:$0xff]
    %v1157 = vld [vmem:[#allocation13 + $0x98] sm:$0xff]
    %v1158 = vld [vmem:[#allocation13 + $0xa0] sm:$0xff]
    %v1159 = vld [vmem:[#allocation13 + $0xa8] sm:$0xff]
    %v1160 = vld [vmem:[#allocation13 + $0xb0] sm:$0xff]
    %v1161 = vld [vmem:[#allocation13 + $0xb8] sm:$0xff]
    %v1162 = vld [vmem:[#allocation13 + $0xc0] sm:$0xff]
    %v1163 = vld [vmem:[#allocation13 + $0xc8] sm:$0xff]
    %v1164 = vld [vmem:[#allocation13 + $0xd0] sm:$0xff]
    %v1165 = vld [vmem:[#allocation13 + $0xd8] sm:$0xff]
    %v1166 = vld [vmem:[#allocation13 + $0xe0] sm:$0xff]
    %v1167 = vld [vmem:[#allocation13 + $0xe8] sm:$0xff]
    %v1168 = vld [vmem:[#allocation13 + $0xf0] sm:$0xff]
    %v1169 = vld [vmem:[#allocation13 + $0xf8] sm:$0xff]
    %v1170 = vld [vmem:[#allocation13 + $0x100] sm:$0xff]
    %v1171 = vld [vmem:[#allocation13 + $0x108] sm:$0xff]
    %v1172 = vld [vmem:[#allocation13 + $0x110] sm:$0xff]
    %v1173 = vld [vmem:[#allocation13 + $0x118] sm:$0xff]
    %v1174 = vld [vmem:[#allocation13 + $0x120] sm:$0xff]
    %v1175 = vld [vmem:[#allocation13 + $0x128] sm:$0xff]
    %v1176 = vld [vmem:[#allocation13 + $0x130] sm:$0xff]
    %v1177 = vld [vmem:[#allocation13 + $0x138] sm:$0xff]
    %v1178 = vld [vmem:[#allocation13 + $0x140] sm:$0xff]
    %v1179 = vld [vmem:[#allocation13 + $0x148] sm:$0xff]
    %v1180 = vld [vmem:[#allocation13 + $0x150] sm:$0xff]
    %v1181 = vld [vmem:[#allocation13 + $0x158] sm:$0xff]
    %v1182 = vld [vmem:[#allocation13 + $0x160] sm:$0xff]
    %v1183 = vld [vmem:[#allocation13 + $0x168] sm:$0xff]
    %v1184 = vld [vmem:[#allocation13 + $0x170] sm:$0xff]
    %v1185 = vld [vmem:[#allocation13 + $0x178] sm:$0xff]
    %v1186 = vld [vmem:[#allocation13 + $0x180] sm:$0xff]
    %v1187 = vld [vmem:[#allocation13 + $0x188] sm:$0xff]
    %v1188 = vld [vmem:[#allocation13 + $0x190] sm:$0xff]
    %v1189 = vld [vmem:[#allocation13 + $0x198] sm:$0xff]
    %v1190 = vld [vmem:[#allocation13 + $0x1a0] sm:$0xff]
    %v1191 = vld [vmem:[#allocation13 + $0x1a8] sm:$0xff]
    %v1192 = vld [vmem:[#allocation13 + $0x1b0] sm:$0xff]
    %v1193 = vld [vmem:[#allocation13 + $0x1b8] sm:$0xff]
    %v1194 = vld [vmem:[#allocation13 + $0x1c0] sm:$0xff]
    %v1195 = vld [vmem:[#allocation13 + $0x1c8] sm:$0xff]
    %v1196 = vld [vmem:[#allocation13 + $0x1d0] sm:$0xff]
    %v1197 = vld [vmem:[#allocation13 + $0x1d8] sm:$0xff]
    %v1198 = vld [vmem:[#allocation13 + $0x1e0] sm:$0xff]
    %v1199 = vld [vmem:[#allocation13 + $0x1e8] sm:$0xff]
    %v1200 = vld [vmem:[#allocation13 + $0x1f0] sm:$0xff]
    %v1201 = vld [vmem:[#allocation13 + $0x1f8] sm:$0xff]
    %1202 = vmatprep.subr.mxu0 %v1139
    %1203 = vmatpush1.msra.mxu0 %v1138
    %1204 = vmatprep.subr.mxu0 %v1143
    %1205 = vmatpush1.msra.mxu0 %v1142
    %1206 = vmatprep.subr.mxu0 %v1147
    %1207 = vmatpush1.msra.mxu0 %v1146
    %1208 = vmatprep.subr.mxu0 %v1151
    %1209 = vmatpush1.msra.mxu0 %v1150
    %1210 = vmatprep.subr.mxu0 %v1155
    %1211 = vmatpush1.msra.mxu0 %v1154
    %1212 = vmatprep.subr.mxu0 %v1159
    %1213 = vmatpush1.msra.mxu0 %v1158
    %1214 = vmatprep.subr.mxu0 %v1163
    %1215 = vmatpush1.msra.mxu0 %v1162
    %1216 = vmatprep.subr.mxu0 %v1167
    %1217 = vmatpush1.msra.mxu0 %v1166
    %1218 = vmatprep.subr.mxu0 %v1171
    %1219 = vmatpush1.msra.mxu0 %v1170
    %1220 = vmatprep.subr.mxu0 %v1175
    %1221 = vmatpush1.msra.mxu0 %v1174
    %1222 = vmatprep.subr.mxu0 %v1179
    %1223 = vmatpush1.msra.mxu0 %v1178
    %1224 = vmatprep.subr.mxu0 %v1183
    %1225 = vmatpush1.msra.mxu0 %v1182
    %1226 = vmatprep.subr.mxu0 %v1187
    %1227 = vmatpush1.msra.mxu0 %v1186
    %1228 = vmatprep.subr.mxu0 %v1191
    %1229 = vmatpush1.msra.mxu0 %v1190
    %1230 = vmatprep.subr.mxu0 %v1195
    %1231 = vmatpush1.msra.mxu0 %v1194
    %1232 = vmatprep.subr.mxu0 %v1199
    %1233 = vmatpush1.msra.mxu0 %v1198
    %1234 = vmatprep.subr.mxu0 0.0
    %1235 = vmatpush1.msra.mxu0 0.0
    %1236 = vmatprep.subr.mxu0 0.0
    %1237 = vmatpush1.msra.mxu0 0.0
    %1238 = vmatprep.subr.mxu0 0.0
    %1239 = vmatpush1.msra.mxu0 0.0
    %1240 = vmatprep.subr.mxu0 0.0
    %1241 = vmatpush1.msra.mxu0 0.0
    %1242 = vmatprep.subr.mxu0 0.0
    %1243 = vmatpush1.msra.mxu0 0.0
    %1244 = vmatprep.subr.mxu0 0.0
    %1245 = vmatpush1.msra.mxu0 0.0
    %1246 = vmatprep.subr.mxu0 0.0
    %1247 = vmatpush1.msra.mxu0 0.0
    %1248 = vmatprep.subr.mxu0 0.0
    %1249 = vmatpush1.msra.mxu0 0.0
    %1250 = vmatprep.subr.mxu0 0.0
    %1251 = vmatpush1.msra.mxu0 0.0
    %1252 = vmatprep.subr.mxu0 0.0
    %1253 = vmatpush1.msra.mxu0 0.0
    %1254 = vmatprep.subr.mxu0 0.0
    %1255 = vmatpush1.msra.mxu0 0.0
    %1256 = vmatprep.subr.mxu0 0.0
    %1257 = vmatpush1.msra.mxu0 0.0
    %1258 = vmatprep.subr.mxu0 0.0
    %1259 = vmatpush1.msra.mxu0 0.0
    %1260 = vmatprep.subr.mxu0 0.0
    %1261 = vmatpush1.msra.mxu0 0.0
    %1262 = vmatprep.subr.mxu0 0.0
    %1263 = vmatpush1.msra.mxu0 0.0
    %1264 = vmatprep.subr.mxu0 0.0
    %1265 = vmatpush1.msra.mxu0 0.0
    %1266 = vmatprep.mubr.f32.mxu0 0.0
    %1267 = vmatmul.mubr.f32.gmra.mrb[0].mxu0 %v1130
    %v1268 = vpop.f32.mrb[0].mxu0
    %v1269 = vadd.f32 0.0, %v1268
    %v1270 = vpop.f32.mrb[0].mxu0
    %v1271 = vadd.f32 0.0, %v1270
    %1272 = vdwg.mxu0
    %1273 = vmatprep.subr.mxu0 %v1141
    %1274 = vmatpush1.msra.mxu0 %v1140
    %1275 = vmatprep.subr.mxu0 %v1145
    %1276 = vmatpush1.msra.mxu0 %v1144
    %1277 = vmatprep.subr.mxu0 %v1149
    %1278 = vmatpush1.msra.mxu0 %v1148
    %1279 = vmatprep.subr.mxu0 %v1153
    %1280 = vmatpush1.msra.mxu0 %v1152
    %1281 = vmatprep.subr.mxu0 %v1157
    %1282 = vmatpush1.msra.mxu0 %v1156
    %1283 = vmatprep.subr.mxu0 %v1161
    %1284 = vmatpush1.msra.mxu0 %v1160
    %1285 = vmatprep.subr.mxu0 %v1165
    %1286 = vmatpush1.msra.mxu0 %v1164
    %1287 = vmatprep.subr.mxu0 %v1169
    %1288 = vmatpush1.msra.mxu0 %v1168
    %1289 = vmatprep.subr.mxu0 %v1173
    %1290 = vmatpush1.msra.mxu0 %v1172
    %1291 = vmatprep.subr.mxu0 %v1177
    %1292 = vmatpush1.msra.mxu0 %v1176
    %1293 = vmatprep.subr.mxu0 %v1181
    %1294 = vmatpush1.msra.mxu0 %v1180
    %1295 = vmatprep.subr.mxu0 %v1185
    %1296 = vmatpush1.msra.mxu0 %v1184
    %1297 = vmatprep.subr.mxu0 %v1189
    %1298 = vmatpush1.msra.mxu0 %v1188
    %1299 = vmatprep.subr.mxu0 %v1193
    %1300 = vmatpush1.msra.mxu0 %v1192
    %1301 = vmatprep.subr.mxu0 %v1197
    %1302 = vmatpush1.msra.mxu0 %v1196
    %1303 = vmatprep.subr.mxu0 %v1201
    %1304 = vmatpush1.msra.mxu0 %v1200
    %1305 = vmatprep.subr.mxu0 0.0
    %1306 = vmatpush1.msra.mxu0 0.0
    %1307 = vmatprep.subr.mxu0 0.0
    %1308 = vmatpush1.msra.mxu0 0.0
    %1309 = vmatprep.subr.mxu0 0.0
    %1310 = vmatpush1.msra.mxu0 0.0
    %1311 = vmatprep.subr.mxu0 0.0
    %1312 = vmatpush1.msra.mxu0 0.0
    %1313 = vmatprep.subr.mxu0 0.0
    %1314 = vmatpush1.msra.mxu0 0.0
    %1315 = vmatprep.subr.mxu0 0.0
    %1316 = vmatpush1.msra.mxu0 0.0
    %1317 = vmatprep.subr.mxu0 0.0
    %1318 = vmatpush1.msra.mxu0 0.0
    %1319 = vmatprep.subr.mxu0 0.0
    %1320 = vmatpush1.msra.mxu0 0.0
    %1321 = vmatprep.subr.mxu0 0.0
    %1322 = vmatpush1.msra.mxu0 0.0
    %1323 = vmatprep.subr.mxu0 0.0
    %1324 = vmatpush1.msra.mxu0 0.0
    %1325 = vmatprep.subr.mxu0 0.0
    %1326 = vmatpush1.msra.mxu0 0.0
    %1327 = vmatprep.subr.mxu0 0.0
    %1328 = vmatpush1.msra.mxu0 0.0
    %1329 = vmatprep.subr.mxu0 0.0
    %1330 = vmatpush1.msra.mxu0 0.0
    %1331 = vmatprep.subr.mxu0 0.0
    %1332 = vmatpush1.msra.mxu0 0.0
    %1333 = vmatprep.subr.mxu0 0.0
    %1334 = vmatpush1.msra.mxu0 0.0
    %1335 = vmatprep.subr.mxu0 0.0
    %1336 = vmatpush1.msra.mxu0 0.0
    %1337 = vmatprep.mubr.f32.mxu0 0.0
    %1338 = vmatmul.mubr.f32.gmra.mrb[0].mxu0 %v1130
    %v1339 = vpop.f32.mrb[0].mxu0
    %v1340 = vadd.f32 0.0, %v1339
    %v1341 = vpop.f32.mrb[0].mxu0
    %v1342 = vadd.f32 0.0, %v1341
    %1343 = vdwg.mxu0
    %v1344 = vadd.f32 %v1134, %v1269
    %v1345 = vadd.f32 %v1135, %v1271
    %v1346 = vadd.f32 %v1136, %v1340
    %v1347 = vadd.f32 %v1137, %v1342
    %v1348 = vxor.u32 %v1344, 2147483648
    %v1349 = vmul.f32 %v1348, 1.442695
    %v1350 = vpow.pop %v1349
    %v1351 = vadd.f32 %v1350, 1.0
    %v1352 = vrcp.pop %v1351
    %v1353 = vmul.f32 1.0, %v1352
    %v1354 = vxor.u32 %v1345, 2147483648
    %v1355 = vmul.f32 %v1354, 1.442695
    %v1356 = vpow.pop %v1355
    %v1357 = vadd.f32 %v1356, 1.0
    %v1358 = vrcp.pop %v1357
    %v1359 = vmul.f32 1.0, %v1358
    %v1360 = vtanh.pop %v1346
    %v1361 = vxor.u32 %v1347, 2147483648
    %v1362 = vmul.f32 %v1361, 1.442695
    %v1363 = vpow.pop %v1362
    %v1364 = vadd.f32 %v1363, 1.0
    %v1365 = vrcp.pop %v1364
    %v1366 = vmul.f32 1.0, %v1365
    %v1367 = vmul.f32 %v1359, %v1128
    %v1368 = vmul.f32 %v1353, %v1360
    %v1369 = vadd.f32 %v1367, %v1368
    %v1370 = vtanh.pop %v1369
    %v1371 = vmul.f32 %v1366, %v1370
    %s1372 = scalar_lea.vmem [#allocation3], 16
    %1373 = vst [vmem:[%s1372] sm:$0xff] %v1371
    %s1374 = scalar_lea.vmem [#allocation2], 96
    %v1375 = vld [vmem:[%s1374] sm:$0xff]
    %v1376 = vld [vmem:[%s1374 + $0x8] sm:$0xff]
    %v1377 = vld [vmem:[%s1374 + $0x10] sm:$0xff]
    %v1378 = vld [vmem:[%s1374 + $0x18] sm:$0xff]
    %v1379 = vld [vmem:[#allocation13] sm:$0xff]
    %v1380 = vld [vmem:[#allocation13 + $0x8] sm:$0xff]
    %v1381 = vld [vmem:[#allocation13 + $0x10] sm:$0xff]
    %v1382 = vld [vmem:[#allocation13 + $0x18] sm:$0xff]
    %v1383 = vld [vmem:[#allocation13 + $0x20] sm:$0xff]
    %v1384 = vld [vmem:[#allocation13 + $0x28] sm:$0xff]
    %v1385 = vld [vmem:[#allocation13 + $0x30] sm:$0xff]
    %v1386 = vld [vmem:[#allocation13 + $0x38] sm:$0xff]
    %v1387 = vld [vmem:[#allocation13 + $0x40] sm:$0xff]
    %v1388 = vld [vmem:[#allocation13 + $0x48] sm:$0xff]
    %v1389 = vld [vmem:[#allocation13 + $0x50] sm:$0xff]
    %v1390 = vld [vmem:[#allocation13 + $0x58] sm:$0xff]
    %v1391 = vld [vmem:[#allocation13 + $0x60] sm:$0xff]
    %v1392 = vld [vmem:[#allocation13 + $0x68] sm:$0xff]
    %v1393 = vld [vmem:[#allocation13 + $0x70] sm:$0xff]
    %v1394 = vld [vmem:[#allocation13 + $0x78] sm:$0xff]
    %v1395 = vld [vmem:[#allocation13 + $0x80] sm:$0xff]
    %v1396 = vld [vmem:[#allocation13 + $0x88] sm:$0xff]
    %v1397 = vld [vmem:[#allocation13 + $0x90] sm:$0xff]
    %v1398 = vld [vmem:[#allocation13 + $0x98] sm:$0xff]
    %v1399 = vld [vmem:[#allocation13 + $0xa0] sm:$0xff]
    %v1400 = vld [vmem:[#allocation13 + $0xa8] sm:$0xff]
    %v1401 = vld [vmem:[#allocation13 + $0xb0] sm:$0xff]
    %v1402 = vld [vmem:[#allocation13 + $0xb8] sm:$0xff]
    %v1403 = vld [vmem:[#allocation13 + $0xc0] sm:$0xff]
    %v1404 = vld [vmem:[#allocation13 + $0xc8] sm:$0xff]
    %v1405 = vld [vmem:[#allocation13 + $0xd0] sm:$0xff]
    %v1406 = vld [vmem:[#allocation13 + $0xd8] sm:$0xff]
    %v1407 = vld [vmem:[#allocation13 + $0xe0] sm:$0xff]
    %v1408 = vld [vmem:[#allocation13 + $0xe8] sm:$0xff]
    %v1409 = vld [vmem:[#allocation13 + $0xf0] sm:$0xff]
    %v1410 = vld [vmem:[#allocation13 + $0xf8] sm:$0xff]
    %v1411 = vld [vmem:[#allocation13 + $0x100] sm:$0xff]
    %v1412 = vld [vmem:[#allocation13 + $0x108] sm:$0xff]
    %v1413 = vld [vmem:[#allocation13 + $0x110] sm:$0xff]
    %v1414 = vld [vmem:[#allocation13 + $0x118] sm:$0xff]
    %v1415 = vld [vmem:[#allocation13 + $0x120] sm:$0xff]
    %v1416 = vld [vmem:[#allocation13 + $0x128] sm:$0xff]
    %v1417 = vld [vmem:[#allocation13 + $0x130] sm:$0xff]
    %v1418 = vld [vmem:[#allocation13 + $0x138] sm:$0xff]
    %v1419 = vld [vmem:[#allocation13 + $0x140] sm:$0xff]
    %v1420 = vld [vmem:[#allocation13 + $0x148] sm:$0xff]
    %v1421 = vld [vmem:[#allocation13 + $0x150] sm:$0xff]
    %v1422 = vld [vmem:[#allocation13 + $0x158] sm:$0xff]
    %v1423 = vld [vmem:[#allocation13 + $0x160] sm:$0xff]
    %v1424 = vld [vmem:[#allocation13 + $0x168] sm:$0xff]
    %v1425 = vld [vmem:[#allocation13 + $0x170] sm:$0xff]
    %v1426 = vld [vmem:[#allocation13 + $0x178] sm:$0xff]
    %v1427 = vld [vmem:[#allocation13 + $0x180] sm:$0xff]
    %v1428 = vld [vmem:[#allocation13 + $0x188] sm:$0xff]
    %v1429 = vld [vmem:[#allocation13 + $0x190] sm:$0xff]
    %v1430 = vld [vmem:[#allocation13 + $0x198] sm:$0xff]
    %v1431 = vld [vmem:[#allocation13 + $0x1a0] sm:$0xff]
    %v1432 = vld [vmem:[#allocation13 + $0x1a8] sm:$0xff]
    %v1433 = vld [vmem:[#allocation13 + $0x1b0] sm:$0xff]
    %v1434 = vld [vmem:[#allocation13 + $0x1b8] sm:$0xff]
    %v1435 = vld [vmem:[#allocation13 + $0x1c0] sm:$0xff]
    %v1436 = vld [vmem:[#allocation13 + $0x1c8] sm:$0xff]
    %v1437 = vld [vmem:[#allocation13 + $0x1d0] sm:$0xff]
    %v1438 = vld [vmem:[#allocation13 + $0x1d8] sm:$0xff]
    %v1439 = vld [vmem:[#allocation13 + $0x1e0] sm:$0xff]
    %v1440 = vld [vmem:[#allocation13 + $0x1e8] sm:$0xff]
    %v1441 = vld [vmem:[#allocation13 + $0x1f0] sm:$0xff]
    %v1442 = vld [vmem:[#allocation13 + $0x1f8] sm:$0xff]
    %1443 = vmatprep.subr.mxu0 %v1380
    %1444 = vmatpush1.msra.mxu0 %v1379
    %1445 = vmatprep.subr.mxu0 %v1384
    %1446 = vmatpush1.msra.mxu0 %v1383
    %1447 = vmatprep.subr.mxu0 %v1388
    %1448 = vmatpush1.msra.mxu0 %v1387
    %1449 = vmatprep.subr.mxu0 %v1392
    %1450 = vmatpush1.msra.mxu0 %v1391
    %1451 = vmatprep.subr.mxu0 %v1396
    %1452 = vmatpush1.msra.mxu0 %v1395
    %1453 = vmatprep.subr.mxu0 %v1400
    %1454 = vmatpush1.msra.mxu0 %v1399
    %1455 = vmatprep.subr.mxu0 %v1404
    %1456 = vmatpush1.msra.mxu0 %v1403
    %1457 = vmatprep.subr.mxu0 %v1408
    %1458 = vmatpush1.msra.mxu0 %v1407
    %1459 = vmatprep.subr.mxu0 %v1412
    %1460 = vmatpush1.msra.mxu0 %v1411
    %1461 = vmatprep.subr.mxu0 %v1416
    %1462 = vmatpush1.msra.mxu0 %v1415
    %1463 = vmatprep.subr.mxu0 %v1420
    %1464 = vmatpush1.msra.mxu0 %v1419
    %1465 = vmatprep.subr.mxu0 %v1424
    %1466 = vmatpush1.msra.mxu0 %v1423
    %1467 = vmatprep.subr.mxu0 %v1428
    %1468 = vmatpush1.msra.mxu0 %v1427
    %1469 = vmatprep.subr.mxu0 %v1432
    %1470 = vmatpush1.msra.mxu0 %v1431
    %1471 = vmatprep.subr.mxu0 %v1436
    %1472 = vmatpush1.msra.mxu0 %v1435
    %1473 = vmatprep.subr.mxu0 %v1440
    %1474 = vmatpush1.msra.mxu0 %v1439
    %1475 = vmatprep.subr.mxu0 0.0
    %1476 = vmatpush1.msra.mxu0 0.0
    %1477 = vmatprep.subr.mxu0 0.0
    %1478 = vmatpush1.msra.mxu0 0.0
    %1479 = vmatprep.subr.mxu0 0.0
    %1480 = vmatpush1.msra.mxu0 0.0
    %1481 = vmatprep.subr.mxu0 0.0
    %1482 = vmatpush1.msra.mxu0 0.0
    %1483 = vmatprep.subr.mxu0 0.0
    %1484 = vmatpush1.msra.mxu0 0.0
    %1485 = vmatprep.subr.mxu0 0.0
    %1486 = vmatpush1.msra.mxu0 0.0
    %1487 = vmatprep.subr.mxu0 0.0
    %1488 = vmatpush1.msra.mxu0 0.0
    %1489 = vmatprep.subr.mxu0 0.0
    %1490 = vmatpush1.msra.mxu0 0.0
    %1491 = vmatprep.subr.mxu0 0.0
    %1492 = vmatpush1.msra.mxu0 0.0
    %1493 = vmatprep.subr.mxu0 0.0
    %1494 = vmatpush1.msra.mxu0 0.0
    %1495 = vmatprep.subr.mxu0 0.0
    %1496 = vmatpush1.msra.mxu0 0.0
    %1497 = vmatprep.subr.mxu0 0.0
    %1498 = vmatpush1.msra.mxu0 0.0
    %1499 = vmatprep.subr.mxu0 0.0
    %1500 = vmatpush1.msra.mxu0 0.0
    %1501 = vmatprep.subr.mxu0 0.0
    %1502 = vmatpush1.msra.mxu0 0.0
    %1503 = vmatprep.subr.mxu0 0.0
    %1504 = vmatpush1.msra.mxu0 0.0
    %1505 = vmatprep.subr.mxu0 0.0
    %1506 = vmatpush1.msra.mxu0 0.0
    %1507 = vmatprep.mubr.f32.mxu0 0.0
    %1508 = vmatmul.mubr.f32.gmra.mrb[0].mxu0 %v1371
    %v1509 = vpop.f32.mrb[0].mxu0
    %v1510 = vadd.f32 0.0, %v1509
    %v1511 = vpop.f32.mrb[0].mxu0
    %v1512 = vadd.f32 0.0, %v1511
    %1513 = vdwg.mxu0
    %1514 = vmatprep.subr.mxu0 %v1382
    %1515 = vmatpush1.msra.mxu0 %v1381
    %1516 = vmatprep.subr.mxu0 %v1386
    %1517 = vmatpush1.msra.mxu0 %v1385
    %1518 = vmatprep.subr.mxu0 %v1390
    %1519 = vmatpush1.msra.mxu0 %v1389
    %1520 = vmatprep.subr.mxu0 %v1394
    %1521 = vmatpush1.msra.mxu0 %v1393
    %1522 = vmatprep.subr.mxu0 %v1398
    %1523 = vmatpush1.msra.mxu0 %v1397
    %1524 = vmatprep.subr.mxu0 %v1402
    %1525 = vmatpush1.msra.mxu0 %v1401
    %1526 = vmatprep.subr.mxu0 %v1406
    %1527 = vmatpush1.msra.mxu0 %v1405
    %1528 = vmatprep.subr.mxu0 %v1410
    %1529 = vmatpush1.msra.mxu0 %v1409
    %1530 = vmatprep.subr.mxu0 %v1414
    %1531 = vmatpush1.msra.mxu0 %v1413
    %1532 = vmatprep.subr.mxu0 %v1418
    %1533 = vmatpush1.msra.mxu0 %v1417
    %1534 = vmatprep.subr.mxu0 %v1422
    %1535 = vmatpush1.msra.mxu0 %v1421
    %1536 = vmatprep.subr.mxu0 %v1426
    %1537 = vmatpush1.msra.mxu0 %v1425
    %1538 = vmatprep.subr.mxu0 %v1430
    %1539 = vmatpush1.msra.mxu0 %v1429
    %1540 = vmatprep.subr.mxu0 %v1434
    %1541 = vmatpush1.msra.mxu0 %v1433
    %1542 = vmatprep.subr.mxu0 %v1438
    %1543 = vmatpush1.msra.mxu0 %v1437
    %1544 = vmatprep.subr.mxu0 %v1442
    %1545 = vmatpush1.msra.mxu0 %v1441
    %1546 = vmatprep.subr.mxu0 0.0
    %1547 = vmatpush1.msra.mxu0 0.0
    %1548 = vmatprep.subr.mxu0 0.0
    %1549 = vmatpush1.msra.mxu0 0.0
    %1550 = vmatprep.subr.mxu0 0.0
    %1551 = vmatpush1.msra.mxu0 0.0
    %1552 = vmatprep.subr.mxu0 0.0
    %1553 = vmatpush1.msra.mxu0 0.0
    %1554 = vmatprep.subr.mxu0 0.0
    %1555 = vmatpush1.msra.mxu0 0.0
    %1556 = vmatprep.subr.mxu0 0.0
    %1557 = vmatpush1.msra.mxu0 0.0
    %1558 = vmatprep.subr.mxu0 0.0
    %1559 = vmatpush1.msra.mxu0 0.0
    %1560 = vmatprep.subr.mxu0 0.0
    %1561 = vmatpush1.msra.mxu0 0.0
    %1562 = vmatprep.subr.mxu0 0.0
    %1563 = vmatpush1.msra.mxu0 0.0
    %1564 = vmatprep.subr.mxu0 0.0
    %1565 = vmatpush1.msra.mxu0 0.0
    %1566 = vmatprep.subr.mxu0 0.0
    %1567 = vmatpush1.msra.mxu0 0.0
    %1568 = vmatprep.subr.mxu0 0.0
    %1569 = vmatpush1.msra.mxu0 0.0
    %1570 = vmatprep.subr.mxu0 0.0
    %1571 = vmatpush1.msra.mxu0 0.0
    %1572 = vmatprep.subr.mxu0 0.0
    %1573 = vmatpush1.msra.mxu0 0.0
    %1574 = vmatprep.subr.mxu0 0.0
    %1575 = vmatpush1.msra.mxu0 0.0
    %1576 = vmatprep.subr.mxu0 0.0
    %1577 = vmatpush1.msra.mxu0 0.0
    %1578 = vmatprep.mubr.f32.mxu0 0.0
    %1579 = vmatmul.mubr.f32.gmra.mrb[0].mxu0 %v1371
    %v1580 = vpop.f32.mrb[0].mxu0
    %v1581 = vadd.f32 0.0, %v1580
    %v1582 = vpop.f32.mrb[0].mxu0
    %v1583 = vadd.f32 0.0, %v1582
    %1584 = vdwg.mxu0
    %v1585 = vadd.f32 %v1375, %v1510
    %v1586 = vadd.f32 %v1376, %v1512
    %v1587 = vadd.f32 %v1377, %v1581
    %v1588 = vadd.f32 %v1378, %v1583
    %v1589 = vxor.u32 %v1585, 2147483648
    %v1590 = vmul.f32 %v1589, 1.442695
    %v1591 = vpow.pop %v1590
    %v1592 = vadd.f32 %v1591, 1.0
    %v1593 = vrcp.pop %v1592
    %v1594 = vmul.f32 1.0, %v1593
    %v1595 = vxor.u32 %v1586, 2147483648
    %v1596 = vmul.f32 %v1595, 1.442695
    %v1597 = vpow.pop %v1596
    %v1598 = vadd.f32 %v1597, 1.0
    %v1599 = vrcp.pop %v1598
    %v1600 = vmul.f32 1.0, %v1599
    %v1601 = vtanh.pop %v1587
    %v1602 = vxor.u32 %v1588, 2147483648
    %v1603 = vmul.f32 %v1602, 1.442695
    %v1604 = vpow.pop %v1603
    %v1605 = vadd.f32 %v1604, 1.0
    %v1606 = vrcp.pop %v1605
    %v1607 = vmul.f32 1.0, %v1606
    %v1608 = vmul.f32 %v1600, %v1369
    %v1609 = vmul.f32 %v1594, %v1601
    %v1610 = vadd.f32 %v1608, %v1609
    %v1611 = vtanh.pop %v1610
    %v1612 = vmul.f32 %v1607, %v1611
    %s1613 = scalar_lea.vmem [#allocation3], 24
    %1614 = vst [vmem:[%s1613] sm:$0xff] %v1612
    %s1615 = scalar_lea.vmem [#allocation2], 128
    %v1616 = vld [vmem:[%s1615] sm:$0xff]
    %v1617 = vld [vmem:[%s1615 + $0x8] sm:$0xff]
    %v1618 = vld [vmem:[%s1615 + $0x10] sm:$0xff]
    %v1619 = vld [vmem:[%s1615 + $0x18] sm:$0xff]
    %v1620 = vld [vmem:[#allocation13] sm:$0xff]
    %v1621 = vld [vmem:[#allocation13 + $0x8] sm:$0xff]
    %v1622 = vld [vmem:[#allocation13 + $0x10] sm:$0xff]
    %v1623 = vld [vmem:[#allocation13 + $0x18] sm:$0xff]
    %v1624 = vld [vmem:[#allocation13 + $0x20] sm:$0xff]
    %v1625 = vld [vmem:[#allocation13 + $0x28] sm:$0xff]
    %v1626 = vld [vmem:[#allocation13 + $0x30] sm:$0xff]
    %v1627 = vld [vmem:[#allocation13 + $0x38] sm:$0xff]
    %v1628 = vld [vmem:[#allocation13 + $0x40] sm:$0xff]
    %v1629 = vld [vmem:[#allocation13 + $0x48] sm:$0xff]
    %v1630 = vld [vmem:[#allocation13 + $0x50] sm:$0xff]
    %v1631 = vld [vmem:[#allocation13 + $0x58] sm:$0xff]
    %v1632 = vld [vmem:[#allocation13 + $0x60] sm:$0xff]
    %v1633 = vld [vmem:[#allocation13 + $0x68] sm:$0xff]
    %v1634 = vld [vmem:[#allocation13 + $0x70] sm:$0xff]
    %v1635 = vld [vmem:[#allocation13 + $0x78] sm:$0xff]
    %v1636 = vld [vmem:[#allocation13 + $0x80] sm:$0xff]
    %v1637 = vld [vmem:[#allocation13 + $0x88] sm:$0xff]
    %v1638 = vld [vmem:[#allocation13 + $0x90] sm:$0xff]
    %v1639 = vld [vmem:[#allocation13 + $0x98] sm:$0xff]
    %v1640 = vld [vmem:[#allocation13 + $0xa0] sm:$0xff]
    %v1641 = vld [vmem:[#allocation13 + $0xa8] sm:$0xff]
    %v1642 = vld [vmem:[#allocation13 + $0xb0] sm:$0xff]
    %v1643 = vld [vmem:[#allocation13 + $0xb8] sm:$0xff]
    %v1644 = vld [vmem:[#allocation13 + $0xc0] sm:$0xff]
    %v1645 = vld [vmem:[#allocation13 + $0xc8] sm:$0xff]
    %v1646 = vld [vmem:[#allocation13 + $0xd0] sm:$0xff]
    %v1647 = vld [vmem:[#allocation13 + $0xd8] sm:$0xff]
    %v1648 = vld [vmem:[#allocation13 + $0xe0] sm:$0xff]
    %v1649 = vld [vmem:[#allocation13 + $0xe8] sm:$0xff]
    %v1650 = vld [vmem:[#allocation13 + $0xf0] sm:$0xff]
    %v1651 = vld [vmem:[#allocation13 + $0xf8] sm:$0xff]
    %v1652 = vld [vmem:[#allocation13 + $0x100] sm:$0xff]
    %v1653 = vld [vmem:[#allocation13 + $0x108] sm:$0xff]
    %v1654 = vld [vmem:[#allocation13 + $0x110] sm:$0xff]
    %v1655 = vld [vmem:[#allocation13 + $0x118] sm:$0xff]
    %v1656 = vld [vmem:[#allocation13 + $0x120] sm:$0xff]
    %v1657 = vld [vmem:[#allocation13 + $0x128] sm:$0xff]
    %v1658 = vld [vmem:[#allocation13 + $0x130] sm:$0xff]
    %v1659 = vld [vmem:[#allocation13 + $0x138] sm:$0xff]
    %v1660 = vld [vmem:[#allocation13 + $0x140] sm:$0xff]
    %v1661 = vld [vmem:[#allocation13 + $0x148] sm:$0xff]
    %v1662 = vld [vmem:[#allocation13 + $0x150] sm:$0xff]
    %v1663 = vld [vmem:[#allocation13 + $0x158] sm:$0xff]
    %v1664 = vld [vmem:[#allocation13 + $0x160] sm:$0xff]
    %v1665 = vld [vmem:[#allocation13 + $0x168] sm:$0xff]
    %v1666 = vld [vmem:[#allocation13 + $0x170] sm:$0xff]
    %v1667 = vld [vmem:[#allocation13 + $0x178] sm:$0xff]
    %v1668 = vld [vmem:[#allocation13 + $0x180] sm:$0xff]
    %v1669 = vld [vmem:[#allocation13 + $0x188] sm:$0xff]
    %v1670 = vld [vmem:[#allocation13 + $0x190] sm:$0xff]
    %v1671 = vld [vmem:[#allocation13 + $0x198] sm:$0xff]
    %v1672 = vld [vmem:[#allocation13 + $0x1a0] sm:$0xff]
    %v1673 = vld [vmem:[#allocation13 + $0x1a8] sm:$0xff]
    %v1674 = vld [vmem:[#allocation13 + $0x1b0] sm:$0xff]
    %v1675 = vld [vmem:[#allocation13 + $0x1b8] sm:$0xff]
    %v1676 = vld [vmem:[#allocation13 + $0x1c0] sm:$0xff]
    %v1677 = vld [vmem:[#allocation13 + $0x1c8] sm:$0xff]
    %v1678 = vld [vmem:[#allocation13 + $0x1d0] sm:$0xff]
    %v1679 = vld [vmem:[#allocation13 + $0x1d8] sm:$0xff]
    %v1680 = vld [vmem:[#allocation13 + $0x1e0] sm:$0xff]
    %v1681 = vld [vmem:[#allocation13 + $0x1e8] sm:$0xff]
    %v1682 = vld [vmem:[#allocation13 + $0x1f0] sm:$0xff]
    %v1683 = vld [vmem:[#allocation13 + $0x1f8] sm:$0xff]
    %1684 = vmatprep.subr.mxu0 %v1621
    %1685 = vmatpush1.msra.mxu0 %v1620
    %1686 = vmatprep.subr.mxu0 %v1625
    %1687 = vmatpush1.msra.mxu0 %v1624
    %1688 = vmatprep.subr.mxu0 %v1629
    %1689 = vmatpush1.msra.mxu0 %v1628
    %1690 = vmatprep.subr.mxu0 %v1633
    %1691 = vmatpush1.msra.mxu0 %v1632
    %1692 = vmatprep.subr.mxu0 %v1637
    %1693 = vmatpush1.msra.mxu0 %v1636
    %1694 = vmatprep.subr.mxu0 %v1641
    %1695 = vmatpush1.msra.mxu0 %v1640
    %1696 = vmatprep.subr.mxu0 %v1645
    %1697 = vmatpush1.msra.mxu0 %v1644
    %1698 = vmatprep.subr.mxu0 %v1649
    %1699 = vmatpush1.msra.mxu0 %v1648
    %1700 = vmatprep.subr.mxu0 %v1653
    %1701 = vmatpush1.msra.mxu0 %v1652
    %1702 = vmatprep.subr.mxu0 %v1657
    %1703 = vmatpush1.msra.mxu0 %v1656
    %1704 = vmatprep.subr.mxu0 %v1661
    %1705 = vmatpush1.msra.mxu0 %v1660
    %1706 = vmatprep.subr.mxu0 %v1665
    %1707 = vmatpush1.msra.mxu0 %v1664
    %1708 = vmatprep.subr.mxu0 %v1669
    %1709 = vmatpush1.msra.mxu0 %v1668
    %1710 = vmatprep.subr.mxu0 %v1673
    %1711 = vmatpush1.msra.mxu0 %v1672
    %1712 = vmatprep.subr.mxu0 %v1677
    %1713 = vmatpush1.msra.mxu0 %v1676
    %1714 = vmatprep.subr.mxu0 %v1681
    %1715 = vmatpush1.msra.mxu0 %v1680
    %1716 = vmatprep.subr.mxu0 0.0
    %1717 = vmatpush1.msra.mxu0 0.0
    %1718 = vmatprep.subr.mxu0 0.0
    %1719 = vmatpush1.msra.mxu0 0.0
    %1720 = vmatprep.subr.mxu0 0.0
    %1721 = vmatpush1.msra.mxu0 0.0
    %1722 = vmatprep.subr.mxu0 0.0
    %1723 = vmatpush1.msra.mxu0 0.0
    %1724 = vmatprep.subr.mxu0 0.0
    %1725 = vmatpush1.msra.mxu0 0.0
    %1726 = vmatprep.subr.mxu0 0.0
    %1727 = vmatpush1.msra.mxu0 0.0
    %1728 = vmatprep.subr.mxu0 0.0
    %1729 = vmatpush1.msra.mxu0 0.0
    %1730 = vmatprep.subr.mxu0 0.0
    %1731 = vmatpush1.msra.mxu0 0.0
    %1732 = vmatprep.subr.mxu0 0.0
    %1733 = vmatpush1.msra.mxu0 0.0
    %1734 = vmatprep.subr.mxu0 0.0
    %1735 = vmatpush1.msra.mxu0 0.0
    %1736 = vmatprep.subr.mxu0 0.0
    %1737 = vmatpush1.msra.mxu0 0.0
    %1738 = vmatprep.subr.mxu0 0.0
    %1739 = vmatpush1.msra.mxu0 0.0
    %1740 = vmatprep.subr.mxu0 0.0
    %1741 = vmatpush1.msra.mxu0 0.0
    %1742 = vmatprep.subr.mxu0 0.0
    %1743 = vmatpush1.msra.mxu0 0.0
    %1744 = vmatprep.subr.mxu0 0.0
    %1745 = vmatpush1.msra.mxu0 0.0
    %1746 = vmatprep.subr.mxu0 0.0
    %1747 = vmatpush1.msra.mxu0 0.0
    %1748 = vmatprep.mubr.f32.mxu0 0.0
    %1749 = vmatmul.mubr.f32.gmra.mrb[0].mxu0 %v1612
    %v1750 = vpop.f32.mrb[0].mxu0
    %v1751 = vadd.f32 0.0, %v1750
    %v1752 = vpop.f32.mrb[0].mxu0
    %v1753 = vadd.f32 0.0, %v1752
    %1754 = vdwg.mxu0
    %1755 = vmatprep.subr.mxu0 %v1623
    %1756 = vmatpush1.msra.mxu0 %v1622
    %1757 = vmatprep.subr.mxu0 %v1627
    %1758 = vmatpush1.msra.mxu0 %v1626
    %1759 = vmatprep.subr.mxu0 %v1631
    %1760 = vmatpush1.msra.mxu0 %v1630
    %1761 = vmatprep.subr.mxu0 %v1635
    %1762 = vmatpush1.msra.mxu0 %v1634
    %1763 = vmatprep.subr.mxu0 %v1639
    %1764 = vmatpush1.msra.mxu0 %v1638
    %1765 = vmatprep.subr.mxu0 %v1643
    %1766 = vmatpush1.msra.mxu0 %v1642
    %1767 = vmatprep.subr.mxu0 %v1647
    %1768 = vmatpush1.msra.mxu0 %v1646
    %1769 = vmatprep.subr.mxu0 %v1651
    %1770 = vmatpush1.msra.mxu0 %v1650
    %1771 = vmatprep.subr.mxu0 %v1655
    %1772 = vmatpush1.msra.mxu0 %v1654
    %1773 = vmatprep.subr.mxu0 %v1659
    %1774 = vmatpush1.msra.mxu0 %v1658
    %1775 = vmatprep.subr.mxu0 %v1663
    %1776 = vmatpush1.msra.mxu0 %v1662
    %1777 = vmatprep.subr.mxu0 %v1667
    %1778 = vmatpush1.msra.mxu0 %v1666
    %1779 = vmatprep.subr.mxu0 %v1671
    %1780 = vmatpush1.msra.mxu0 %v1670
    %1781 = vmatprep.subr.mxu0 %v1675
    %1782 = vmatpush1.msra.mxu0 %v1674
    %1783 = vmatprep.subr.mxu0 %v1679
    %1784 = vmatpush1.msra.mxu0 %v1678
    %1785 = vmatprep.subr.mxu0 %v1683
    %1786 = vmatpush1.msra.mxu0 %v1682
    %1787 = vmatprep.subr.mxu0 0.0
    %1788 = vmatpush1.msra.mxu0 0.0
    %1789 = vmatprep.subr.mxu0 0.0
    %1790 = vmatpush1.msra.mxu0 0.0
    %1791 = vmatprep.subr.mxu0 0.0
    %1792 = vmatpush1.msra.mxu0 0.0
    %1793 = vmatprep.subr.mxu0 0.0
    %1794 = vmatpush1.msra.mxu0 0.0
    %1795 = vmatprep.subr.mxu0 0.0
    %1796 = vmatpush1.msra.mxu0 0.0
    %1797 = vmatprep.subr.mxu0 0.0
    %1798 = vmatpush1.msra.mxu0 0.0
    %1799 = vmatprep.subr.mxu0 0.0
    %1800 = vmatpush1.msra.mxu0 0.0
    %1801 = vmatprep.subr.mxu0 0.0
    %1802 = vmatpush1.msra.mxu0 0.0
    %1803 = vmatprep.subr.mxu0 0.0
    %1804 = vmatpush1.msra.mxu0 0.0
    %1805 = vmatprep.subr.mxu0 0.0
    %1806 = vmatpush1.msra.mxu0 0.0
    %1807 = vmatprep.subr.mxu0 0.0
    %1808 = vmatpush1.msra.mxu0 0.0
    %1809 = vmatprep.subr.mxu0 0.0
    %1810 = vmatpush1.msra.mxu0 0.0
    %1811 = vmatprep.subr.mxu0 0.0
    %1812 = vmatpush1.msra.mxu0 0.0
    %1813 = vmatprep.subr.mxu0 0.0
    %1814 = vmatpush1.msra.mxu0 0.0
    %1815 = vmatprep.subr.mxu0 0.0
    %1816 = vmatpush1.msra.mxu0 0.0
    %1817 = vmatprep.subr.mxu0 0.0
    %1818 = vmatpush1.msra.mxu0 0.0
    %1819 = vmatprep.mubr.f32.mxu0 0.0
    %1820 = vmatmul.mubr.f32.gmra.mrb[0].mxu0 %v1612
    %v1821 = vpop.f32.mrb[0].mxu0
    %v1822 = vadd.f32 0.0, %v1821
    %v1823 = vpop.f32.mrb[0].mxu0
    %v1824 = vadd.f32 0.0, %v1823
    %1825 = vdwg.mxu0
    %v1826 = vadd.f32 %v1616, %v1751
    %v1827 = vadd.f32 %v1617, %v1753
    %v1828 = vadd.f32 %v1618, %v1822
    %v1829 = vadd.f32 %v1619, %v1824
    %v1830 = vxor.u32 %v1826, 2147483648
    %v1831 = vmul.f32 %v1830, 1.442695
    %v1832 = vpow.pop %v1831
    %v1833 = vadd.f32 %v1832, 1.0
    %v1834 = vrcp.pop %v1833
    %v1835 = vmul.f32 1.0, %v1834
    %v1836 = vxor.u32 %v1827, 2147483648
    %v1837 = vmul.f32 %v1836, 1.442695
    %v1838 = vpow.pop %v1837
    %v1839 = vadd.f32 %v1838, 1.0
    %v1840 = vrcp.pop %v1839
    %v1841 = vmul.f32 1.0, %v1840
    %v1842 = vtanh.pop %v1828
    %v1843 = vxor.u32 %v1829, 2147483648
    %v1844 = vmul.f32 %v1843, 1.442695
    %v1845 = vpow.pop %v1844
    %v1846 = vadd.f32 %v1845, 1.0
    %v1847 = vrcp.pop %v1846
    %v1848 = vmul.f32 1.0, %v1847
    %v1849 = vmul.f32 %v1841, %v1610
    %v1850 = vmul.f32 %v1835, %v1842
    %v1851 = vadd.f32 %v1849, %v1850
    %v1852 = vtanh.pop %v1851
    %v1853 = vmul.f32 %v1848, %v1852
    %s1854 = scalar_lea.vmem [#allocation3], 32
    %1855 = vst [vmem:[%s1854] sm:$0xff] %v1853
    %s1856 = scalar_lea.vmem [#allocation2], 160
    %v1857 = vld [vmem:[%s1856] sm:$0xff]
    %v1858 = vld [vmem:[%s1856 + $0x8] sm:$0xff]
    %v1859 = vld [vmem:[%s1856 + $0x10] sm:$0xff]
    %v1860 = vld [vmem:[%s1856 + $0x18] sm:$0xff]
    %v1861 = vld [vmem:[#allocation13] sm:$0xff]
    %v1862 = vld [vmem:[#allocation13 + $0x8] sm:$0xff]
    %v1863 = vld [vmem:[#allocation13 + $0x10] sm:$0xff]
    %v1864 = vld [vmem:[#allocation13 + $0x18] sm:$0xff]
    %v1865 = vld [vmem:[#allocation13 + $0x20] sm:$0xff]
    %v1866 = vld [vmem:[#allocation13 + $0x28] sm:$0xff]
    %v1867 = vld [vmem:[#allocation13 + $0x30] sm:$0xff]
    %v1868 = vld [vmem:[#allocation13 + $0x38] sm:$0xff]
    %v1869 = vld [vmem:[#allocation13 + $0x40] sm:$0xff]
    %v1870 = vld [vmem:[#allocation13 + $0x48] sm:$0xff]
    %v1871 = vld [vmem:[#allocation13 + $0x50] sm:$0xff]
    %v1872 = vld [vmem:[#allocation13 + $0x58] sm:$0xff]
    %v1873 = vld [vmem:[#allocation13 + $0x60] sm:$0xff]
    %v1874 = vld [vmem:[#allocation13 + $0x68] sm:$0xff]
    %v1875 = vld [vmem:[#allocation13 + $0x70] sm:$0xff]
    %v1876 = vld [vmem:[#allocation13 + $0x78] sm:$0xff]
    %v1877 = vld [vmem:[#allocation13 + $0x80] sm:$0xff]
    %v1878 = vld [vmem:[#allocation13 + $0x88] sm:$0xff]
    %v1879 = vld [vmem:[#allocation13 + $0x90] sm:$0xff]
    %v1880 = vld [vmem:[#allocation13 + $0x98] sm:$0xff]
    %v1881 = vld [vmem:[#allocation13 + $0xa0] sm:$0xff]
    %v1882 = vld [vmem:[#allocation13 + $0xa8] sm:$0xff]
    %v1883 = vld [vmem:[#allocation13 + $0xb0] sm:$0xff]
    %v1884 = vld [vmem:[#allocation13 + $0xb8] sm:$0xff]
    %v1885 = vld [vmem:[#allocation13 + $0xc0] sm:$0xff]
    %v1886 = vld [vmem:[#allocation13 + $0xc8] sm:$0xff]
    %v1887 = vld [vmem:[#allocation13 + $0xd0] sm:$0xff]
    %v1888 = vld [vmem:[#allocation13 + $0xd8] sm:$0xff]
    %v1889 = vld [vmem:[#allocation13 + $0xe0] sm:$0xff]
    %v1890 = vld [vmem:[#allocation13 + $0xe8] sm:$0xff]
    %v1891 = vld [vmem:[#allocation13 + $0xf0] sm:$0xff]
    %v1892 = vld [vmem:[#allocation13 + $0xf8] sm:$0xff]
    %v1893 = vld [vmem:[#allocation13 + $0x100] sm:$0xff]
    %v1894 = vld [vmem:[#allocation13 + $0x108] sm:$0xff]
    %v1895 = vld [vmem:[#allocation13 + $0x110] sm:$0xff]
    %v1896 = vld [vmem:[#allocation13 + $0x118] sm:$0xff]
    %v1897 = vld [vmem:[#allocation13 + $0x120] sm:$0xff]
    %v1898 = vld [vmem:[#allocation13 + $0x128] sm:$0xff]
    %v1899 = vld [vmem:[#allocation13 + $0x130] sm:$0xff]
    %v1900 = vld [vmem:[#allocation13 + $0x138] sm:$0xff]
    %v1901 = vld [vmem:[#allocation13 + $0x140] sm:$0xff]
    %v1902 = vld [vmem:[#allocation13 + $0x148] sm:$0xff]
    %v1903 = vld [vmem:[#allocation13 + $0x150] sm:$0xff]
    %v1904 = vld [vmem:[#allocation13 + $0x158] sm:$0xff]
    %v1905 = vld [vmem:[#allocation13 + $0x160] sm:$0xff]
    %v1906 = vld [vmem:[#allocation13 + $0x168] sm:$0xff]
    %v1907 = vld [vmem:[#allocation13 + $0x170] sm:$0xff]
    %v1908 = vld [vmem:[#allocation13 + $0x178] sm:$0xff]
    %v1909 = vld [vmem:[#allocation13 + $0x180] sm:$0xff]
    %v1910 = vld [vmem:[#allocation13 + $0x188] sm:$0xff]
    %v1911 = vld [vmem:[#allocation13 + $0x190] sm:$0xff]
    %v1912 = vld [vmem:[#allocation13 + $0x198] sm:$0xff]
    %v1913 = vld [vmem:[#allocation13 + $0x1a0] sm:$0xff]
    %v1914 = vld [vmem:[#allocation13 + $0x1a8] sm:$0xff]
    %v1915 = vld [vmem:[#allocation13 + $0x1b0] sm:$0xff]
    %v1916 = vld [vmem:[#allocation13 + $0x1b8] sm:$0xff]
    %v1917 = vld [vmem:[#allocation13 + $0x1c0] sm:$0xff]
    %v1918 = vld [vmem:[#allocation13 + $0x1c8] sm:$0xff]
    %v1919 = vld [vmem:[#allocation13 + $0x1d0] sm:$0xff]
    %v1920 = vld [vmem:[#allocation13 + $0x1d8] sm:$0xff]
    %v1921 = vld [vmem:[#allocation13 + $0x1e0] sm:$0xff]
    %v1922 = vld [vmem:[#allocation13 + $0x1e8] sm:$0xff]
    %v1923 = vld [vmem:[#allocation13 + $0x1f0] sm:$0xff]
    %v1924 = vld [vmem:[#allocation13 + $0x1f8] sm:$0xff]
    %1925 = vmatprep.subr.mxu0 %v1862
    %1926 = vmatpush1.msra.mxu0 %v1861
    %1927 = vmatprep.subr.mxu0 %v1866
    %1928 = vmatpush1.msra.mxu0 %v1865
    %1929 = vmatprep.subr.mxu0 %v1870
    %1930 = vmatpush1.msra.mxu0 %v1869
    %1931 = vmatprep.subr.mxu0 %v1874
    %1932 = vmatpush1.msra.mxu0 %v1873
    %1933 = vmatprep.subr.mxu0 %v1878
    %1934 = vmatpush1.msra.mxu0 %v1877
    %1935 = vmatprep.subr.mxu0 %v1882
    %1936 = vmatpush1.msra.mxu0 %v1881
    %1937 = vmatprep.subr.mxu0 %v1886
    %1938 = vmatpush1.msra.mxu0 %v1885
    %1939 = vmatprep.subr.mxu0 %v1890
    %1940 = vmatpush1.msra.mxu0 %v1889
    %1941 = vmatprep.subr.mxu0 %v1894
    %1942 = vmatpush1.msra.mxu0 %v1893
    %1943 = vmatprep.subr.mxu0 %v1898
    %1944 = vmatpush1.msra.mxu0 %v1897
    %1945 = vmatprep.subr.mxu0 %v1902
    %1946 = vmatpush1.msra.mxu0 %v1901
    %1947 = vmatprep.subr.mxu0 %v1906
    %1948 = vmatpush1.msra.mxu0 %v1905
    %1949 = vmatprep.subr.mxu0 %v1910
    %1950 = vmatpush1.msra.mxu0 %v1909
    %1951 = vmatprep.subr.mxu0 %v1914
    %1952 = vmatpush1.msra.mxu0 %v1913
    %1953 = vmatprep.subr.mxu0 %v1918
    %1954 = vmatpush1.msra.mxu0 %v1917
    %1955 = vmatprep.subr.mxu0 %v1922
    %1956 = vmatpush1.msra.mxu0 %v1921
    %1957 = vmatprep.subr.mxu0 0.0
    %1958 = vmatpush1.msra.mxu0 0.0
    %1959 = vmatprep.subr.mxu0 0.0
    %1960 = vmatpush1.msra.mxu0 0.0
    %1961 = vmatprep.subr.mxu0 0.0
    %1962 = vmatpush1.msra.mxu0 0.0
    %1963 = vmatprep.subr.mxu0 0.0
    %1964 = vmatpush1.msra.mxu0 0.0
    %1965 = vmatprep.subr.mxu0 0.0
    %1966 = vmatpush1.msra.mxu0 0.0
    %1967 = vmatprep.subr.mxu0 0.0
    %1968 = vmatpush1.msra.mxu0 0.0
    %1969 = vmatprep.subr.mxu0 0.0
    %1970 = vmatpush1.msra.mxu0 0.0
    %1971 = vmatprep.subr.mxu0 0.0
    %1972 = vmatpush1.msra.mxu0 0.0
    %1973 = vmatprep.subr.mxu0 0.0
    %1974 = vmatpush1.msra.mxu0 0.0
    %1975 = vmatprep.subr.mxu0 0.0
    %1976 = vmatpush1.msra.mxu0 0.0
    %1977 = vmatprep.subr.mxu0 0.0
    %1978 = vmatpush1.msra.mxu0 0.0
    %1979 = vmatprep.subr.mxu0 0.0
    %1980 = vmatpush1.msra.mxu0 0.0
    %1981 = vmatprep.subr.mxu0 0.0
    %1982 = vmatpush1.msra.mxu0 0.0
    %1983 = vmatprep.subr.mxu0 0.0
    %1984 = vmatpush1.msra.mxu0 0.0
    %1985 = vmatprep.subr.mxu0 0.0
    %1986 = vmatpush1.msra.mxu0 0.0
    %1987 = vmatprep.subr.mxu0 0.0
    %1988 = vmatpush1.msra.mxu0 0.0
    %1989 = vmatprep.mubr.f32.mxu0 0.0
    %1990 = vmatmul.mubr.f32.gmra.mrb[0].mxu0 %v1853
    %v1991 = vpop.f32.mrb[0].mxu0
    %v1992 = vadd.f32 0.0, %v1991
    %v1993 = vpop.f32.mrb[0].mxu0
    %v1994 = vadd.f32 0.0, %v1993
    %1995 = vdwg.mxu0
    %1996 = vmatprep.subr.mxu0 %v1864
    %1997 = vmatpush1.msra.mxu0 %v1863
    %1998 = vmatprep.subr.mxu0 %v1868
    %1999 = vmatpush1.msra.mxu0 %v1867
    %2000 = vmatprep.subr.mxu0 %v1872
    %2001 = vmatpush1.msra.mxu0 %v1871
    %2002 = vmatprep.subr.mxu0 %v1876
    %2003 = vmatpush1.msra.mxu0 %v1875
    %2004 = vmatprep.subr.mxu0 %v1880
    %2005 = vmatpush1.msra.mxu0 %v1879
    %2006 = vmatprep.subr.mxu0 %v1884
    %2007 = vmatpush1.msra.mxu0 %v1883
    %2008 = vmatprep.subr.mxu0 %v1888
    %2009 = vmatpush1.msra.mxu0 %v1887
    %2010 = vmatprep.subr.mxu0 %v1892
    %2011 = vmatpush1.msra.mxu0 %v1891
    %2012 = vmatprep.subr.mxu0 %v1896
    %2013 = vmatpush1.msra.mxu0 %v1895
    %2014 = vmatprep.subr.mxu0 %v1900
    %2015 = vmatpush1.msra.mxu0 %v1899
    %2016 = vmatprep.subr.mxu0 %v1904
    %2017 = vmatpush1.msra.mxu0 %v1903
    %2018 = vmatprep.subr.mxu0 %v1908
    %2019 = vmatpush1.msra.mxu0 %v1907
    %2020 = vmatprep.subr.mxu0 %v1912
    %2021 = vmatpush1.msra.mxu0 %v1911
    %2022 = vmatprep.subr.mxu0 %v1916
    %2023 = vmatpush1.msra.mxu0 %v1915
    %2024 = vmatprep.subr.mxu0 %v1920
    %2025 = vmatpush1.msra.mxu0 %v1919
    %2026 = vmatprep.subr.mxu0 %v1924
    %2027 = vmatpush1.msra.mxu0 %v1923
    %2028 = vmatprep.subr.mxu0 0.0
    %2029 = vmatpush1.msra.mxu0 0.0
    %2030 = vmatprep.subr.mxu0 0.0
    %2031 = vmatpush1.msra.mxu0 0.0
    %2032 = vmatprep.subr.mxu0 0.0
    %2033 = vmatpush1.msra.mxu0 0.0
    %2034 = vmatprep.subr.mxu0 0.0
    %2035 = vmatpush1.msra.mxu0 0.0
    %2036 = vmatprep.subr.mxu0 0.0
    %2037 = vmatpush1.msra.mxu0 0.0
    %2038 = vmatprep.subr.mxu0 0.0
    %2039 = vmatpush1.msra.mxu0 0.0
    %2040 = vmatprep.subr.mxu0 0.0
    %2041 = vmatpush1.msra.mxu0 0.0
    %2042 = vmatprep.subr.mxu0 0.0
    %2043 = vmatpush1.msra.mxu0 0.0
    %2044 = vmatprep.subr.mxu0 0.0
    %2045 = vmatpush1.msra.mxu0 0.0
    %2046 = vmatprep.subr.mxu0 0.0
    %2047 = vmatpush1.msra.mxu0 0.0
    %2048 = vmatprep.subr.mxu0 0.0
    %2049 = vmatpush1.msra.mxu0 0.0
    %2050 = vmatprep.subr.mxu0 0.0
    %2051 = vmatpush1.msra.mxu0 0.0
    %2052 = vmatprep.subr.mxu0 0.0
    %2053 = vmatpush1.msra.mxu0 0.0
    %2054 = vmatprep.subr.mxu0 0.0
    %2055 = vmatpush1.msra.mxu0 0.0
    %2056 = vmatprep.subr.mxu0 0.0
    %2057 = vmatpush1.msra.mxu0 0.0
    %2058 = vmatprep.subr.mxu0 0.0
    %2059 = vmatpush1.msra.mxu0 0.0
    %2060 = vmatprep.mubr.f32.mxu0 0.0
    %2061 = vmatmul.mubr.f32.gmra.mrb[0].mxu0 %v1853
    %v2062 = vpop.f32.mrb[0].mxu0
    %v2063 = vadd.f32 0.0, %v2062
    %v2064 = vpop.f32.mrb[0].mxu0
    %v2065 = vadd.f32 0.0, %v2064
    %2066 = vdwg.mxu0
    %v2067 = vadd.f32 %v1857, %v1992
    %v2068 = vadd.f32 %v1858, %v1994
    %v2069 = vadd.f32 %v1859, %v2063
    %v2070 = vadd.f32 %v1860, %v2065
    %v2071 = vxor.u32 %v2067, 2147483648
    %v2072 = vmul.f32 %v2071, 1.442695
    %v2073 = vpow.pop %v2072
    %v2074 = vadd.f32 %v2073, 1.0
    %v2075 = vrcp.pop %v2074
    %v2076 = vmul.f32 1.0, %v2075
    %v2077 = vxor.u32 %v2068, 2147483648
    %v2078 = vmul.f32 %v2077, 1.442695
    %v2079 = vpow.pop %v2078
    %v2080 = vadd.f32 %v2079, 1.0
    %v2081 = vrcp.pop %v2080
    %v2082 = vmul.f32 1.0, %v2081
    %v2083 = vtanh.pop %v2069
    %v2084 = vxor.u32 %v2070, 2147483648
    %v2085 = vmul.f32 %v2084, 1.442695
    %v2086 = vpow.pop %v2085
    %v2087 = vadd.f32 %v2086, 1.0
    %v2088 = vrcp.pop %v2087
    %v2089 = vmul.f32 1.0, %v2088
    %v2090 = vmul.f32 %v2082, %v1851
    %v2091 = vmul.f32 %v2076, %v2083
    %v2092 = vadd.f32 %v2090, %v2091
    %v2093 = vtanh.pop %v2092
    %v2094 = vmul.f32 %v2089, %v2093
    %s2095 = scalar_lea.vmem [#allocation3], 40
    %2096 = vst [vmem:[%s2095] sm:$0xff] %v2094
    %s2097 = scalar_lea.vmem [#allocation2], 192
    %v2098 = vld [vmem:[%s2097] sm:$0xff]
    %v2099 = vld [vmem:[%s2097 + $0x8] sm:$0xff]
    %v2100 = vld [vmem:[%s2097 + $0x10] sm:$0xff]
    %v2101 = vld [vmem:[%s2097 + $0x18] sm:$0xff]
    %v2102 = vld [vmem:[#allocation13] sm:$0xff]
    %v2103 = vld [vmem:[#allocation13 + $0x8] sm:$0xff]
    %v2104 = vld [vmem:[#allocation13 + $0x10] sm:$0xff]
    %v2105 = vld [vmem:[#allocation13 + $0x18] sm:$0xff]
    %v2106 = vld [vmem:[#allocation13 + $0x20] sm:$0xff]
    %v2107 = vld [vmem:[#allocation13 + $0x28] sm:$0xff]
    %v2108 = vld [vmem:[#allocation13 + $0x30] sm:$0xff]
    %v2109 = vld [vmem:[#allocation13 + $0x38] sm:$0xff]
    %v2110 = vld [vmem:[#allocation13 + $0x40] sm:$0xff]
    %v2111 = vld [vmem:[#allocation13 + $0x48] sm:$0xff]
    %v2112 = vld [vmem:[#allocation13 + $0x50] sm:$0xff]
    %v2113 = vld [vmem:[#allocation13 + $0x58] sm:$0xff]
    %v2114 = vld [vmem:[#allocation13 + $0x60] sm:$0xff]
    %v2115 = vld [vmem:[#allocation13 + $0x68] sm:$0xff]
    %v2116 = vld [vmem:[#allocation13 + $0x70] sm:$0xff]
    %v2117 = vld [vmem:[#allocation13 + $0x78] sm:$0xff]
    %v2118 = vld [vmem:[#allocation13 + $0x80] sm:$0xff]
    %v2119 = vld [vmem:[#allocation13 + $0x88] sm:$0xff]
    %v2120 = vld [vmem:[#allocation13 + $0x90] sm:$0xff]
    %v2121 = vld [vmem:[#allocation13 + $0x98] sm:$0xff]
    %v2122 = vld [vmem:[#allocation13 + $0xa0] sm:$0xff]
    %v2123 = vld [vmem:[#allocation13 + $0xa8] sm:$0xff]
    %v2124 = vld [vmem:[#allocation13 + $0xb0] sm:$0xff]
    %v2125 = vld [vmem:[#allocation13 + $0xb8] sm:$0xff]
    %v2126 = vld [vmem:[#allocation13 + $0xc0] sm:$0xff]
    %v2127 = vld [vmem:[#allocation13 + $0xc8] sm:$0xff]
    %v2128 = vld [vmem:[#allocation13 + $0xd0] sm:$0xff]
    %v2129 = vld [vmem:[#allocation13 + $0xd8] sm:$0xff]
    %v2130 = vld [vmem:[#allocation13 + $0xe0] sm:$0xff]
    %v2131 = vld [vmem:[#allocation13 + $0xe8] sm:$0xff]
    %v2132 = vld [vmem:[#allocation13 + $0xf0] sm:$0xff]
    %v2133 = vld [vmem:[#allocation13 + $0xf8] sm:$0xff]
    %v2134 = vld [vmem:[#allocation13 + $0x100] sm:$0xff]
    %v2135 = vld [vmem:[#allocation13 + $0x108] sm:$0xff]
    %v2136 = vld [vmem:[#allocation13 + $0x110] sm:$0xff]
    %v2137 = vld [vmem:[#allocation13 + $0x118] sm:$0xff]
    %v2138 = vld [vmem:[#allocation13 + $0x120] sm:$0xff]
    %v2139 = vld [vmem:[#allocation13 + $0x128] sm:$0xff]
    %v2140 = vld [vmem:[#allocation13 + $0x130] sm:$0xff]
    %v2141 = vld [vmem:[#allocation13 + $0x138] sm:$0xff]
    %v2142 = vld [vmem:[#allocation13 + $0x140] sm:$0xff]
    %v2143 = vld [vmem:[#allocation13 + $0x148] sm:$0xff]
    %v2144 = vld [vmem:[#allocation13 + $0x150] sm:$0xff]
    %v2145 = vld [vmem:[#allocation13 + $0x158] sm:$0xff]
    %v2146 = vld [vmem:[#allocation13 + $0x160] sm:$0xff]
    %v2147 = vld [vmem:[#allocation13 + $0x168] sm:$0xff]
    %v2148 = vld [vmem:[#allocation13 + $0x170] sm:$0xff]
    %v2149 = vld [vmem:[#allocation13 + $0x178] sm:$0xff]
    %v2150 = vld [vmem:[#allocation13 + $0x180] sm:$0xff]
    %v2151 = vld [vmem:[#allocation13 + $0x188] sm:$0xff]
    %v2152 = vld [vmem:[#allocation13 + $0x190] sm:$0xff]
    %v2153 = vld [vmem:[#allocation13 + $0x198] sm:$0xff]
    %v2154 = vld [vmem:[#allocation13 + $0x1a0] sm:$0xff]
    %v2155 = vld [vmem:[#allocation13 + $0x1a8] sm:$0xff]
    %v2156 = vld [vmem:[#allocation13 + $0x1b0] sm:$0xff]
    %v2157 = vld [vmem:[#allocation13 + $0x1b8] sm:$0xff]
    %v2158 = vld [vmem:[#allocation13 + $0x1c0] sm:$0xff]
    %v2159 = vld [vmem:[#allocation13 + $0x1c8] sm:$0xff]
    %v2160 = vld [vmem:[#allocation13 + $0x1d0] sm:$0xff]
    %v2161 = vld [vmem:[#allocation13 + $0x1d8] sm:$0xff]
    %v2162 = vld [vmem:[#allocation13 + $0x1e0] sm:$0xff]
    %v2163 = vld [vmem:[#allocation13 + $0x1e8] sm:$0xff]
    %v2164 = vld [vmem:[#allocation13 + $0x1f0] sm:$0xff]
    %v2165 = vld [vmem:[#allocation13 + $0x1f8] sm:$0xff]
    %2166 = vmatprep.subr.mxu0 %v2103
    %2167 = vmatpush1.msra.mxu0 %v2102
    %2168 = vmatprep.subr.mxu0 %v2107
    %2169 = vmatpush1.msra.mxu0 %v2106
    %2170 = vmatprep.subr.mxu0 %v2111
    %2171 = vmatpush1.msra.mxu0 %v2110
    %2172 = vmatprep.subr.mxu0 %v2115
    %2173 = vmatpush1.msra.mxu0 %v2114
    %2174 = vmatprep.subr.mxu0 %v2119
    %2175 = vmatpush1.msra.mxu0 %v2118
    %2176 = vmatprep.subr.mxu0 %v2123
    %2177 = vmatpush1.msra.mxu0 %v2122
    %2178 = vmatprep.subr.mxu0 %v2127
    %2179 = vmatpush1.msra.mxu0 %v2126
    %2180 = vmatprep.subr.mxu0 %v2131
    %2181 = vmatpush1.msra.mxu0 %v2130
    %2182 = vmatprep.subr.mxu0 %v2135
    %2183 = vmatpush1.msra.mxu0 %v2134
    %2184 = vmatprep.subr.mxu0 %v2139
    %2185 = vmatpush1.msra.mxu0 %v2138
    %2186 = vmatprep.subr.mxu0 %v2143
    %2187 = vmatpush1.msra.mxu0 %v2142
    %2188 = vmatprep.subr.mxu0 %v2147
    %2189 = vmatpush1.msra.mxu0 %v2146
    %2190 = vmatprep.subr.mxu0 %v2151
    %2191 = vmatpush1.msra.mxu0 %v2150
    %2192 = vmatprep.subr.mxu0 %v2155
    %2193 = vmatpush1.msra.mxu0 %v2154
    %2194 = vmatprep.subr.mxu0 %v2159
    %2195 = vmatpush1.msra.mxu0 %v2158
    %2196 = vmatprep.subr.mxu0 %v2163
    %2197 = vmatpush1.msra.mxu0 %v2162
    %2198 = vmatprep.subr.mxu0 0.0
    %2199 = vmatpush1.msra.mxu0 0.0
    %2200 = vmatprep.subr.mxu0 0.0
    %2201 = vmatpush1.msra.mxu0 0.0
    %2202 = vmatprep.subr.mxu0 0.0
    %2203 = vmatpush1.msra.mxu0 0.0
    %2204 = vmatprep.subr.mxu0 0.0
    %2205 = vmatpush1.msra.mxu0 0.0
    %2206 = vmatprep.subr.mxu0 0.0
    %2207 = vmatpush1.msra.mxu0 0.0
    %2208 = vmatprep.subr.mxu0 0.0
    %2209 = vmatpush1.msra.mxu0 0.0
    %2210 = vmatprep.subr.mxu0 0.0
    %2211 = vmatpush1.msra.mxu0 0.0
    %2212 = vmatprep.subr.mxu0 0.0
    %2213 = vmatpush1.msra.mxu0 0.0
    %2214 = vmatprep.subr.mxu0 0.0
    %2215 = vmatpush1.msra.mxu0 0.0
    %2216 = vmatprep.subr.mxu0 0.0
    %2217 = vmatpush1.msra.mxu0 0.0
    %2218 = vmatprep.subr.mxu0 0.0
    %2219 = vmatpush1.msra.mxu0 0.0
    %2220 = vmatprep.subr.mxu0 0.0
    %2221 = vmatpush1.msra.mxu0 0.0
    %2222 = vmatprep.subr.mxu0 0.0
    %2223 = vmatpush1.msra.mxu0 0.0
    %2224 = vmatprep.subr.mxu0 0.0
    %2225 = vmatpush1.msra.mxu0 0.0
    %2226 = vmatprep.subr.mxu0 0.0
    %2227 = vmatpush1.msra.mxu0 0.0
    %2228 = vmatprep.subr.mxu0 0.0
    %2229 = vmatpush1.msra.mxu0 0.0
    %2230 = vmatprep.mubr.f32.mxu0 0.0
    %2231 = vmatmul.mubr.f32.gmra.mrb[0].mxu0 %v2094
    %v2232 = vpop.f32.mrb[0].mxu0
    %v2233 = vadd.f32 0.0, %v2232
    %v2234 = vpop.f32.mrb[0].mxu0
    %v2235 = vadd.f32 0.0, %v2234
    %2236 = vdwg.mxu0
    %2237 = vmatprep.subr.mxu0 %v2105
    %2238 = vmatpush1.msra.mxu0 %v2104
    %2239 = vmatprep.subr.mxu0 %v2109
    %2240 = vmatpush1.msra.mxu0 %v2108
    %2241 = vmatprep.subr.mxu0 %v2113
    %2242 = vmatpush1.msra.mxu0 %v2112
    %2243 = vmatprep.subr.mxu0 %v2117
    %2244 = vmatpush1.msra.mxu0 %v2116
    %2245 = vmatprep.subr.mxu0 %v2121
    %2246 = vmatpush1.msra.mxu0 %v2120
    %2247 = vmatprep.subr.mxu0 %v2125
    %2248 = vmatpush1.msra.mxu0 %v2124
    %2249 = vmatprep.subr.mxu0 %v2129
    %2250 = vmatpush1.msra.mxu0 %v2128
    %2251 = vmatprep.subr.mxu0 %v2133
    %2252 = vmatpush1.msra.mxu0 %v2132
    %2253 = vmatprep.subr.mxu0 %v2137
    %2254 = vmatpush1.msra.mxu0 %v2136
    %2255 = vmatprep.subr.mxu0 %v2141
    %2256 = vmatpush1.msra.mxu0 %v2140
    %2257 = vmatprep.subr.mxu0 %v2145
    %2258 = vmatpush1.msra.mxu0 %v2144
    %2259 = vmatprep.subr.mxu0 %v2149
    %2260 = vmatpush1.msra.mxu0 %v2148
    %2261 = vmatprep.subr.mxu0 %v2153
    %2262 = vmatpush1.msra.mxu0 %v2152
    %2263 = vmatprep.subr.mxu0 %v2157
    %2264 = vmatpush1.msra.mxu0 %v2156
    %2265 = vmatprep.subr.mxu0 %v2161
    %2266 = vmatpush1.msra.mxu0 %v2160
    %2267 = vmatprep.subr.mxu0 %v2165
    %2268 = vmatpush1.msra.mxu0 %v2164
    %2269 = vmatprep.subr.mxu0 0.0
    %2270 = vmatpush1.msra.mxu0 0.0
    %2271 = vmatprep.subr.mxu0 0.0
    %2272 = vmatpush1.msra.mxu0 0.0
    %2273 = vmatprep.subr.mxu0 0.0
    %2274 = vmatpush1.msra.mxu0 0.0
    %2275 = vmatprep.subr.mxu0 0.0
    %2276 = vmatpush1.msra.mxu0 0.0
    %2277 = vmatprep.subr.mxu0 0.0
    %2278 = vmatpush1.msra.mxu0 0.0
    %2279 = vmatprep.subr.mxu0 0.0
    %2280 = vmatpush1.msra.mxu0 0.0
    %2281 = vmatprep.subr.mxu0 0.0
    %2282 = vmatpush1.msra.mxu0 0.0
    %2283 = vmatprep.subr.mxu0 0.0
    %2284 = vmatpush1.msra.mxu0 0.0
    %2285 = vmatprep.subr.mxu0 0.0
    %2286 = vmatpush1.msra.mxu0 0.0
    %2287 = vmatprep.subr.mxu0 0.0
    %2288 = vmatpush1.msra.mxu0 0.0
    %2289 = vmatprep.subr.mxu0 0.0
    %2290 = vmatpush1.msra.mxu0 0.0
    %2291 = vmatprep.subr.mxu0 0.0
    %2292 = vmatpush1.msra.mxu0 0.0
    %2293 = vmatprep.subr.mxu0 0.0
    %2294 = vmatpush1.msra.mxu0 0.0
    %2295 = vmatprep.subr.mxu0 0.0
    %2296 = vmatpush1.msra.mxu0 0.0
    %2297 = vmatprep.subr.mxu0 0.0
    %2298 = vmatpush1.msra.mxu0 0.0
    %2299 = vmatprep.subr.mxu0 0.0
    %2300 = vmatpush1.msra.mxu0 0.0
    %2301 = vmatprep.mubr.f32.mxu0 0.0
    %2302 = vmatmul.mubr.f32.gmra.mrb[0].mxu0 %v2094
    %v2303 = vpop.f32.mrb[0].mxu0
    %v2304 = vadd.f32 0.0, %v2303
    %v2305 = vpop.f32.mrb[0].mxu0
    %v2306 = vadd.f32 0.0, %v2305
    %2307 = vdwg.mxu0
    %v2308 = vadd.f32 %v2098, %v2233
    %v2309 = vadd.f32 %v2099, %v2235
    %v2310 = vadd.f32 %v2100, %v2304
    %v2311 = vadd.f32 %v2101, %v2306
    %v2312 = vxor.u32 %v2308, 2147483648
    %v2313 = vmul.f32 %v2312, 1.442695
    %v2314 = vpow.pop %v2313
    %v2315 = vadd.f32 %v2314, 1.0
    %v2316 = vrcp.pop %v2315
    %v2317 = vmul.f32 1.0, %v2316
    %v2318 = vxor.u32 %v2309, 2147483648
    %v2319 = vmul.f32 %v2318, 1.442695
    %v2320 = vpow.pop %v2319
    %v2321 = vadd.f32 %v2320, 1.0
    %v2322 = vrcp.pop %v2321
    %v2323 = vmul.f32 1.0, %v2322
    %v2324 = vtanh.pop %v2310
    %v2325 = vxor.u32 %v2311, 2147483648
    %v2326 = vmul.f32 %v2325, 1.442695
    %v2327 = vpow.pop %v2326
    %v2328 = vadd.f32 %v2327, 1.0
    %v2329 = vrcp.pop %v2328
    %v2330 = vmul.f32 1.0, %v2329
    %v2331 = vmul.f32 %v2323, %v2092
    %v2332 = vmul.f32 %v2317, %v2324
    %v2333 = vadd.f32 %v2331, %v2332
    %v2334 = vtanh.pop %v2333
    %v2335 = vmul.f32 %v2330, %v2334
    %s2336 = scalar_lea.vmem [#allocation3], 48
    %2337 = vst [vmem:[%s2336] sm:$0xff] %v2335
    %s2338 = scalar_lea.vmem [#allocation2], 224
    %v2339 = vld [vmem:[%s2338] sm:$0xff]
    %v2340 = vld [vmem:[%s2338 + $0x8] sm:$0xff]
    %v2341 = vld [vmem:[%s2338 + $0x10] sm:$0xff]
    %v2342 = vld [vmem:[%s2338 + $0x18] sm:$0xff]
    %v2343 = vld [vmem:[#allocation13] sm:$0xff]
    %v2344 = vld [vmem:[#allocation13 + $0x8] sm:$0xff]
    %v2345 = vld [vmem:[#allocation13 + $0x10] sm:$0xff]
    %v2346 = vld [vmem:[#allocation13 + $0x18] sm:$0xff]
    %v2347 = vld [vmem:[#allocation13 + $0x20] sm:$0xff]
    %v2348 = vld [vmem:[#allocation13 + $0x28] sm:$0xff]
    %v2349 = vld [vmem:[#allocation13 + $0x30] sm:$0xff]
    %v2350 = vld [vmem:[#allocation13 + $0x38] sm:$0xff]
    %v2351 = vld [vmem:[#allocation13 + $0x40] sm:$0xff]
    %v2352 = vld [vmem:[#allocation13 + $0x48] sm:$0xff]
    %v2353 = vld [vmem:[#allocation13 + $0x50] sm:$0xff]
    %v2354 = vld [vmem:[#allocation13 + $0x58] sm:$0xff]
    %v2355 = vld [vmem:[#allocation13 + $0x60] sm:$0xff]
    %v2356 = vld [vmem:[#allocation13 + $0x68] sm:$0xff]
    %v2357 = vld [vmem:[#allocation13 + $0x70] sm:$0xff]
    %v2358 = vld [vmem:[#allocation13 + $0x78] sm:$0xff]
    %v2359 = vld [vmem:[#allocation13 + $0x80] sm:$0xff]
    %v2360 = vld [vmem:[#allocation13 + $0x88] sm:$0xff]
    %v2361 = vld [vmem:[#allocation13 + $0x90] sm:$0xff]
    %v2362 = vld [vmem:[#allocation13 + $0x98] sm:$0xff]
    %v2363 = vld [vmem:[#allocation13 + $0xa0] sm:$0xff]
    %v2364 = vld [vmem:[#allocation13 + $0xa8] sm:$0xff]
    %v2365 = vld [vmem:[#allocation13 + $0xb0] sm:$0xff]
    %v2366 = vld [vmem:[#allocation13 + $0xb8] sm:$0xff]
    %v2367 = vld [vmem:[#allocation13 + $0xc0] sm:$0xff]
    %v2368 = vld [vmem:[#allocation13 + $0xc8] sm:$0xff]
    %v2369 = vld [vmem:[#allocation13 + $0xd0] sm:$0xff]
    %v2370 = vld [vmem:[#allocation13 + $0xd8] sm:$0xff]
    %v2371 = vld [vmem:[#allocation13 + $0xe0] sm:$0xff]
    %v2372 = vld [vmem:[#allocation13 + $0xe8] sm:$0xff]
    %v2373 = vld [vmem:[#allocation13 + $0xf0] sm:$0xff]
    %v2374 = vld [vmem:[#allocation13 + $0xf8] sm:$0xff]
    %v2375 = vld [vmem:[#allocation13 + $0x100] sm:$0xff]
    %v2376 = vld [vmem:[#allocation13 + $0x108] sm:$0xff]
    %v2377 = vld [vmem:[#allocation13 + $0x110] sm:$0xff]
    %v2378 = vld [vmem:[#allocation13 + $0x118] sm:$0xff]
    %v2379 = vld [vmem:[#allocation13 + $0x120] sm:$0xff]
    %v2380 = vld [vmem:[#allocation13 + $0x128] sm:$0xff]
    %v2381 = vld [vmem:[#allocation13 + $0x130] sm:$0xff]
    %v2382 = vld [vmem:[#allocation13 + $0x138] sm:$0xff]
    %v2383 = vld [vmem:[#allocation13 + $0x140] sm:$0xff]
    %v2384 = vld [vmem:[#allocation13 + $0x148] sm:$0xff]
    %v2385 = vld [vmem:[#allocation13 + $0x150] sm:$0xff]
    %v2386 = vld [vmem:[#allocation13 + $0x158] sm:$0xff]
    %v2387 = vld [vmem:[#allocation13 + $0x160] sm:$0xff]
    %v2388 = vld [vmem:[#allocation13 + $0x168] sm:$0xff]
    %v2389 = vld [vmem:[#allocation13 + $0x170] sm:$0xff]
    %v2390 = vld [vmem:[#allocation13 + $0x178] sm:$0xff]
    %v2391 = vld [vmem:[#allocation13 + $0x180] sm:$0xff]
    %v2392 = vld [vmem:[#allocation13 + $0x188] sm:$0xff]
    %v2393 = vld [vmem:[#allocation13 + $0x190] sm:$0xff]
    %v2394 = vld [vmem:[#allocation13 + $0x198] sm:$0xff]
    %v2395 = vld [vmem:[#allocation13 + $0x1a0] sm:$0xff]
    %v2396 = vld [vmem:[#allocation13 + $0x1a8] sm:$0xff]
    %v2397 = vld [vmem:[#allocation13 + $0x1b0] sm:$0xff]
    %v2398 = vld [vmem:[#allocation13 + $0x1b8] sm:$0xff]
    %v2399 = vld [vmem:[#allocation13 + $0x1c0] sm:$0xff]
    %v2400 = vld [vmem:[#allocation13 + $0x1c8] sm:$0xff]
    %v2401 = vld [vmem:[#allocation13 + $0x1d0] sm:$0xff]
    %v2402 = vld [vmem:[#allocation13 + $0x1d8] sm:$0xff]
    %v2403 = vld [vmem:[#allocation13 + $0x1e0] sm:$0xff]
    %v2404 = vld [vmem:[#allocation13 + $0x1e8] sm:$0xff]
    %v2405 = vld [vmem:[#allocation13 + $0x1f0] sm:$0xff]
    %v2406 = vld [vmem:[#allocation13 + $0x1f8] sm:$0xff]
    %2407 = vmatprep.subr.mxu0 %v2344
    %2408 = vmatpush1.msra.mxu0 %v2343
    %2409 = vmatprep.subr.mxu0 %v2348
    %2410 = vmatpush1.msra.mxu0 %v2347
    %2411 = vmatprep.subr.mxu0 %v2352
    %2412 = vmatpush1.msra.mxu0 %v2351
    %2413 = vmatprep.subr.mxu0 %v2356
    %2414 = vmatpush1.msra.mxu0 %v2355
    %2415 = vmatprep.subr.mxu0 %v2360
    %2416 = vmatpush1.msra.mxu0 %v2359
    %2417 = vmatprep.subr.mxu0 %v2364
    %2418 = vmatpush1.msra.mxu0 %v2363
    %2419 = vmatprep.subr.mxu0 %v2368
    %2420 = vmatpush1.msra.mxu0 %v2367
    %2421 = vmatprep.subr.mxu0 %v2372
    %2422 = vmatpush1.msra.mxu0 %v2371
    %2423 = vmatprep.subr.mxu0 %v2376
    %2424 = vmatpush1.msra.mxu0 %v2375
    %2425 = vmatprep.subr.mxu0 %v2380
    %2426 = vmatpush1.msra.mxu0 %v2379
    %2427 = vmatprep.subr.mxu0 %v2384
    %2428 = vmatpush1.msra.mxu0 %v2383
    %2429 = vmatprep.subr.mxu0 %v2388
    %2430 = vmatpush1.msra.mxu0 %v2387
    %2431 = vmatprep.subr.mxu0 %v2392
    %2432 = vmatpush1.msra.mxu0 %v2391
    %2433 = vmatprep.subr.mxu0 %v2396
    %2434 = vmatpush1.msra.mxu0 %v2395
    %2435 = vmatprep.subr.mxu0 %v2400
    %2436 = vmatpush1.msra.mxu0 %v2399
    %2437 = vmatprep.subr.mxu0 %v2404
    %2438 = vmatpush1.msra.mxu0 %v2403
    %2439 = vmatprep.subr.mxu0 0.0
    %2440 = vmatpush1.msra.mxu0 0.0
    %2441 = vmatprep.subr.mxu0 0.0
    %2442 = vmatpush1.msra.mxu0 0.0
    %2443 = vmatprep.subr.mxu0 0.0
    %2444 = vmatpush1.msra.mxu0 0.0
    %2445 = vmatprep.subr.mxu0 0.0
    %2446 = vmatpush1.msra.mxu0 0.0
    %2447 = vmatprep.subr.mxu0 0.0
    %2448 = vmatpush1.msra.mxu0 0.0
    %2449 = vmatprep.subr.mxu0 0.0
    %2450 = vmatpush1.msra.mxu0 0.0
    %2451 = vmatprep.subr.mxu0 0.0
    %2452 = vmatpush1.msra.mxu0 0.0
    %2453 = vmatprep.subr.mxu0 0.0
    %2454 = vmatpush1.msra.mxu0 0.0
    %2455 = vmatprep.subr.mxu0 0.0
    %2456 = vmatpush1.msra.mxu0 0.0
    %2457 = vmatprep.subr.mxu0 0.0
    %2458 = vmatpush1.msra.mxu0 0.0
    %2459 = vmatprep.subr.mxu0 0.0
    %2460 = vmatpush1.msra.mxu0 0.0
    %2461 = vmatprep.subr.mxu0 0.0
    %2462 = vmatpush1.msra.mxu0 0.0
    %2463 = vmatprep.subr.mxu0 0.0
    %2464 = vmatpush1.msra.mxu0 0.0
    %2465 = vmatprep.subr.mxu0 0.0
    %2466 = vmatpush1.msra.mxu0 0.0
    %2467 = vmatprep.subr.mxu0 0.0
    %2468 = vmatpush1.msra.mxu0 0.0
    %2469 = vmatprep.subr.mxu0 0.0
    %2470 = vmatpush1.msra.mxu0 0.0
    %2471 = vmatprep.mubr.f32.mxu0 0.0
    %2472 = vmatmul.mubr.f32.gmra.mrb[0].mxu0 %v2335
    %v2473 = vpop.f32.mrb[0].mxu0
    %v2474 = vadd.f32 0.0, %v2473
    %v2475 = vpop.f32.mrb[0].mxu0
    %v2476 = vadd.f32 0.0, %v2475
    %2477 = vdwg.mxu0
    %2478 = vmatprep.subr.mxu0 %v2346
    %2479 = vmatpush1.msra.mxu0 %v2345
    %2480 = vmatprep.subr.mxu0 %v2350
    %2481 = vmatpush1.msra.mxu0 %v2349
    %2482 = vmatprep.subr.mxu0 %v2354
    %2483 = vmatpush1.msra.mxu0 %v2353
    %2484 = vmatprep.subr.mxu0 %v2358
    %2485 = vmatpush1.msra.mxu0 %v2357
    %2486 = vmatprep.subr.mxu0 %v2362
    %2487 = vmatpush1.msra.mxu0 %v2361
    %2488 = vmatprep.subr.mxu0 %v2366
    %2489 = vmatpush1.msra.mxu0 %v2365
    %2490 = vmatprep.subr.mxu0 %v2370
    %2491 = vmatpush1.msra.mxu0 %v2369
    %2492 = vmatprep.subr.mxu0 %v2374
    %2493 = vmatpush1.msra.mxu0 %v2373
    %2494 = vmatprep.subr.mxu0 %v2378
    %2495 = vmatpush1.msra.mxu0 %v2377
    %2496 = vmatprep.subr.mxu0 %v2382
    %2497 = vmatpush1.msra.mxu0 %v2381
    %2498 = vmatprep.subr.mxu0 %v2386
    %2499 = vmatpush1.msra.mxu0 %v2385
    %2500 = vmatprep.subr.mxu0 %v2390
    %2501 = vmatpush1.msra.mxu0 %v2389
    %2502 = vmatprep.subr.mxu0 %v2394
    %2503 = vmatpush1.msra.mxu0 %v2393
    %2504 = vmatprep.subr.mxu0 %v2398
    %2505 = vmatpush1.msra.mxu0 %v2397
    %2506 = vmatprep.subr.mxu0 %v2402
    %2507 = vmatpush1.msra.mxu0 %v2401
    %2508 = vmatprep.subr.mxu0 %v2406
    %2509 = vmatpush1.msra.mxu0 %v2405
    %2510 = vmatprep.subr.mxu0 0.0
    %2511 = vmatpush1.msra.mxu0 0.0
    %2512 = vmatprep.subr.mxu0 0.0
    %2513 = vmatpush1.msra.mxu0 0.0
    %2514 = vmatprep.subr.mxu0 0.0
    %2515 = vmatpush1.msra.mxu0 0.0
    %2516 = vmatprep.subr.mxu0 0.0
    %2517 = vmatpush1.msra.mxu0 0.0
    %2518 = vmatprep.subr.mxu0 0.0
    %2519 = vmatpush1.msra.mxu0 0.0
    %2520 = vmatprep.subr.mxu0 0.0
    %2521 = vmatpush1.msra.mxu0 0.0
    %2522 = vmatprep.subr.mxu0 0.0
    %2523 = vmatpush1.msra.mxu0 0.0
    %2524 = vmatprep.subr.mxu0 0.0
    %2525 = vmatpush1.msra.mxu0 0.0
    %2526 = vmatprep.subr.mxu0 0.0
    %2527 = vmatpush1.msra.mxu0 0.0
    %2528 = vmatprep.subr.mxu0 0.0
    %2529 = vmatpush1.msra.mxu0 0.0
    %2530 = vmatprep.subr.mxu0 0.0
    %2531 = vmatpush1.msra.mxu0 0.0
    %2532 = vmatprep.subr.mxu0 0.0
    %2533 = vmatpush1.msra.mxu0 0.0
    %2534 = vmatprep.subr.mxu0 0.0
    %2535 = vmatpush1.msra.mxu0 0.0
    %2536 = vmatprep.subr.mxu0 0.0
    %2537 = vmatpush1.msra.mxu0 0.0
    %2538 = vmatprep.subr.mxu0 0.0
    %2539 = vmatpush1.msra.mxu0 0.0
    %2540 = vmatprep.subr.mxu0 0.0
    %2541 = vmatpush1.msra.mxu0 0.0
    %2542 = vmatprep.mubr.f32.mxu0 0.0
    %2543 = vmatmul.mubr.f32.gmra.mrb[0].mxu0 %v2335
    %v2544 = vpop.f32.mrb[0].mxu0
    %v2545 = vadd.f32 0.0, %v2544
    %v2546 = vpop.f32.mrb[0].mxu0
    %v2547 = vadd.f32 0.0, %v2546
    %2548 = vdwg.mxu0
    %v2549 = vadd.f32 %v2339, %v2474
    %v2550 = vadd.f32 %v2340, %v2476
    %v2551 = vadd.f32 %v2341, %v2545
    %v2552 = vadd.f32 %v2342, %v2547
    %v2553 = vxor.u32 %v2549, 2147483648
    %v2554 = vmul.f32 %v2553, 1.442695
    %v2555 = vpow.pop %v2554
    %v2556 = vadd.f32 %v2555, 1.0
    %v2557 = vrcp.pop %v2556
    %v2558 = vmul.f32 1.0, %v2557
    %v2559 = vxor.u32 %v2550, 2147483648
    %v2560 = vmul.f32 %v2559, 1.442695
    %v2561 = vpow.pop %v2560
    %v2562 = vadd.f32 %v2561, 1.0
    %v2563 = vrcp.pop %v2562
    %v2564 = vmul.f32 1.0, %v2563
    %v2565 = vtanh.pop %v2551
    %v2566 = vxor.u32 %v2552, 2147483648
    %v2567 = vmul.f32 %v2566, 1.442695
    %v2568 = vpow.pop %v2567
    %v2569 = vadd.f32 %v2568, 1.0
    %v2570 = vrcp.pop %v2569
    %v2571 = vmul.f32 1.0, %v2570
    %v2572 = vmul.f32 %v2564, %v2333
    %v2573 = vmul.f32 %v2558, %v2565
    %v2574 = vadd.f32 %v2572, %v2573
    %v2575 = vtanh.pop %v2574
    %v2576 = vmul.f32 %v2571, %v2575
    %s2577 = scalar_lea.vmem [#allocation3], 56
    %2578 = vst [vmem:[%s2577] sm:$0xff] %v2576
    %2579 = vst [vmem:[#allocation20] sm:$0xff] %v2576
    %2580 = vst [vmem:[#allocation22] sm:$0xff] %v2574
    %v2581 = vld [vmem:[#allocation3] sm:$0xff]
    %v2582 = vld [vmem:[#allocation3 + $0x8] sm:$0xff]
    %v2583 = vld [vmem:[#allocation3 + $0x10] sm:$0xff]
    %v2584 = vld [vmem:[#allocation3 + $0x18] sm:$0xff]
    %v2585 = vld [vmem:[#allocation3 + $0x20] sm:$0xff]
    %v2586 = vld [vmem:[#allocation3 + $0x28] sm:$0xff]
    %v2587 = vld [vmem:[#allocation3 + $0x30] sm:$0xff]
    %v2588 = vld [vmem:[#allocation3 + $0x38] sm:$0xff]
    %v2589 = vld [vmem:[#allocation15] sm:$0xff]
    %v2590 = vld [vmem:[#allocation15 + $0x8] sm:$0xff]
    %v2591 = vld [vmem:[#allocation15 + $0x10] sm:$0xff]
    %v2592 = vld [vmem:[#allocation15 + $0x18] sm:$0xff]
    %v2593 = vld [vmem:[#allocation15 + $0x20] sm:$0xff]
    %v2594 = vld [vmem:[#allocation15 + $0x28] sm:$0xff]
    %v2595 = vld [vmem:[#allocation15 + $0x30] sm:$0xff]
    %v2596 = vld [vmem:[#allocation15 + $0x38] sm:$0xff]
    %v2597 = vld [vmem:[#allocation15 + $0x40] sm:$0xff]
    %v2598 = vld [vmem:[#allocation15 + $0x48] sm:$0xff]
    %v2599 = vld [vmem:[#allocation15 + $0x50] sm:$0xff]
    %v2600 = vld [vmem:[#allocation15 + $0x58] sm:$0xff]
    %v2601 = vld [vmem:[#allocation15 + $0x60] sm:$0xff]
    %v2602 = vld [vmem:[#allocation15 + $0x68] sm:$0xff]
    %v2603 = vld [vmem:[#allocation15 + $0x70] sm:$0xff]
    %v2604 = vld [vmem:[#allocation15 + $0x78] sm:$0xff]
    %v2605 = vld [vmem:[#allocation15 + $0x80] sm:$0xff]
    %v2606 = vld [vmem:[#allocation15 + $0x88] sm:$0xff]
    %v2607 = vld [vmem:[#allocation15 + $0x90] sm:$0xff]
    %v2608 = vld [vmem:[#allocation15 + $0x98] sm:$0xff]
    %v2609 = vld [vmem:[#allocation15 + $0xa0] sm:$0xff]
    %v2610 = vld [vmem:[#allocation15 + $0xa8] sm:$0xff]
    %v2611 = vld [vmem:[#allocation15 + $0xb0] sm:$0xff]
    %v2612 = vld [vmem:[#allocation15 + $0xb8] sm:$0xff]
    %v2613 = vld [vmem:[#allocation15 + $0xc0] sm:$0xff]
    %v2614 = vld [vmem:[#allocation15 + $0xc8] sm:$0xff]
    %v2615 = vld [vmem:[#allocation15 + $0xd0] sm:$0xff]
    %v2616 = vld [vmem:[#allocation15 + $0xd8] sm:$0xff]
    %v2617 = vld [vmem:[#allocation15 + $0xe0] sm:$0xff]
    %v2618 = vld [vmem:[#allocation15 + $0xe8] sm:$0xff]
    %v2619 = vld [vmem:[#allocation15 + $0xf0] sm:$0xff]
    %v2620 = vld [vmem:[#allocation15 + $0xf8] sm:$0xff]
    %v2621 = vld [vmem:[#allocation15 + $0x100] sm:$0xff]
    %v2622 = vld [vmem:[#allocation15 + $0x108] sm:$0xff]
    %v2623 = vld [vmem:[#allocation15 + $0x110] sm:$0xff]
    %v2624 = vld [vmem:[#allocation15 + $0x118] sm:$0xff]
    %v2625 = vld [vmem:[#allocation15 + $0x120] sm:$0xff]
    %v2626 = vld [vmem:[#allocation15 + $0x128] sm:$0xff]
    %v2627 = vld [vmem:[#allocation15 + $0x130] sm:$0xff]
    %v2628 = vld [vmem:[#allocation15 + $0x138] sm:$0xff]
    %v2629 = vld [vmem:[#allocation15 + $0x140] sm:$0xff]
    %v2630 = vld [vmem:[#allocation15 + $0x148] sm:$0xff]
    %v2631 = vld [vmem:[#allocation15 + $0x150] sm:$0xff]
    %v2632 = vld [vmem:[#allocation15 + $0x158] sm:$0xff]
    %v2633 = vld [vmem:[#allocation15 + $0x160] sm:$0xff]
    %v2634 = vld [vmem:[#allocation15 + $0x168] sm:$0xff]
    %v2635 = vld [vmem:[#allocation15 + $0x170] sm:$0xff]
    %v2636 = vld [vmem:[#allocation15 + $0x178] sm:$0xff]
    %v2637 = vld [vmem:[#allocation15 + $0x180] sm:$0xff]
    %v2638 = vld [vmem:[#allocation15 + $0x188] sm:$0xff]
    %v2639 = vld [vmem:[#allocation15 + $0x190] sm:$0xff]
    %v2640 = vld [vmem:[#allocation15 + $0x198] sm:$0xff]
    %v2641 = vld [vmem:[#allocation15 + $0x1a0] sm:$0xff]
    %v2642 = vld [vmem:[#allocation15 + $0x1a8] sm:$0xff]
    %v2643 = vld [vmem:[#allocation15 + $0x1b0] sm:$0xff]
    %v2644 = vld [vmem:[#allocation15 + $0x1b8] sm:$0xff]
    %v2645 = vld [vmem:[#allocation15 + $0x1c0] sm:$0xff]
    %v2646 = vld [vmem:[#allocation15 + $0x1c8] sm:$0xff]
    %v2647 = vld [vmem:[#allocation15 + $0x1d0] sm:$0xff]
    %v2648 = vld [vmem:[#allocation15 + $0x1d8] sm:$0xff]
    %v2649 = vld [vmem:[#allocation15 + $0x1e0] sm:$0xff]
    %v2650 = vld [vmem:[#allocation15 + $0x1e8] sm:$0xff]
    %v2651 = vld [vmem:[#allocation15 + $0x1f0] sm:$0xff]
    %v2652 = vld [vmem:[#allocation15 + $0x1f8] sm:$0xff]
    %v2653 = vld [vmem:[%s10] sm:$0xf]
    %v2655 = vlaneseq
    %v2656 = vshrl.u32 %v2655, 7
    %v2657 = vsub.s32 0, %v2656
    %v2658 = vrot.slane %v2653, %v2657
    %v2659 = vlaneseq
    %v2660 = vshrl.u32 %v2659, 7
    %v2661 = vsub.s32 1, %v2660
    %v2662 = vrot.slane %v2653, %v2661
    %v2663 = vlaneseq
    %v2664 = vshrl.u32 %v2663, 7
    %v2665 = vsub.s32 2, %v2664
    %v2666 = vrot.slane %v2653, %v2665
    %v2667 = vlaneseq
    %v2668 = vshrl.u32 %v2667, 7
    %v2669 = vsub.s32 3, %v2668
    %v2670 = vrot.slane %v2653, %v2669
    %2675 = vmatprep.subr.mxu0 %v2590
    %2676 = vmatpush1.msra.mxu0 %v2589
    %2677 = vmatprep.subr.mxu0 %v2594
    %2678 = vmatpush1.msra.mxu0 %v2593
    %2679 = vmatprep.subr.mxu0 %v2598
    %2680 = vmatpush1.msra.mxu0 %v2597
    %2681 = vmatprep.subr.mxu0 %v2602
    %2682 = vmatpush1.msra.mxu0 %v2601
    %2683 = vmatprep.subr.mxu0 %v2606
    %2684 = vmatpush1.msra.mxu0 %v2605
    %2685 = vmatprep.subr.mxu0 %v2610
    %2686 = vmatpush1.msra.mxu0 %v2609
    %2687 = vmatprep.subr.mxu0 %v2614
    %2688 = vmatpush1.msra.mxu0 %v2613
    %2689 = vmatprep.subr.mxu0 %v2618
    %2690 = vmatpush1.msra.mxu0 %v2617
    %2691 = vmatprep.subr.mxu0 %v2622
    %2692 = vmatpush1.msra.mxu0 %v2621
    %2693 = vmatprep.subr.mxu0 %v2626
    %2694 = vmatpush1.msra.mxu0 %v2625
    %2695 = vmatprep.subr.mxu0 %v2630
    %2696 = vmatpush1.msra.mxu0 %v2629
    %2697 = vmatprep.subr.mxu0 %v2634
    %2698 = vmatpush1.msra.mxu0 %v2633
    %2699 = vmatprep.subr.mxu0 %v2638
    %2700 = vmatpush1.msra.mxu0 %v2637
    %2701 = vmatprep.subr.mxu0 %v2642
    %2702 = vmatpush1.msra.mxu0 %v2641
    %2703 = vmatprep.subr.mxu0 %v2646
    %2704 = vmatpush1.msra.mxu0 %v2645
    %2705 = vmatprep.subr.mxu0 %v2650
    %2706 = vmatpush1.msra.mxu0 %v2649
    %2707 = vmatprep.subr.mxu0 0.0
    %2708 = vmatpush1.msra.mxu0 0.0
    %2709 = vmatprep.subr.mxu0 0.0
    %2710 = vmatpush1.msra.mxu0 0.0
    %2711 = vmatprep.subr.mxu0 0.0
    %2712 = vmatpush1.msra.mxu0 0.0
    %2713 = vmatprep.subr.mxu0 0.0
    %2714 = vmatpush1.msra.mxu0 0.0
    %2715 = vmatprep.subr.mxu0 0.0
    %2716 = vmatpush1.msra.mxu0 0.0
    %2717 = vmatprep.subr.mxu0 0.0
    %2718 = vmatpush1.msra.mxu0 0.0
    %2719 = vmatprep.subr.mxu0 0.0
    %2720 = vmatpush1.msra.mxu0 0.0
    %2721 = vmatprep.subr.mxu0 0.0
    %2722 = vmatpush1.msra.mxu0 0.0
    %2723 = vmatprep.subr.mxu0 0.0
    %2724 = vmatpush1.msra.mxu0 0.0
    %2725 = vmatprep.subr.mxu0 0.0
    %2726 = vmatpush1.msra.mxu0 0.0
    %2727 = vmatprep.subr.mxu0 0.0
    %2728 = vmatpush1.msra.mxu0 0.0
    %2729 = vmatprep.subr.mxu0 0.0
    %2730 = vmatpush1.msra.mxu0 0.0
    %2731 = vmatprep.subr.mxu0 0.0
    %2732 = vmatpush1.msra.mxu0 0.0
    %2733 = vmatprep.subr.mxu0 0.0
    %2734 = vmatpush1.msra.mxu0 0.0
    %2735 = vmatprep.subr.mxu0 0.0
    %2736 = vmatpush1.msra.mxu0 0.0
    %2737 = vmatprep.subr.mxu0 0.0
    %2738 = vmatpush1.msra.mxu0 0.0
    %2739 = vmatprep.mubr.f32.mxu0 0.0
    %2740 = vmatmul.mubr.f32.gmra.mrb[0].mxu0 %v2581
    %v2741 = vpop.f32.mrb[0].mxu0
    %v2742 = vadd.f32 %v2658, %v2741
    %v2743 = vpop.f32.mrb[0].mxu0
    %v2744 = vadd.f32 %v2662, %v2743
    %2745 = vmatprep.mubr.f32.mxu0 0.0
    %2746 = vmatmul.mubr.f32.gmra.mrb[0].mxu0 %v2582
    %v2747 = vpop.f32.mrb[0].mxu0
    %v2748 = vadd.f32 %v2658, %v2747
    %v2749 = vpop.f32.mrb[0].mxu0
    %v2750 = vadd.f32 %v2662, %v2749
    %2751 = vmatprep.mubr.f32.mxu0 0.0
    %2752 = vmatmul.mubr.f32.gmra.mrb[0].mxu0 %v2583
    %v2753 = vpop.f32.mrb[0].mxu0
    %v2754 = vadd.f32 %v2658, %v2753
    %v2755 = vpop.f32.mrb[0].mxu0
    %v2756 = vadd.f32 %v2662, %v2755
    %2757 = vmatprep.mubr.f32.mxu0 0.0
    %2758 = vmatmul.mubr.f32.gmra.mrb[0].mxu0 %v2584
    %v2759 = vpop.f32.mrb[0].mxu0
    %v2760 = vadd.f32 %v2658, %v2759
    %v2761 = vpop.f32.mrb[0].mxu0
    %v2762 = vadd.f32 %v2662, %v2761
    %2763 = vmatprep.mubr.f32.mxu0 0.0
    %2764 = vmatmul.mubr.f32.gmra.mrb[0].mxu0 %v2585
    %v2765 = vpop.f32.mrb[0].mxu0
    %v2766 = vadd.f32 %v2658, %v2765
    %v2767 = vpop.f32.mrb[0].mxu0
    %v2768 = vadd.f32 %v2662, %v2767
    %2769 = vmatprep.mubr.f32.mxu0 0.0
    %2770 = vmatmul.mubr.f32.gmra.mrb[0].mxu0 %v2586
    %v2771 = vpop.f32.mrb[0].mxu0
    %v2772 = vadd.f32 %v2658, %v2771
    %v2773 = vpop.f32.mrb[0].mxu0
    %v2774 = vadd.f32 %v2662, %v2773
    %2775 = vmatprep.mubr.f32.mxu0 0.0
    %2776 = vmatmul.mubr.f32.gmra.mrb[0].mxu0 %v2587
    %v2777 = vpop.f32.mrb[0].mxu0
    %v2778 = vadd.f32 %v2658, %v2777
    %v2779 = vpop.f32.mrb[0].mxu0
    %v2780 = vadd.f32 %v2662, %v2779
    %2781 = vmatprep.mubr.f32.mxu0 0.0
    %2782 = vmatmul.mubr.f32.gmra.mrb[0].mxu0 %v2588
    %v2783 = vpop.f32.mrb[0].mxu0
    %v2784 = vadd.f32 %v2658, %v2783
    %v2785 = vpop.f32.mrb[0].mxu0
    %v2786 = vadd.f32 %v2662, %v2785
    %2787 = vdwg.mxu0
    %2788 = vmatprep.subr.mxu0 %v2592
    %2789 = vmatpush1.msra.mxu0 %v2591
    %2790 = vmatprep.subr.mxu0 %v2596
    %2791 = vmatpush1.msra.mxu0 %v2595
    %2792 = vmatprep.subr.mxu0 %v2600
    %2793 = vmatpush1.msra.mxu0 %v2599
    %2794 = vmatprep.subr.mxu0 %v2604
    %2795 = vmatpush1.msra.mxu0 %v2603
    %2796 = vmatprep.subr.mxu0 %v2608
    %2797 = vmatpush1.msra.mxu0 %v2607
    %2798 = vmatprep.subr.mxu0 %v2612
    %2799 = vmatpush1.msra.mxu0 %v2611
    %2800 = vmatprep.subr.mxu0 %v2616
    %2801 = vmatpush1.msra.mxu0 %v2615
    %2802 = vmatprep.subr.mxu0 %v2620
    %2803 = vmatpush1.msra.mxu0 %v2619
    %2804 = vmatprep.subr.mxu0 %v2624
    %2805 = vmatpush1.msra.mxu0 %v2623
    %2806 = vmatprep.subr.mxu0 %v2628
    %2807 = vmatpush1.msra.mxu0 %v2627
    %2808 = vmatprep.subr.mxu0 %v2632
    %2809 = vmatpush1.msra.mxu0 %v2631
    %2810 = vmatprep.subr.mxu0 %v2636
    %2811 = vmatpush1.msra.mxu0 %v2635
    %2812 = vmatprep.subr.mxu0 %v2640
    %2813 = vmatpush1.msra.mxu0 %v2639
    %2814 = vmatprep.subr.mxu0 %v2644
    %2815 = vmatpush1.msra.mxu0 %v2643
    %2816 = vmatprep.subr.mxu0 %v2648
    %2817 = vmatpush1.msra.mxu0 %v2647
    %2818 = vmatprep.subr.mxu0 %v2652
    %2819 = vmatpush1.msra.mxu0 %v2651
    %2820 = vmatprep.subr.mxu0 0.0
    %2821 = vmatpush1.msra.mxu0 0.0
    %2822 = vmatprep.subr.mxu0 0.0
    %2823 = vmatpush1.msra.mxu0 0.0
    %2824 = vmatprep.subr.mxu0 0.0
    %2825 = vmatpush1.msra.mxu0 0.0
    %2826 = vmatprep.subr.mxu0 0.0
    %2827 = vmatpush1.msra.mxu0 0.0
    %2828 = vmatprep.subr.mxu0 0.0
    %2829 = vmatpush1.msra.mxu0 0.0
    %2830 = vmatprep.subr.mxu0 0.0
    %2831 = vmatpush1.msra.mxu0 0.0
    %2832 = vmatprep.subr.mxu0 0.0
    %2833 = vmatpush1.msra.mxu0 0.0
    %2834 = vmatprep.subr.mxu0 0.0
    %2835 = vmatpush1.msra.mxu0 0.0
    %2836 = vmatprep.subr.mxu0 0.0
    %2837 = vmatpush1.msra.mxu0 0.0
    %2838 = vmatprep.subr.mxu0 0.0
    %2839 = vmatpush1.msra.mxu0 0.0
    %2840 = vmatprep.subr.mxu0 0.0
    %2841 = vmatpush1.msra.mxu0 0.0
    %2842 = vmatprep.subr.mxu0 0.0
    %2843 = vmatpush1.msra.mxu0 0.0
    %2844 = vmatprep.subr.mxu0 0.0
    %2845 = vmatpush1.msra.mxu0 0.0
    %2846 = vmatprep.subr.mxu0 0.0
    %2847 = vmatpush1.msra.mxu0 0.0
    %2848 = vmatprep.subr.mxu0 0.0
    %2849 = vmatpush1.msra.mxu0 0.0
    %2850 = vmatprep.subr.mxu0 0.0
    %2851 = vmatpush1.msra.mxu0 0.0
    %2852 = vmatprep.mubr.f32.mxu0 0.0
    %2853 = vmatmul.mubr.f32.gmra.mrb[0].mxu0 %v2581
    %v2854 = vpop.f32.mrb[0].mxu0
    %v2855 = vadd.f32 %v2666, %v2854
    %v2856 = vpop.f32.mrb[0].mxu0
    %v2857 = vadd.f32 %v2670, %v2856
    %2858 = vmatprep.mubr.f32.mxu0 0.0
    %2859 = vmatmul.mubr.f32.gmra.mrb[0].mxu0 %v2582
    %v2860 = vpop.f32.mrb[0].mxu0
    %v2861 = vadd.f32 %v2666, %v2860
    %v2862 = vpop.f32.mrb[0].mxu0
    %v2863 = vadd.f32 %v2670, %v2862
    %2864 = vmatprep.mubr.f32.mxu0 0.0
    %2865 = vmatmul.mubr.f32.gmra.mrb[0].mxu0 %v2583
    %v2866 = vpop.f32.mrb[0].mxu0
    %v2867 = vadd.f32 %v2666, %v2866
    %v2868 = vpop.f32.mrb[0].mxu0
    %v2869 = vadd.f32 %v2670, %v2868
    %2870 = vmatprep.mubr.f32.mxu0 0.0
    %2871 = vmatmul.mubr.f32.gmra.mrb[0].mxu0 %v2584
    %v2872 = vpop.f32.mrb[0].mxu0
    %v2873 = vadd.f32 %v2666, %v2872
    %v2874 = vpop.f32.mrb[0].mxu0
    %v2875 = vadd.f32 %v2670, %v2874
    %2876 = vmatprep.mubr.f32.mxu0 0.0
    %2877 = vmatmul.mubr.f32.gmra.mrb[0].mxu0 %v2585
    %v2878 = vpop.f32.mrb[0].mxu0
    %v2879 = vadd.f32 %v2666, %v2878
    %v2880 = vpop.f32.mrb[0].mxu0
    %v2881 = vadd.f32 %v2670, %v2880
    %2882 = vmatprep.mubr.f32.mxu0 0.0
    %2883 = vmatmul.mubr.f32.gmra.mrb[0].mxu0 %v2586
    %v2884 = vpop.f32.mrb[0].mxu0
    %v2885 = vadd.f32 %v2666, %v2884
    %v2886 = vpop.f32.mrb[0].mxu0
    %v2887 = vadd.f32 %v2670, %v2886
    %2888 = vmatprep.mubr.f32.mxu0 0.0
    %2889 = vmatmul.mubr.f32.gmra.mrb[0].mxu0 %v2587
    %v2890 = vpop.f32.mrb[0].mxu0
    %v2891 = vadd.f32 %v2666, %v2890
    %v2892 = vpop.f32.mrb[0].mxu0
    %v2893 = vadd.f32 %v2670, %v2892
    %2894 = vmatprep.mubr.f32.mxu0 0.0
    %2895 = vmatmul.mubr.f32.gmra.mrb[0].mxu0 %v2588
    %v2896 = vpop.f32.mrb[0].mxu0
    %v2897 = vadd.f32 %v2666, %v2896
    %v2898 = vpop.f32.mrb[0].mxu0
    %v2899 = vadd.f32 %v2670, %v2898
    %2900 = vdwg.mxu0
    %2901 = vst [vmem:[#allocation2] sm:$0xff] %v2742
    %2902 = vst [vmem:[#allocation2 + $0x8] sm:$0xff] %v2744
    %2903 = vst [vmem:[#allocation2 + $0x10] sm:$0xff] %v2855
    %2904 = vst [vmem:[#allocation2 + $0x18] sm:$0xff] %v2857
    %2905 = vst [vmem:[#allocation2 + $0x20] sm:$0xff] %v2748
    %2906 = vst [vmem:[#allocation2 + $0x28] sm:$0xff] %v2750
    %2907 = vst [vmem:[#allocation2 + $0x30] sm:$0xff] %v2861
    %2908 = vst [vmem:[#allocation2 + $0x38] sm:$0xff] %v2863
    %2909 = vst [vmem:[#allocation2 + $0x40] sm:$0xff] %v2754
    %2910 = vst [vmem:[#allocation2 + $0x48] sm:$0xff] %v2756
    %2911 = vst [vmem:[#allocation2 + $0x50] sm:$0xff] %v2867
    %2912 = vst [vmem:[#allocation2 + $0x58] sm:$0xff] %v2869
    %2913 = vst [vmem:[#allocation2 + $0x60] sm:$0xff] %v2760
    %2914 = vst [vmem:[#allocation2 + $0x68] sm:$0xff] %v2762
    %2915 = vst [vmem:[#allocation2 + $0x70] sm:$0xff] %v2873
    %2916 = vst [vmem:[#allocation2 + $0x78] sm:$0xff] %v2875
    %2917 = vst [vmem:[#allocation2 + $0x80] sm:$0xff] %v2766
    %2918 = vst [vmem:[#allocation2 + $0x88] sm:$0xff] %v2768
    %2919 = vst [vmem:[#allocation2 + $0x90] sm:$0xff] %v2879
    %2920 = vst [vmem:[#allocation2 + $0x98] sm:$0xff] %v2881
    %2921 = vst [vmem:[#allocation2 + $0xa0] sm:$0xff] %v2772
    %2922 = vst [vmem:[#allocation2 + $0xa8] sm:$0xff] %v2774
    %2923 = vst [vmem:[#allocation2 + $0xb0] sm:$0xff] %v2885
    %2924 = vst [vmem:[#allocation2 + $0xb8] sm:$0xff] %v2887
    %2925 = vst [vmem:[#allocation2 + $0xc0] sm:$0xff] %v2778
    %2926 = vst [vmem:[#allocation2 + $0xc8] sm:$0xff] %v2780
    %2927 = vst [vmem:[#allocation2 + $0xd0] sm:$0xff] %v2891
    %2928 = vst [vmem:[#allocation2 + $0xd8] sm:$0xff] %v2893
    %2929 = vst [vmem:[#allocation2 + $0xe0] sm:$0xff] %v2784
    %2930 = vst [vmem:[#allocation2 + $0xe8] sm:$0xff] %v2786
    %2931 = vst [vmem:[#allocation2 + $0xf0] sm:$0xff] %v2897
    %2932 = vst [vmem:[#allocation2 + $0xf8] sm:$0xff] %v2899
    %s2933 = scalar_lea.vmem [#allocation7], 8
    %v2934 = vld [vmem:[%s2933] sm:$0xff]
    %s2935 = scalar_lea.vmem [#allocation9], 8
    %v2936 = vld [vmem:[%s2935] sm:$0xff]
    %v2937 = vld [vmem:[#allocation2] sm:$0xff]
    %v2938 = vld [vmem:[#allocation2 + $0x8] sm:$0xff]
    %v2939 = vld [vmem:[#allocation2 + $0x10] sm:$0xff]
    %v2940 = vld [vmem:[#allocation2 + $0x18] sm:$0xff]
    %v2941 = vld [vmem:[#allocation16] sm:$0xff]
    %v2942 = vld [vmem:[#allocation16 + $0x8] sm:$0xff]
    %v2943 = vld [vmem:[#allocation16 + $0x10] sm:$0xff]
    %v2944 = vld [vmem:[#allocation16 + $0x18] sm:$0xff]
    %v2945 = vld [vmem:[#allocation16 + $0x20] sm:$0xff]
    %v2946 = vld [vmem:[#allocation16 + $0x28] sm:$0xff]
    %v2947 = vld [vmem:[#allocation16 + $0x30] sm:$0xff]
    %v2948 = vld [vmem:[#allocation16 + $0x38] sm:$0xff]
    %v2949 = vld [vmem:[#allocation16 + $0x40] sm:$0xff]
    %v2950 = vld [vmem:[#allocation16 + $0x48] sm:$0xff]
    %v2951 = vld [vmem:[#allocation16 + $0x50] sm:$0xff]
    %v2952 = vld [vmem:[#allocation16 + $0x58] sm:$0xff]
    %v2953 = vld [vmem:[#allocation16 + $0x60] sm:$0xff]
    %v2954 = vld [vmem:[#allocation16 + $0x68] sm:$0xff]
    %v2955 = vld [vmem:[#allocation16 + $0x70] sm:$0xff]
    %v2956 = vld [vmem:[#allocation16 + $0x78] sm:$0xff]
    %v2957 = vld [vmem:[#allocation16 + $0x80] sm:$0xff]
    %v2958 = vld [vmem:[#allocation16 + $0x88] sm:$0xff]
    %v2959 = vld [vmem:[#allocation16 + $0x90] sm:$0xff]
    %v2960 = vld [vmem:[#allocation16 + $0x98] sm:$0xff]
    %v2961 = vld [vmem:[#allocation16 + $0xa0] sm:$0xff]
    %v2962 = vld [vmem:[#allocation16 + $0xa8] sm:$0xff]
    %v2963 = vld [vmem:[#allocation16 + $0xb0] sm:$0xff]
    %v2964 = vld [vmem:[#allocation16 + $0xb8] sm:$0xff]
    %v2965 = vld [vmem:[#allocation16 + $0xc0] sm:$0xff]
    %v2966 = vld [vmem:[#allocation16 + $0xc8] sm:$0xff]
    %v2967 = vld [vmem:[#allocation16 + $0xd0] sm:$0xff]
    %v2968 = vld [vmem:[#allocation16 + $0xd8] sm:$0xff]
    %v2969 = vld [vmem:[#allocation16 + $0xe0] sm:$0xff]
    %v2970 = vld [vmem:[#allocation16 + $0xe8] sm:$0xff]
    %v2971 = vld [vmem:[#allocation16 + $0xf0] sm:$0xff]
    %v2972 = vld [vmem:[#allocation16 + $0xf8] sm:$0xff]
    %v2973 = vld [vmem:[#allocation16 + $0x100] sm:$0xff]
    %v2974 = vld [vmem:[#allocation16 + $0x108] sm:$0xff]
    %v2975 = vld [vmem:[#allocation16 + $0x110] sm:$0xff]
    %v2976 = vld [vmem:[#allocation16 + $0x118] sm:$0xff]
    %v2977 = vld [vmem:[#allocation16 + $0x120] sm:$0xff]
    %v2978 = vld [vmem:[#allocation16 + $0x128] sm:$0xff]
    %v2979 = vld [vmem:[#allocation16 + $0x130] sm:$0xff]
    %v2980 = vld [vmem:[#allocation16 + $0x138] sm:$0xff]
    %v2981 = vld [vmem:[#allocation16 + $0x140] sm:$0xff]
    %v2982 = vld [vmem:[#allocation16 + $0x148] sm:$0xff]
    %v2983 = vld [vmem:[#allocation16 + $0x150] sm:$0xff]
    %v2984 = vld [vmem:[#allocation16 + $0x158] sm:$0xff]
    %v2985 = vld [vmem:[#allocation16 + $0x160] sm:$0xff]
    %v2986 = vld [vmem:[#allocation16 + $0x168] sm:$0xff]
    %v2987 = vld [vmem:[#allocation16 + $0x170] sm:$0xff]
    %v2988 = vld [vmem:[#allocation16 + $0x178] sm:$0xff]
    %v2989 = vld [vmem:[#allocation16 + $0x180] sm:$0xff]
    %v2990 = vld [vmem:[#allocation16 + $0x188] sm:$0xff]
    %v2991 = vld [vmem:[#allocation16 + $0x190] sm:$0xff]
    %v2992 = vld [vmem:[#allocation16 + $0x198] sm:$0xff]
    %v2993 = vld [vmem:[#allocation16 + $0x1a0] sm:$0xff]
    %v2994 = vld [vmem:[#allocation16 + $0x1a8] sm:$0xff]
    %v2995 = vld [vmem:[#allocation16 + $0x1b0] sm:$0xff]
    %v2996 = vld [vmem:[#allocation16 + $0x1b8] sm:$0xff]
    %v2997 = vld [vmem:[#allocation16 + $0x1c0] sm:$0xff]
    %v2998 = vld [vmem:[#allocation16 + $0x1c8] sm:$0xff]
    %v2999 = vld [vmem:[#allocation16 + $0x1d0] sm:$0xff]
    %v3000 = vld [vmem:[#allocation16 + $0x1d8] sm:$0xff]
    %v3001 = vld [vmem:[#allocation16 + $0x1e0] sm:$0xff]
    %v3002 = vld [vmem:[#allocation16 + $0x1e8] sm:$0xff]
    %v3003 = vld [vmem:[#allocation16 + $0x1f0] sm:$0xff]
    %v3004 = vld [vmem:[#allocation16 + $0x1f8] sm:$0xff]
    %3005 = vmatprep.subr.mxu0 %v2942
    %3006 = vmatpush1.msra.mxu0 %v2941
    %3007 = vmatprep.subr.mxu0 %v2946
    %3008 = vmatpush1.msra.mxu0 %v2945
    %3009 = vmatprep.subr.mxu0 %v2950
    %3010 = vmatpush1.msra.mxu0 %v2949
    %3011 = vmatprep.subr.mxu0 %v2954
    %3012 = vmatpush1.msra.mxu0 %v2953
    %3013 = vmatprep.subr.mxu0 %v2958
    %3014 = vmatpush1.msra.mxu0 %v2957
    %3015 = vmatprep.subr.mxu0 %v2962
    %3016 = vmatpush1.msra.mxu0 %v2961
    %3017 = vmatprep.subr.mxu0 %v2966
    %3018 = vmatpush1.msra.mxu0 %v2965
    %3019 = vmatprep.subr.mxu0 %v2970
    %3020 = vmatpush1.msra.mxu0 %v2969
    %3021 = vmatprep.subr.mxu0 %v2974
    %3022 = vmatpush1.msra.mxu0 %v2973
    %3023 = vmatprep.subr.mxu0 %v2978
    %3024 = vmatpush1.msra.mxu0 %v2977
    %3025 = vmatprep.subr.mxu0 %v2982
    %3026 = vmatpush1.msra.mxu0 %v2981
    %3027 = vmatprep.subr.mxu0 %v2986
    %3028 = vmatpush1.msra.mxu0 %v2985
    %3029 = vmatprep.subr.mxu0 %v2990
    %3030 = vmatpush1.msra.mxu0 %v2989
    %3031 = vmatprep.subr.mxu0 %v2994
    %3032 = vmatpush1.msra.mxu0 %v2993
    %3033 = vmatprep.subr.mxu0 %v2998
    %3034 = vmatpush1.msra.mxu0 %v2997
    %3035 = vmatprep.subr.mxu0 %v3002
    %3036 = vmatpush1.msra.mxu0 %v3001
    %3037 = vmatprep.subr.mxu0 0.0
    %3038 = vmatpush1.msra.mxu0 0.0
    %3039 = vmatprep.subr.mxu0 0.0
    %3040 = vmatpush1.msra.mxu0 0.0
    %3041 = vmatprep.subr.mxu0 0.0
    %3042 = vmatpush1.msra.mxu0 0.0
    %3043 = vmatprep.subr.mxu0 0.0
    %3044 = vmatpush1.msra.mxu0 0.0
    %3045 = vmatprep.subr.mxu0 0.0
    %3046 = vmatpush1.msra.mxu0 0.0
    %3047 = vmatprep.subr.mxu0 0.0
    %3048 = vmatpush1.msra.mxu0 0.0
    %3049 = vmatprep.subr.mxu0 0.0
    %3050 = vmatpush1.msra.mxu0 0.0
    %3051 = vmatprep.subr.mxu0 0.0
    %3052 = vmatpush1.msra.mxu0 0.0
    %3053 = vmatprep.subr.mxu0 0.0
    %3054 = vmatpush1.msra.mxu0 0.0
    %3055 = vmatprep.subr.mxu0 0.0
    %3056 = vmatpush1.msra.mxu0 0.0
    %3057 = vmatprep.subr.mxu0 0.0
    %3058 = vmatpush1.msra.mxu0 0.0
    %3059 = vmatprep.subr.mxu0 0.0
    %3060 = vmatpush1.msra.mxu0 0.0
    %3061 = vmatprep.subr.mxu0 0.0
    %3062 = vmatpush1.msra.mxu0 0.0
    %3063 = vmatprep.subr.mxu0 0.0
    %3064 = vmatpush1.msra.mxu0 0.0
    %3065 = vmatprep.subr.mxu0 0.0
    %3066 = vmatpush1.msra.mxu0 0.0
    %3067 = vmatprep.subr.mxu0 0.0
    %3068 = vmatpush1.msra.mxu0 0.0
    %3069 = vmatprep.mubr.f32.mxu0 0.0
    %3070 = vmatmul.mubr.f32.gmra.mrb[0].mxu0 %v2934
    %v3071 = vpop.f32.mrb[0].mxu0
    %v3072 = vadd.f32 0.0, %v3071
    %v3073 = vpop.f32.mrb[0].mxu0
    %v3074 = vadd.f32 0.0, %v3073
    %3075 = vdwg.mxu0
    %3076 = vmatprep.subr.mxu0 %v2944
    %3077 = vmatpush1.msra.mxu0 %v2943
    %3078 = vmatprep.subr.mxu0 %v2948
    %3079 = vmatpush1.msra.mxu0 %v2947
    %3080 = vmatprep.subr.mxu0 %v2952
    %3081 = vmatpush1.msra.mxu0 %v2951
    %3082 = vmatprep.subr.mxu0 %v2956
    %3083 = vmatpush1.msra.mxu0 %v2955
    %3084 = vmatprep.subr.mxu0 %v2960
    %3085 = vmatpush1.msra.mxu0 %v2959
    %3086 = vmatprep.subr.mxu0 %v2964
    %3087 = vmatpush1.msra.mxu0 %v2963
    %3088 = vmatprep.subr.mxu0 %v2968
    %3089 = vmatpush1.msra.mxu0 %v2967
    %3090 = vmatprep.subr.mxu0 %v2972
    %3091 = vmatpush1.msra.mxu0 %v2971
    %3092 = vmatprep.subr.mxu0 %v2976
    %3093 = vmatpush1.msra.mxu0 %v2975
    %3094 = vmatprep.subr.mxu0 %v2980
    %3095 = vmatpush1.msra.mxu0 %v2979
    %3096 = vmatprep.subr.mxu0 %v2984
    %3097 = vmatpush1.msra.mxu0 %v2983
    %3098 = vmatprep.subr.mxu0 %v2988
    %3099 = vmatpush1.msra.mxu0 %v2987
    %3100 = vmatprep.subr.mxu0 %v2992
    %3101 = vmatpush1.msra.mxu0 %v2991
    %3102 = vmatprep.subr.mxu0 %v2996
    %3103 = vmatpush1.msra.mxu0 %v2995
    %3104 = vmatprep.subr.mxu0 %v3000
    %3105 = vmatpush1.msra.mxu0 %v2999
    %3106 = vmatprep.subr.mxu0 %v3004
    %3107 = vmatpush1.msra.mxu0 %v3003
    %3108 = vmatprep.subr.mxu0 0.0
    %3109 = vmatpush1.msra.mxu0 0.0
    %3110 = vmatprep.subr.mxu0 0.0
    %3111 = vmatpush1.msra.mxu0 0.0
    %3112 = vmatprep.subr.mxu0 0.0
    %3113 = vmatpush1.msra.mxu0 0.0
    %3114 = vmatprep.subr.mxu0 0.0
    %3115 = vmatpush1.msra.mxu0 0.0
    %3116 = vmatprep.subr.mxu0 0.0
    %3117 = vmatpush1.msra.mxu0 0.0
    %3118 = vmatprep.subr.mxu0 0.0
    %3119 = vmatpush1.msra.mxu0 0.0
    %3120 = vmatprep.subr.mxu0 0.0
    %3121 = vmatpush1.msra.mxu0 0.0
    %3122 = vmatprep.subr.mxu0 0.0
    %3123 = vmatpush1.msra.mxu0 0.0
    %3124 = vmatprep.subr.mxu0 0.0
    %3125 = vmatpush1.msra.mxu0 0.0
    %3126 = vmatprep.subr.mxu0 0.0
    %3127 = vmatpush1.msra.mxu0 0.0
    %3128 = vmatprep.subr.mxu0 0.0
    %3129 = vmatpush1.msra.mxu0 0.0
    %3130 = vmatprep.subr.mxu0 0.0
    %3131 = vmatpush1.msra.mxu0 0.0
    %3132 = vmatprep.subr.mxu0 0.0
    %3133 = vmatpush1.msra.mxu0 0.0
    %3134 = vmatprep.subr.mxu0 0.0
    %3135 = vmatpush1.msra.mxu0 0.0
    %3136 = vmatprep.subr.mxu0 0.0
    %3137 = vmatpush1.msra.mxu0 0.0
    %3138 = vmatprep.subr.mxu0 0.0
    %3139 = vmatpush1.msra.mxu0 0.0
    %3140 = vmatprep.mubr.f32.mxu0 0.0
    %3141 = vmatmul.mubr.f32.gmra.mrb[0].mxu0 %v2934
    %v3142 = vpop.f32.mrb[0].mxu0
    %v3143 = vadd.f32 0.0, %v3142
    %v3144 = vpop.f32.mrb[0].mxu0
    %v3145 = vadd.f32 0.0, %v3144
    %3146 = vdwg.mxu0
    %v3147 = vadd.f32 %v2937, %v3072
    %v3148 = vadd.f32 %v2938, %v3074
    %v3149 = vadd.f32 %v2939, %v3143
    %v3150 = vadd.f32 %v2940, %v3145
    %v3151 = vxor.u32 %v3147, 2147483648
    %v3152 = vmul.f32 %v3151, 1.442695
    %v3153 = vpow.pop %v3152
    %v3154 = vadd.f32 %v3153, 1.0
    %v3155 = vrcp.pop %v3154
    %v3156 = vmul.f32 1.0, %v3155
    %v3157 = vxor.u32 %v3148, 2147483648
    %v3158 = vmul.f32 %v3157, 1.442695
    %v3159 = vpow.pop %v3158
    %v3160 = vadd.f32 %v3159, 1.0
    %v3161 = vrcp.pop %v3160
    %v3162 = vmul.f32 1.0, %v3161
    %v3163 = vtanh.pop %v3149
    %v3164 = vxor.u32 %v3150, 2147483648
    %v3165 = vmul.f32 %v3164, 1.442695
    %v3166 = vpow.pop %v3165
    %v3167 = vadd.f32 %v3166, 1.0
    %v3168 = vrcp.pop %v3167
    %v3169 = vmul.f32 1.0, %v3168
    %v3170 = vmul.f32 %v3162, %v2936
    %v3171 = vmul.f32 %v3156, %v3163
    %v3172 = vadd.f32 %v3170, %v3171
    %v3173 = vtanh.pop %v3172
    %v3174 = vmul.f32 %v3169, %v3173
    %3175 = vst [vmem:[#allocation3] sm:$0xff] %v3174
    %v3176 = vld [vmem:[%s892] sm:$0xff]
    %v3177 = vld [vmem:[%s892 + $0x8] sm:$0xff]
    %v3178 = vld [vmem:[%s892 + $0x10] sm:$0xff]
    %v3179 = vld [vmem:[%s892 + $0x18] sm:$0xff]
    %v3180 = vld [vmem:[#allocation16] sm:$0xff]
    %v3181 = vld [vmem:[#allocation16 + $0x8] sm:$0xff]
    %v3182 = vld [vmem:[#allocation16 + $0x10] sm:$0xff]
    %v3183 = vld [vmem:[#allocation16 + $0x18] sm:$0xff]
    %v3184 = vld [vmem:[#allocation16 + $0x20] sm:$0xff]
    %v3185 = vld [vmem:[#allocation16 + $0x28] sm:$0xff]
    %v3186 = vld [vmem:[#allocation16 + $0x30] sm:$0xff]
    %v3187 = vld [vmem:[#allocation16 + $0x38] sm:$0xff]
    %v3188 = vld [vmem:[#allocation16 + $0x40] sm:$0xff]
    %v3189 = vld [vmem:[#allocation16 + $0x48] sm:$0xff]
    %v3190 = vld [vmem:[#allocation16 + $0x50] sm:$0xff]
    %v3191 = vld [vmem:[#allocation16 + $0x58] sm:$0xff]
    %v3192 = vld [vmem:[#allocation16 + $0x60] sm:$0xff]
    %v3193 = vld [vmem:[#allocation16 + $0x68] sm:$0xff]
    %v3194 = vld [vmem:[#allocation16 + $0x70] sm:$0xff]
    %v3195 = vld [vmem:[#allocation16 + $0x78] sm:$0xff]
    %v3196 = vld [vmem:[#allocation16 + $0x80] sm:$0xff]
    %v3197 = vld [vmem:[#allocation16 + $0x88] sm:$0xff]
    %v3198 = vld [vmem:[#allocation16 + $0x90] sm:$0xff]
    %v3199 = vld [vmem:[#allocation16 + $0x98] sm:$0xff]
    %v3200 = vld [vmem:[#allocation16 + $0xa0] sm:$0xff]
    %v3201 = vld [vmem:[#allocation16 + $0xa8] sm:$0xff]
    %v3202 = vld [vmem:[#allocation16 + $0xb0] sm:$0xff]
    %v3203 = vld [vmem:[#allocation16 + $0xb8] sm:$0xff]
    %v3204 = vld [vmem:[#allocation16 + $0xc0] sm:$0xff]
    %v3205 = vld [vmem:[#allocation16 + $0xc8] sm:$0xff]
    %v3206 = vld [vmem:[#allocation16 + $0xd0] sm:$0xff]
    %v3207 = vld [vmem:[#allocation16 + $0xd8] sm:$0xff]
    %v3208 = vld [vmem:[#allocation16 + $0xe0] sm:$0xff]
    %v3209 = vld [vmem:[#allocation16 + $0xe8] sm:$0xff]
    %v3210 = vld [vmem:[#allocation16 + $0xf0] sm:$0xff]
    %v3211 = vld [vmem:[#allocation16 + $0xf8] sm:$0xff]
    %v3212 = vld [vmem:[#allocation16 + $0x100] sm:$0xff]
    %v3213 = vld [vmem:[#allocation16 + $0x108] sm:$0xff]
    %v3214 = vld [vmem:[#allocation16 + $0x110] sm:$0xff]
    %v3215 = vld [vmem:[#allocation16 + $0x118] sm:$0xff]
    %v3216 = vld [vmem:[#allocation16 + $0x120] sm:$0xff]
    %v3217 = vld [vmem:[#allocation16 + $0x128] sm:$0xff]
    %v3218 = vld [vmem:[#allocation16 + $0x130] sm:$0xff]
    %v3219 = vld [vmem:[#allocation16 + $0x138] sm:$0xff]
    %v3220 = vld [vmem:[#allocation16 + $0x140] sm:$0xff]
    %v3221 = vld [vmem:[#allocation16 + $0x148] sm:$0xff]
    %v3222 = vld [vmem:[#allocation16 + $0x150] sm:$0xff]
    %v3223 = vld [vmem:[#allocation16 + $0x158] sm:$0xff]
    %v3224 = vld [vmem:[#allocation16 + $0x160] sm:$0xff]
    %v3225 = vld [vmem:[#allocation16 + $0x168] sm:$0xff]
    %v3226 = vld [vmem:[#allocation16 + $0x170] sm:$0xff]
    %v3227 = vld [vmem:[#allocation16 + $0x178] sm:$0xff]
    %v3228 = vld [vmem:[#allocation16 + $0x180] sm:$0xff]
    %v3229 = vld [vmem:[#allocation16 + $0x188] sm:$0xff]
    %v3230 = vld [vmem:[#allocation16 + $0x190] sm:$0xff]
    %v3231 = vld [vmem:[#allocation16 + $0x198] sm:$0xff]
    %v3232 = vld [vmem:[#allocation16 + $0x1a0] sm:$0xff]
    %v3233 = vld [vmem:[#allocation16 + $0x1a8] sm:$0xff]
    %v3234 = vld [vmem:[#allocation16 + $0x1b0] sm:$0xff]
    %v3235 = vld [vmem:[#allocation16 + $0x1b8] sm:$0xff]
    %v3236 = vld [vmem:[#allocation16 + $0x1c0] sm:$0xff]
    %v3237 = vld [vmem:[#allocation16 + $0x1c8] sm:$0xff]
    %v3238 = vld [vmem:[#allocation16 + $0x1d0] sm:$0xff]
    %v3239 = vld [vmem:[#allocation16 + $0x1d8] sm:$0xff]
    %v3240 = vld [vmem:[#allocation16 + $0x1e0] sm:$0xff]
    %v3241 = vld [vmem:[#allocation16 + $0x1e8] sm:$0xff]
    %v3242 = vld [vmem:[#allocation16 + $0x1f0] sm:$0xff]
    %v3243 = vld [vmem:[#allocation16 + $0x1f8] sm:$0xff]
    %3244 = vmatprep.subr.mxu0 %v3181
    %3245 = vmatpush1.msra.mxu0 %v3180
    %3246 = vmatprep.subr.mxu0 %v3185
    %3247 = vmatpush1.msra.mxu0 %v3184
    %3248 = vmatprep.subr.mxu0 %v3189
    %3249 = vmatpush1.msra.mxu0 %v3188
    %3250 = vmatprep.subr.mxu0 %v3193
    %3251 = vmatpush1.msra.mxu0 %v3192
    %3252 = vmatprep.subr.mxu0 %v3197
    %3253 = vmatpush1.msra.mxu0 %v3196
    %3254 = vmatprep.subr.mxu0 %v3201
    %3255 = vmatpush1.msra.mxu0 %v3200
    %3256 = vmatprep.subr.mxu0 %v3205
    %3257 = vmatpush1.msra.mxu0 %v3204
    %3258 = vmatprep.subr.mxu0 %v3209
    %3259 = vmatpush1.msra.mxu0 %v3208
    %3260 = vmatprep.subr.mxu0 %v3213
    %3261 = vmatpush1.msra.mxu0 %v3212
    %3262 = vmatprep.subr.mxu0 %v3217
    %3263 = vmatpush1.msra.mxu0 %v3216
    %3264 = vmatprep.subr.mxu0 %v3221
    %3265 = vmatpush1.msra.mxu0 %v3220
    %3266 = vmatprep.subr.mxu0 %v3225
    %3267 = vmatpush1.msra.mxu0 %v3224
    %3268 = vmatprep.subr.mxu0 %v3229
    %3269 = vmatpush1.msra.mxu0 %v3228
    %3270 = vmatprep.subr.mxu0 %v3233
    %3271 = vmatpush1.msra.mxu0 %v3232
    %3272 = vmatprep.subr.mxu0 %v3237
    %3273 = vmatpush1.msra.mxu0 %v3236
    %3274 = vmatprep.subr.mxu0 %v3241
    %3275 = vmatpush1.msra.mxu0 %v3240
    %3276 = vmatprep.subr.mxu0 0.0
    %3277 = vmatpush1.msra.mxu0 0.0
    %3278 = vmatprep.subr.mxu0 0.0
    %3279 = vmatpush1.msra.mxu0 0.0
    %3280 = vmatprep.subr.mxu0 0.0
    %3281 = vmatpush1.msra.mxu0 0.0
    %3282 = vmatprep.subr.mxu0 0.0
    %3283 = vmatpush1.msra.mxu0 0.0
    %3284 = vmatprep.subr.mxu0 0.0
    %3285 = vmatpush1.msra.mxu0 0.0
    %3286 = vmatprep.subr.mxu0 0.0
    %3287 = vmatpush1.msra.mxu0 0.0
    %3288 = vmatprep.subr.mxu0 0.0
    %3289 = vmatpush1.msra.mxu0 0.0
    %3290 = vmatprep.subr.mxu0 0.0
    %3291 = vmatpush1.msra.mxu0 0.0
    %3292 = vmatprep.subr.mxu0 0.0
    %3293 = vmatpush1.msra.mxu0 0.0
    %3294 = vmatprep.subr.mxu0 0.0
    %3295 = vmatpush1.msra.mxu0 0.0
    %3296 = vmatprep.subr.mxu0 0.0
    %3297 = vmatpush1.msra.mxu0 0.0
    %3298 = vmatprep.subr.mxu0 0.0
    %3299 = vmatpush1.msra.mxu0 0.0
    %3300 = vmatprep.subr.mxu0 0.0
    %3301 = vmatpush1.msra.mxu0 0.0
    %3302 = vmatprep.subr.mxu0 0.0
    %3303 = vmatpush1.msra.mxu0 0.0
    %3304 = vmatprep.subr.mxu0 0.0
    %3305 = vmatpush1.msra.mxu0 0.0
    %3306 = vmatprep.subr.mxu0 0.0
    %3307 = vmatpush1.msra.mxu0 0.0
    %3308 = vmatprep.mubr.f32.mxu0 0.0
    %3309 = vmatmul.mubr.f32.gmra.mrb[0].mxu0 %v3174
    %v3310 = vpop.f32.mrb[0].mxu0
    %v3311 = vadd.f32 0.0, %v3310
    %v3312 = vpop.f32.mrb[0].mxu0
    %v3313 = vadd.f32 0.0, %v3312
    %3314 = vdwg.mxu0
    %3315 = vmatprep.subr.mxu0 %v3183
    %3316 = vmatpush1.msra.mxu0 %v3182
    %3317 = vmatprep.subr.mxu0 %v3187
    %3318 = vmatpush1.msra.mxu0 %v3186
    %3319 = vmatprep.subr.mxu0 %v3191
    %3320 = vmatpush1.msra.mxu0 %v3190
    %3321 = vmatprep.subr.mxu0 %v3195
    %3322 = vmatpush1.msra.mxu0 %v3194
    %3323 = vmatprep.subr.mxu0 %v3199
    %3324 = vmatpush1.msra.mxu0 %v3198
    %3325 = vmatprep.subr.mxu0 %v3203
    %3326 = vmatpush1.msra.mxu0 %v3202
    %3327 = vmatprep.subr.mxu0 %v3207
    %3328 = vmatpush1.msra.mxu0 %v3206
    %3329 = vmatprep.subr.mxu0 %v3211
    %3330 = vmatpush1.msra.mxu0 %v3210
    %3331 = vmatprep.subr.mxu0 %v3215
    %3332 = vmatpush1.msra.mxu0 %v3214
    %3333 = vmatprep.subr.mxu0 %v3219
    %3334 = vmatpush1.msra.mxu0 %v3218
    %3335 = vmatprep.subr.mxu0 %v3223
    %3336 = vmatpush1.msra.mxu0 %v3222
    %3337 = vmatprep.subr.mxu0 %v3227
    %3338 = vmatpush1.msra.mxu0 %v3226
    %3339 = vmatprep.subr.mxu0 %v3231
    %3340 = vmatpush1.msra.mxu0 %v3230
    %3341 = vmatprep.subr.mxu0 %v3235
    %3342 = vmatpush1.msra.mxu0 %v3234
    %3343 = vmatprep.subr.mxu0 %v3239
    %3344 = vmatpush1.msra.mxu0 %v3238
    %3345 = vmatprep.subr.mxu0 %v3243
    %3346 = vmatpush1.msra.mxu0 %v3242
    %3347 = vmatprep.subr.mxu0 0.0
    %3348 = vmatpush1.msra.mxu0 0.0
    %3349 = vmatprep.subr.mxu0 0.0
    %3350 = vmatpush1.msra.mxu0 0.0
    %3351 = vmatprep.subr.mxu0 0.0
    %3352 = vmatpush1.msra.mxu0 0.0
    %3353 = vmatprep.subr.mxu0 0.0
    %3354 = vmatpush1.msra.mxu0 0.0
    %3355 = vmatprep.subr.mxu0 0.0
    %3356 = vmatpush1.msra.mxu0 0.0
    %3357 = vmatprep.subr.mxu0 0.0
    %3358 = vmatpush1.msra.mxu0 0.0
    %3359 = vmatprep.subr.mxu0 0.0
    %3360 = vmatpush1.msra.mxu0 0.0
    %3361 = vmatprep.subr.mxu0 0.0
    %3362 = vmatpush1.msra.mxu0 0.0
    %3363 = vmatprep.subr.mxu0 0.0
    %3364 = vmatpush1.msra.mxu0 0.0
    %3365 = vmatprep.subr.mxu0 0.0
    %3366 = vmatpush1.msra.mxu0 0.0
    %3367 = vmatprep.subr.mxu0 0.0
    %3368 = vmatpush1.msra.mxu0 0.0
    %3369 = vmatprep.subr.mxu0 0.0
    %3370 = vmatpush1.msra.mxu0 0.0
    %3371 = vmatprep.subr.mxu0 0.0
    %3372 = vmatpush1.msra.mxu0 0.0
    %3373 = vmatprep.subr.mxu0 0.0
    %3374 = vmatpush1.msra.mxu0 0.0
    %3375 = vmatprep.subr.mxu0 0.0
    %3376 = vmatpush1.msra.mxu0 0.0
    %3377 = vmatprep.subr.mxu0 0.0
    %3378 = vmatpush1.msra.mxu0 0.0
    %3379 = vmatprep.mubr.f32.mxu0 0.0
    %3380 = vmatmul.mubr.f32.gmra.mrb[0].mxu0 %v3174
    %v3381 = vpop.f32.mrb[0].mxu0
    %v3382 = vadd.f32 0.0, %v3381
    %v3383 = vpop.f32.mrb[0].mxu0
    %v3384 = vadd.f32 0.0, %v3383
    %3385 = vdwg.mxu0
    %v3386 = vadd.f32 %v3176, %v3311
    %v3387 = vadd.f32 %v3177, %v3313
    %v3388 = vadd.f32 %v3178, %v3382
    %v3389 = vadd.f32 %v3179, %v3384
    %v3390 = vxor.u32 %v3386, 2147483648
    %v3391 = vmul.f32 %v3390, 1.442695
    %v3392 = vpow.pop %v3391
    %v3393 = vadd.f32 %v3392, 1.0
    %v3394 = vrcp.pop %v3393
    %v3395 = vmul.f32 1.0, %v3394
    %v3396 = vxor.u32 %v3387, 2147483648
    %v3397 = vmul.f32 %v3396, 1.442695
    %v3398 = vpow.pop %v3397
    %v3399 = vadd.f32 %v3398, 1.0
    %v3400 = vrcp.pop %v3399
    %v3401 = vmul.f32 1.0, %v3400
    %v3402 = vtanh.pop %v3388
    %v3403 = vxor.u32 %v3389, 2147483648
    %v3404 = vmul.f32 %v3403, 1.442695
    %v3405 = vpow.pop %v3404
    %v3406 = vadd.f32 %v3405, 1.0
    %v3407 = vrcp.pop %v3406
    %v3408 = vmul.f32 1.0, %v3407
    %v3409 = vmul.f32 %v3401, %v3172
    %v3410 = vmul.f32 %v3395, %v3402
    %v3411 = vadd.f32 %v3409, %v3410
    %v3412 = vtanh.pop %v3411
    %v3413 = vmul.f32 %v3408, %v3412
    %3414 = vst [vmem:[%s1131] sm:$0xff] %v3413
    %v3415 = vld [vmem:[%s1133] sm:$0xff]
    %v3416 = vld [vmem:[%s1133 + $0x8] sm:$0xff]
    %v3417 = vld [vmem:[%s1133 + $0x10] sm:$0xff]
    %v3418 = vld [vmem:[%s1133 + $0x18] sm:$0xff]
    %v3419 = vld [vmem:[#allocation16] sm:$0xff]
    %v3420 = vld [vmem:[#allocation16 + $0x8] sm:$0xff]
    %v3421 = vld [vmem:[#allocation16 + $0x10] sm:$0xff]
    %v3422 = vld [vmem:[#allocation16 + $0x18] sm:$0xff]
    %v3423 = vld [vmem:[#allocation16 + $0x20] sm:$0xff]
    %v3424 = vld [vmem:[#allocation16 + $0x28] sm:$0xff]
    %v3425 = vld [vmem:[#allocation16 + $0x30] sm:$0xff]
    %v3426 = vld [vmem:[#allocation16 + $0x38] sm:$0xff]
    %v3427 = vld [vmem:[#allocation16 + $0x40] sm:$0xff]
    %v3428 = vld [vmem:[#allocation16 + $0x48] sm:$0xff]
    %v3429 = vld [vmem:[#allocation16 + $0x50] sm:$0xff]
    %v3430 = vld [vmem:[#allocation16 + $0x58] sm:$0xff]
    %v3431 = vld [vmem:[#allocation16 + $0x60] sm:$0xff]
    %v3432 = vld [vmem:[#allocation16 + $0x68] sm:$0xff]
    %v3433 = vld [vmem:[#allocation16 + $0x70] sm:$0xff]
    %v3434 = vld [vmem:[#allocation16 + $0x78] sm:$0xff]
    %v3435 = vld [vmem:[#allocation16 + $0x80] sm:$0xff]
    %v3436 = vld [vmem:[#allocation16 + $0x88] sm:$0xff]
    %v3437 = vld [vmem:[#allocation16 + $0x90] sm:$0xff]
    %v3438 = vld [vmem:[#allocation16 + $0x98] sm:$0xff]
    %v3439 = vld [vmem:[#allocation16 + $0xa0] sm:$0xff]
    %v3440 = vld [vmem:[#allocation16 + $0xa8] sm:$0xff]
    %v3441 = vld [vmem:[#allocation16 + $0xb0] sm:$0xff]
    %v3442 = vld [vmem:[#allocation16 + $0xb8] sm:$0xff]
    %v3443 = vld [vmem:[#allocation16 + $0xc0] sm:$0xff]
    %v3444 = vld [vmem:[#allocation16 + $0xc8] sm:$0xff]
    %v3445 = vld [vmem:[#allocation16 + $0xd0] sm:$0xff]
    %v3446 = vld [vmem:[#allocation16 + $0xd8] sm:$0xff]
    %v3447 = vld [vmem:[#allocation16 + $0xe0] sm:$0xff]
    %v3448 = vld [vmem:[#allocation16 + $0xe8] sm:$0xff]
    %v3449 = vld [vmem:[#allocation16 + $0xf0] sm:$0xff]
    %v3450 = vld [vmem:[#allocation16 + $0xf8] sm:$0xff]
    %v3451 = vld [vmem:[#allocation16 + $0x100] sm:$0xff]
    %v3452 = vld [vmem:[#allocation16 + $0x108] sm:$0xff]
    %v3453 = vld [vmem:[#allocation16 + $0x110] sm:$0xff]
    %v3454 = vld [vmem:[#allocation16 + $0x118] sm:$0xff]
    %v3455 = vld [vmem:[#allocation16 + $0x120] sm:$0xff]
    %v3456 = vld [vmem:[#allocation16 + $0x128] sm:$0xff]
    %v3457 = vld [vmem:[#allocation16 + $0x130] sm:$0xff]
    %v3458 = vld [vmem:[#allocation16 + $0x138] sm:$0xff]
    %v3459 = vld [vmem:[#allocation16 + $0x140] sm:$0xff]
    %v3460 = vld [vmem:[#allocation16 + $0x148] sm:$0xff]
    %v3461 = vld [vmem:[#allocation16 + $0x150] sm:$0xff]
    %v3462 = vld [vmem:[#allocation16 + $0x158] sm:$0xff]
    %v3463 = vld [vmem:[#allocation16 + $0x160] sm:$0xff]
    %v3464 = vld [vmem:[#allocation16 + $0x168] sm:$0xff]
    %v3465 = vld [vmem:[#allocation16 + $0x170] sm:$0xff]
    %v3466 = vld [vmem:[#allocation16 + $0x178] sm:$0xff]
    %v3467 = vld [vmem:[#allocation16 + $0x180] sm:$0xff]
    %v3468 = vld [vmem:[#allocation16 + $0x188] sm:$0xff]
    %v3469 = vld [vmem:[#allocation16 + $0x190] sm:$0xff]
    %v3470 = vld [vmem:[#allocation16 + $0x198] sm:$0xff]
    %v3471 = vld [vmem:[#allocation16 + $0x1a0] sm:$0xff]
    %v3472 = vld [vmem:[#allocation16 + $0x1a8] sm:$0xff]
    %v3473 = vld [vmem:[#allocation16 + $0x1b0] sm:$0xff]
    %v3474 = vld [vmem:[#allocation16 + $0x1b8] sm:$0xff]
    %v3475 = vld [vmem:[#allocation16 + $0x1c0] sm:$0xff]
    %v3476 = vld [vmem:[#allocation16 + $0x1c8] sm:$0xff]
    %v3477 = vld [vmem:[#allocation16 + $0x1d0] sm:$0xff]
    %v3478 = vld [vmem:[#allocation16 + $0x1d8] sm:$0xff]
    %v3479 = vld [vmem:[#allocation16 + $0x1e0] sm:$0xff]
    %v3480 = vld [vmem:[#allocation16 + $0x1e8] sm:$0xff]
    %v3481 = vld [vmem:[#allocation16 + $0x1f0] sm:$0xff]
    %v3482 = vld [vmem:[#allocation16 + $0x1f8] sm:$0xff]
    %3483 = vmatprep.subr.mxu0 %v3420
    %3484 = vmatpush1.msra.mxu0 %v3419
    %3485 = vmatprep.subr.mxu0 %v3424
    %3486 = vmatpush1.msra.mxu0 %v3423
    %3487 = vmatprep.subr.mxu0 %v3428
    %3488 = vmatpush1.msra.mxu0 %v3427
    %3489 = vmatprep.subr.mxu0 %v3432
    %3490 = vmatpush1.msra.mxu0 %v3431
    %3491 = vmatprep.subr.mxu0 %v3436
    %3492 = vmatpush1.msra.mxu0 %v3435
    %3493 = vmatprep.subr.mxu0 %v3440
    %3494 = vmatpush1.msra.mxu0 %v3439
    %3495 = vmatprep.subr.mxu0 %v3444
    %3496 = vmatpush1.msra.mxu0 %v3443
    %3497 = vmatprep.subr.mxu0 %v3448
    %3498 = vmatpush1.msra.mxu0 %v3447
    %3499 = vmatprep.subr.mxu0 %v3452
    %3500 = vmatpush1.msra.mxu0 %v3451
    %3501 = vmatprep.subr.mxu0 %v3456
    %3502 = vmatpush1.msra.mxu0 %v3455
    %3503 = vmatprep.subr.mxu0 %v3460
    %3504 = vmatpush1.msra.mxu0 %v3459
    %3505 = vmatprep.subr.mxu0 %v3464
    %3506 = vmatpush1.msra.mxu0 %v3463
    %3507 = vmatprep.subr.mxu0 %v3468
    %3508 = vmatpush1.msra.mxu0 %v3467
    %3509 = vmatprep.subr.mxu0 %v3472
    %3510 = vmatpush1.msra.mxu0 %v3471
    %3511 = vmatprep.subr.mxu0 %v3476
    %3512 = vmatpush1.msra.mxu0 %v3475
    %3513 = vmatprep.subr.mxu0 %v3480
    %3514 = vmatpush1.msra.mxu0 %v3479
    %3515 = vmatprep.subr.mxu0 0.0
    %3516 = vmatpush1.msra.mxu0 0.0
    %3517 = vmatprep.subr.mxu0 0.0
    %3518 = vmatpush1.msra.mxu0 0.0
    %3519 = vmatprep.subr.mxu0 0.0
    %3520 = vmatpush1.msra.mxu0 0.0
    %3521 = vmatprep.subr.mxu0 0.0
    %3522 = vmatpush1.msra.mxu0 0.0
    %3523 = vmatprep.subr.mxu0 0.0
    %3524 = vmatpush1.msra.mxu0 0.0
    %3525 = vmatprep.subr.mxu0 0.0
    %3526 = vmatpush1.msra.mxu0 0.0
    %3527 = vmatprep.subr.mxu0 0.0
    %3528 = vmatpush1.msra.mxu0 0.0
    %3529 = vmatprep.subr.mxu0 0.0
    %3530 = vmatpush1.msra.mxu0 0.0
    %3531 = vmatprep.subr.mxu0 0.0
    %3532 = vmatpush1.msra.mxu0 0.0
    %3533 = vmatprep.subr.mxu0 0.0
    %3534 = vmatpush1.msra.mxu0 0.0
    %3535 = vmatprep.subr.mxu0 0.0
    %3536 = vmatpush1.msra.mxu0 0.0
    %3537 = vmatprep.subr.mxu0 0.0
    %3538 = vmatpush1.msra.mxu0 0.0
    %3539 = vmatprep.subr.mxu0 0.0
    %3540 = vmatpush1.msra.mxu0 0.0
    %3541 = vmatprep.subr.mxu0 0.0
    %3542 = vmatpush1.msra.mxu0 0.0
    %3543 = vmatprep.subr.mxu0 0.0
    %3544 = vmatpush1.msra.mxu0 0.0
    %3545 = vmatprep.subr.mxu0 0.0
    %3546 = vmatpush1.msra.mxu0 0.0
    %3547 = vmatprep.mubr.f32.mxu0 0.0
    %3548 = vmatmul.mubr.f32.gmra.mrb[0].mxu0 %v3413
    %v3549 = vpop.f32.mrb[0].mxu0
    %v3550 = vadd.f32 0.0, %v3549
    %v3551 = vpop.f32.mrb[0].mxu0
    %v3552 = vadd.f32 0.0, %v3551
    %3553 = vdwg.mxu0
    %3554 = vmatprep.subr.mxu0 %v3422
    %3555 = vmatpush1.msra.mxu0 %v3421
    %3556 = vmatprep.subr.mxu0 %v3426
    %3557 = vmatpush1.msra.mxu0 %v3425
    %3558 = vmatprep.subr.mxu0 %v3430
    %3559 = vmatpush1.msra.mxu0 %v3429
    %3560 = vmatprep.subr.mxu0 %v3434
    %3561 = vmatpush1.msra.mxu0 %v3433
    %3562 = vmatprep.subr.mxu0 %v3438
    %3563 = vmatpush1.msra.mxu0 %v3437
    %3564 = vmatprep.subr.mxu0 %v3442
    %3565 = vmatpush1.msra.mxu0 %v3441
    %3566 = vmatprep.subr.mxu0 %v3446
    %3567 = vmatpush1.msra.mxu0 %v3445
    %3568 = vmatprep.subr.mxu0 %v3450
    %3569 = vmatpush1.msra.mxu0 %v3449
    %3570 = vmatprep.subr.mxu0 %v3454
    %3571 = vmatpush1.msra.mxu0 %v3453
    %3572 = vmatprep.subr.mxu0 %v3458
    %3573 = vmatpush1.msra.mxu0 %v3457
    %3574 = vmatprep.subr.mxu0 %v3462
    %3575 = vmatpush1.msra.mxu0 %v3461
    %3576 = vmatprep.subr.mxu0 %v3466
    %3577 = vmatpush1.msra.mxu0 %v3465
    %3578 = vmatprep.subr.mxu0 %v3470
    %3579 = vmatpush1.msra.mxu0 %v3469
    %3580 = vmatprep.subr.mxu0 %v3474
    %3581 = vmatpush1.msra.mxu0 %v3473
    %3582 = vmatprep.subr.mxu0 %v3478
    %3583 = vmatpush1.msra.mxu0 %v3477
    %3584 = vmatprep.subr.mxu0 %v3482
    %3585 = vmatpush1.msra.mxu0 %v3481
    %3586 = vmatprep.subr.mxu0 0.0
    %3587 = vmatpush1.msra.mxu0 0.0
    %3588 = vmatprep.subr.mxu0 0.0
    %3589 = vmatpush1.msra.mxu0 0.0
    %3590 = vmatprep.subr.mxu0 0.0
    %3591 = vmatpush1.msra.mxu0 0.0
    %3592 = vmatprep.subr.mxu0 0.0
    %3593 = vmatpush1.msra.mxu0 0.0
    %3594 = vmatprep.subr.mxu0 0.0
    %3595 = vmatpush1.msra.mxu0 0.0
    %3596 = vmatprep.subr.mxu0 0.0
    %3597 = vmatpush1.msra.mxu0 0.0
    %3598 = vmatprep.subr.mxu0 0.0
    %3599 = vmatpush1.msra.mxu0 0.0
    %3600 = vmatprep.subr.mxu0 0.0
    %3601 = vmatpush1.msra.mxu0 0.0
    %3602 = vmatprep.subr.mxu0 0.0
    %3603 = vmatpush1.msra.mxu0 0.0
    %3604 = vmatprep.subr.mxu0 0.0
    %3605 = vmatpush1.msra.mxu0 0.0
    %3606 = vmatprep.subr.mxu0 0.0
    %3607 = vmatpush1.msra.mxu0 0.0
    %3608 = vmatprep.subr.mxu0 0.0
    %3609 = vmatpush1.msra.mxu0 0.0
    %3610 = vmatprep.subr.mxu0 0.0
    %3611 = vmatpush1.msra.mxu0 0.0
    %3612 = vmatprep.subr.mxu0 0.0
    %3613 = vmatpush1.msra.mxu0 0.0
    %3614 = vmatprep.subr.mxu0 0.0
    %3615 = vmatpush1.msra.mxu0 0.0
    %3616 = vmatprep.subr.mxu0 0.0
    %3617 = vmatpush1.msra.mxu0 0.0
    %3618 = vmatprep.mubr.f32.mxu0 0.0
    %3619 = vmatmul.mubr.f32.gmra.mrb[0].mxu0 %v3413
    %v3620 = vpop.f32.mrb[0].mxu0
    %v3621 = vadd.f32 0.0, %v3620
    %v3622 = vpop.f32.mrb[0].mxu0
    %v3623 = vadd.f32 0.0, %v3622
    %3624 = vdwg.mxu0
    %v3625 = vadd.f32 %v3415, %v3550
    %v3626 = vadd.f32 %v3416, %v3552
    %v3627 = vadd.f32 %v3417, %v3621
    %v3628 = vadd.f32 %v3418, %v3623
    %v3629 = vxor.u32 %v3625, 2147483648
    %v3630 = vmul.f32 %v3629, 1.442695
    %v3631 = vpow.pop %v3630
    %v3632 = vadd.f32 %v3631, 1.0
    %v3633 = vrcp.pop %v3632
    %v3634 = vmul.f32 1.0, %v3633
    %v3635 = vxor.u32 %v3626, 2147483648
    %v3636 = vmul.f32 %v3635, 1.442695
    %v3637 = vpow.pop %v3636
    %v3638 = vadd.f32 %v3637, 1.0
    %v3639 = vrcp.pop %v3638
    %v3640 = vmul.f32 1.0, %v3639
    %v3641 = vtanh.pop %v3627
    %v3642 = vxor.u32 %v3628, 2147483648
    %v3643 = vmul.f32 %v3642, 1.442695
    %v3644 = vpow.pop %v3643
    %v3645 = vadd.f32 %v3644, 1.0
    %v3646 = vrcp.pop %v3645
    %v3647 = vmul.f32 1.0, %v3646
    %v3648 = vmul.f32 %v3640, %v3411
    %v3649 = vmul.f32 %v3634, %v3641
    %v3650 = vadd.f32 %v3648, %v3649
    %v3651 = vtanh.pop %v3650
    %v3652 = vmul.f32 %v3647, %v3651
    %3653 = vst [vmem:[%s1372] sm:$0xff] %v3652
    %v3654 = vld [vmem:[%s1374] sm:$0xff]
    %v3655 = vld [vmem:[%s1374 + $0x8] sm:$0xff]
    %v3656 = vld [vmem:[%s1374 + $0x10] sm:$0xff]
    %v3657 = vld [vmem:[%s1374 + $0x18] sm:$0xff]
    %v3658 = vld [vmem:[#allocation16] sm:$0xff]
    %v3659 = vld [vmem:[#allocation16 + $0x8] sm:$0xff]
    %v3660 = vld [vmem:[#allocation16 + $0x10] sm:$0xff]
    %v3661 = vld [vmem:[#allocation16 + $0x18] sm:$0xff]
    %v3662 = vld [vmem:[#allocation16 + $0x20] sm:$0xff]
    %v3663 = vld [vmem:[#allocation16 + $0x28] sm:$0xff]
    %v3664 = vld [vmem:[#allocation16 + $0x30] sm:$0xff]
    %v3665 = vld [vmem:[#allocation16 + $0x38] sm:$0xff]
    %v3666 = vld [vmem:[#allocation16 + $0x40] sm:$0xff]
    %v3667 = vld [vmem:[#allocation16 + $0x48] sm:$0xff]
    %v3668 = vld [vmem:[#allocation16 + $0x50] sm:$0xff]
    %v3669 = vld [vmem:[#allocation16 + $0x58] sm:$0xff]
    %v3670 = vld [vmem:[#allocation16 + $0x60] sm:$0xff]
    %v3671 = vld [vmem:[#allocation16 + $0x68] sm:$0xff]
    %v3672 = vld [vmem:[#allocation16 + $0x70] sm:$0xff]
    %v3673 = vld [vmem:[#allocation16 + $0x78] sm:$0xff]
    %v3674 = vld [vmem:[#allocation16 + $0x80] sm:$0xff]
    %v3675 = vld [vmem:[#allocation16 + $0x88] sm:$0xff]
    %v3676 = vld [vmem:[#allocation16 + $0x90] sm:$0xff]
    %v3677 = vld [vmem:[#allocation16 + $0x98] sm:$0xff]
    %v3678 = vld [vmem:[#allocation16 + $0xa0] sm:$0xff]
    %v3679 = vld [vmem:[#allocation16 + $0xa8] sm:$0xff]
    %v3680 = vld [vmem:[#allocation16 + $0xb0] sm:$0xff]
    %v3681 = vld [vmem:[#allocation16 + $0xb8] sm:$0xff]
    %v3682 = vld [vmem:[#allocation16 + $0xc0] sm:$0xff]
    %v3683 = vld [vmem:[#allocation16 + $0xc8] sm:$0xff]
    %v3684 = vld [vmem:[#allocation16 + $0xd0] sm:$0xff]
    %v3685 = vld [vmem:[#allocation16 + $0xd8] sm:$0xff]
    %v3686 = vld [vmem:[#allocation16 + $0xe0] sm:$0xff]
    %v3687 = vld [vmem:[#allocation16 + $0xe8] sm:$0xff]
    %v3688 = vld [vmem:[#allocation16 + $0xf0] sm:$0xff]
    %v3689 = vld [vmem:[#allocation16 + $0xf8] sm:$0xff]
    %v3690 = vld [vmem:[#allocation16 + $0x100] sm:$0xff]
    %v3691 = vld [vmem:[#allocation16 + $0x108] sm:$0xff]
    %v3692 = vld [vmem:[#allocation16 + $0x110] sm:$0xff]
    %v3693 = vld [vmem:[#allocation16 + $0x118] sm:$0xff]
    %v3694 = vld [vmem:[#allocation16 + $0x120] sm:$0xff]
    %v3695 = vld [vmem:[#allocation16 + $0x128] sm:$0xff]
    %v3696 = vld [vmem:[#allocation16 + $0x130] sm:$0xff]
    %v3697 = vld [vmem:[#allocation16 + $0x138] sm:$0xff]
    %v3698 = vld [vmem:[#allocation16 + $0x140] sm:$0xff]
    %v3699 = vld [vmem:[#allocation16 + $0x148] sm:$0xff]
    %v3700 = vld [vmem:[#allocation16 + $0x150] sm:$0xff]
    %v3701 = vld [vmem:[#allocation16 + $0x158] sm:$0xff]
    %v3702 = vld [vmem:[#allocation16 + $0x160] sm:$0xff]
    %v3703 = vld [vmem:[#allocation16 + $0x168] sm:$0xff]
    %v3704 = vld [vmem:[#allocation16 + $0x170] sm:$0xff]
    %v3705 = vld [vmem:[#allocation16 + $0x178] sm:$0xff]
    %v3706 = vld [vmem:[#allocation16 + $0x180] sm:$0xff]
    %v3707 = vld [vmem:[#allocation16 + $0x188] sm:$0xff]
    %v3708 = vld [vmem:[#allocation16 + $0x190] sm:$0xff]
    %v3709 = vld [vmem:[#allocation16 + $0x198] sm:$0xff]
    %v3710 = vld [vmem:[#allocation16 + $0x1a0] sm:$0xff]
    %v3711 = vld [vmem:[#allocation16 + $0x1a8] sm:$0xff]
    %v3712 = vld [vmem:[#allocation16 + $0x1b0] sm:$0xff]
    %v3713 = vld [vmem:[#allocation16 + $0x1b8] sm:$0xff]
    %v3714 = vld [vmem:[#allocation16 + $0x1c0] sm:$0xff]
    %v3715 = vld [vmem:[#allocation16 + $0x1c8] sm:$0xff]
    %v3716 = vld [vmem:[#allocation16 + $0x1d0] sm:$0xff]
    %v3717 = vld [vmem:[#allocation16 + $0x1d8] sm:$0xff]
    %v3718 = vld [vmem:[#allocation16 + $0x1e0] sm:$0xff]
    %v3719 = vld [vmem:[#allocation16 + $0x1e8] sm:$0xff]
    %v3720 = vld [vmem:[#allocation16 + $0x1f0] sm:$0xff]
    %v3721 = vld [vmem:[#allocation16 + $0x1f8] sm:$0xff]
    %3722 = vmatprep.subr.mxu0 %v3659
    %3723 = vmatpush1.msra.mxu0 %v3658
    %3724 = vmatprep.subr.mxu0 %v3663
    %3725 = vmatpush1.msra.mxu0 %v3662
    %3726 = vmatprep.subr.mxu0 %v3667
    %3727 = vmatpush1.msra.mxu0 %v3666
    %3728 = vmatprep.subr.mxu0 %v3671
    %3729 = vmatpush1.msra.mxu0 %v3670
    %3730 = vmatprep.subr.mxu0 %v3675
    %3731 = vmatpush1.msra.mxu0 %v3674
    %3732 = vmatprep.subr.mxu0 %v3679
    %3733 = vmatpush1.msra.mxu0 %v3678
    %3734 = vmatprep.subr.mxu0 %v3683
    %3735 = vmatpush1.msra.mxu0 %v3682
    %3736 = vmatprep.subr.mxu0 %v3687
    %3737 = vmatpush1.msra.mxu0 %v3686
    %3738 = vmatprep.subr.mxu0 %v3691
    %3739 = vmatpush1.msra.mxu0 %v3690
    %3740 = vmatprep.subr.mxu0 %v3695
    %3741 = vmatpush1.msra.mxu0 %v3694
    %3742 = vmatprep.subr.mxu0 %v3699
    %3743 = vmatpush1.msra.mxu0 %v3698
    %3744 = vmatprep.subr.mxu0 %v3703
    %3745 = vmatpush1.msra.mxu0 %v3702
    %3746 = vmatprep.subr.mxu0 %v3707
    %3747 = vmatpush1.msra.mxu0 %v3706
    %3748 = vmatprep.subr.mxu0 %v3711
    %3749 = vmatpush1.msra.mxu0 %v3710
    %3750 = vmatprep.subr.mxu0 %v3715
    %3751 = vmatpush1.msra.mxu0 %v3714
    %3752 = vmatprep.subr.mxu0 %v3719
    %3753 = vmatpush1.msra.mxu0 %v3718
    %3754 = vmatprep.subr.mxu0 0.0
    %3755 = vmatpush1.msra.mxu0 0.0
    %3756 = vmatprep.subr.mxu0 0.0
    %3757 = vmatpush1.msra.mxu0 0.0
    %3758 = vmatprep.subr.mxu0 0.0
    %3759 = vmatpush1.msra.mxu0 0.0
    %3760 = vmatprep.subr.mxu0 0.0
    %3761 = vmatpush1.msra.mxu0 0.0
    %3762 = vmatprep.subr.mxu0 0.0
    %3763 = vmatpush1.msra.mxu0 0.0
    %3764 = vmatprep.subr.mxu0 0.0
    %3765 = vmatpush1.msra.mxu0 0.0
    %3766 = vmatprep.subr.mxu0 0.0
    %3767 = vmatpush1.msra.mxu0 0.0
    %3768 = vmatprep.subr.mxu0 0.0
    %3769 = vmatpush1.msra.mxu0 0.0
    %3770 = vmatprep.subr.mxu0 0.0
    %3771 = vmatpush1.msra.mxu0 0.0
    %3772 = vmatprep.subr.mxu0 0.0
    %3773 = vmatpush1.msra.mxu0 0.0
    %3774 = vmatprep.subr.mxu0 0.0
    %3775 = vmatpush1.msra.mxu0 0.0
    %3776 = vmatprep.subr.mxu0 0.0
    %3777 = vmatpush1.msra.mxu0 0.0
    %3778 = vmatprep.subr.mxu0 0.0
    %3779 = vmatpush1.msra.mxu0 0.0
    %3780 = vmatprep.subr.mxu0 0.0
    %3781 = vmatpush1.msra.mxu0 0.0
    %3782 = vmatprep.subr.mxu0 0.0
    %3783 = vmatpush1.msra.mxu0 0.0
    %3784 = vmatprep.subr.mxu0 0.0
    %3785 = vmatpush1.msra.mxu0 0.0
    %3786 = vmatprep.mubr.f32.mxu0 0.0
    %3787 = vmatmul.mubr.f32.gmra.mrb[0].mxu0 %v3652
    %v3788 = vpop.f32.mrb[0].mxu0
    %v3789 = vadd.f32 0.0, %v3788
    %v3790 = vpop.f32.mrb[0].mxu0
    %v3791 = vadd.f32 0.0, %v3790
    %3792 = vdwg.mxu0
    %3793 = vmatprep.subr.mxu0 %v3661
    %3794 = vmatpush1.msra.mxu0 %v3660
    %3795 = vmatprep.subr.mxu0 %v3665
    %3796 = vmatpush1.msra.mxu0 %v3664
    %3797 = vmatprep.subr.mxu0 %v3669
    %3798 = vmatpush1.msra.mxu0 %v3668
    %3799 = vmatprep.subr.mxu0 %v3673
    %3800 = vmatpush1.msra.mxu0 %v3672
    %3801 = vmatprep.subr.mxu0 %v3677
    %3802 = vmatpush1.msra.mxu0 %v3676
    %3803 = vmatprep.subr.mxu0 %v3681
    %3804 = vmatpush1.msra.mxu0 %v3680
    %3805 = vmatprep.subr.mxu0 %v3685
    %3806 = vmatpush1.msra.mxu0 %v3684
    %3807 = vmatprep.subr.mxu0 %v3689
    %3808 = vmatpush1.msra.mxu0 %v3688
    %3809 = vmatprep.subr.mxu0 %v3693
    %3810 = vmatpush1.msra.mxu0 %v3692
    %3811 = vmatprep.subr.mxu0 %v3697
    %3812 = vmatpush1.msra.mxu0 %v3696
    %3813 = vmatprep.subr.mxu0 %v3701
    %3814 = vmatpush1.msra.mxu0 %v3700
    %3815 = vmatprep.subr.mxu0 %v3705
    %3816 = vmatpush1.msra.mxu0 %v3704
    %3817 = vmatprep.subr.mxu0 %v3709
    %3818 = vmatpush1.msra.mxu0 %v3708
    %3819 = vmatprep.subr.mxu0 %v3713
    %3820 = vmatpush1.msra.mxu0 %v3712
    %3821 = vmatprep.subr.mxu0 %v3717
    %3822 = vmatpush1.msra.mxu0 %v3716
    %3823 = vmatprep.subr.mxu0 %v3721
    %3824 = vmatpush1.msra.mxu0 %v3720
    %3825 = vmatprep.subr.mxu0 0.0
    %3826 = vmatpush1.msra.mxu0 0.0
    %3827 = vmatprep.subr.mxu0 0.0
    %3828 = vmatpush1.msra.mxu0 0.0
    %3829 = vmatprep.subr.mxu0 0.0
    %3830 = vmatpush1.msra.mxu0 0.0
    %3831 = vmatprep.subr.mxu0 0.0
    %3832 = vmatpush1.msra.mxu0 0.0
    %3833 = vmatprep.subr.mxu0 0.0
    %3834 = vmatpush1.msra.mxu0 0.0
    %3835 = vmatprep.subr.mxu0 0.0
    %3836 = vmatpush1.msra.mxu0 0.0
    %3837 = vmatprep.subr.mxu0 0.0
    %3838 = vmatpush1.msra.mxu0 0.0
    %3839 = vmatprep.subr.mxu0 0.0
    %3840 = vmatpush1.msra.mxu0 0.0
    %3841 = vmatprep.subr.mxu0 0.0
    %3842 = vmatpush1.msra.mxu0 0.0
    %3843 = vmatprep.subr.mxu0 0.0
    %3844 = vmatpush1.msra.mxu0 0.0
    %3845 = vmatprep.subr.mxu0 0.0
    %3846 = vmatpush1.msra.mxu0 0.0
    %3847 = vmatprep.subr.mxu0 0.0
    %3848 = vmatpush1.msra.mxu0 0.0
    %3849 = vmatprep.subr.mxu0 0.0
    %3850 = vmatpush1.msra.mxu0 0.0
    %3851 = vmatprep.subr.mxu0 0.0
    %3852 = vmatpush1.msra.mxu0 0.0
    %3853 = vmatprep.subr.mxu0 0.0
    %3854 = vmatpush1.msra.mxu0 0.0
    %3855 = vmatprep.subr.mxu0 0.0
    %3856 = vmatpush1.msra.mxu0 0.0
    %3857 = vmatprep.mubr.f32.mxu0 0.0
    %3858 = vmatmul.mubr.f32.gmra.mrb[0].mxu0 %v3652
    %v3859 = vpop.f32.mrb[0].mxu0
    %v3860 = vadd.f32 0.0, %v3859
    %v3861 = vpop.f32.mrb[0].mxu0
    %v3862 = vadd.f32 0.0, %v3861
    %3863 = vdwg.mxu0
    %v3864 = vadd.f32 %v3654, %v3789
    %v3865 = vadd.f32 %v3655, %v3791
    %v3866 = vadd.f32 %v3656, %v3860
    %v3867 = vadd.f32 %v3657, %v3862
    %v3868 = vxor.u32 %v3864, 2147483648
    %v3869 = vmul.f32 %v3868, 1.442695
    %v3870 = vpow.pop %v3869
    %v3871 = vadd.f32 %v3870, 1.0
    %v3872 = vrcp.pop %v3871
    %v3873 = vmul.f32 1.0, %v3872
    %v3874 = vxor.u32 %v3865, 2147483648
    %v3875 = vmul.f32 %v3874, 1.442695
    %v3876 = vpow.pop %v3875
    %v3877 = vadd.f32 %v3876, 1.0
    %v3878 = vrcp.pop %v3877
    %v3879 = vmul.f32 1.0, %v3878
    %v3880 = vtanh.pop %v3866
    %v3881 = vxor.u32 %v3867, 2147483648
    %v3882 = vmul.f32 %v3881, 1.442695
    %v3883 = vpow.pop %v3882
    %v3884 = vadd.f32 %v3883, 1.0
    %v3885 = vrcp.pop %v3884
    %v3886 = vmul.f32 1.0, %v3885
    %v3887 = vmul.f32 %v3879, %v3650
    %v3888 = vmul.f32 %v3873, %v3880
    %v3889 = vadd.f32 %v3887, %v3888
    %v3890 = vtanh.pop %v3889
    %v3891 = vmul.f32 %v3886, %v3890
    %3892 = vst [vmem:[%s1613] sm:$0xff] %v3891
    %v3893 = vld [vmem:[%s1615] sm:$0xff]
    %v3894 = vld [vmem:[%s1615 + $0x8] sm:$0xff]
    %v3895 = vld [vmem:[%s1615 + $0x10] sm:$0xff]
    %v3896 = vld [vmem:[%s1615 + $0x18] sm:$0xff]
    %v3897 = vld [vmem:[#allocation16] sm:$0xff]
    %v3898 = vld [vmem:[#allocation16 + $0x8] sm:$0xff]
    %v3899 = vld [vmem:[#allocation16 + $0x10] sm:$0xff]
    %v3900 = vld [vmem:[#allocation16 + $0x18] sm:$0xff]
    %v3901 = vld [vmem:[#allocation16 + $0x20] sm:$0xff]
    %v3902 = vld [vmem:[#allocation16 + $0x28] sm:$0xff]
    %v3903 = vld [vmem:[#allocation16 + $0x30] sm:$0xff]
    %v3904 = vld [vmem:[#allocation16 + $0x38] sm:$0xff]
    %v3905 = vld [vmem:[#allocation16 + $0x40] sm:$0xff]
    %v3906 = vld [vmem:[#allocation16 + $0x48] sm:$0xff]
    %v3907 = vld [vmem:[#allocation16 + $0x50] sm:$0xff]
    %v3908 = vld [vmem:[#allocation16 + $0x58] sm:$0xff]
    %v3909 = vld [vmem:[#allocation16 + $0x60] sm:$0xff]
    %v3910 = vld [vmem:[#allocation16 + $0x68] sm:$0xff]
    %v3911 = vld [vmem:[#allocation16 + $0x70] sm:$0xff]
    %v3912 = vld [vmem:[#allocation16 + $0x78] sm:$0xff]
    %v3913 = vld [vmem:[#allocation16 + $0x80] sm:$0xff]
    %v3914 = vld [vmem:[#allocation16 + $0x88] sm:$0xff]
    %v3915 = vld [vmem:[#allocation16 + $0x90] sm:$0xff]
    %v3916 = vld [vmem:[#allocation16 + $0x98] sm:$0xff]
    %v3917 = vld [vmem:[#allocation16 + $0xa0] sm:$0xff]
    %v3918 = vld [vmem:[#allocation16 + $0xa8] sm:$0xff]
    %v3919 = vld [vmem:[#allocation16 + $0xb0] sm:$0xff]
    %v3920 = vld [vmem:[#allocation16 + $0xb8] sm:$0xff]
    %v3921 = vld [vmem:[#allocation16 + $0xc0] sm:$0xff]
    %v3922 = vld [vmem:[#allocation16 + $0xc8] sm:$0xff]
    %v3923 = vld [vmem:[#allocation16 + $0xd0] sm:$0xff]
    %v3924 = vld [vmem:[#allocation16 + $0xd8] sm:$0xff]
    %v3925 = vld [vmem:[#allocation16 + $0xe0] sm:$0xff]
    %v3926 = vld [vmem:[#allocation16 + $0xe8] sm:$0xff]
    %v3927 = vld [vmem:[#allocation16 + $0xf0] sm:$0xff]
    %v3928 = vld [vmem:[#allocation16 + $0xf8] sm:$0xff]
    %v3929 = vld [vmem:[#allocation16 + $0x100] sm:$0xff]
    %v3930 = vld [vmem:[#allocation16 + $0x108] sm:$0xff]
    %v3931 = vld [vmem:[#allocation16 + $0x110] sm:$0xff]
    %v3932 = vld [vmem:[#allocation16 + $0x118] sm:$0xff]
    %v3933 = vld [vmem:[#allocation16 + $0x120] sm:$0xff]
    %v3934 = vld [vmem:[#allocation16 + $0x128] sm:$0xff]
    %v3935 = vld [vmem:[#allocation16 + $0x130] sm:$0xff]
    %v3936 = vld [vmem:[#allocation16 + $0x138] sm:$0xff]
    %v3937 = vld [vmem:[#allocation16 + $0x140] sm:$0xff]
    %v3938 = vld [vmem:[#allocation16 + $0x148] sm:$0xff]
    %v3939 = vld [vmem:[#allocation16 + $0x150] sm:$0xff]
    %v3940 = vld [vmem:[#allocation16 + $0x158] sm:$0xff]
    %v3941 = vld [vmem:[#allocation16 + $0x160] sm:$0xff]
    %v3942 = vld [vmem:[#allocation16 + $0x168] sm:$0xff]
    %v3943 = vld [vmem:[#allocation16 + $0x170] sm:$0xff]
    %v3944 = vld [vmem:[#allocation16 + $0x178] sm:$0xff]
    %v3945 = vld [vmem:[#allocation16 + $0x180] sm:$0xff]
    %v3946 = vld [vmem:[#allocation16 + $0x188] sm:$0xff]
    %v3947 = vld [vmem:[#allocation16 + $0x190] sm:$0xff]
    %v3948 = vld [vmem:[#allocation16 + $0x198] sm:$0xff]
    %v3949 = vld [vmem:[#allocation16 + $0x1a0] sm:$0xff]
    %v3950 = vld [vmem:[#allocation16 + $0x1a8] sm:$0xff]
    %v3951 = vld [vmem:[#allocation16 + $0x1b0] sm:$0xff]
    %v3952 = vld [vmem:[#allocation16 + $0x1b8] sm:$0xff]
    %v3953 = vld [vmem:[#allocation16 + $0x1c0] sm:$0xff]
    %v3954 = vld [vmem:[#allocation16 + $0x1c8] sm:$0xff]
    %v3955 = vld [vmem:[#allocation16 + $0x1d0] sm:$0xff]
    %v3956 = vld [vmem:[#allocation16 + $0x1d8] sm:$0xff]
    %v3957 = vld [vmem:[#allocation16 + $0x1e0] sm:$0xff]
    %v3958 = vld [vmem:[#allocation16 + $0x1e8] sm:$0xff]
    %v3959 = vld [vmem:[#allocation16 + $0x1f0] sm:$0xff]
    %v3960 = vld [vmem:[#allocation16 + $0x1f8] sm:$0xff]
    %3961 = vmatprep.subr.mxu0 %v3898
    %3962 = vmatpush1.msra.mxu0 %v3897
    %3963 = vmatprep.subr.mxu0 %v3902
    %3964 = vmatpush1.msra.mxu0 %v3901
    %3965 = vmatprep.subr.mxu0 %v3906
    %3966 = vmatpush1.msra.mxu0 %v3905
    %3967 = vmatprep.subr.mxu0 %v3910
    %3968 = vmatpush1.msra.mxu0 %v3909
    %3969 = vmatprep.subr.mxu0 %v3914
    %3970 = vmatpush1.msra.mxu0 %v3913
    %3971 = vmatprep.subr.mxu0 %v3918
    %3972 = vmatpush1.msra.mxu0 %v3917
    %3973 = vmatprep.subr.mxu0 %v3922
    %3974 = vmatpush1.msra.mxu0 %v3921
    %3975 = vmatprep.subr.mxu0 %v3926
    %3976 = vmatpush1.msra.mxu0 %v3925
    %3977 = vmatprep.subr.mxu0 %v3930
    %3978 = vmatpush1.msra.mxu0 %v3929
    %3979 = vmatprep.subr.mxu0 %v3934
    %3980 = vmatpush1.msra.mxu0 %v3933
    %3981 = vmatprep.subr.mxu0 %v3938
    %3982 = vmatpush1.msra.mxu0 %v3937
    %3983 = vmatprep.subr.mxu0 %v3942
    %3984 = vmatpush1.msra.mxu0 %v3941
    %3985 = vmatprep.subr.mxu0 %v3946
    %3986 = vmatpush1.msra.mxu0 %v3945
    %3987 = vmatprep.subr.mxu0 %v3950
    %3988 = vmatpush1.msra.mxu0 %v3949
    %3989 = vmatprep.subr.mxu0 %v3954
    %3990 = vmatpush1.msra.mxu0 %v3953
    %3991 = vmatprep.subr.mxu0 %v3958
    %3992 = vmatpush1.msra.mxu0 %v3957
    %3993 = vmatprep.subr.mxu0 0.0
    %3994 = vmatpush1.msra.mxu0 0.0
    %3995 = vmatprep.subr.mxu0 0.0
    %3996 = vmatpush1.msra.mxu0 0.0
    %3997 = vmatprep.subr.mxu0 0.0
    %3998 = vmatpush1.msra.mxu0 0.0
    %3999 = vmatprep.subr.mxu0 0.0
    %4000 = vmatpush1.msra.mxu0 0.0
    %4001 = vmatprep.subr.mxu0 0.0
    %4002 = vmatpush1.msra.mxu0 0.0
    %4003 = vmatprep.subr.mxu0 0.0
    %4004 = vmatpush1.msra.mxu0 0.0
    %4005 = vmatprep.subr.mxu0 0.0
    %4006 = vmatpush1.msra.mxu0 0.0
    %4007 = vmatprep.subr.mxu0 0.0
    %4008 = vmatpush1.msra.mxu0 0.0
    %4009 = vmatprep.subr.mxu0 0.0
    %4010 = vmatpush1.msra.mxu0 0.0
    %4011 = vmatprep.subr.mxu0 0.0
    %4012 = vmatpush1.msra.mxu0 0.0
    %4013 = vmatprep.subr.mxu0 0.0
    %4014 = vmatpush1.msra.mxu0 0.0
    %4015 = vmatprep.subr.mxu0 0.0
    %4016 = vmatpush1.msra.mxu0 0.0
    %4017 = vmatprep.subr.mxu0 0.0
    %4018 = vmatpush1.msra.mxu0 0.0
    %4019 = vmatprep.subr.mxu0 0.0
    %4020 = vmatpush1.msra.mxu0 0.0
    %4021 = vmatprep.subr.mxu0 0.0
    %4022 = vmatpush1.msra.mxu0 0.0
    %4023 = vmatprep.subr.mxu0 0.0
    %4024 = vmatpush1.msra.mxu0 0.0
    %4025 = vmatprep.mubr.f32.mxu0 0.0
    %4026 = vmatmul.mubr.f32.gmra.mrb[0].mxu0 %v3891
    %v4027 = vpop.f32.mrb[0].mxu0
    %v4028 = vadd.f32 0.0, %v4027
    %v4029 = vpop.f32.mrb[0].mxu0
    %v4030 = vadd.f32 0.0, %v4029
    %4031 = vdwg.mxu0
    %4032 = vmatprep.subr.mxu0 %v3900
    %4033 = vmatpush1.msra.mxu0 %v3899
    %4034 = vmatprep.subr.mxu0 %v3904
    %4035 = vmatpush1.msra.mxu0 %v3903
    %4036 = vmatprep.subr.mxu0 %v3908
    %4037 = vmatpush1.msra.mxu0 %v3907
    %4038 = vmatprep.subr.mxu0 %v3912
    %4039 = vmatpush1.msra.mxu0 %v3911
    %4040 = vmatprep.subr.mxu0 %v3916
    %4041 = vmatpush1.msra.mxu0 %v3915
    %4042 = vmatprep.subr.mxu0 %v3920
    %4043 = vmatpush1.msra.mxu0 %v3919
    %4044 = vmatprep.subr.mxu0 %v3924
    %4045 = vmatpush1.msra.mxu0 %v3923
    %4046 = vmatprep.subr.mxu0 %v3928
    %4047 = vmatpush1.msra.mxu0 %v3927
    %4048 = vmatprep.subr.mxu0 %v3932
    %4049 = vmatpush1.msra.mxu0 %v3931
    %4050 = vmatprep.subr.mxu0 %v3936
    %4051 = vmatpush1.msra.mxu0 %v3935
    %4052 = vmatprep.subr.mxu0 %v3940
    %4053 = vmatpush1.msra.mxu0 %v3939
    %4054 = vmatprep.subr.mxu0 %v3944
    %4055 = vmatpush1.msra.mxu0 %v3943
    %4056 = vmatprep.subr.mxu0 %v3948
    %4057 = vmatpush1.msra.mxu0 %v3947
    %4058 = vmatprep.subr.mxu0 %v3952
    %4059 = vmatpush1.msra.mxu0 %v3951
    %4060 = vmatprep.subr.mxu0 %v3956
    %4061 = vmatpush1.msra.mxu0 %v3955
    %4062 = vmatprep.subr.mxu0 %v3960
    %4063 = vmatpush1.msra.mxu0 %v3959
    %4064 = vmatprep.subr.mxu0 0.0
    %4065 = vmatpush1.msra.mxu0 0.0
    %4066 = vmatprep.subr.mxu0 0.0
    %4067 = vmatpush1.msra.mxu0 0.0
    %4068 = vmatprep.subr.mxu0 0.0
    %4069 = vmatpush1.msra.mxu0 0.0
    %4070 = vmatprep.subr.mxu0 0.0
    %4071 = vmatpush1.msra.mxu0 0.0
    %4072 = vmatprep.subr.mxu0 0.0
    %4073 = vmatpush1.msra.mxu0 0.0
    %4074 = vmatprep.subr.mxu0 0.0
    %4075 = vmatpush1.msra.mxu0 0.0
    %4076 = vmatprep.subr.mxu0 0.0
    %4077 = vmatpush1.msra.mxu0 0.0
    %4078 = vmatprep.subr.mxu0 0.0
    %4079 = vmatpush1.msra.mxu0 0.0
    %4080 = vmatprep.subr.mxu0 0.0
    %4081 = vmatpush1.msra.mxu0 0.0
    %4082 = vmatprep.subr.mxu0 0.0
    %4083 = vmatpush1.msra.mxu0 0.0
    %4084 = vmatprep.subr.mxu0 0.0
    %4085 = vmatpush1.msra.mxu0 0.0
    %4086 = vmatprep.subr.mxu0 0.0
    %4087 = vmatpush1.msra.mxu0 0.0
    %4088 = vmatprep.subr.mxu0 0.0
    %4089 = vmatpush1.msra.mxu0 0.0
    %4090 = vmatprep.subr.mxu0 0.0
    %4091 = vmatpush1.msra.mxu0 0.0
    %4092 = vmatprep.subr.mxu0 0.0
    %4093 = vmatpush1.msra.mxu0 0.0
    %4094 = vmatprep.subr.mxu0 0.0
    %4095 = vmatpush1.msra.mxu0 0.0
    %4096 = vmatprep.mubr.f32.mxu0 0.0
    %4097 = vmatmul.mubr.f32.gmra.mrb[0].mxu0 %v3891
    %v4098 = vpop.f32.mrb[0].mxu0
    %v4099 = vadd.f32 0.0, %v4098
    %v4100 = vpop.f32.mrb[0].mxu0
    %v4101 = vadd.f32 0.0, %v4100
    %4102 = vdwg.mxu0
    %v4103 = vadd.f32 %v3893, %v4028
    %v4104 = vadd.f32 %v3894, %v4030
    %v4105 = vadd.f32 %v3895, %v4099
    %v4106 = vadd.f32 %v3896, %v4101
    %v4107 = vxor.u32 %v4103, 2147483648
    %v4108 = vmul.f32 %v4107, 1.442695
    %v4109 = vpow.pop %v4108
    %v4110 = vadd.f32 %v4109, 1.0
    %v4111 = vrcp.pop %v4110
    %v4112 = vmul.f32 1.0, %v4111
    %v4113 = vxor.u32 %v4104, 2147483648
    %v4114 = vmul.f32 %v4113, 1.442695
    %v4115 = vpow.pop %v4114
    %v4116 = vadd.f32 %v4115, 1.0
    %v4117 = vrcp.pop %v4116
    %v4118 = vmul.f32 1.0, %v4117
    %v4119 = vtanh.pop %v4105
    %v4120 = vxor.u32 %v4106, 2147483648
    %v4121 = vmul.f32 %v4120, 1.442695
    %v4122 = vpow.pop %v4121
    %v4123 = vadd.f32 %v4122, 1.0
    %v4124 = vrcp.pop %v4123
    %v4125 = vmul.f32 1.0, %v4124
    %v4126 = vmul.f32 %v4118, %v3889
    %v4127 = vmul.f32 %v4112, %v4119
    %v4128 = vadd.f32 %v4126, %v4127
    %v4129 = vtanh.pop %v4128
    %v4130 = vmul.f32 %v4125, %v4129
    %4131 = vst [vmem:[%s1854] sm:$0xff] %v4130
    %v4132 = vld [vmem:[%s1856] sm:$0xff]
    %v4133 = vld [vmem:[%s1856 + $0x8] sm:$0xff]
    %v4134 = vld [vmem:[%s1856 + $0x10] sm:$0xff]
    %v4135 = vld [vmem:[%s1856 + $0x18] sm:$0xff]
    %v4136 = vld [vmem:[#allocation16] sm:$0xff]
    %v4137 = vld [vmem:[#allocation16 + $0x8] sm:$0xff]
    %v4138 = vld [vmem:[#allocation16 + $0x10] sm:$0xff]
    %v4139 = vld [vmem:[#allocation16 + $0x18] sm:$0xff]
    %v4140 = vld [vmem:[#allocation16 + $0x20] sm:$0xff]
    %v4141 = vld [vmem:[#allocation16 + $0x28] sm:$0xff]
    %v4142 = vld [vmem:[#allocation16 + $0x30] sm:$0xff]
    %v4143 = vld [vmem:[#allocation16 + $0x38] sm:$0xff]
    %v4144 = vld [vmem:[#allocation16 + $0x40] sm:$0xff]
    %v4145 = vld [vmem:[#allocation16 + $0x48] sm:$0xff]
    %v4146 = vld [vmem:[#allocation16 + $0x50] sm:$0xff]
    %v4147 = vld [vmem:[#allocation16 + $0x58] sm:$0xff]
    %v4148 = vld [vmem:[#allocation16 + $0x60] sm:$0xff]
    %v4149 = vld [vmem:[#allocation16 + $0x68] sm:$0xff]
    %v4150 = vld [vmem:[#allocation16 + $0x70] sm:$0xff]
    %v4151 = vld [vmem:[#allocation16 + $0x78] sm:$0xff]
    %v4152 = vld [vmem:[#allocation16 + $0x80] sm:$0xff]
    %v4153 = vld [vmem:[#allocation16 + $0x88] sm:$0xff]
    %v4154 = vld [vmem:[#allocation16 + $0x90] sm:$0xff]
    %v4155 = vld [vmem:[#allocation16 + $0x98] sm:$0xff]
    %v4156 = vld [vmem:[#allocation16 + $0xa0] sm:$0xff]
    %v4157 = vld [vmem:[#allocation16 + $0xa8] sm:$0xff]
    %v4158 = vld [vmem:[#allocation16 + $0xb0] sm:$0xff]
    %v4159 = vld [vmem:[#allocation16 + $0xb8] sm:$0xff]
    %v4160 = vld [vmem:[#allocation16 + $0xc0] sm:$0xff]
    %v4161 = vld [vmem:[#allocation16 + $0xc8] sm:$0xff]
    %v4162 = vld [vmem:[#allocation16 + $0xd0] sm:$0xff]
    %v4163 = vld [vmem:[#allocation16 + $0xd8] sm:$0xff]
    %v4164 = vld [vmem:[#allocation16 + $0xe0] sm:$0xff]
    %v4165 = vld [vmem:[#allocation16 + $0xe8] sm:$0xff]
    %v4166 = vld [vmem:[#allocation16 + $0xf0] sm:$0xff]
    %v4167 = vld [vmem:[#allocation16 + $0xf8] sm:$0xff]
    %v4168 = vld [vmem:[#allocation16 + $0x100] sm:$0xff]
    %v4169 = vld [vmem:[#allocation16 + $0x108] sm:$0xff]
    %v4170 = vld [vmem:[#allocation16 + $0x110] sm:$0xff]
    %v4171 = vld [vmem:[#allocation16 + $0x118] sm:$0xff]
    %v4172 = vld [vmem:[#allocation16 + $0x120] sm:$0xff]
    %v4173 = vld [vmem:[#allocation16 + $0x128] sm:$0xff]
    %v4174 = vld [vmem:[#allocation16 + $0x130] sm:$0xff]
    %v4175 = vld [vmem:[#allocation16 + $0x138] sm:$0xff]
    %v4176 = vld [vmem:[#allocation16 + $0x140] sm:$0xff]
    %v4177 = vld [vmem:[#allocation16 + $0x148] sm:$0xff]
    %v4178 = vld [vmem:[#allocation16 + $0x150] sm:$0xff]
    %v4179 = vld [vmem:[#allocation16 + $0x158] sm:$0xff]
    %v4180 = vld [vmem:[#allocation16 + $0x160] sm:$0xff]
    %v4181 = vld [vmem:[#allocation16 + $0x168] sm:$0xff]
    %v4182 = vld [vmem:[#allocation16 + $0x170] sm:$0xff]
    %v4183 = vld [vmem:[#allocation16 + $0x178] sm:$0xff]
    %v4184 = vld [vmem:[#allocation16 + $0x180] sm:$0xff]
    %v4185 = vld [vmem:[#allocation16 + $0x188] sm:$0xff]
    %v4186 = vld [vmem:[#allocation16 + $0x190] sm:$0xff]
    %v4187 = vld [vmem:[#allocation16 + $0x198] sm:$0xff]
    %v4188 = vld [vmem:[#allocation16 + $0x1a0] sm:$0xff]
    %v4189 = vld [vmem:[#allocation16 + $0x1a8] sm:$0xff]
    %v4190 = vld [vmem:[#allocation16 + $0x1b0] sm:$0xff]
    %v4191 = vld [vmem:[#allocation16 + $0x1b8] sm:$0xff]
    %v4192 = vld [vmem:[#allocation16 + $0x1c0] sm:$0xff]
    %v4193 = vld [vmem:[#allocation16 + $0x1c8] sm:$0xff]
    %v4194 = vld [vmem:[#allocation16 + $0x1d0] sm:$0xff]
    %v4195 = vld [vmem:[#allocation16 + $0x1d8] sm:$0xff]
    %v4196 = vld [vmem:[#allocation16 + $0x1e0] sm:$0xff]
    %v4197 = vld [vmem:[#allocation16 + $0x1e8] sm:$0xff]
    %v4198 = vld [vmem:[#allocation16 + $0x1f0] sm:$0xff]
    %v4199 = vld [vmem:[#allocation16 + $0x1f8] sm:$0xff]
    %4200 = vmatprep.subr.mxu0 %v4137
    %4201 = vmatpush1.msra.mxu0 %v4136
    %4202 = vmatprep.subr.mxu0 %v4141
    %4203 = vmatpush1.msra.mxu0 %v4140
    %4204 = vmatprep.subr.mxu0 %v4145
    %4205 = vmatpush1.msra.mxu0 %v4144
    %4206 = vmatprep.subr.mxu0 %v4149
    %4207 = vmatpush1.msra.mxu0 %v4148
    %4208 = vmatprep.subr.mxu0 %v4153
    %4209 = vmatpush1.msra.mxu0 %v4152
    %4210 = vmatprep.subr.mxu0 %v4157
    %4211 = vmatpush1.msra.mxu0 %v4156
    %4212 = vmatprep.subr.mxu0 %v4161
    %4213 = vmatpush1.msra.mxu0 %v4160
    %4214 = vmatprep.subr.mxu0 %v4165
    %4215 = vmatpush1.msra.mxu0 %v4164
    %4216 = vmatprep.subr.mxu0 %v4169
    %4217 = vmatpush1.msra.mxu0 %v4168
    %4218 = vmatprep.subr.mxu0 %v4173
    %4219 = vmatpush1.msra.mxu0 %v4172
    %4220 = vmatprep.subr.mxu0 %v4177
    %4221 = vmatpush1.msra.mxu0 %v4176
    %4222 = vmatprep.subr.mxu0 %v4181
    %4223 = vmatpush1.msra.mxu0 %v4180
    %4224 = vmatprep.subr.mxu0 %v4185
    %4225 = vmatpush1.msra.mxu0 %v4184
    %4226 = vmatprep.subr.mxu0 %v4189
    %4227 = vmatpush1.msra.mxu0 %v4188
    %4228 = vmatprep.subr.mxu0 %v4193
    %4229 = vmatpush1.msra.mxu0 %v4192
    %4230 = vmatprep.subr.mxu0 %v4197
    %4231 = vmatpush1.msra.mxu0 %v4196
    %4232 = vmatprep.subr.mxu0 0.0
    %4233 = vmatpush1.msra.mxu0 0.0
    %4234 = vmatprep.subr.mxu0 0.0
    %4235 = vmatpush1.msra.mxu0 0.0
    %4236 = vmatprep.subr.mxu0 0.0
    %4237 = vmatpush1.msra.mxu0 0.0
    %4238 = vmatprep.subr.mxu0 0.0
    %4239 = vmatpush1.msra.mxu0 0.0
    %4240 = vmatprep.subr.mxu0 0.0
    %4241 = vmatpush1.msra.mxu0 0.0
    %4242 = vmatprep.subr.mxu0 0.0
    %4243 = vmatpush1.msra.mxu0 0.0
    %4244 = vmatprep.subr.mxu0 0.0
    %4245 = vmatpush1.msra.mxu0 0.0
    %4246 = vmatprep.subr.mxu0 0.0
    %4247 = vmatpush1.msra.mxu0 0.0
    %4248 = vmatprep.subr.mxu0 0.0
    %4249 = vmatpush1.msra.mxu0 0.0
    %4250 = vmatprep.subr.mxu0 0.0
    %4251 = vmatpush1.msra.mxu0 0.0
    %4252 = vmatprep.subr.mxu0 0.0
    %4253 = vmatpush1.msra.mxu0 0.0
    %4254 = vmatprep.subr.mxu0 0.0
    %4255 = vmatpush1.msra.mxu0 0.0
    %4256 = vmatprep.subr.mxu0 0.0
    %4257 = vmatpush1.msra.mxu0 0.0
    %4258 = vmatprep.subr.mxu0 0.0
    %4259 = vmatpush1.msra.mxu0 0.0
    %4260 = vmatprep.subr.mxu0 0.0
    %4261 = vmatpush1.msra.mxu0 0.0
    %4262 = vmatprep.subr.mxu0 0.0
    %4263 = vmatpush1.msra.mxu0 0.0
    %4264 = vmatprep.mubr.f32.mxu0 0.0
    %4265 = vmatmul.mubr.f32.gmra.mrb[0].mxu0 %v4130
    %v4266 = vpop.f32.mrb[0].mxu0
    %v4267 = vadd.f32 0.0, %v4266
    %v4268 = vpop.f32.mrb[0].mxu0
    %v4269 = vadd.f32 0.0, %v4268
    %4270 = vdwg.mxu0
    %4271 = vmatprep.subr.mxu0 %v4139
    %4272 = vmatpush1.msra.mxu0 %v4138
    %4273 = vmatprep.subr.mxu0 %v4143
    %4274 = vmatpush1.msra.mxu0 %v4142
    %4275 = vmatprep.subr.mxu0 %v4147
    %4276 = vmatpush1.msra.mxu0 %v4146
    %4277 = vmatprep.subr.mxu0 %v4151
    %4278 = vmatpush1.msra.mxu0 %v4150
    %4279 = vmatprep.subr.mxu0 %v4155
    %4280 = vmatpush1.msra.mxu0 %v4154
    %4281 = vmatprep.subr.mxu0 %v4159
    %4282 = vmatpush1.msra.mxu0 %v4158
    %4283 = vmatprep.subr.mxu0 %v4163
    %4284 = vmatpush1.msra.mxu0 %v4162
    %4285 = vmatprep.subr.mxu0 %v4167
    %4286 = vmatpush1.msra.mxu0 %v4166
    %4287 = vmatprep.subr.mxu0 %v4171
    %4288 = vmatpush1.msra.mxu0 %v4170
    %4289 = vmatprep.subr.mxu0 %v4175
    %4290 = vmatpush1.msra.mxu0 %v4174
    %4291 = vmatprep.subr.mxu0 %v4179
    %4292 = vmatpush1.msra.mxu0 %v4178
    %4293 = vmatprep.subr.mxu0 %v4183
    %4294 = vmatpush1.msra.mxu0 %v4182
    %4295 = vmatprep.subr.mxu0 %v4187
    %4296 = vmatpush1.msra.mxu0 %v4186
    %4297 = vmatprep.subr.mxu0 %v4191
    %4298 = vmatpush1.msra.mxu0 %v4190
    %4299 = vmatprep.subr.mxu0 %v4195
    %4300 = vmatpush1.msra.mxu0 %v4194
    %4301 = vmatprep.subr.mxu0 %v4199
    %4302 = vmatpush1.msra.mxu0 %v4198
    %4303 = vmatprep.subr.mxu0 0.0
    %4304 = vmatpush1.msra.mxu0 0.0
    %4305 = vmatprep.subr.mxu0 0.0
    %4306 = vmatpush1.msra.mxu0 0.0
    %4307 = vmatprep.subr.mxu0 0.0
    %4308 = vmatpush1.msra.mxu0 0.0
    %4309 = vmatprep.subr.mxu0 0.0
    %4310 = vmatpush1.msra.mxu0 0.0
    %4311 = vmatprep.subr.mxu0 0.0
    %4312 = vmatpush1.msra.mxu0 0.0
    %4313 = vmatprep.subr.mxu0 0.0
    %4314 = vmatpush1.msra.mxu0 0.0
    %4315 = vmatprep.subr.mxu0 0.0
    %4316 = vmatpush1.msra.mxu0 0.0
    %4317 = vmatprep.subr.mxu0 0.0
    %4318 = vmatpush1.msra.mxu0 0.0
    %4319 = vmatprep.subr.mxu0 0.0
    %4320 = vmatpush1.msra.mxu0 0.0
    %4321 = vmatprep.subr.mxu0 0.0
    %4322 = vmatpush1.msra.mxu0 0.0
    %4323 = vmatprep.subr.mxu0 0.0
    %4324 = vmatpush1.msra.mxu0 0.0
    %4325 = vmatprep.subr.mxu0 0.0
    %4326 = vmatpush1.msra.mxu0 0.0
    %4327 = vmatprep.subr.mxu0 0.0
    %4328 = vmatpush1.msra.mxu0 0.0
    %4329 = vmatprep.subr.mxu0 0.0
    %4330 = vmatpush1.msra.mxu0 0.0
    %4331 = vmatprep.subr.mxu0 0.0
    %4332 = vmatpush1.msra.mxu0 0.0
    %4333 = vmatprep.subr.mxu0 0.0
    %4334 = vmatpush1.msra.mxu0 0.0
    %4335 = vmatprep.mubr.f32.mxu0 0.0
    %4336 = vmatmul.mubr.f32.gmra.mrb[0].mxu0 %v4130
    %v4337 = vpop.f32.mrb[0].mxu0
    %v4338 = vadd.f32 0.0, %v4337
    %v4339 = vpop.f32.mrb[0].mxu0
    %v4340 = vadd.f32 0.0, %v4339
    %4341 = vdwg.mxu0
    %v4342 = vadd.f32 %v4132, %v4267
    %v4343 = vadd.f32 %v4133, %v4269
    %v4344 = vadd.f32 %v4134, %v4338
    %v4345 = vadd.f32 %v4135, %v4340
    %v4346 = vxor.u32 %v4342, 2147483648
    %v4347 = vmul.f32 %v4346, 1.442695
    %v4348 = vpow.pop %v4347
    %v4349 = vadd.f32 %v4348, 1.0
    %v4350 = vrcp.pop %v4349
    %v4351 = vmul.f32 1.0, %v4350
    %v4352 = vxor.u32 %v4343, 2147483648
    %v4353 = vmul.f32 %v4352, 1.442695
    %v4354 = vpow.pop %v4353
    %v4355 = vadd.f32 %v4354, 1.0
    %v4356 = vrcp.pop %v4355
    %v4357 = vmul.f32 1.0, %v4356
    %v4358 = vtanh.pop %v4344
    %v4359 = vxor.u32 %v4345, 2147483648
    %v4360 = vmul.f32 %v4359, 1.442695
    %v4361 = vpow.pop %v4360
    %v4362 = vadd.f32 %v4361, 1.0
    %v4363 = vrcp.pop %v4362
    %v4364 = vmul.f32 1.0, %v4363
    %v4365 = vmul.f32 %v4357, %v4128
    %v4366 = vmul.f32 %v4351, %v4358
    %v4367 = vadd.f32 %v4365, %v4366
    %v4368 = vtanh.pop %v4367
    %v4369 = vmul.f32 %v4364, %v4368
    %4370 = vst [vmem:[%s2095] sm:$0xff] %v4369
    %v4371 = vld [vmem:[%s2097] sm:$0xff]
    %v4372 = vld [vmem:[%s2097 + $0x8] sm:$0xff]
    %v4373 = vld [vmem:[%s2097 + $0x10] sm:$0xff]
    %v4374 = vld [vmem:[%s2097 + $0x18] sm:$0xff]
    %v4375 = vld [vmem:[#allocation16] sm:$0xff]
    %v4376 = vld [vmem:[#allocation16 + $0x8] sm:$0xff]
    %v4377 = vld [vmem:[#allocation16 + $0x10] sm:$0xff]
    %v4378 = vld [vmem:[#allocation16 + $0x18] sm:$0xff]
    %v4379 = vld [vmem:[#allocation16 + $0x20] sm:$0xff]
    %v4380 = vld [vmem:[#allocation16 + $0x28] sm:$0xff]
    %v4381 = vld [vmem:[#allocation16 + $0x30] sm:$0xff]
    %v4382 = vld [vmem:[#allocation16 + $0x38] sm:$0xff]
    %v4383 = vld [vmem:[#allocation16 + $0x40] sm:$0xff]
    %v4384 = vld [vmem:[#allocation16 + $0x48] sm:$0xff]
    %v4385 = vld [vmem:[#allocation16 + $0x50] sm:$0xff]
    %v4386 = vld [vmem:[#allocation16 + $0x58] sm:$0xff]
    %v4387 = vld [vmem:[#allocation16 + $0x60] sm:$0xff]
    %v4388 = vld [vmem:[#allocation16 + $0x68] sm:$0xff]
    %v4389 = vld [vmem:[#allocation16 + $0x70] sm:$0xff]
    %v4390 = vld [vmem:[#allocation16 + $0x78] sm:$0xff]
    %v4391 = vld [vmem:[#allocation16 + $0x80] sm:$0xff]
    %v4392 = vld [vmem:[#allocation16 + $0x88] sm:$0xff]
    %v4393 = vld [vmem:[#allocation16 + $0x90] sm:$0xff]
    %v4394 = vld [vmem:[#allocation16 + $0x98] sm:$0xff]
    %v4395 = vld [vmem:[#allocation16 + $0xa0] sm:$0xff]
    %v4396 = vld [vmem:[#allocation16 + $0xa8] sm:$0xff]
    %v4397 = vld [vmem:[#allocation16 + $0xb0] sm:$0xff]
    %v4398 = vld [vmem:[#allocation16 + $0xb8] sm:$0xff]
    %v4399 = vld [vmem:[#allocation16 + $0xc0] sm:$0xff]
    %v4400 = vld [vmem:[#allocation16 + $0xc8] sm:$0xff]
    %v4401 = vld [vmem:[#allocation16 + $0xd0] sm:$0xff]
    %v4402 = vld [vmem:[#allocation16 + $0xd8] sm:$0xff]
    %v4403 = vld [vmem:[#allocation16 + $0xe0] sm:$0xff]
    %v4404 = vld [vmem:[#allocation16 + $0xe8] sm:$0xff]
    %v4405 = vld [vmem:[#allocation16 + $0xf0] sm:$0xff]
    %v4406 = vld [vmem:[#allocation16 + $0xf8] sm:$0xff]
    %v4407 = vld [vmem:[#allocation16 + $0x100] sm:$0xff]
    %v4408 = vld [vmem:[#allocation16 + $0x108] sm:$0xff]
    %v4409 = vld [vmem:[#allocation16 + $0x110] sm:$0xff]
    %v4410 = vld [vmem:[#allocation16 + $0x118] sm:$0xff]
    %v4411 = vld [vmem:[#allocation16 + $0x120] sm:$0xff]
    %v4412 = vld [vmem:[#allocation16 + $0x128] sm:$0xff]
    %v4413 = vld [vmem:[#allocation16 + $0x130] sm:$0xff]
    %v4414 = vld [vmem:[#allocation16 + $0x138] sm:$0xff]
    %v4415 = vld [vmem:[#allocation16 + $0x140] sm:$0xff]
    %v4416 = vld [vmem:[#allocation16 + $0x148] sm:$0xff]
    %v4417 = vld [vmem:[#allocation16 + $0x150] sm:$0xff]
    %v4418 = vld [vmem:[#allocation16 + $0x158] sm:$0xff]
    %v4419 = vld [vmem:[#allocation16 + $0x160] sm:$0xff]
    %v4420 = vld [vmem:[#allocation16 + $0x168] sm:$0xff]
    %v4421 = vld [vmem:[#allocation16 + $0x170] sm:$0xff]
    %v4422 = vld [vmem:[#allocation16 + $0x178] sm:$0xff]
    %v4423 = vld [vmem:[#allocation16 + $0x180] sm:$0xff]
    %v4424 = vld [vmem:[#allocation16 + $0x188] sm:$0xff]
    %v4425 = vld [vmem:[#allocation16 + $0x190] sm:$0xff]
    %v4426 = vld [vmem:[#allocation16 + $0x198] sm:$0xff]
    %v4427 = vld [vmem:[#allocation16 + $0x1a0] sm:$0xff]
    %v4428 = vld [vmem:[#allocation16 + $0x1a8] sm:$0xff]
    %v4429 = vld [vmem:[#allocation16 + $0x1b0] sm:$0xff]
    %v4430 = vld [vmem:[#allocation16 + $0x1b8] sm:$0xff]
    %v4431 = vld [vmem:[#allocation16 + $0x1c0] sm:$0xff]
    %v4432 = vld [vmem:[#allocation16 + $0x1c8] sm:$0xff]
    %v4433 = vld [vmem:[#allocation16 + $0x1d0] sm:$0xff]
    %v4434 = vld [vmem:[#allocation16 + $0x1d8] sm:$0xff]
    %v4435 = vld [vmem:[#allocation16 + $0x1e0] sm:$0xff]
    %v4436 = vld [vmem:[#allocation16 + $0x1e8] sm:$0xff]
    %v4437 = vld [vmem:[#allocation16 + $0x1f0] sm:$0xff]
    %v4438 = vld [vmem:[#allocation16 + $0x1f8] sm:$0xff]
    %4439 = vmatprep.subr.mxu0 %v4376
    %4440 = vmatpush1.msra.mxu0 %v4375
    %4441 = vmatprep.subr.mxu0 %v4380
    %4442 = vmatpush1.msra.mxu0 %v4379
    %4443 = vmatprep.subr.mxu0 %v4384
    %4444 = vmatpush1.msra.mxu0 %v4383
    %4445 = vmatprep.subr.mxu0 %v4388
    %4446 = vmatpush1.msra.mxu0 %v4387
    %4447 = vmatprep.subr.mxu0 %v4392
    %4448 = vmatpush1.msra.mxu0 %v4391
    %4449 = vmatprep.subr.mxu0 %v4396
    %4450 = vmatpush1.msra.mxu0 %v4395
    %4451 = vmatprep.subr.mxu0 %v4400
    %4452 = vmatpush1.msra.mxu0 %v4399
    %4453 = vmatprep.subr.mxu0 %v4404
    %4454 = vmatpush1.msra.mxu0 %v4403
    %4455 = vmatprep.subr.mxu0 %v4408
    %4456 = vmatpush1.msra.mxu0 %v4407
    %4457 = vmatprep.subr.mxu0 %v4412
    %4458 = vmatpush1.msra.mxu0 %v4411
    %4459 = vmatprep.subr.mxu0 %v4416
    %4460 = vmatpush1.msra.mxu0 %v4415
    %4461 = vmatprep.subr.mxu0 %v4420
    %4462 = vmatpush1.msra.mxu0 %v4419
    %4463 = vmatprep.subr.mxu0 %v4424
    %4464 = vmatpush1.msra.mxu0 %v4423
    %4465 = vmatprep.subr.mxu0 %v4428
    %4466 = vmatpush1.msra.mxu0 %v4427
    %4467 = vmatprep.subr.mxu0 %v4432
    %4468 = vmatpush1.msra.mxu0 %v4431
    %4469 = vmatprep.subr.mxu0 %v4436
    %4470 = vmatpush1.msra.mxu0 %v4435
    %4471 = vmatprep.subr.mxu0 0.0
    %4472 = vmatpush1.msra.mxu0 0.0
    %4473 = vmatprep.subr.mxu0 0.0
    %4474 = vmatpush1.msra.mxu0 0.0
    %4475 = vmatprep.subr.mxu0 0.0
    %4476 = vmatpush1.msra.mxu0 0.0
    %4477 = vmatprep.subr.mxu0 0.0
    %4478 = vmatpush1.msra.mxu0 0.0
    %4479 = vmatprep.subr.mxu0 0.0
    %4480 = vmatpush1.msra.mxu0 0.0
    %4481 = vmatprep.subr.mxu0 0.0
    %4482 = vmatpush1.msra.mxu0 0.0
    %4483 = vmatprep.subr.mxu0 0.0
    %4484 = vmatpush1.msra.mxu0 0.0
    %4485 = vmatprep.subr.mxu0 0.0
    %4486 = vmatpush1.msra.mxu0 0.0
    %4487 = vmatprep.subr.mxu0 0.0
    %4488 = vmatpush1.msra.mxu0 0.0
    %4489 = vmatprep.subr.mxu0 0.0
    %4490 = vmatpush1.msra.mxu0 0.0
    %4491 = vmatprep.subr.mxu0 0.0
    %4492 = vmatpush1.msra.mxu0 0.0
    %4493 = vmatprep.subr.mxu0 0.0
    %4494 = vmatpush1.msra.mxu0 0.0
    %4495 = vmatprep.subr.mxu0 0.0
    %4496 = vmatpush1.msra.mxu0 0.0
    %4497 = vmatprep.subr.mxu0 0.0
    %4498 = vmatpush1.msra.mxu0 0.0
    %4499 = vmatprep.subr.mxu0 0.0
    %4500 = vmatpush1.msra.mxu0 0.0
    %4501 = vmatprep.subr.mxu0 0.0
    %4502 = vmatpush1.msra.mxu0 0.0
    %4503 = vmatprep.mubr.f32.mxu0 0.0
    %4504 = vmatmul.mubr.f32.gmra.mrb[0].mxu0 %v4369
    %v4505 = vpop.f32.mrb[0].mxu0
    %v4506 = vadd.f32 0.0, %v4505
    %v4507 = vpop.f32.mrb[0].mxu0
    %v4508 = vadd.f32 0.0, %v4507
    %4509 = vdwg.mxu0
    %4510 = vmatprep.subr.mxu0 %v4378
    %4511 = vmatpush1.msra.mxu0 %v4377
    %4512 = vmatprep.subr.mxu0 %v4382
    %4513 = vmatpush1.msra.mxu0 %v4381
    %4514 = vmatprep.subr.mxu0 %v4386
    %4515 = vmatpush1.msra.mxu0 %v4385
    %4516 = vmatprep.subr.mxu0 %v4390
    %4517 = vmatpush1.msra.mxu0 %v4389
    %4518 = vmatprep.subr.mxu0 %v4394
    %4519 = vmatpush1.msra.mxu0 %v4393
    %4520 = vmatprep.subr.mxu0 %v4398
    %4521 = vmatpush1.msra.mxu0 %v4397
    %4522 = vmatprep.subr.mxu0 %v4402
    %4523 = vmatpush1.msra.mxu0 %v4401
    %4524 = vmatprep.subr.mxu0 %v4406
    %4525 = vmatpush1.msra.mxu0 %v4405
    %4526 = vmatprep.subr.mxu0 %v4410
    %4527 = vmatpush1.msra.mxu0 %v4409
    %4528 = vmatprep.subr.mxu0 %v4414
    %4529 = vmatpush1.msra.mxu0 %v4413
    %4530 = vmatprep.subr.mxu0 %v4418
    %4531 = vmatpush1.msra.mxu0 %v4417
    %4532 = vmatprep.subr.mxu0 %v4422
    %4533 = vmatpush1.msra.mxu0 %v4421
    %4534 = vmatprep.subr.mxu0 %v4426
    %4535 = vmatpush1.msra.mxu0 %v4425
    %4536 = vmatprep.subr.mxu0 %v4430
    %4537 = vmatpush1.msra.mxu0 %v4429
    %4538 = vmatprep.subr.mxu0 %v4434
    %4539 = vmatpush1.msra.mxu0 %v4433
    %4540 = vmatprep.subr.mxu0 %v4438
    %4541 = vmatpush1.msra.mxu0 %v4437
    %4542 = vmatprep.subr.mxu0 0.0
    %4543 = vmatpush1.msra.mxu0 0.0
    %4544 = vmatprep.subr.mxu0 0.0
    %4545 = vmatpush1.msra.mxu0 0.0
    %4546 = vmatprep.subr.mxu0 0.0
    %4547 = vmatpush1.msra.mxu0 0.0
    %4548 = vmatprep.subr.mxu0 0.0
    %4549 = vmatpush1.msra.mxu0 0.0
    %4550 = vmatprep.subr.mxu0 0.0
    %4551 = vmatpush1.msra.mxu0 0.0
    %4552 = vmatprep.subr.mxu0 0.0
    %4553 = vmatpush1.msra.mxu0 0.0
    %4554 = vmatprep.subr.mxu0 0.0
    %4555 = vmatpush1.msra.mxu0 0.0
    %4556 = vmatprep.subr.mxu0 0.0
    %4557 = vmatpush1.msra.mxu0 0.0
    %4558 = vmatprep.subr.mxu0 0.0
    %4559 = vmatpush1.msra.mxu0 0.0
    %4560 = vmatprep.subr.mxu0 0.0
    %4561 = vmatpush1.msra.mxu0 0.0
    %4562 = vmatprep.subr.mxu0 0.0
    %4563 = vmatpush1.msra.mxu0 0.0
    %4564 = vmatprep.subr.mxu0 0.0
    %4565 = vmatpush1.msra.mxu0 0.0
    %4566 = vmatprep.subr.mxu0 0.0
    %4567 = vmatpush1.msra.mxu0 0.0
    %4568 = vmatprep.subr.mxu0 0.0
    %4569 = vmatpush1.msra.mxu0 0.0
    %4570 = vmatprep.subr.mxu0 0.0
    %4571 = vmatpush1.msra.mxu0 0.0
    %4572 = vmatprep.subr.mxu0 0.0
    %4573 = vmatpush1.msra.mxu0 0.0
    %4574 = vmatprep.mubr.f32.mxu0 0.0
    %4575 = vmatmul.mubr.f32.gmra.mrb[0].mxu0 %v4369
    %v4576 = vpop.f32.mrb[0].mxu0
    %v4577 = vadd.f32 0.0, %v4576
    %v4578 = vpop.f32.mrb[0].mxu0
    %v4579 = vadd.f32 0.0, %v4578
    %4580 = vdwg.mxu0
    %v4581 = vadd.f32 %v4371, %v4506
    %v4582 = vadd.f32 %v4372, %v4508
    %v4583 = vadd.f32 %v4373, %v4577
    %v4584 = vadd.f32 %v4374, %v4579
    %v4585 = vxor.u32 %v4581, 2147483648
    %v4586 = vmul.f32 %v4585, 1.442695
    %v4587 = vpow.pop %v4586
    %v4588 = vadd.f32 %v4587, 1.0
    %v4589 = vrcp.pop %v4588
    %v4590 = vmul.f32 1.0, %v4589
    %v4591 = vxor.u32 %v4582, 2147483648
    %v4592 = vmul.f32 %v4591, 1.442695
    %v4593 = vpow.pop %v4592
    %v4594 = vadd.f32 %v4593, 1.0
    %v4595 = vrcp.pop %v4594
    %v4596 = vmul.f32 1.0, %v4595
    %v4597 = vtanh.pop %v4583
    %v4598 = vxor.u32 %v4584, 2147483648
    %v4599 = vmul.f32 %v4598, 1.442695
    %v4600 = vpow.pop %v4599
    %v4601 = vadd.f32 %v4600, 1.0
    %v4602 = vrcp.pop %v4601
    %v4603 = vmul.f32 1.0, %v4602
    %v4604 = vmul.f32 %v4596, %v4367
    %v4605 = vmul.f32 %v4590, %v4597
    %v4606 = vadd.f32 %v4604, %v4605
    %v4607 = vtanh.pop %v4606
    %v4608 = vmul.f32 %v4603, %v4607
    %4609 = vst [vmem:[%s2336] sm:$0xff] %v4608
    %v4610 = vld [vmem:[%s2338] sm:$0xff]
    %v4611 = vld [vmem:[%s2338 + $0x8] sm:$0xff]
    %v4612 = vld [vmem:[%s2338 + $0x10] sm:$0xff]
    %v4613 = vld [vmem:[%s2338 + $0x18] sm:$0xff]
    %v4614 = vld [vmem:[#allocation16] sm:$0xff]
    %v4615 = vld [vmem:[#allocation16 + $0x8] sm:$0xff]
    %v4616 = vld [vmem:[#allocation16 + $0x10] sm:$0xff]
    %v4617 = vld [vmem:[#allocation16 + $0x18] sm:$0xff]
    %v4618 = vld [vmem:[#allocation16 + $0x20] sm:$0xff]
    %v4619 = vld [vmem:[#allocation16 + $0x28] sm:$0xff]
    %v4620 = vld [vmem:[#allocation16 + $0x30] sm:$0xff]
    %v4621 = vld [vmem:[#allocation16 + $0x38] sm:$0xff]
    %v4622 = vld [vmem:[#allocation16 + $0x40] sm:$0xff]
    %v4623 = vld [vmem:[#allocation16 + $0x48] sm:$0xff]
    %v4624 = vld [vmem:[#allocation16 + $0x50] sm:$0xff]
    %v4625 = vld [vmem:[#allocation16 + $0x58] sm:$0xff]
    %v4626 = vld [vmem:[#allocation16 + $0x60] sm:$0xff]
    %v4627 = vld [vmem:[#allocation16 + $0x68] sm:$0xff]
    %v4628 = vld [vmem:[#allocation16 + $0x70] sm:$0xff]
    %v4629 = vld [vmem:[#allocation16 + $0x78] sm:$0xff]
    %v4630 = vld [vmem:[#allocation16 + $0x80] sm:$0xff]
    %v4631 = vld [vmem:[#allocation16 + $0x88] sm:$0xff]
    %v4632 = vld [vmem:[#allocation16 + $0x90] sm:$0xff]
    %v4633 = vld [vmem:[#allocation16 + $0x98] sm:$0xff]
    %v4634 = vld [vmem:[#allocation16 + $0xa0] sm:$0xff]
    %v4635 = vld [vmem:[#allocation16 + $0xa8] sm:$0xff]
    %v4636 = vld [vmem:[#allocation16 + $0xb0] sm:$0xff]
    %v4637 = vld [vmem:[#allocation16 + $0xb8] sm:$0xff]
    %v4638 = vld [vmem:[#allocation16 + $0xc0] sm:$0xff]
    %v4639 = vld [vmem:[#allocation16 + $0xc8] sm:$0xff]
    %v4640 = vld [vmem:[#allocation16 + $0xd0] sm:$0xff]
    %v4641 = vld [vmem:[#allocation16 + $0xd8] sm:$0xff]
    %v4642 = vld [vmem:[#allocation16 + $0xe0] sm:$0xff]
    %v4643 = vld [vmem:[#allocation16 + $0xe8] sm:$0xff]
    %v4644 = vld [vmem:[#allocation16 + $0xf0] sm:$0xff]
    %v4645 = vld [vmem:[#allocation16 + $0xf8] sm:$0xff]
    %v4646 = vld [vmem:[#allocation16 + $0x100] sm:$0xff]
    %v4647 = vld [vmem:[#allocation16 + $0x108] sm:$0xff]
    %v4648 = vld [vmem:[#allocation16 + $0x110] sm:$0xff]
    %v4649 = vld [vmem:[#allocation16 + $0x118] sm:$0xff]
    %v4650 = vld [vmem:[#allocation16 + $0x120] sm:$0xff]
    %v4651 = vld [vmem:[#allocation16 + $0x128] sm:$0xff]
    %v4652 = vld [vmem:[#allocation16 + $0x130] sm:$0xff]
    %v4653 = vld [vmem:[#allocation16 + $0x138] sm:$0xff]
    %v4654 = vld [vmem:[#allocation16 + $0x140] sm:$0xff]
    %v4655 = vld [vmem:[#allocation16 + $0x148] sm:$0xff]
    %v4656 = vld [vmem:[#allocation16 + $0x150] sm:$0xff]
    %v4657 = vld [vmem:[#allocation16 + $0x158] sm:$0xff]
    %v4658 = vld [vmem:[#allocation16 + $0x160] sm:$0xff]
    %v4659 = vld [vmem:[#allocation16 + $0x168] sm:$0xff]
    %v4660 = vld [vmem:[#allocation16 + $0x170] sm:$0xff]
    %v4661 = vld [vmem:[#allocation16 + $0x178] sm:$0xff]
    %v4662 = vld [vmem:[#allocation16 + $0x180] sm:$0xff]
    %v4663 = vld [vmem:[#allocation16 + $0x188] sm:$0xff]
    %v4664 = vld [vmem:[#allocation16 + $0x190] sm:$0xff]
    %v4665 = vld [vmem:[#allocation16 + $0x198] sm:$0xff]
    %v4666 = vld [vmem:[#allocation16 + $0x1a0] sm:$0xff]
    %v4667 = vld [vmem:[#allocation16 + $0x1a8] sm:$0xff]
    %v4668 = vld [vmem:[#allocation16 + $0x1b0] sm:$0xff]
    %v4669 = vld [vmem:[#allocation16 + $0x1b8] sm:$0xff]
    %v4670 = vld [vmem:[#allocation16 + $0x1c0] sm:$0xff]
    %v4671 = vld [vmem:[#allocation16 + $0x1c8] sm:$0xff]
    %v4672 = vld [vmem:[#allocation16 + $0x1d0] sm:$0xff]
    %v4673 = vld [vmem:[#allocation16 + $0x1d8] sm:$0xff]
    %v4674 = vld [vmem:[#allocation16 + $0x1e0] sm:$0xff]
    %v4675 = vld [vmem:[#allocation16 + $0x1e8] sm:$0xff]
    %v4676 = vld [vmem:[#allocation16 + $0x1f0] sm:$0xff]
    %v4677 = vld [vmem:[#allocation16 + $0x1f8] sm:$0xff]
    %4678 = vmatprep.subr.mxu0 %v4615
    %4679 = vmatpush1.msra.mxu0 %v4614
    %4680 = vmatprep.subr.mxu0 %v4619
    %4681 = vmatpush1.msra.mxu0 %v4618
    %4682 = vmatprep.subr.mxu0 %v4623
    %4683 = vmatpush1.msra.mxu0 %v4622
    %4684 = vmatprep.subr.mxu0 %v4627
    %4685 = vmatpush1.msra.mxu0 %v4626
    %4686 = vmatprep.subr.mxu0 %v4631
    %4687 = vmatpush1.msra.mxu0 %v4630
    %4688 = vmatprep.subr.mxu0 %v4635
    %4689 = vmatpush1.msra.mxu0 %v4634
    %4690 = vmatprep.subr.mxu0 %v4639
    %4691 = vmatpush1.msra.mxu0 %v4638
    %4692 = vmatprep.subr.mxu0 %v4643
    %4693 = vmatpush1.msra.mxu0 %v4642
    %4694 = vmatprep.subr.mxu0 %v4647
    %4695 = vmatpush1.msra.mxu0 %v4646
    %4696 = vmatprep.subr.mxu0 %v4651
    %4697 = vmatpush1.msra.mxu0 %v4650
    %4698 = vmatprep.subr.mxu0 %v4655
    %4699 = vmatpush1.msra.mxu0 %v4654
    %4700 = vmatprep.subr.mxu0 %v4659
    %4701 = vmatpush1.msra.mxu0 %v4658
    %4702 = vmatprep.subr.mxu0 %v4663
    %4703 = vmatpush1.msra.mxu0 %v4662
    %4704 = vmatprep.subr.mxu0 %v4667
    %4705 = vmatpush1.msra.mxu0 %v4666
    %4706 = vmatprep.subr.mxu0 %v4671
    %4707 = vmatpush1.msra.mxu0 %v4670
    %4708 = vmatprep.subr.mxu0 %v4675
    %4709 = vmatpush1.msra.mxu0 %v4674
    %4710 = vmatprep.subr.mxu0 0.0
    %4711 = vmatpush1.msra.mxu0 0.0
    %4712 = vmatprep.subr.mxu0 0.0
    %4713 = vmatpush1.msra.mxu0 0.0
    %4714 = vmatprep.subr.mxu0 0.0
    %4715 = vmatpush1.msra.mxu0 0.0
    %4716 = vmatprep.subr.mxu0 0.0
    %4717 = vmatpush1.msra.mxu0 0.0
    %4718 = vmatprep.subr.mxu0 0.0
    %4719 = vmatpush1.msra.mxu0 0.0
    %4720 = vmatprep.subr.mxu0 0.0
    %4721 = vmatpush1.msra.mxu0 0.0
    %4722 = vmatprep.subr.mxu0 0.0
    %4723 = vmatpush1.msra.mxu0 0.0
    %4724 = vmatprep.subr.mxu0 0.0
    %4725 = vmatpush1.msra.mxu0 0.0
    %4726 = vmatprep.subr.mxu0 0.0
    %4727 = vmatpush1.msra.mxu0 0.0
    %4728 = vmatprep.subr.mxu0 0.0
    %4729 = vmatpush1.msra.mxu0 0.0
    %4730 = vmatprep.subr.mxu0 0.0
    %4731 = vmatpush1.msra.mxu0 0.0
    %4732 = vmatprep.subr.mxu0 0.0
    %4733 = vmatpush1.msra.mxu0 0.0
    %4734 = vmatprep.subr.mxu0 0.0
    %4735 = vmatpush1.msra.mxu0 0.0
    %4736 = vmatprep.subr.mxu0 0.0
    %4737 = vmatpush1.msra.mxu0 0.0
    %4738 = vmatprep.subr.mxu0 0.0
    %4739 = vmatpush1.msra.mxu0 0.0
    %4740 = vmatprep.subr.mxu0 0.0
    %4741 = vmatpush1.msra.mxu0 0.0
    %4742 = vmatprep.mubr.f32.mxu0 0.0
    %4743 = vmatmul.mubr.f32.gmra.mrb[0].mxu0 %v4608
    %v4744 = vpop.f32.mrb[0].mxu0
    %v4745 = vadd.f32 0.0, %v4744
    %v4746 = vpop.f32.mrb[0].mxu0
    %v4747 = vadd.f32 0.0, %v4746
    %4748 = vdwg.mxu0
    %4749 = vmatprep.subr.mxu0 %v4617
    %4750 = vmatpush1.msra.mxu0 %v4616
    %4751 = vmatprep.subr.mxu0 %v4621
    %4752 = vmatpush1.msra.mxu0 %v4620
    %4753 = vmatprep.subr.mxu0 %v4625
    %4754 = vmatpush1.msra.mxu0 %v4624
    %4755 = vmatprep.subr.mxu0 %v4629
    %4756 = vmatpush1.msra.mxu0 %v4628
    %4757 = vmatprep.subr.mxu0 %v4633
    %4758 = vmatpush1.msra.mxu0 %v4632
    %4759 = vmatprep.subr.mxu0 %v4637
    %4760 = vmatpush1.msra.mxu0 %v4636
    %4761 = vmatprep.subr.mxu0 %v4641
    %4762 = vmatpush1.msra.mxu0 %v4640
    %4763 = vmatprep.subr.mxu0 %v4645
    %4764 = vmatpush1.msra.mxu0 %v4644
    %4765 = vmatprep.subr.mxu0 %v4649
    %4766 = vmatpush1.msra.mxu0 %v4648
    %4767 = vmatprep.subr.mxu0 %v4653
    %4768 = vmatpush1.msra.mxu0 %v4652
    %4769 = vmatprep.subr.mxu0 %v4657
    %4770 = vmatpush1.msra.mxu0 %v4656
    %4771 = vmatprep.subr.mxu0 %v4661
    %4772 = vmatpush1.msra.mxu0 %v4660
    %4773 = vmatprep.subr.mxu0 %v4665
    %4774 = vmatpush1.msra.mxu0 %v4664
    %4775 = vmatprep.subr.mxu0 %v4669
    %4776 = vmatpush1.msra.mxu0 %v4668
    %4777 = vmatprep.subr.mxu0 %v4673
    %4778 = vmatpush1.msra.mxu0 %v4672
    %4779 = vmatprep.subr.mxu0 %v4677
    %4780 = vmatpush1.msra.mxu0 %v4676
    %4781 = vmatprep.subr.mxu0 0.0
    %4782 = vmatpush1.msra.mxu0 0.0
    %4783 = vmatprep.subr.mxu0 0.0
    %4784 = vmatpush1.msra.mxu0 0.0
    %4785 = vmatprep.subr.mxu0 0.0
    %4786 = vmatpush1.msra.mxu0 0.0
    %4787 = vmatprep.subr.mxu0 0.0
    %4788 = vmatpush1.msra.mxu0 0.0
    %4789 = vmatprep.subr.mxu0 0.0
    %4790 = vmatpush1.msra.mxu0 0.0
    %4791 = vmatprep.subr.mxu0 0.0
    %4792 = vmatpush1.msra.mxu0 0.0
    %4793 = vmatprep.subr.mxu0 0.0
    %4794 = vmatpush1.msra.mxu0 0.0
    %4795 = vmatprep.subr.mxu0 0.0
    %4796 = vmatpush1.msra.mxu0 0.0
    %4797 = vmatprep.subr.mxu0 0.0
    %4798 = vmatpush1.msra.mxu0 0.0
    %4799 = vmatprep.subr.mxu0 0.0
    %4800 = vmatpush1.msra.mxu0 0.0
    %4801 = vmatprep.subr.mxu0 0.0
    %4802 = vmatpush1.msra.mxu0 0.0
    %4803 = vmatprep.subr.mxu0 0.0
    %4804 = vmatpush1.msra.mxu0 0.0
    %4805 = vmatprep.subr.mxu0 0.0
    %4806 = vmatpush1.msra.mxu0 0.0
    %4807 = vmatprep.subr.mxu0 0.0
    %4808 = vmatpush1.msra.mxu0 0.0
    %4809 = vmatprep.subr.mxu0 0.0
    %4810 = vmatpush1.msra.mxu0 0.0
    %4811 = vmatprep.subr.mxu0 0.0
    %4812 = vmatpush1.msra.mxu0 0.0
    %4813 = vmatprep.mubr.f32.mxu0 0.0
    %4814 = vmatmul.mubr.f32.gmra.mrb[0].mxu0 %v4608
    %v4815 = vpop.f32.mrb[0].mxu0
    %v4816 = vadd.f32 0.0, %v4815
    %v4817 = vpop.f32.mrb[0].mxu0
    %v4818 = vadd.f32 0.0, %v4817
    %4819 = vdwg.mxu0
    %v4820 = vadd.f32 %v4610, %v4745
    %v4821 = vadd.f32 %v4611, %v4747
    %v4822 = vadd.f32 %v4612, %v4816
    %v4823 = vadd.f32 %v4613, %v4818
    %v4824 = vxor.u32 %v4820, 2147483648
    %v4825 = vmul.f32 %v4824, 1.442695
    %v4826 = vpow.pop %v4825
    %v4827 = vadd.f32 %v4826, 1.0
    %v4828 = vrcp.pop %v4827
    %v4829 = vmul.f32 1.0, %v4828
    %v4830 = vxor.u32 %v4821, 2147483648
    %v4831 = vmul.f32 %v4830, 1.442695
    %v4832 = vpow.pop %v4831
    %v4833 = vadd.f32 %v4832, 1.0
    %v4834 = vrcp.pop %v4833
    %v4835 = vmul.f32 1.0, %v4834
    %v4836 = vtanh.pop %v4822
    %v4837 = vxor.u32 %v4823, 2147483648
    %v4838 = vmul.f32 %v4837, 1.442695
    %v4839 = vpow.pop %v4838
    %v4840 = vadd.f32 %v4839, 1.0
    %v4841 = vrcp.pop %v4840
    %v4842 = vmul.f32 1.0, %v4841
    %v4843 = vmul.f32 %v4835, %v4606
    %v4844 = vmul.f32 %v4829, %v4836
    %v4845 = vadd.f32 %v4843, %v4844
    %v4846 = vtanh.pop %v4845
    %v4847 = vmul.f32 %v4842, %v4846
    %4848 = vst [vmem:[%s2577] sm:$0xff] %v4847
    %s4849 = scalar_lea.vmem [#allocation20], 8
    %4850 = vst [vmem:[%s4849] sm:$0xff] %v4847
    %s4851 = scalar_lea.vmem [#allocation22], 8
    %4852 = vst [vmem:[%s4851] sm:$0xff] %v4845
    %v4853 = vld [vmem:[#allocation3] sm:$0xff]
    %v4854 = vld [vmem:[#allocation3 + $0x8] sm:$0xff]
    %v4855 = vld [vmem:[#allocation3 + $0x10] sm:$0xff]
    %v4856 = vld [vmem:[#allocation3 + $0x18] sm:$0xff]
    %v4857 = vld [vmem:[#allocation3 + $0x20] sm:$0xff]
    %v4858 = vld [vmem:[#allocation3 + $0x28] sm:$0xff]
    %v4859 = vld [vmem:[#allocation3 + $0x30] sm:$0xff]
    %v4860 = vld [vmem:[#allocation3 + $0x38] sm:$0xff]
    %v4861 = vld [vmem:[#allocation18] sm:$0xff]
    %v4862 = vld [vmem:[#allocation18 + $0x8] sm:$0xff]
    %v4863 = vld [vmem:[#allocation18 + $0x10] sm:$0xff]
    %v4864 = vld [vmem:[#allocation18 + $0x18] sm:$0xff]
    %v4865 = vld [vmem:[#allocation18 + $0x20] sm:$0xff]
    %v4866 = vld [vmem:[#allocation18 + $0x28] sm:$0xff]
    %v4867 = vld [vmem:[#allocation18 + $0x30] sm:$0xff]
    %v4868 = vld [vmem:[#allocation18 + $0x38] sm:$0xff]
    %v4869 = vld [vmem:[#allocation18 + $0x40] sm:$0xff]
    %v4870 = vld [vmem:[#allocation18 + $0x48] sm:$0xff]
    %v4871 = vld [vmem:[#allocation18 + $0x50] sm:$0xff]
    %v4872 = vld [vmem:[#allocation18 + $0x58] sm:$0xff]
    %v4873 = vld [vmem:[#allocation18 + $0x60] sm:$0xff]
    %v4874 = vld [vmem:[#allocation18 + $0x68] sm:$0xff]
    %v4875 = vld [vmem:[#allocation18 + $0x70] sm:$0xff]
    %v4876 = vld [vmem:[#allocation18 + $0x78] sm:$0xff]
    %v4877 = vld [vmem:[%s12] sm:$0x1]
    %v4879 = vlaneseq
    %v4880 = vshrl.u32 %v4879, 7
    %v4881 = vsub.s32 0, %v4880
    %v4882 = vrot.slane %v4877, %v4881
    %4884 = vmatprep.subr.mxu0 0.0
    %4885 = vmatpush1.msra.mxu0 %v4861
    %4886 = vmatprep.subr.mxu0 0.0
    %4887 = vmatpush1.msra.mxu0 %v4862
    %4888 = vmatprep.subr.mxu0 0.0
    %4889 = vmatpush1.msra.mxu0 %v4863
    %4890 = vmatprep.subr.mxu0 0.0
    %4891 = vmatpush1.msra.mxu0 %v4864
    %4892 = vmatprep.subr.mxu0 0.0
    %4893 = vmatpush1.msra.mxu0 %v4865
    %4894 = vmatprep.subr.mxu0 0.0
    %4895 = vmatpush1.msra.mxu0 %v4866
    %4896 = vmatprep.subr.mxu0 0.0
    %4897 = vmatpush1.msra.mxu0 %v4867
    %4898 = vmatprep.subr.mxu0 0.0
    %4899 = vmatpush1.msra.mxu0 %v4868
    %4900 = vmatprep.subr.mxu0 0.0
    %4901 = vmatpush1.msra.mxu0 %v4869
    %4902 = vmatprep.subr.mxu0 0.0
    %4903 = vmatpush1.msra.mxu0 %v4870
    %4904 = vmatprep.subr.mxu0 0.0
    %4905 = vmatpush1.msra.mxu0 %v4871
    %4906 = vmatprep.subr.mxu0 0.0
    %4907 = vmatpush1.msra.mxu0 %v4872
    %4908 = vmatprep.subr.mxu0 0.0
    %4909 = vmatpush1.msra.mxu0 %v4873
    %4910 = vmatprep.subr.mxu0 0.0
    %4911 = vmatpush1.msra.mxu0 %v4874
    %4912 = vmatprep.subr.mxu0 0.0
    %4913 = vmatpush1.msra.mxu0 %v4875
    %4914 = vmatprep.subr.mxu0 0.0
    %4915 = vmatpush1.msra.mxu0 %v4876
    %4916 = vmatprep.subr.mxu0 0.0
    %4917 = vmatpush1.msra.mxu0 0.0
    %4918 = vmatprep.subr.mxu0 0.0
    %4919 = vmatpush1.msra.mxu0 0.0
    %4920 = vmatprep.subr.mxu0 0.0
    %4921 = vmatpush1.msra.mxu0 0.0
    %4922 = vmatprep.subr.mxu0 0.0
    %4923 = vmatpush1.msra.mxu0 0.0
    %4924 = vmatprep.subr.mxu0 0.0
    %4925 = vmatpush1.msra.mxu0 0.0
    %4926 = vmatprep.subr.mxu0 0.0
    %4927 = vmatpush1.msra.mxu0 0.0
    %4928 = vmatprep.subr.mxu0 0.0
    %4929 = vmatpush1.msra.mxu0 0.0
    %4930 = vmatprep.subr.mxu0 0.0
    %4931 = vmatpush1.msra.mxu0 0.0
    %4932 = vmatprep.subr.mxu0 0.0
    %4933 = vmatpush1.msra.mxu0 0.0
    %4934 = vmatprep.subr.mxu0 0.0
    %4935 = vmatpush1.msra.mxu0 0.0
    %4936 = vmatprep.subr.mxu0 0.0
    %4937 = vmatpush1.msra.mxu0 0.0
    %4938 = vmatprep.subr.mxu0 0.0
    %4939 = vmatpush1.msra.mxu0 0.0
    %4940 = vmatprep.subr.mxu0 0.0
    %4941 = vmatpush1.msra.mxu0 0.0
    %4942 = vmatprep.subr.mxu0 0.0
    %4943 = vmatpush1.msra.mxu0 0.0
    %4944 = vmatprep.subr.mxu0 0.0
    %4945 = vmatpush1.msra.mxu0 0.0
    %4946 = vmatprep.subr.mxu0 0.0
    %4947 = vmatpush1.msra.mxu0 0.0
    %4948 = vmatprep.mubr.f32.mxu0 0.0
    %4949 = vmatmul.mubr.f32.gmra.mrb[0].mxu0 %v4853
    %v4950 = vpop.f32.mrb[0].mxu0
    %v4951 = vadd.f32 %v4882, %v4950
    %v4952 = vpop.f32.mrb[0].mxu0
    %4953 = vmatprep.mubr.f32.mxu0 0.0
    %4954 = vmatmul.mubr.f32.gmra.mrb[0].mxu0 %v4854
    %v4955 = vpop.f32.mrb[0].mxu0
    %v4956 = vadd.f32 %v4882, %v4955
    %v4957 = vpop.f32.mrb[0].mxu0
    %4958 = vmatprep.mubr.f32.mxu0 0.0
    %4959 = vmatmul.mubr.f32.gmra.mrb[0].mxu0 %v4855
    %v4960 = vpop.f32.mrb[0].mxu0
    %v4961 = vadd.f32 %v4882, %v4960
    %v4962 = vpop.f32.mrb[0].mxu0
    %4963 = vmatprep.mubr.f32.mxu0 0.0
    %4964 = vmatmul.mubr.f32.gmra.mrb[0].mxu0 %v4856
    %v4965 = vpop.f32.mrb[0].mxu0
    %v4966 = vadd.f32 %v4882, %v4965
    %v4967 = vpop.f32.mrb[0].mxu0
    %4968 = vmatprep.mubr.f32.mxu0 0.0
    %4969 = vmatmul.mubr.f32.gmra.mrb[0].mxu0 %v4857
    %v4970 = vpop.f32.mrb[0].mxu0
    %v4971 = vadd.f32 %v4882, %v4970
    %v4972 = vpop.f32.mrb[0].mxu0
    %4973 = vmatprep.mubr.f32.mxu0 0.0
    %4974 = vmatmul.mubr.f32.gmra.mrb[0].mxu0 %v4858
    %v4975 = vpop.f32.mrb[0].mxu0
    %v4976 = vadd.f32 %v4882, %v4975
    %v4977 = vpop.f32.mrb[0].mxu0
    %4978 = vmatprep.mubr.f32.mxu0 0.0
    %4979 = vmatmul.mubr.f32.gmra.mrb[0].mxu0 %v4859
    %v4980 = vpop.f32.mrb[0].mxu0
    %v4981 = vadd.f32 %v4882, %v4980
    %v4982 = vpop.f32.mrb[0].mxu0
    %4983 = vmatprep.mubr.f32.mxu0 0.0
    %4984 = vmatmul.mubr.f32.gmra.mrb[0].mxu0 %v4860
    %v4985 = vpop.f32.mrb[0].mxu0
    %v4986 = vadd.f32 %v4882, %v4985
    %v4987 = vpop.f32.mrb[0].mxu0
    %4988 = vdwg.mxu0
    %4989 = vst [vmem:[#allocation19] sm:$0xff] %v4951
    %4990 = vst [vmem:[#allocation19 + $0x8] sm:$0xff] %v4956
    %4991 = vst [vmem:[#allocation19 + $0x10] sm:$0xff] %v4961
    %4992 = vst [vmem:[#allocation19 + $0x18] sm:$0xff] %v4966
    %4993 = vst [vmem:[#allocation19 + $0x20] sm:$0xff] %v4971
    %4994 = vst [vmem:[#allocation19 + $0x28] sm:$0xff] %v4976
    %4995 = vst [vmem:[#allocation19 + $0x30] sm:$0xff] %v4981
    %4996 = vst [vmem:[#allocation19 + $0x38] sm:$0xff] %v4986
    // Predicated region
    $region90: #{tpu_custom_call.1} parent=1 // pred_check
      _
    $region91: #{tpu_custom_call.1} parent=1 // pred_check_branch
      %4998 = sbr.rel (0) target = $region93
    $region92: #{tpu_custom_call.1} parent=1 // pred_region
      %s5000 = ssub.s32 1024, 1024
      %5001 = vsyncadd [#allocation6], %s5000
      %s5002 = sshll.u32 [#allocation19], 4
      %s5003 = int_to_ptr.vmem [resolvable:$true] %s5002
      %5008 = dma.vmem_to_hbm [thread:$0]  %s5003, 1024, %s13, [#allocation6], 128, 128, 8
    $region93: #{tpu_custom_call.1} parent=1 // pred_fallthru
      _
    // Predicated region
    $region94: #{tpu_custom_call.1} parent=1 // pred_check
      _
    $region95: #{tpu_custom_call.1} parent=1 // pred_check_branch
      %5010 = sbr.rel (0) target = $region97
    $region96: #{tpu_custom_call.1} parent=1 // pred_region
      %s5012 = ssub.s32 256, 256
      %5013 = vsyncadd [#allocation21], %s5012
      %s5014 = sshll.u32 [#allocation20], 4
      %s5015 = int_to_ptr.vmem [resolvable:$true] %s5014
      %5020 = dma.vmem_to_hbm [thread:$0]  %s5015, 256, %s14, [#allocation21], 128, 128, 8
    $region97: #{tpu_custom_call.1} parent=1 // pred_fallthru
      _
    // Predicated region
    $region98: #{tpu_custom_call.1} parent=1 // pred_check
      _
    $region99: #{tpu_custom_call.1} parent=1 // pred_check_branch
      %5022 = sbr.rel (0) target = $region101
    $region100: #{tpu_custom_call.1} parent=1 // pred_region
      %s5024 = ssub.s32 256, 256
      %5025 = vsyncadd [#allocation21], %s5024
      %s5026 = sshll.u32 [#allocation22], 4
      %s5027 = int_to_ptr.vmem [resolvable:$true] %s5026
      %5032 = dma.vmem_to_hbm [thread:$0]  %s5027, 256, %s15, [#allocation21], 128, 128, 8
    $region101: #{tpu_custom_call.1} parent=1 // pred_fallthru
      _
    // Predicated region
    $region102: #{tpu_custom_call.1} parent=1 // pred_check
      _
    $region103: #{tpu_custom_call.1} parent=1 // pred_check_branch
      %5034 = sbr.rel (0) target = $region105
    $region104: #{tpu_custom_call.1} parent=1 // pred_region
      %5035 = dma.done [#allocation6], 1024
    $region105: #{tpu_custom_call.1} parent=1 // pred_fallthru
      _
    // Predicated region
    $region106: #{tpu_custom_call.1} parent=1 // pred_check
      _
    $region107: #{tpu_custom_call.1} parent=1 // pred_check_branch
      %5037 = sbr.rel (0) target = $region109
    $region108: #{tpu_custom_call.1} parent=1 // pred_region
      %5038 = dma.done [#allocation21], 256
    $region109: #{tpu_custom_call.1} parent=1 // pred_fallthru
      _
    // Predicated region
    $region110: #{tpu_custom_call.1} parent=1 // pred_check
      _
    $region111: #{tpu_custom_call.1} parent=1 // pred_check_branch
      %5040 = sbr.rel (0) target = $region113
    $region112: #{tpu_custom_call.1} parent=1 // pred_region
      %5041 = dma.done [#allocation21], 256
    $region113: #{tpu_custom_call.1} parent=1 // pred_fallthru
      _
    %5042 = vsyncpa [#allocation5], 1
    %5043 = vsyncpa [#allocation8], 1
    %5044 = vsyncpa [#allocation11], 1
    %5045 = vsyncpa [#allocation14], 1
    %5046 = vsyncpa [#allocation17], 1
    %5047 = vsyncpa [#allocation6], 1
    %5048 = vsyncpa [#allocation21], 1

</llo_original>
